<compile_context>
chip_gen: v7x
topology: tpu7x:2x2x1
jax: 0.10.0
libtpu: 0.0.40
codegen_flags: <defaults>
</compile_context>

<pallas_src>
import math

import jax
import jax.numpy as jnp
from jax.experimental import pallas as pl
from jax.experimental.pallas import tpu as pltpu

WINDOW = 512
HOP = 256
N_FREQ = WINDOW // 2 + 1          # 257
N_FREQ_PAD = 384                  # 3*128 -> lane-dense internal layout
N_FRAMES = 64
N_SAMPLES = N_FRAMES * HOP        # 16384  (view(-1, 64, 257) fixes this)
CH = 128
N_BLOCKS = 6
LEAK = 0.2
EPS = 1e-12

BF16 = jnp.bfloat16
F32 = jnp.float32

PARAM_ORDER = ("wrwi", "w0", "b0", "w1", "b1",
               "wqkv", "bqkv", "wo", "bo",
               "wf1", "bf1", "wf2", "bf2", "wu", "bu")


def _leaky(x):
    return jnp.where(x > 0, x, LEAK * x)


# --------------------------------------------------------------------------
# Single fused kernel: STFT (fused re|im rDFT matmul) + log-magnitude +
# embedding MLP + 6 MetaFormer blocks + last-token slice + up-projection.
# One grid step processes a block of `sb` sequences (sb*64 frames).
# --------------------------------------------------------------------------

def encoder_kernel(fr_ref, wrwi_ref, w0_ref, b0_ref, w1_ref, b1_ref,
                   wqkv_ref, bqkv_ref, wo_ref, bo_ref,
                   wf1_ref, bf1_ref, wf2_ref, bf2_ref,
                   wu_ref, bu_ref, out_ref):
    rows = fr_ref.shape[0]                    # sb * 64
    B = rows // N_FRAMES                      # sequences in this block
    T = N_FRAMES
    C = CH
    scale = 1.0 / math.sqrt(C)

    # ---- STFT: one MXU pass over the frames for real|imag ----------------
    fr = fr_ref[...].astype(BF16)
    reim = jnp.dot(fr, wrwi_ref[...], preferred_element_type=F32)   # (rows,768)
    re = reim[:, :N_FREQ_PAD]
    im = reim[:, N_FREQ_PAD:]
    # 0.5*log(re^2+im^2+eps^2) ~= log(|X|+eps): one EUP op instead of sqrt+log.
    # Padded freq lanes give exactly log(eps) (finite); the matching rows of
    # w0 are exactly zero (also after the bf16 cast) so they contribute 0.
    spec = 0.5 * jnp.log(re * re + im * im + EPS * EPS)             # f32

    # ---- embedding: LinearOutputStack(128, 2, in_channels=257) -----------
    h = _leaky(jnp.dot(spec.astype(BF16), w0_ref[...],
                       preferred_element_type=F32) + b0_ref[...])
    x = jnp.dot(h.astype(BF16), w1_ref[...],
                preferred_element_type=F32) + b1_ref[...]           # (rows,C) f32

    # ---- 6 MetaFormer blocks (AttnMixer, identity norm), weights resident --
    # TODO(synk): convert to lax.fori_loop + dynamic wqkv_ref[blk] indexing if
    # a bundle dump ever shows spill vld/vst from this static unroll.
    for blk in range(N_BLOCKS):
        qkv = jnp.dot(x.astype(BF16), wqkv_ref[blk],
                      preferred_element_type=F32) + bqkv_ref[blk]   # (rows,3C)
        q = qkv[:, 0 * C:1 * C].reshape(B, T, C)
        k = qkv[:, 1 * C:2 * C].reshape(B, T, C)
        v = qkv[:, 2 * C:3 * C].reshape(B, T, C)

        # attention (contract minor dims; no explicit transpose in source)
        s = jnp.einsum('bqd,bkd->bqk', q.astype(BF16), k.astype(BF16),
                       preferred_element_type=F32) * scale
        s = s - jnp.max(s, axis=-1, keepdims=True)
        p = jnp.exp(s)
        p = p * pl.reciprocal(jnp.sum(p, axis=-1, keepdims=True), approx=True)
        a = jnp.einsum('bqk,bkd->bqd', p.astype(BF16), v.astype(BF16),
                       preferred_element_type=F32).reshape(rows, C)
        o = jnp.dot(a.astype(BF16), wo_ref[blk],
                    preferred_element_type=F32) + bo_ref[blk]

        y = x + o                                   # residual, identity norm
        hh = _leaky(jnp.dot(y.astype(BF16), wf1_ref[blk],
                            preferred_element_type=F32) + bf1_ref[blk])
        f = jnp.dot(hh.astype(BF16), wf2_ref[blk],
                    preferred_element_type=F32) + bf2_ref[blk]
        x = y + f

    # ---- epilogue: last token per sequence, then up = Linear(128, 128) ----
    last = x.reshape(B, T, C)[:, T - 1, :]          # (B, C)
    out = jnp.dot(last.astype(BF16), wu_ref[...],
                  preferred_element_type=F32) + bu_ref[...]
    out_ref[...] = out.reshape(1, B, C)


def _fixed_spec(shape):
    n = len(shape)
    return pl.BlockSpec(shape, lambda i, n=n: (0,) * n)


def _pick_seq_block(b):
    # Biggest block of sequences (MXU fill) while keeping >= 2 grid steps
    # (megacore / v7x) when the batch allows it.
    for sb in (8, 4, 2):
        if b % sb == 0 and b // sb >= 2:
            return sb
    return 1


def _cost_estimate(b, params):
    t, c, f = N_FRAMES, CH, N_FREQ_PAD
    per_seq = (2 * t * WINDOW * (2 * f)                    # fused rDFT
               + 2 * t * (f * c + c * c)                   # embedding
               + N_BLOCKS * (2 * t * c * 3 * c             # qkv
                             + 2 * t * t * c * 2           # scores + p@v
                             + 2 * t * c * c               # out proj
                             + 2 * 2 * t * c * c)          # mlp
               + 2 * c * c)                                # head
    trans = b * (t * f + N_BLOCKS * (t * t + t))           # log + exp + recip
    wbytes = sum(int(params[k].size) * params[k].dtype.itemsize
                 for k in PARAM_ORDER)
    bytes_acc = b * t * WINDOW * 4 + wbytes + b * c * 4
    return pl.CostEstimate(flops=b * per_seq, transcendentals=trans,
                           bytes_accessed=bytes_acc)


def encoder_pallas(frames2d, params):
    bt = frames2d.shape[0]
    b = bt // N_FRAMES
    sb = _pick_seq_block(b)
    g = b // sb
    rows = sb * N_FRAMES

    weights = [params[k] for k in PARAM_ORDER]
    out = pl.pallas_call(
        encoder_kernel,
        out_shape=jax.ShapeDtypeStruct((g, sb, CH), jnp.float32),
        grid=(g,),
        in_specs=[pl.BlockSpec((rows, WINDOW), lambda i: (i, 0))]
                 + [_fixed_spec(w.shape) for w in weights],
        out_specs=pl.BlockSpec((1, sb, CH), lambda i: (i, 0, 0)),
        compiler_params=pltpu.CompilerParams(
            dimension_semantics=("parallel",),
            vmem_limit_bytes=32 * 1024 * 1024),
        cost_estimate=_cost_estimate(b, params),
    )(frames2d, *weights)
    return out.reshape(b, CH)


# --------------------------------------------------------------------------
# JAX glue: framing / window / DFT basis / parameters
# --------------------------------------------------------------------------

def frame_and_window(audio, hann):
    # audio: (B, 1, N) -> windowed frames (B*64, 512); pad=True appends HOP
    # zeros.  50%-overlap frames built with reshape + concat (no gather).
    b = audio.shape[0]
    x = audio.reshape(b, -1)
    x = jnp.pad(x, ((0, 0), (0, HOP)))                          # (B, 65*256)
    chunks = x.reshape(b, N_FRAMES + 1, HOP)                    # (B, 65, 256)
    frames = jnp.concatenate([chunks[:, :N_FRAMES, :], chunks[:, 1:, :]],
                             axis=-1)                           # (B, 64, 512)
    return (frames * hann).reshape(b * N_FRAMES, WINDOW)


def make_constants():
    # Precomputed once: periodic Hann window and padded, fused rDFT basis.
    n = jnp.arange(WINDOW, dtype=jnp.float32)
    hann = 0.5 - 0.5 * jnp.cos(2.0 * jnp.pi * n / WINDOW)
    k = jnp.arange(N_FREQ, dtype=jnp.float32)
    ang = 2.0 * jnp.pi * n[:, None] * k[None, :] / WINDOW
    pad = ((0, 0), (0, N_FREQ_PAD - N_FREQ))
    wr = jnp.pad(jnp.cos(ang), pad)                             # (512, 384)
    wi = jnp.pad(-jnp.sin(ang), pad)                            # (512, 384)
    wrwi = jnp.concatenate([wr, wi], axis=1).astype(BF16)       # (512, 768)
    return hann, wrwi


def _linear_params(key, fan_in, fan_out):
    # deterministic, PyTorch-style uniform(-1/sqrt(fan_in), 1/sqrt(fan_in))
    kw, kb = jax.random.split(key)
    bound = 1.0 / math.sqrt(fan_in)
    w = jax.random.uniform(kw, (fan_in, fan_out), jnp.float32, -bound, bound)
    b = jax.random.uniform(kb, (1, fan_out), jnp.float32, -bound, bound)
    return w, b


def make_params(key, wrwi):
    keys = jax.random.split(key, 3 + N_BLOCKS)
    # LinearOutputStack(128, 2, in_channels=257): 257->128, LeakyReLU, 128->128
    w0, b0 = _linear_params(keys[0], N_FREQ, CH)
    w1, b1 = _linear_params(keys[1], CH, CH)
    w0p = jnp.pad(w0, ((0, N_FREQ_PAD - N_FREQ), (0, 0)))       # zero pad rows

    wqkv, bqkv, wo, bo, wf1, bf1, wf2, bf2 = ([] for _ in range(8))
    for i in range(N_BLOCKS):
        bkeys = jax.random.split(keys[2 + i], 6)
        (wq, bq), (wk, bk), (wv, bv), (wo_i, bo_i), (w1_i, b1_i), (w2_i, b2_i) = \
            [_linear_params(k, CH, CH) for k in bkeys]
        wqkv.append(jnp.concatenate([wq, wk, wv], axis=1))      # (128, 384)
        bqkv.append(jnp.concatenate([bq, bk, bv], axis=1))      # (1, 384)
        wo.append(wo_i); bo.append(bo_i)
        wf1.append(w1_i); bf1.append(b1_i)
        wf2.append(w2_i); bf2.append(b2_i)
    wu, bu = _linear_params(keys[2 + N_BLOCKS], CH, CH)

    stack = lambda xs: jnp.stack(xs, axis=0)
    # Weights (matmul RHS) in bf16 for the MXU; biases stay f32 (added to the
    # f32 accumulator outputs).
    return {"wrwi": wrwi,
            "w0": w0p.astype(BF16), "b0": b0,
            "w1": w1.astype(BF16), "b1": b1,
            "wqkv": stack(wqkv).astype(BF16), "bqkv": stack(bqkv),
            "wo": stack(wo).astype(BF16), "bo": stack(bo),
            "wf1": stack(wf1).astype(BF16), "bf1": stack(bf1),
            "wf2": stack(wf2).astype(BF16), "bf2": stack(bf2),
            "wu": wu.astype(BF16), "bu": bu}


@jax.jit
def encoder_forward(audio, params, hann):
    frames = frame_and_window(audio, hann)                      # (B*64, 512)
    return encoder_pallas(frames, params)                       # (B, 128)


if __name__ == "__main__":
    key = jax.random.PRNGKey(0)
    k_audio, k_params = jax.random.split(key)

    batch = 2
    audio = jax.random.normal(k_audio, (batch, 1, N_SAMPLES), jnp.float32) * 0.1
    hann, wrwi = make_constants()
    params = make_params(k_params, wrwi)

    out = encoder_forward(audio, params, hann)
    out = jax.block_until_ready(out)
    assert out.shape == (batch, CH) and out.dtype == jnp.float32
    print("KERNEL_OK")
</pallas_src>

<mosaic_0001>
module attributes {stable_mosaic.version = 11 : i64} {
  func.func @encoder_kernel(%arg0: i32, %arg1: memref<64x512xf32, #tpu.memory_space<vmem>>, %arg2: memref<512x768xbf16, #tpu.memory_space<vmem>>, %arg3: memref<384x128xbf16, #tpu.memory_space<vmem>>, %arg4: memref<1x128xf32, #tpu.memory_space<vmem>>, %arg5: memref<128x128xbf16, #tpu.memory_space<vmem>>, %arg6: memref<1x128xf32, #tpu.memory_space<vmem>>, %arg7: memref<6x128x384xbf16, #tpu.memory_space<vmem>>, %arg8: memref<6x1x384xf32, #tpu.memory_space<vmem>>, %arg9: memref<6x128x128xbf16, #tpu.memory_space<vmem>>, %arg10: memref<6x1x128xf32, #tpu.memory_space<vmem>>, %arg11: memref<6x128x128xbf16, #tpu.memory_space<vmem>>, %arg12: memref<6x1x128xf32, #tpu.memory_space<vmem>>, %arg13: memref<6x128x128xbf16, #tpu.memory_space<vmem>>, %arg14: memref<6x1x128xf32, #tpu.memory_space<vmem>>, %arg15: memref<128x128xbf16, #tpu.memory_space<vmem>>, %arg16: memref<1x128xf32, #tpu.memory_space<vmem>>, %arg17: memref<1x1x128xf32, #tpu.memory_space<vmem>>) attributes {dimension_semantics = [#tpu.dimension_semantics<parallel>], iteration_bounds = array<i64: 2>, scalar_prefetch = 0 : i64, scratch_operands = 0 : i64, tpu.core_type = #tpu.core_type<tc>, window_params = [{transform_indices = @transform_0, window_bounds = array<i64: 64, 512>}, {pipeline_mode = #tpu.pipeline_mode<synchronous>, transform_indices = @transform_1, window_bounds = array<i64: 512, 768>}, {pipeline_mode = #tpu.pipeline_mode<synchronous>, transform_indices = @transform_2, window_bounds = array<i64: 384, 128>}, {pipeline_mode = #tpu.pipeline_mode<synchronous>, transform_indices = @transform_3, window_bounds = array<i64: 1, 128>}, {pipeline_mode = #tpu.pipeline_mode<synchronous>, transform_indices = @transform_4, window_bounds = array<i64: 128, 128>}, {pipeline_mode = #tpu.pipeline_mode<synchronous>, transform_indices = @transform_5, window_bounds = array<i64: 1, 128>}, {pipeline_mode = #tpu.pipeline_mode<synchronous>, transform_indices = @transform_6, window_bounds = array<i64: 6, 128, 384>}, {pipeline_mode = #tpu.pipeline_mode<synchronous>, transform_indices = @transform_7, window_bounds = array<i64: 6, 1, 384>}, {pipeline_mode = #tpu.pipeline_mode<synchronous>, transform_indices = @transform_8, window_bounds = array<i64: 6, 128, 128>}, {pipeline_mode = #tpu.pipeline_mode<synchronous>, transform_indices = @transform_9, window_bounds = array<i64: 6, 1, 128>}, {pipeline_mode = #tpu.pipeline_mode<synchronous>, transform_indices = @transform_10, window_bounds = array<i64: 6, 128, 128>}, {pipeline_mode = #tpu.pipeline_mode<synchronous>, transform_indices = @transform_11, window_bounds = array<i64: 6, 1, 128>}, {pipeline_mode = #tpu.pipeline_mode<synchronous>, transform_indices = @transform_12, window_bounds = array<i64: 6, 128, 128>}, {pipeline_mode = #tpu.pipeline_mode<synchronous>, transform_indices = @transform_13, window_bounds = array<i64: 6, 1, 128>}, {pipeline_mode = #tpu.pipeline_mode<synchronous>, transform_indices = @transform_14, window_bounds = array<i64: 128, 128>}, {pipeline_mode = #tpu.pipeline_mode<synchronous>, transform_indices = @transform_15, window_bounds = array<i64: 1, 128>}, {transform_indices = @transform_16, window_bounds = array<i64: 1, 1, 128>}]} {
    %c0 = arith.constant 0 : index
    %c0_0 = arith.constant 0 : index
    %0 = vector.load %arg1[%c0, %c0_0] : memref<64x512xf32, #tpu.memory_space<vmem>>, vector<64x512xf32>
    %1 = arith.truncf %0 : vector<64x512xf32> to vector<64x512xbf16>
    %c0_1 = arith.constant 0 : index
    %c0_2 = arith.constant 0 : index
    %2 = vector.load %arg2[%c0_1, %c0_2] : memref<512x768xbf16, #tpu.memory_space<vmem>>, vector<512x768xbf16>
    %cst = arith.constant dense<0.000000e+00> : vector<64x768xf32>
    %3 = tpu.matmul %1, %2, %cst {dimension_numbers = #tpu.dot_dimension_numbers<[1], [0], [0], [1], [0, 0, 1, 1], [], []>} : vector<64x512xbf16>, vector<512x768xbf16>, vector<64x768xf32> -> vector<64x768xf32>
    %4 = vector.extract_strided_slice %3 {offsets = [0, 0], sizes = [64, 384], strides = [1, 1]} : vector<64x768xf32> to vector<64x384xf32>
    %5 = vector.extract_strided_slice %3 {offsets = [0, 384], sizes = [64, 384], strides = [1, 1]} : vector<64x768xf32> to vector<64x384xf32>
    %6 = arith.mulf %4, %4 : vector<64x384xf32>
    %7 = arith.mulf %5, %5 : vector<64x384xf32>
    %8 = arith.addf %6, %7 : vector<64x384xf32>
    %cst_3 = arith.constant 1.000000e-24 : f32
    %9 = vector.broadcast %cst_3 : f32 to vector<64x384xf32>
    %10 = arith.addf %8, %9 : vector<64x384xf32>
    %11 = math.log %10 : vector<64x384xf32>
    %cst_4 = arith.constant 5.000000e-01 : f32
    %12 = vector.broadcast %cst_4 : f32 to vector<64x384xf32>
    %13 = arith.mulf %12, %11 : vector<64x384xf32>
    %14 = arith.truncf %13 : vector<64x384xf32> to vector<64x384xbf16>
    %c0_5 = arith.constant 0 : index
    %c0_6 = arith.constant 0 : index
    %15 = vector.load %arg3[%c0_5, %c0_6] : memref<384x128xbf16, #tpu.memory_space<vmem>>, vector<384x128xbf16>
    %cst_7 = arith.constant dense<0.000000e+00> : vector<64x128xf32>
    %16 = tpu.matmul %14, %15, %cst_7 {dimension_numbers = #tpu.dot_dimension_numbers<[1], [0], [0], [1], [0, 0, 1, 1], [], []>} : vector<64x384xbf16>, vector<384x128xbf16>, vector<64x128xf32> -> vector<64x128xf32>
    %c0_8 = arith.constant 0 : index
    %c0_9 = arith.constant 0 : index
    %17 = vector.load %arg4[%c0_8, %c0_9] : memref<1x128xf32, #tpu.memory_space<vmem>>, vector<1x128xf32>
    %18 = vector.broadcast %17 : vector<1x128xf32> to vector<64x128xf32>
    %19 = arith.addf %16, %18 : vector<64x128xf32>
    %cst_10 = arith.constant 0.000000e+00 : f32
    %20 = vector.broadcast %cst_10 : f32 to vector<64x128xf32>
    %21 = arith.cmpf ogt, %19, %20 : vector<64x128xf32>
    %cst_11 = arith.constant 2.000000e-01 : f32
    %22 = vector.broadcast %cst_11 : f32 to vector<64x128xf32>
    %23 = arith.mulf %22, %19 : vector<64x128xf32>
    %24 = arith.select %21, %19, %23 : vector<64x128xi1>, vector<64x128xf32>
    %25 = arith.truncf %24 : vector<64x128xf32> to vector<64x128xbf16>
    %c0_12 = arith.constant 0 : index
    %c0_13 = arith.constant 0 : index
    %26 = vector.load %arg5[%c0_12, %c0_13] : memref<128x128xbf16, #tpu.memory_space<vmem>>, vector<128x128xbf16>
    %cst_14 = arith.constant dense<0.000000e+00> : vector<64x128xf32>
    %27 = tpu.matmul %25, %26, %cst_14 {dimension_numbers = #tpu.dot_dimension_numbers<[1], [0], [0], [1], [0, 0, 1, 1], [], []>} : vector<64x128xbf16>, vector<128x128xbf16>, vector<64x128xf32> -> vector<64x128xf32>
    %c0_15 = arith.constant 0 : index
    %c0_16 = arith.constant 0 : index
    %28 = vector.load %arg6[%c0_15, %c0_16] : memref<1x128xf32, #tpu.memory_space<vmem>>, vector<1x128xf32>
    %29 = vector.broadcast %28 : vector<1x128xf32> to vector<64x128xf32>
    %30 = arith.addf %27, %29 : vector<64x128xf32>
    %31 = arith.truncf %30 : vector<64x128xf32> to vector<64x128xbf16>
    %c0_17 = arith.constant 0 : index
    %c0_18 = arith.constant 0 : index
    %c0_19 = arith.constant 0 : index
    %32 = vector.load %arg7[%c0_17, %c0_18, %c0_19] : memref<6x128x384xbf16, #tpu.memory_space<vmem>>, vector<1x128x384xbf16>
    %33 = vector.shape_cast %32 : vector<1x128x384xbf16> to vector<128x384xbf16>
    %cst_20 = arith.constant dense<0.000000e+00> : vector<64x384xf32>
    %34 = tpu.matmul %31, %33, %cst_20 {dimension_numbers = #tpu.dot_dimension_numbers<[1], [0], [0], [1], [0, 0, 1, 1], [], []>} : vector<64x128xbf16>, vector<128x384xbf16>, vector<64x384xf32> -> vector<64x384xf32>
    %c0_21 = arith.constant 0 : index
    %c0_22 = arith.constant 0 : index
    %c0_23 = arith.constant 0 : index
    %35 = vector.load %arg8[%c0_21, %c0_22, %c0_23] : memref<6x1x384xf32, #tpu.memory_space<vmem>>, vector<1x1x384xf32>
    %36 = vector.shape_cast %35 : vector<1x1x384xf32> to vector<1x384xf32>
    %37 = vector.broadcast %36 : vector<1x384xf32> to vector<64x384xf32>
    %38 = arith.addf %34, %37 : vector<64x384xf32>
    %39 = vector.extract_strided_slice %38 {offsets = [0, 0], sizes = [64, 128], strides = [1, 1]} : vector<64x384xf32> to vector<64x128xf32>
    %40 = vector.shape_cast %39 : vector<64x128xf32> to vector<1x64x128xf32>
    %41 = vector.extract_strided_slice %38 {offsets = [0, 128], sizes = [64, 128], strides = [1, 1]} : vector<64x384xf32> to vector<64x128xf32>
    %42 = vector.shape_cast %41 : vector<64x128xf32> to vector<1x64x128xf32>
    %43 = vector.extract_strided_slice %38 {offsets = [0, 256], sizes = [64, 128], strides = [1, 1]} : vector<64x384xf32> to vector<64x128xf32>
    %44 = vector.shape_cast %43 : vector<64x128xf32> to vector<1x64x128xf32>
    %45 = arith.truncf %40 : vector<1x64x128xf32> to vector<1x64x128xbf16>
    %46 = arith.truncf %42 : vector<1x64x128xf32> to vector<1x64x128xbf16>
    "tpu.trace_start"() <{level = 10 : i32, message = "bqd,bkd->bqk"}> : () -> ()
    %cst_24 = arith.constant dense<0.000000e+00> : vector<1x64x64xf32>
    %47 = tpu.matmul %45, %46, %cst_24 {dimension_numbers = #tpu.dot_dimension_numbers<[2], [2], [1], [1], [0, 0, 0, 1, 1, 1], [0], [0]>} : vector<1x64x128xbf16>, vector<1x64x128xbf16>, vector<1x64x64xf32> -> vector<1x64x64xf32>
    "tpu.trace_stop"() : () -> ()
    %cst_25 = arith.constant 0.0883883461 : f32
    %48 = vector.broadcast %cst_25 : f32 to vector<1x64x64xf32>
    %49 = arith.mulf %47, %48 : vector<1x64x64xf32>
    %cst_26 = arith.constant dense<0xFF800000> : vector<1x64xf32>
    %50 = vector.multi_reduction <maximumf>, %49, %cst_26 [2] : vector<1x64x64xf32> to vector<1x64xf32>
    %51 = vector.shape_cast %50 : vector<1x64xf32> to vector<1x64x1xf32>
    %52 = vector.broadcast %51 : vector<1x64x1xf32> to vector<1x64x64xf32>
    %53 = arith.subf %49, %52 : vector<1x64x64xf32>
    %54 = math.exp %53 : vector<1x64x64xf32>
    %cst_27 = arith.constant dense<0.000000e+00> : vector<1x64xf32>
    %55 = vector.multi_reduction <add>, %54, %cst_27 [2] : vector<1x64x64xf32> to vector<1x64xf32>
    %56 = vector.shape_cast %55 : vector<1x64xf32> to vector<1x64x1xf32>
    %57 = tpu.reciprocal %56 {approx = true} : vector<1x64x1xf32> -> vector<1x64x1xf32>
    %58 = vector.broadcast %57 : vector<1x64x1xf32> to vector<1x64x64xf32>
    %59 = arith.mulf %54, %58 : vector<1x64x64xf32>
    %60 = arith.truncf %59 : vector<1x64x64xf32> to vector<1x64x64xbf16>
    %61 = arith.truncf %44 : vector<1x64x128xf32> to vector<1x64x128xbf16>
    "tpu.trace_start"() <{level = 10 : i32, message = "bqk,bkd->bqd"}> : () -> ()
    %cst_28 = arith.constant dense<0.000000e+00> : vector<1x64x128xf32>
    %62 = tpu.matmul %60, %61, %cst_28 {dimension_numbers = #tpu.dot_dimension_numbers<[2], [1], [1], [2], [0, 0, 0, 1, 1, 2], [0], [0]>} : vector<1x64x64xbf16>, vector<1x64x128xbf16>, vector<1x64x128xf32> -> vector<1x64x128xf32>
    "tpu.trace_stop"() : () -> ()
    %63 = vector.shape_cast %62 : vector<1x64x128xf32> to vector<64x128xf32>
    %64 = arith.truncf %63 : vector<64x128xf32> to vector<64x128xbf16>
    %c0_29 = arith.constant 0 : index
    %c0_30 = arith.constant 0 : index
    %c0_31 = arith.constant 0 : index
    %65 = vector.load %arg9[%c0_29, %c0_30, %c0_31] : memref<6x128x128xbf16, #tpu.memory_space<vmem>>, vector<1x128x128xbf16>
    %66 = vector.shape_cast %65 : vector<1x128x128xbf16> to vector<128x128xbf16>
    %cst_32 = arith.constant dense<0.000000e+00> : vector<64x128xf32>
    %67 = tpu.matmul %64, %66, %cst_32 {dimension_numbers = #tpu.dot_dimension_numbers<[1], [0], [0], [1], [0, 0, 1, 1], [], []>} : vector<64x128xbf16>, vector<128x128xbf16>, vector<64x128xf32> -> vector<64x128xf32>
    %c0_33 = arith.constant 0 : index
    %c0_34 = arith.constant 0 : index
    %c0_35 = arith.constant 0 : index
    %68 = vector.load %arg10[%c0_33, %c0_34, %c0_35] : memref<6x1x128xf32, #tpu.memory_space<vmem>>, vector<1x1x128xf32>
    %69 = vector.shape_cast %68 : vector<1x1x128xf32> to vector<1x128xf32>
    %70 = vector.broadcast %69 : vector<1x128xf32> to vector<64x128xf32>
    %71 = arith.addf %67, %70 : vector<64x128xf32>
    %72 = arith.addf %30, %71 : vector<64x128xf32>
    %73 = arith.truncf %72 : vector<64x128xf32> to vector<64x128xbf16>
    %c0_36 = arith.constant 0 : index
    %c0_37 = arith.constant 0 : index
    %c0_38 = arith.constant 0 : index
    %74 = vector.load %arg11[%c0_36, %c0_37, %c0_38] : memref<6x128x128xbf16, #tpu.memory_space<vmem>>, vector<1x128x128xbf16>
    %75 = vector.shape_cast %74 : vector<1x128x128xbf16> to vector<128x128xbf16>
    %cst_39 = arith.constant dense<0.000000e+00> : vector<64x128xf32>
    %76 = tpu.matmul %73, %75, %cst_39 {dimension_numbers = #tpu.dot_dimension_numbers<[1], [0], [0], [1], [0, 0, 1, 1], [], []>} : vector<64x128xbf16>, vector<128x128xbf16>, vector<64x128xf32> -> vector<64x128xf32>
    %c0_40 = arith.constant 0 : index
    %c0_41 = arith.constant 0 : index
    %c0_42 = arith.constant 0 : index
    %77 = vector.load %arg12[%c0_40, %c0_41, %c0_42] : memref<6x1x128xf32, #tpu.memory_space<vmem>>, vector<1x1x128xf32>
    %78 = vector.shape_cast %77 : vector<1x1x128xf32> to vector<1x128xf32>
    %79 = vector.broadcast %78 : vector<1x128xf32> to vector<64x128xf32>
    %80 = arith.addf %76, %79 : vector<64x128xf32>
    %cst_43 = arith.constant 0.000000e+00 : f32
    %81 = vector.broadcast %cst_43 : f32 to vector<64x128xf32>
    %82 = arith.cmpf ogt, %80, %81 : vector<64x128xf32>
    %cst_44 = arith.constant 2.000000e-01 : f32
    %83 = vector.broadcast %cst_44 : f32 to vector<64x128xf32>
    %84 = arith.mulf %83, %80 : vector<64x128xf32>
    %85 = arith.select %82, %80, %84 : vector<64x128xi1>, vector<64x128xf32>
    %86 = arith.truncf %85 : vector<64x128xf32> to vector<64x128xbf16>
    %c0_45 = arith.constant 0 : index
    %c0_46 = arith.constant 0 : index
    %c0_47 = arith.constant 0 : index
    %87 = vector.load %arg13[%c0_45, %c0_46, %c0_47] : memref<6x128x128xbf16, #tpu.memory_space<vmem>>, vector<1x128x128xbf16>
    %88 = vector.shape_cast %87 : vector<1x128x128xbf16> to vector<128x128xbf16>
    %cst_48 = arith.constant dense<0.000000e+00> : vector<64x128xf32>
    %89 = tpu.matmul %86, %88, %cst_48 {dimension_numbers = #tpu.dot_dimension_numbers<[1], [0], [0], [1], [0, 0, 1, 1], [], []>} : vector<64x128xbf16>, vector<128x128xbf16>, vector<64x128xf32> -> vector<64x128xf32>
    %c0_49 = arith.constant 0 : index
    %c0_50 = arith.constant 0 : index
    %c0_51 = arith.constant 0 : index
    %90 = vector.load %arg14[%c0_49, %c0_50, %c0_51] : memref<6x1x128xf32, #tpu.memory_space<vmem>>, vector<1x1x128xf32>
    %91 = vector.shape_cast %90 : vector<1x1x128xf32> to vector<1x128xf32>
    %92 = vector.broadcast %91 : vector<1x128xf32> to vector<64x128xf32>
    %93 = arith.addf %89, %92 : vector<64x128xf32>
    %94 = arith.addf %72, %93 : vector<64x128xf32>
    %95 = arith.truncf %94 : vector<64x128xf32> to vector<64x128xbf16>
    %c1 = arith.constant 1 : index
    %c0_52 = arith.constant 0 : index
    %c0_53 = arith.constant 0 : index
    %96 = vector.load %arg7[%c1, %c0_52, %c0_53] : memref<6x128x384xbf16, #tpu.memory_space<vmem>>, vector<1x128x384xbf16>
    %97 = vector.shape_cast %96 : vector<1x128x384xbf16> to vector<128x384xbf16>
    %cst_54 = arith.constant dense<0.000000e+00> : vector<64x384xf32>
    %98 = tpu.matmul %95, %97, %cst_54 {dimension_numbers = #tpu.dot_dimension_numbers<[1], [0], [0], [1], [0, 0, 1, 1], [], []>} : vector<64x128xbf16>, vector<128x384xbf16>, vector<64x384xf32> -> vector<64x384xf32>
    %c1_55 = arith.constant 1 : index
    %c0_56 = arith.constant 0 : index
    %c0_57 = arith.constant 0 : index
    %99 = vector.load %arg8[%c1_55, %c0_56, %c0_57] : memref<6x1x384xf32, #tpu.memory_space<vmem>>, vector<1x1x384xf32>
    %100 = vector.shape_cast %99 : vector<1x1x384xf32> to vector<1x384xf32>
    %101 = vector.broadcast %100 : vector<1x384xf32> to vector<64x384xf32>
    %102 = arith.addf %98, %101 : vector<64x384xf32>
    %103 = vector.extract_strided_slice %102 {offsets = [0, 0], sizes = [64, 128], strides = [1, 1]} : vector<64x384xf32> to vector<64x128xf32>
    %104 = vector.shape_cast %103 : vector<64x128xf32> to vector<1x64x128xf32>
    %105 = vector.extract_strided_slice %102 {offsets = [0, 128], sizes = [64, 128], strides = [1, 1]} : vector<64x384xf32> to vector<64x128xf32>
    %106 = vector.shape_cast %105 : vector<64x128xf32> to vector<1x64x128xf32>
    %107 = vector.extract_strided_slice %102 {offsets = [0, 256], sizes = [64, 128], strides = [1, 1]} : vector<64x384xf32> to vector<64x128xf32>
    %108 = vector.shape_cast %107 : vector<64x128xf32> to vector<1x64x128xf32>
    %109 = arith.truncf %104 : vector<1x64x128xf32> to vector<1x64x128xbf16>
    %110 = arith.truncf %106 : vector<1x64x128xf32> to vector<1x64x128xbf16>
    "tpu.trace_start"() <{level = 10 : i32, message = "bqd,bkd->bqk"}> : () -> ()
    %cst_58 = arith.constant dense<0.000000e+00> : vector<1x64x64xf32>
    %111 = tpu.matmul %109, %110, %cst_58 {dimension_numbers = #tpu.dot_dimension_numbers<[2], [2], [1], [1], [0, 0, 0, 1, 1, 1], [0], [0]>} : vector<1x64x128xbf16>, vector<1x64x128xbf16>, vector<1x64x64xf32> -> vector<1x64x64xf32>
    "tpu.trace_stop"() : () -> ()
    %cst_59 = arith.constant 0.0883883461 : f32
    %112 = vector.broadcast %cst_59 : f32 to vector<1x64x64xf32>
    %113 = arith.mulf %111, %112 : vector<1x64x64xf32>
    %cst_60 = arith.constant dense<0xFF800000> : vector<1x64xf32>
    %114 = vector.multi_reduction <maximumf>, %113, %cst_60 [2] : vector<1x64x64xf32> to vector<1x64xf32>
    %115 = vector.shape_cast %114 : vector<1x64xf32> to vector<1x64x1xf32>
    %116 = vector.broadcast %115 : vector<1x64x1xf32> to vector<1x64x64xf32>
    %117 = arith.subf %113, %116 : vector<1x64x64xf32>
    %118 = math.exp %117 : vector<1x64x64xf32>
    %cst_61 = arith.constant dense<0.000000e+00> : vector<1x64xf32>
    %119 = vector.multi_reduction <add>, %118, %cst_61 [2] : vector<1x64x64xf32> to vector<1x64xf32>
    %120 = vector.shape_cast %119 : vector<1x64xf32> to vector<1x64x1xf32>
    %121 = tpu.reciprocal %120 {approx = true} : vector<1x64x1xf32> -> vector<1x64x1xf32>
    %122 = vector.broadcast %121 : vector<1x64x1xf32> to vector<1x64x64xf32>
    %123 = arith.mulf %118, %122 : vector<1x64x64xf32>
    %124 = arith.truncf %123 : vector<1x64x64xf32> to vector<1x64x64xbf16>
    %125 = arith.truncf %108 : vector<1x64x128xf32> to vector<1x64x128xbf16>
    "tpu.trace_start"() <{level = 10 : i32, message = "bqk,bkd->bqd"}> : () -> ()
    %cst_62 = arith.constant dense<0.000000e+00> : vector<1x64x128xf32>
    %126 = tpu.matmul %124, %125, %cst_62 {dimension_numbers = #tpu.dot_dimension_numbers<[2], [1], [1], [2], [0, 0, 0, 1, 1, 2], [0], [0]>} : vector<1x64x64xbf16>, vector<1x64x128xbf16>, vector<1x64x128xf32> -> vector<1x64x128xf32>
    "tpu.trace_stop"() : () -> ()
    %127 = vector.shape_cast %126 : vector<1x64x128xf32> to vector<64x128xf32>
    %128 = arith.truncf %127 : vector<64x128xf32> to vector<64x128xbf16>
    %c1_63 = arith.constant 1 : index
    %c0_64 = arith.constant 0 : index
    %c0_65 = arith.constant 0 : index
    %129 = vector.load %arg9[%c1_63, %c0_64, %c0_65] : memref<6x128x128xbf16, #tpu.memory_space<vmem>>, vector<1x128x128xbf16>
    %130 = vector.shape_cast %129 : vector<1x128x128xbf16> to vector<128x128xbf16>
    %cst_66 = arith.constant dense<0.000000e+00> : vector<64x128xf32>
    %131 = tpu.matmul %128, %130, %cst_66 {dimension_numbers = #tpu.dot_dimension_numbers<[1], [0], [0], [1], [0, 0, 1, 1], [], []>} : vector<64x128xbf16>, vector<128x128xbf16>, vector<64x128xf32> -> vector<64x128xf32>
    %c1_67 = arith.constant 1 : index
    %c0_68 = arith.constant 0 : index
    %c0_69 = arith.constant 0 : index
    %132 = vector.load %arg10[%c1_67, %c0_68, %c0_69] : memref<6x1x128xf32, #tpu.memory_space<vmem>>, vector<1x1x128xf32>
    %133 = vector.shape_cast %132 : vector<1x1x128xf32> to vector<1x128xf32>
    %134 = vector.broadcast %133 : vector<1x128xf32> to vector<64x128xf32>
    %135 = arith.addf %131, %134 : vector<64x128xf32>
    %136 = arith.addf %94, %135 : vector<64x128xf32>
    %137 = arith.truncf %136 : vector<64x128xf32> to vector<64x128xbf16>
    %c1_70 = arith.constant 1 : index
    %c0_71 = arith.constant 0 : index
    %c0_72 = arith.constant 0 : index
    %138 = vector.load %arg11[%c1_70, %c0_71, %c0_72] : memref<6x128x128xbf16, #tpu.memory_space<vmem>>, vector<1x128x128xbf16>
    %139 = vector.shape_cast %138 : vector<1x128x128xbf16> to vector<128x128xbf16>
    %cst_73 = arith.constant dense<0.000000e+00> : vector<64x128xf32>
    %140 = tpu.matmul %137, %139, %cst_73 {dimension_numbers = #tpu.dot_dimension_numbers<[1], [0], [0], [1], [0, 0, 1, 1], [], []>} : vector<64x128xbf16>, vector<128x128xbf16>, vector<64x128xf32> -> vector<64x128xf32>
    %c1_74 = arith.constant 1 : index
    %c0_75 = arith.constant 0 : index
    %c0_76 = arith.constant 0 : index
    %141 = vector.load %arg12[%c1_74, %c0_75, %c0_76] : memref<6x1x128xf32, #tpu.memory_space<vmem>>, vector<1x1x128xf32>
    %142 = vector.shape_cast %141 : vector<1x1x128xf32> to vector<1x128xf32>
    %143 = vector.broadcast %142 : vector<1x128xf32> to vector<64x128xf32>
    %144 = arith.addf %140, %143 : vector<64x128xf32>
    %cst_77 = arith.constant 0.000000e+00 : f32
    %145 = vector.broadcast %cst_77 : f32 to vector<64x128xf32>
    %146 = arith.cmpf ogt, %144, %145 : vector<64x128xf32>
    %cst_78 = arith.constant 2.000000e-01 : f32
    %147 = vector.broadcast %cst_78 : f32 to vector<64x128xf32>
    %148 = arith.mulf %147, %144 : vector<64x128xf32>
    %149 = arith.select %146, %144, %148 : vector<64x128xi1>, vector<64x128xf32>
    %150 = arith.truncf %149 : vector<64x128xf32> to vector<64x128xbf16>
    %c1_79 = arith.constant 1 : index
    %c0_80 = arith.constant 0 : index
    %c0_81 = arith.constant 0 : index
    %151 = vector.load %arg13[%c1_79, %c0_80, %c0_81] : memref<6x128x128xbf16, #tpu.memory_space<vmem>>, vector<1x128x128xbf16>
    %152 = vector.shape_cast %151 : vector<1x128x128xbf16> to vector<128x128xbf16>
    %cst_82 = arith.constant dense<0.000000e+00> : vector<64x128xf32>
    %153 = tpu.matmul %150, %152, %cst_82 {dimension_numbers = #tpu.dot_dimension_numbers<[1], [0], [0], [1], [0, 0, 1, 1], [], []>} : vector<64x128xbf16>, vector<128x128xbf16>, vector<64x128xf32> -> vector<64x128xf32>
    %c1_83 = arith.constant 1 : index
    %c0_84 = arith.constant 0 : index
    %c0_85 = arith.constant 0 : index
    %154 = vector.load %arg14[%c1_83, %c0_84, %c0_85] : memref<6x1x128xf32, #tpu.memory_space<vmem>>, vector<1x1x128xf32>
    %155 = vector.shape_cast %154 : vector<1x1x128xf32> to vector<1x128xf32>
    %156 = vector.broadcast %155 : vector<1x128xf32> to vector<64x128xf32>
    %157 = arith.addf %153, %156 : vector<64x128xf32>
    %158 = arith.addf %136, %157 : vector<64x128xf32>
    %159 = arith.truncf %158 : vector<64x128xf32> to vector<64x128xbf16>
    %c2 = arith.constant 2 : index
    %c0_86 = arith.constant 0 : index
    %c0_87 = arith.constant 0 : index
    %160 = vector.load %arg7[%c2, %c0_86, %c0_87] : memref<6x128x384xbf16, #tpu.memory_space<vmem>>, vector<1x128x384xbf16>
    %161 = vector.shape_cast %160 : vector<1x128x384xbf16> to vector<128x384xbf16>
    %cst_88 = arith.constant dense<0.000000e+00> : vector<64x384xf32>
    %162 = tpu.matmul %159, %161, %cst_88 {dimension_numbers = #tpu.dot_dimension_numbers<[1], [0], [0], [1], [0, 0, 1, 1], [], []>} : vector<64x128xbf16>, vector<128x384xbf16>, vector<64x384xf32> -> vector<64x384xf32>
    %c2_89 = arith.constant 2 : index
    %c0_90 = arith.constant 0 : index
    %c0_91 = arith.constant 0 : index
    %163 = vector.load %arg8[%c2_89, %c0_90, %c0_91] : memref<6x1x384xf32, #tpu.memory_space<vmem>>, vector<1x1x384xf32>
    %164 = vector.shape_cast %163 : vector<1x1x384xf32> to vector<1x384xf32>
    %165 = vector.broadcast %164 : vector<1x384xf32> to vector<64x384xf32>
    %166 = arith.addf %162, %165 : vector<64x384xf32>
    %167 = vector.extract_strided_slice %166 {offsets = [0, 0], sizes = [64, 128], strides = [1, 1]} : vector<64x384xf32> to vector<64x128xf32>
    %168 = vector.shape_cast %167 : vector<64x128xf32> to vector<1x64x128xf32>
    %169 = vector.extract_strided_slice %166 {offsets = [0, 128], sizes = [64, 128], strides = [1, 1]} : vector<64x384xf32> to vector<64x128xf32>
    %170 = vector.shape_cast %169 : vector<64x128xf32> to vector<1x64x128xf32>
    %171 = vector.extract_strided_slice %166 {offsets = [0, 256], sizes = [64, 128], strides = [1, 1]} : vector<64x384xf32> to vector<64x128xf32>
    %172 = vector.shape_cast %171 : vector<64x128xf32> to vector<1x64x128xf32>
    %173 = arith.truncf %168 : vector<1x64x128xf32> to vector<1x64x128xbf16>
    %174 = arith.truncf %170 : vector<1x64x128xf32> to vector<1x64x128xbf16>
    "tpu.trace_start"() <{level = 10 : i32, message = "bqd,bkd->bqk"}> : () -> ()
    %cst_92 = arith.constant dense<0.000000e+00> : vector<1x64x64xf32>
    %175 = tpu.matmul %173, %174, %cst_92 {dimension_numbers = #tpu.dot_dimension_numbers<[2], [2], [1], [1], [0, 0, 0, 1, 1, 1], [0], [0]>} : vector<1x64x128xbf16>, vector<1x64x128xbf16>, vector<1x64x64xf32> -> vector<1x64x64xf32>
    "tpu.trace_stop"() : () -> ()
    %cst_93 = arith.constant 0.0883883461 : f32
    %176 = vector.broadcast %cst_93 : f32 to vector<1x64x64xf32>
    %177 = arith.mulf %175, %176 : vector<1x64x64xf32>
    %cst_94 = arith.constant dense<0xFF800000> : vector<1x64xf32>
    %178 = vector.multi_reduction <maximumf>, %177, %cst_94 [2] : vector<1x64x64xf32> to vector<1x64xf32>
    %179 = vector.shape_cast %178 : vector<1x64xf32> to vector<1x64x1xf32>
    %180 = vector.broadcast %179 : vector<1x64x1xf32> to vector<1x64x64xf32>
    %181 = arith.subf %177, %180 : vector<1x64x64xf32>
    %182 = math.exp %181 : vector<1x64x64xf32>
    %cst_95 = arith.constant dense<0.000000e+00> : vector<1x64xf32>
    %183 = vector.multi_reduction <add>, %182, %cst_95 [2] : vector<1x64x64xf32> to vector<1x64xf32>
    %184 = vector.shape_cast %183 : vector<1x64xf32> to vector<1x64x1xf32>
    %185 = tpu.reciprocal %184 {approx = true} : vector<1x64x1xf32> -> vector<1x64x1xf32>
    %186 = vector.broadcast %185 : vector<1x64x1xf32> to vector<1x64x64xf32>
    %187 = arith.mulf %182, %186 : vector<1x64x64xf32>
    %188 = arith.truncf %187 : vector<1x64x64xf32> to vector<1x64x64xbf16>
    %189 = arith.truncf %172 : vector<1x64x128xf32> to vector<1x64x128xbf16>
    "tpu.trace_start"() <{level = 10 : i32, message = "bqk,bkd->bqd"}> : () -> ()
    %cst_96 = arith.constant dense<0.000000e+00> : vector<1x64x128xf32>
    %190 = tpu.matmul %188, %189, %cst_96 {dimension_numbers = #tpu.dot_dimension_numbers<[2], [1], [1], [2], [0, 0, 0, 1, 1, 2], [0], [0]>} : vector<1x64x64xbf16>, vector<1x64x128xbf16>, vector<1x64x128xf32> -> vector<1x64x128xf32>
    "tpu.trace_stop"() : () -> ()
    %191 = vector.shape_cast %190 : vector<1x64x128xf32> to vector<64x128xf32>
    %192 = arith.truncf %191 : vector<64x128xf32> to vector<64x128xbf16>
    %c2_97 = arith.constant 2 : index
    %c0_98 = arith.constant 0 : index
    %c0_99 = arith.constant 0 : index
    %193 = vector.load %arg9[%c2_97, %c0_98, %c0_99] : memref<6x128x128xbf16, #tpu.memory_space<vmem>>, vector<1x128x128xbf16>
    %194 = vector.shape_cast %193 : vector<1x128x128xbf16> to vector<128x128xbf16>
    %cst_100 = arith.constant dense<0.000000e+00> : vector<64x128xf32>
    %195 = tpu.matmul %192, %194, %cst_100 {dimension_numbers = #tpu.dot_dimension_numbers<[1], [0], [0], [1], [0, 0, 1, 1], [], []>} : vector<64x128xbf16>, vector<128x128xbf16>, vector<64x128xf32> -> vector<64x128xf32>
    %c2_101 = arith.constant 2 : index
    %c0_102 = arith.constant 0 : index
    %c0_103 = arith.constant 0 : index
    %196 = vector.load %arg10[%c2_101, %c0_102, %c0_103] : memref<6x1x128xf32, #tpu.memory_space<vmem>>, vector<1x1x128xf32>
    %197 = vector.shape_cast %196 : vector<1x1x128xf32> to vector<1x128xf32>
    %198 = vector.broadcast %197 : vector<1x128xf32> to vector<64x128xf32>
    %199 = arith.addf %195, %198 : vector<64x128xf32>
    %200 = arith.addf %158, %199 : vector<64x128xf32>
    %201 = arith.truncf %200 : vector<64x128xf32> to vector<64x128xbf16>
    %c2_104 = arith.constant 2 : index
    %c0_105 = arith.constant 0 : index
    %c0_106 = arith.constant 0 : index
    %202 = vector.load %arg11[%c2_104, %c0_105, %c0_106] : memref<6x128x128xbf16, #tpu.memory_space<vmem>>, vector<1x128x128xbf16>
    %203 = vector.shape_cast %202 : vector<1x128x128xbf16> to vector<128x128xbf16>
    %cst_107 = arith.constant dense<0.000000e+00> : vector<64x128xf32>
    %204 = tpu.matmul %201, %203, %cst_107 {dimension_numbers = #tpu.dot_dimension_numbers<[1], [0], [0], [1], [0, 0, 1, 1], [], []>} : vector<64x128xbf16>, vector<128x128xbf16>, vector<64x128xf32> -> vector<64x128xf32>
    %c2_108 = arith.constant 2 : index
    %c0_109 = arith.constant 0 : index
    %c0_110 = arith.constant 0 : index
    %205 = vector.load %arg12[%c2_108, %c0_109, %c0_110] : memref<6x1x128xf32, #tpu.memory_space<vmem>>, vector<1x1x128xf32>
    %206 = vector.shape_cast %205 : vector<1x1x128xf32> to vector<1x128xf32>
    %207 = vector.broadcast %206 : vector<1x128xf32> to vector<64x128xf32>
    %208 = arith.addf %204, %207 : vector<64x128xf32>
    %cst_111 = arith.constant 0.000000e+00 : f32
    %209 = vector.broadcast %cst_111 : f32 to vector<64x128xf32>
    %210 = arith.cmpf ogt, %208, %209 : vector<64x128xf32>
    %cst_112 = arith.constant 2.000000e-01 : f32
    %211 = vector.broadcast %cst_112 : f32 to vector<64x128xf32>
    %212 = arith.mulf %211, %208 : vector<64x128xf32>
    %213 = arith.select %210, %208, %212 : vector<64x128xi1>, vector<64x128xf32>
    %214 = arith.truncf %213 : vector<64x128xf32> to vector<64x128xbf16>
    %c2_113 = arith.constant 2 : index
    %c0_114 = arith.constant 0 : index
    %c0_115 = arith.constant 0 : index
    %215 = vector.load %arg13[%c2_113, %c0_114, %c0_115] : memref<6x128x128xbf16, #tpu.memory_space<vmem>>, vector<1x128x128xbf16>
    %216 = vector.shape_cast %215 : vector<1x128x128xbf16> to vector<128x128xbf16>
    %cst_116 = arith.constant dense<0.000000e+00> : vector<64x128xf32>
    %217 = tpu.matmul %214, %216, %cst_116 {dimension_numbers = #tpu.dot_dimension_numbers<[1], [0], [0], [1], [0, 0, 1, 1], [], []>} : vector<64x128xbf16>, vector<128x128xbf16>, vector<64x128xf32> -> vector<64x128xf32>
    %c2_117 = arith.constant 2 : index
    %c0_118 = arith.constant 0 : index
    %c0_119 = arith.constant 0 : index
    %218 = vector.load %arg14[%c2_117, %c0_118, %c0_119] : memref<6x1x128xf32, #tpu.memory_space<vmem>>, vector<1x1x128xf32>
    %219 = vector.shape_cast %218 : vector<1x1x128xf32> to vector<1x128xf32>
    %220 = vector.broadcast %219 : vector<1x128xf32> to vector<64x128xf32>
    %221 = arith.addf %217, %220 : vector<64x128xf32>
    %222 = arith.addf %200, %221 : vector<64x128xf32>
    %223 = arith.truncf %222 : vector<64x128xf32> to vector<64x128xbf16>
    %c3 = arith.constant 3 : index
    %c0_120 = arith.constant 0 : index
    %c0_121 = arith.constant 0 : index
    %224 = vector.load %arg7[%c3, %c0_120, %c0_121] : memref<6x128x384xbf16, #tpu.memory_space<vmem>>, vector<1x128x384xbf16>
    %225 = vector.shape_cast %224 : vector<1x128x384xbf16> to vector<128x384xbf16>
    %cst_122 = arith.constant dense<0.000000e+00> : vector<64x384xf32>
    %226 = tpu.matmul %223, %225, %cst_122 {dimension_numbers = #tpu.dot_dimension_numbers<[1], [0], [0], [1], [0, 0, 1, 1], [], []>} : vector<64x128xbf16>, vector<128x384xbf16>, vector<64x384xf32> -> vector<64x384xf32>
    %c3_123 = arith.constant 3 : index
    %c0_124 = arith.constant 0 : index
    %c0_125 = arith.constant 0 : index
    %227 = vector.load %arg8[%c3_123, %c0_124, %c0_125] : memref<6x1x384xf32, #tpu.memory_space<vmem>>, vector<1x1x384xf32>
    %228 = vector.shape_cast %227 : vector<1x1x384xf32> to vector<1x384xf32>
    %229 = vector.broadcast %228 : vector<1x384xf32> to vector<64x384xf32>
    %230 = arith.addf %226, %229 : vector<64x384xf32>
    %231 = vector.extract_strided_slice %230 {offsets = [0, 0], sizes = [64, 128], strides = [1, 1]} : vector<64x384xf32> to vector<64x128xf32>
    %232 = vector.shape_cast %231 : vector<64x128xf32> to vector<1x64x128xf32>
    %233 = vector.extract_strided_slice %230 {offsets = [0, 128], sizes = [64, 128], strides = [1, 1]} : vector<64x384xf32> to vector<64x128xf32>
    %234 = vector.shape_cast %233 : vector<64x128xf32> to vector<1x64x128xf32>
    %235 = vector.extract_strided_slice %230 {offsets = [0, 256], sizes = [64, 128], strides = [1, 1]} : vector<64x384xf32> to vector<64x128xf32>
    %236 = vector.shape_cast %235 : vector<64x128xf32> to vector<1x64x128xf32>
    %237 = arith.truncf %232 : vector<1x64x128xf32> to vector<1x64x128xbf16>
    %238 = arith.truncf %234 : vector<1x64x128xf32> to vector<1x64x128xbf16>
    "tpu.trace_start"() <{level = 10 : i32, message = "bqd,bkd->bqk"}> : () -> ()
    %cst_126 = arith.constant dense<0.000000e+00> : vector<1x64x64xf32>
    %239 = tpu.matmul %237, %238, %cst_126 {dimension_numbers = #tpu.dot_dimension_numbers<[2], [2], [1], [1], [0, 0, 0, 1, 1, 1], [0], [0]>} : vector<1x64x128xbf16>, vector<1x64x128xbf16>, vector<1x64x64xf32> -> vector<1x64x64xf32>
    "tpu.trace_stop"() : () -> ()
    %cst_127 = arith.constant 0.0883883461 : f32
    %240 = vector.broadcast %cst_127 : f32 to vector<1x64x64xf32>
    %241 = arith.mulf %239, %240 : vector<1x64x64xf32>
    %cst_128 = arith.constant dense<0xFF800000> : vector<1x64xf32>
    %242 = vector.multi_reduction <maximumf>, %241, %cst_128 [2] : vector<1x64x64xf32> to vector<1x64xf32>
    %243 = vector.shape_cast %242 : vector<1x64xf32> to vector<1x64x1xf32>
    %244 = vector.broadcast %243 : vector<1x64x1xf32> to vector<1x64x64xf32>
    %245 = arith.subf %241, %244 : vector<1x64x64xf32>
    %246 = math.exp %245 : vector<1x64x64xf32>
    %cst_129 = arith.constant dense<0.000000e+00> : vector<1x64xf32>
    %247 = vector.multi_reduction <add>, %246, %cst_129 [2] : vector<1x64x64xf32> to vector<1x64xf32>
    %248 = vector.shape_cast %247 : vector<1x64xf32> to vector<1x64x1xf32>
    %249 = tpu.reciprocal %248 {approx = true} : vector<1x64x1xf32> -> vector<1x64x1xf32>
    %250 = vector.broadcast %249 : vector<1x64x1xf32> to vector<1x64x64xf32>
    %251 = arith.mulf %246, %250 : vector<1x64x64xf32>
    %252 = arith.truncf %251 : vector<1x64x64xf32> to vector<1x64x64xbf16>
    %253 = arith.truncf %236 : vector<1x64x128xf32> to vector<1x64x128xbf16>
    "tpu.trace_start"() <{level = 10 : i32, message = "bqk,bkd->bqd"}> : () -> ()
    %cst_130 = arith.constant dense<0.000000e+00> : vector<1x64x128xf32>
    %254 = tpu.matmul %252, %253, %cst_130 {dimension_numbers = #tpu.dot_dimension_numbers<[2], [1], [1], [2], [0, 0, 0, 1, 1, 2], [0], [0]>} : vector<1x64x64xbf16>, vector<1x64x128xbf16>, vector<1x64x128xf32> -> vector<1x64x128xf32>
    "tpu.trace_stop"() : () -> ()
    %255 = vector.shape_cast %254 : vector<1x64x128xf32> to vector<64x128xf32>
    %256 = arith.truncf %255 : vector<64x128xf32> to vector<64x128xbf16>
    %c3_131 = arith.constant 3 : index
    %c0_132 = arith.constant 0 : index
    %c0_133 = arith.constant 0 : index
    %257 = vector.load %arg9[%c3_131, %c0_132, %c0_133] : memref<6x128x128xbf16, #tpu.memory_space<vmem>>, vector<1x128x128xbf16>
    %258 = vector.shape_cast %257 : vector<1x128x128xbf16> to vector<128x128xbf16>
    %cst_134 = arith.constant dense<0.000000e+00> : vector<64x128xf32>
    %259 = tpu.matmul %256, %258, %cst_134 {dimension_numbers = #tpu.dot_dimension_numbers<[1], [0], [0], [1], [0, 0, 1, 1], [], []>} : vector<64x128xbf16>, vector<128x128xbf16>, vector<64x128xf32> -> vector<64x128xf32>
    %c3_135 = arith.constant 3 : index
    %c0_136 = arith.constant 0 : index
    %c0_137 = arith.constant 0 : index
    %260 = vector.load %arg10[%c3_135, %c0_136, %c0_137] : memref<6x1x128xf32, #tpu.memory_space<vmem>>, vector<1x1x128xf32>
    %261 = vector.shape_cast %260 : vector<1x1x128xf32> to vector<1x128xf32>
    %262 = vector.broadcast %261 : vector<1x128xf32> to vector<64x128xf32>
    %263 = arith.addf %259, %262 : vector<64x128xf32>
    %264 = arith.addf %222, %263 : vector<64x128xf32>
    %265 = arith.truncf %264 : vector<64x128xf32> to vector<64x128xbf16>
    %c3_138 = arith.constant 3 : index
    %c0_139 = arith.constant 0 : index
    %c0_140 = arith.constant 0 : index
    %266 = vector.load %arg11[%c3_138, %c0_139, %c0_140] : memref<6x128x128xbf16, #tpu.memory_space<vmem>>, vector<1x128x128xbf16>
    %267 = vector.shape_cast %266 : vector<1x128x128xbf16> to vector<128x128xbf16>
    %cst_141 = arith.constant dense<0.000000e+00> : vector<64x128xf32>
    %268 = tpu.matmul %265, %267, %cst_141 {dimension_numbers = #tpu.dot_dimension_numbers<[1], [0], [0], [1], [0, 0, 1, 1], [], []>} : vector<64x128xbf16>, vector<128x128xbf16>, vector<64x128xf32> -> vector<64x128xf32>
    %c3_142 = arith.constant 3 : index
    %c0_143 = arith.constant 0 : index
    %c0_144 = arith.constant 0 : index
    %269 = vector.load %arg12[%c3_142, %c0_143, %c0_144] : memref<6x1x128xf32, #tpu.memory_space<vmem>>, vector<1x1x128xf32>
    %270 = vector.shape_cast %269 : vector<1x1x128xf32> to vector<1x128xf32>
    %271 = vector.broadcast %270 : vector<1x128xf32> to vector<64x128xf32>
    %272 = arith.addf %268, %271 : vector<64x128xf32>
    %cst_145 = arith.constant 0.000000e+00 : f32
    %273 = vector.broadcast %cst_145 : f32 to vector<64x128xf32>
    %274 = arith.cmpf ogt, %272, %273 : vector<64x128xf32>
    %cst_146 = arith.constant 2.000000e-01 : f32
    %275 = vector.broadcast %cst_146 : f32 to vector<64x128xf32>
    %276 = arith.mulf %275, %272 : vector<64x128xf32>
    %277 = arith.select %274, %272, %276 : vector<64x128xi1>, vector<64x128xf32>
    %278 = arith.truncf %277 : vector<64x128xf32> to vector<64x128xbf16>
    %c3_147 = arith.constant 3 : index
    %c0_148 = arith.constant 0 : index
    %c0_149 = arith.constant 0 : index
    %279 = vector.load %arg13[%c3_147, %c0_148, %c0_149] : memref<6x128x128xbf16, #tpu.memory_space<vmem>>, vector<1x128x128xbf16>
    %280 = vector.shape_cast %279 : vector<1x128x128xbf16> to vector<128x128xbf16>
    %cst_150 = arith.constant dense<0.000000e+00> : vector<64x128xf32>
    %281 = tpu.matmul %278, %280, %cst_150 {dimension_numbers = #tpu.dot_dimension_numbers<[1], [0], [0], [1], [0, 0, 1, 1], [], []>} : vector<64x128xbf16>, vector<128x128xbf16>, vector<64x128xf32> -> vector<64x128xf32>
    %c3_151 = arith.constant 3 : index
    %c0_152 = arith.constant 0 : index
    %c0_153 = arith.constant 0 : index
    %282 = vector.load %arg14[%c3_151, %c0_152, %c0_153] : memref<6x1x128xf32, #tpu.memory_space<vmem>>, vector<1x1x128xf32>
    %283 = vector.shape_cast %282 : vector<1x1x128xf32> to vector<1x128xf32>
    %284 = vector.broadcast %283 : vector<1x128xf32> to vector<64x128xf32>
    %285 = arith.addf %281, %284 : vector<64x128xf32>
    %286 = arith.addf %264, %285 : vector<64x128xf32>
    %287 = arith.truncf %286 : vector<64x128xf32> to vector<64x128xbf16>
    %c4 = arith.constant 4 : index
    %c0_154 = arith.constant 0 : index
    %c0_155 = arith.constant 0 : index
    %288 = vector.load %arg7[%c4, %c0_154, %c0_155] : memref<6x128x384xbf16, #tpu.memory_space<vmem>>, vector<1x128x384xbf16>
    %289 = vector.shape_cast %288 : vector<1x128x384xbf16> to vector<128x384xbf16>
    %cst_156 = arith.constant dense<0.000000e+00> : vector<64x384xf32>
    %290 = tpu.matmul %287, %289, %cst_156 {dimension_numbers = #tpu.dot_dimension_numbers<[1], [0], [0], [1], [0, 0, 1, 1], [], []>} : vector<64x128xbf16>, vector<128x384xbf16>, vector<64x384xf32> -> vector<64x384xf32>
    %c4_157 = arith.constant 4 : index
    %c0_158 = arith.constant 0 : index
    %c0_159 = arith.constant 0 : index
    %291 = vector.load %arg8[%c4_157, %c0_158, %c0_159] : memref<6x1x384xf32, #tpu.memory_space<vmem>>, vector<1x1x384xf32>
    %292 = vector.shape_cast %291 : vector<1x1x384xf32> to vector<1x384xf32>
    %293 = vector.broadcast %292 : vector<1x384xf32> to vector<64x384xf32>
    %294 = arith.addf %290, %293 : vector<64x384xf32>
    %295 = vector.extract_strided_slice %294 {offsets = [0, 0], sizes = [64, 128], strides = [1, 1]} : vector<64x384xf32> to vector<64x128xf32>
    %296 = vector.shape_cast %295 : vector<64x128xf32> to vector<1x64x128xf32>
    %297 = vector.extract_strided_slice %294 {offsets = [0, 128], sizes = [64, 128], strides = [1, 1]} : vector<64x384xf32> to vector<64x128xf32>
    %298 = vector.shape_cast %297 : vector<64x128xf32> to vector<1x64x128xf32>
    %299 = vector.extract_strided_slice %294 {offsets = [0, 256], sizes = [64, 128], strides = [1, 1]} : vector<64x384xf32> to vector<64x128xf32>
    %300 = vector.shape_cast %299 : vector<64x128xf32> to vector<1x64x128xf32>
    %301 = arith.truncf %296 : vector<1x64x128xf32> to vector<1x64x128xbf16>
    %302 = arith.truncf %298 : vector<1x64x128xf32> to vector<1x64x128xbf16>
    "tpu.trace_start"() <{level = 10 : i32, message = "bqd,bkd->bqk"}> : () -> ()
    %cst_160 = arith.constant dense<0.000000e+00> : vector<1x64x64xf32>
    %303 = tpu.matmul %301, %302, %cst_160 {dimension_numbers = #tpu.dot_dimension_numbers<[2], [2], [1], [1], [0, 0, 0, 1, 1, 1], [0], [0]>} : vector<1x64x128xbf16>, vector<1x64x128xbf16>, vector<1x64x64xf32> -> vector<1x64x64xf32>
    "tpu.trace_stop"() : () -> ()
    %cst_161 = arith.constant 0.0883883461 : f32
    %304 = vector.broadcast %cst_161 : f32 to vector<1x64x64xf32>
    %305 = arith.mulf %303, %304 : vector<1x64x64xf32>
    %cst_162 = arith.constant dense<0xFF800000> : vector<1x64xf32>
    %306 = vector.multi_reduction <maximumf>, %305, %cst_162 [2] : vector<1x64x64xf32> to vector<1x64xf32>
    %307 = vector.shape_cast %306 : vector<1x64xf32> to vector<1x64x1xf32>
    %308 = vector.broadcast %307 : vector<1x64x1xf32> to vector<1x64x64xf32>
    %309 = arith.subf %305, %308 : vector<1x64x64xf32>
    %310 = math.exp %309 : vector<1x64x64xf32>
    %cst_163 = arith.constant dense<0.000000e+00> : vector<1x64xf32>
    %311 = vector.multi_reduction <add>, %310, %cst_163 [2] : vector<1x64x64xf32> to vector<1x64xf32>
    %312 = vector.shape_cast %311 : vector<1x64xf32> to vector<1x64x1xf32>
    %313 = tpu.reciprocal %312 {approx = true} : vector<1x64x1xf32> -> vector<1x64x1xf32>
    %314 = vector.broadcast %313 : vector<1x64x1xf32> to vector<1x64x64xf32>
    %315 = arith.mulf %310, %314 : vector<1x64x64xf32>
    %316 = arith.truncf %315 : vector<1x64x64xf32> to vector<1x64x64xbf16>
    %317 = arith.truncf %300 : vector<1x64x128xf32> to vector<1x64x128xbf16>
    "tpu.trace_start"() <{level = 10 : i32, message = "bqk,bkd->bqd"}> : () -> ()
    %cst_164 = arith.constant dense<0.000000e+00> : vector<1x64x128xf32>
    %318 = tpu.matmul %316, %317, %cst_164 {dimension_numbers = #tpu.dot_dimension_numbers<[2], [1], [1], [2], [0, 0, 0, 1, 1, 2], [0], [0]>} : vector<1x64x64xbf16>, vector<1x64x128xbf16>, vector<1x64x128xf32> -> vector<1x64x128xf32>
    "tpu.trace_stop"() : () -> ()
    %319 = vector.shape_cast %318 : vector<1x64x128xf32> to vector<64x128xf32>
    %320 = arith.truncf %319 : vector<64x128xf32> to vector<64x128xbf16>
    %c4_165 = arith.constant 4 : index
    %c0_166 = arith.constant 0 : index
    %c0_167 = arith.constant 0 : index
    %321 = vector.load %arg9[%c4_165, %c0_166, %c0_167] : memref<6x128x128xbf16, #tpu.memory_space<vmem>>, vector<1x128x128xbf16>
    %322 = vector.shape_cast %321 : vector<1x128x128xbf16> to vector<128x128xbf16>
    %cst_168 = arith.constant dense<0.000000e+00> : vector<64x128xf32>
    %323 = tpu.matmul %320, %322, %cst_168 {dimension_numbers = #tpu.dot_dimension_numbers<[1], [0], [0], [1], [0, 0, 1, 1], [], []>} : vector<64x128xbf16>, vector<128x128xbf16>, vector<64x128xf32> -> vector<64x128xf32>
    %c4_169 = arith.constant 4 : index
    %c0_170 = arith.constant 0 : index
    %c0_171 = arith.constant 0 : index
    %324 = vector.load %arg10[%c4_169, %c0_170, %c0_171] : memref<6x1x128xf32, #tpu.memory_space<vmem>>, vector<1x1x128xf32>
    %325 = vector.shape_cast %324 : vector<1x1x128xf32> to vector<1x128xf32>
    %326 = vector.broadcast %325 : vector<1x128xf32> to vector<64x128xf32>
    %327 = arith.addf %323, %326 : vector<64x128xf32>
    %328 = arith.addf %286, %327 : vector<64x128xf32>
    %329 = arith.truncf %328 : vector<64x128xf32> to vector<64x128xbf16>
    %c4_172 = arith.constant 4 : index
    %c0_173 = arith.constant 0 : index
    %c0_174 = arith.constant 0 : index
    %330 = vector.load %arg11[%c4_172, %c0_173, %c0_174] : memref<6x128x128xbf16, #tpu.memory_space<vmem>>, vector<1x128x128xbf16>
    %331 = vector.shape_cast %330 : vector<1x128x128xbf16> to vector<128x128xbf16>
    %cst_175 = arith.constant dense<0.000000e+00> : vector<64x128xf32>
    %332 = tpu.matmul %329, %331, %cst_175 {dimension_numbers = #tpu.dot_dimension_numbers<[1], [0], [0], [1], [0, 0, 1, 1], [], []>} : vector<64x128xbf16>, vector<128x128xbf16>, vector<64x128xf32> -> vector<64x128xf32>
    %c4_176 = arith.constant 4 : index
    %c0_177 = arith.constant 0 : index
    %c0_178 = arith.constant 0 : index
    %333 = vector.load %arg12[%c4_176, %c0_177, %c0_178] : memref<6x1x128xf32, #tpu.memory_space<vmem>>, vector<1x1x128xf32>
    %334 = vector.shape_cast %333 : vector<1x1x128xf32> to vector<1x128xf32>
    %335 = vector.broadcast %334 : vector<1x128xf32> to vector<64x128xf32>
    %336 = arith.addf %332, %335 : vector<64x128xf32>
    %cst_179 = arith.constant 0.000000e+00 : f32
    %337 = vector.broadcast %cst_179 : f32 to vector<64x128xf32>
    %338 = arith.cmpf ogt, %336, %337 : vector<64x128xf32>
    %cst_180 = arith.constant 2.000000e-01 : f32
    %339 = vector.broadcast %cst_180 : f32 to vector<64x128xf32>
    %340 = arith.mulf %339, %336 : vector<64x128xf32>
    %341 = arith.select %338, %336, %340 : vector<64x128xi1>, vector<64x128xf32>
    %342 = arith.truncf %341 : vector<64x128xf32> to vector<64x128xbf16>
    %c4_181 = arith.constant 4 : index
    %c0_182 = arith.constant 0 : index
    %c0_183 = arith.constant 0 : index
    %343 = vector.load %arg13[%c4_181, %c0_182, %c0_183] : memref<6x128x128xbf16, #tpu.memory_space<vmem>>, vector<1x128x128xbf16>
    %344 = vector.shape_cast %343 : vector<1x128x128xbf16> to vector<128x128xbf16>
    %cst_184 = arith.constant dense<0.000000e+00> : vector<64x128xf32>
    %345 = tpu.matmul %342, %344, %cst_184 {dimension_numbers = #tpu.dot_dimension_numbers<[1], [0], [0], [1], [0, 0, 1, 1], [], []>} : vector<64x128xbf16>, vector<128x128xbf16>, vector<64x128xf32> -> vector<64x128xf32>
    %c4_185 = arith.constant 4 : index
    %c0_186 = arith.constant 0 : index
    %c0_187 = arith.constant 0 : index
    %346 = vector.load %arg14[%c4_185, %c0_186, %c0_187] : memref<6x1x128xf32, #tpu.memory_space<vmem>>, vector<1x1x128xf32>
    %347 = vector.shape_cast %346 : vector<1x1x128xf32> to vector<1x128xf32>
    %348 = vector.broadcast %347 : vector<1x128xf32> to vector<64x128xf32>
    %349 = arith.addf %345, %348 : vector<64x128xf32>
    %350 = arith.addf %328, %349 : vector<64x128xf32>
    %351 = arith.truncf %350 : vector<64x128xf32> to vector<64x128xbf16>
    %c5 = arith.constant 5 : index
    %c0_188 = arith.constant 0 : index
    %c0_189 = arith.constant 0 : index
    %352 = vector.load %arg7[%c5, %c0_188, %c0_189] : memref<6x128x384xbf16, #tpu.memory_space<vmem>>, vector<1x128x384xbf16>
    %353 = vector.shape_cast %352 : vector<1x128x384xbf16> to vector<128x384xbf16>
    %cst_190 = arith.constant dense<0.000000e+00> : vector<64x384xf32>
    %354 = tpu.matmul %351, %353, %cst_190 {dimension_numbers = #tpu.dot_dimension_numbers<[1], [0], [0], [1], [0, 0, 1, 1], [], []>} : vector<64x128xbf16>, vector<128x384xbf16>, vector<64x384xf32> -> vector<64x384xf32>
    %c5_191 = arith.constant 5 : index
    %c0_192 = arith.constant 0 : index
    %c0_193 = arith.constant 0 : index
    %355 = vector.load %arg8[%c5_191, %c0_192, %c0_193] : memref<6x1x384xf32, #tpu.memory_space<vmem>>, vector<1x1x384xf32>
    %356 = vector.shape_cast %355 : vector<1x1x384xf32> to vector<1x384xf32>
    %357 = vector.broadcast %356 : vector<1x384xf32> to vector<64x384xf32>
    %358 = arith.addf %354, %357 : vector<64x384xf32>
    %359 = vector.extract_strided_slice %358 {offsets = [0, 0], sizes = [64, 128], strides = [1, 1]} : vector<64x384xf32> to vector<64x128xf32>
    %360 = vector.shape_cast %359 : vector<64x128xf32> to vector<1x64x128xf32>
    %361 = vector.extract_strided_slice %358 {offsets = [0, 128], sizes = [64, 128], strides = [1, 1]} : vector<64x384xf32> to vector<64x128xf32>
    %362 = vector.shape_cast %361 : vector<64x128xf32> to vector<1x64x128xf32>
    %363 = vector.extract_strided_slice %358 {offsets = [0, 256], sizes = [64, 128], strides = [1, 1]} : vector<64x384xf32> to vector<64x128xf32>
    %364 = vector.shape_cast %363 : vector<64x128xf32> to vector<1x64x128xf32>
    %365 = arith.truncf %360 : vector<1x64x128xf32> to vector<1x64x128xbf16>
    %366 = arith.truncf %362 : vector<1x64x128xf32> to vector<1x64x128xbf16>
    "tpu.trace_start"() <{level = 10 : i32, message = "bqd,bkd->bqk"}> : () -> ()
    %cst_194 = arith.constant dense<0.000000e+00> : vector<1x64x64xf32>
    %367 = tpu.matmul %365, %366, %cst_194 {dimension_numbers = #tpu.dot_dimension_numbers<[2], [2], [1], [1], [0, 0, 0, 1, 1, 1], [0], [0]>} : vector<1x64x128xbf16>, vector<1x64x128xbf16>, vector<1x64x64xf32> -> vector<1x64x64xf32>
    "tpu.trace_stop"() : () -> ()
    %cst_195 = arith.constant 0.0883883461 : f32
    %368 = vector.broadcast %cst_195 : f32 to vector<1x64x64xf32>
    %369 = arith.mulf %367, %368 : vector<1x64x64xf32>
    %cst_196 = arith.constant dense<0xFF800000> : vector<1x64xf32>
    %370 = vector.multi_reduction <maximumf>, %369, %cst_196 [2] : vector<1x64x64xf32> to vector<1x64xf32>
    %371 = vector.shape_cast %370 : vector<1x64xf32> to vector<1x64x1xf32>
    %372 = vector.broadcast %371 : vector<1x64x1xf32> to vector<1x64x64xf32>
    %373 = arith.subf %369, %372 : vector<1x64x64xf32>
    %374 = math.exp %373 : vector<1x64x64xf32>
    %cst_197 = arith.constant dense<0.000000e+00> : vector<1x64xf32>
    %375 = vector.multi_reduction <add>, %374, %cst_197 [2] : vector<1x64x64xf32> to vector<1x64xf32>
    %376 = vector.shape_cast %375 : vector<1x64xf32> to vector<1x64x1xf32>
    %377 = tpu.reciprocal %376 {approx = true} : vector<1x64x1xf32> -> vector<1x64x1xf32>
    %378 = vector.broadcast %377 : vector<1x64x1xf32> to vector<1x64x64xf32>
    %379 = arith.mulf %374, %378 : vector<1x64x64xf32>
    %380 = arith.truncf %379 : vector<1x64x64xf32> to vector<1x64x64xbf16>
    %381 = arith.truncf %364 : vector<1x64x128xf32> to vector<1x64x128xbf16>
    "tpu.trace_start"() <{level = 10 : i32, message = "bqk,bkd->bqd"}> : () -> ()
    %cst_198 = arith.constant dense<0.000000e+00> : vector<1x64x128xf32>
    %382 = tpu.matmul %380, %381, %cst_198 {dimension_numbers = #tpu.dot_dimension_numbers<[2], [1], [1], [2], [0, 0, 0, 1, 1, 2], [0], [0]>} : vector<1x64x64xbf16>, vector<1x64x128xbf16>, vector<1x64x128xf32> -> vector<1x64x128xf32>
    "tpu.trace_stop"() : () -> ()
    %383 = vector.shape_cast %382 : vector<1x64x128xf32> to vector<64x128xf32>
    %384 = arith.truncf %383 : vector<64x128xf32> to vector<64x128xbf16>
    %c5_199 = arith.constant 5 : index
    %c0_200 = arith.constant 0 : index
    %c0_201 = arith.constant 0 : index
    %385 = vector.load %arg9[%c5_199, %c0_200, %c0_201] : memref<6x128x128xbf16, #tpu.memory_space<vmem>>, vector<1x128x128xbf16>
    %386 = vector.shape_cast %385 : vector<1x128x128xbf16> to vector<128x128xbf16>
    %cst_202 = arith.constant dense<0.000000e+00> : vector<64x128xf32>
    %387 = tpu.matmul %384, %386, %cst_202 {dimension_numbers = #tpu.dot_dimension_numbers<[1], [0], [0], [1], [0, 0, 1, 1], [], []>} : vector<64x128xbf16>, vector<128x128xbf16>, vector<64x128xf32> -> vector<64x128xf32>
    %c5_203 = arith.constant 5 : index
    %c0_204 = arith.constant 0 : index
    %c0_205 = arith.constant 0 : index
    %388 = vector.load %arg10[%c5_203, %c0_204, %c0_205] : memref<6x1x128xf32, #tpu.memory_space<vmem>>, vector<1x1x128xf32>
    %389 = vector.shape_cast %388 : vector<1x1x128xf32> to vector<1x128xf32>
    %390 = vector.broadcast %389 : vector<1x128xf32> to vector<64x128xf32>
    %391 = arith.addf %387, %390 : vector<64x128xf32>
    %392 = arith.addf %350, %391 : vector<64x128xf32>
    %393 = arith.truncf %392 : vector<64x128xf32> to vector<64x128xbf16>
    %c5_206 = arith.constant 5 : index
    %c0_207 = arith.constant 0 : index
    %c0_208 = arith.constant 0 : index
    %394 = vector.load %arg11[%c5_206, %c0_207, %c0_208] : memref<6x128x128xbf16, #tpu.memory_space<vmem>>, vector<1x128x128xbf16>
    %395 = vector.shape_cast %394 : vector<1x128x128xbf16> to vector<128x128xbf16>
    %cst_209 = arith.constant dense<0.000000e+00> : vector<64x128xf32>
    %396 = tpu.matmul %393, %395, %cst_209 {dimension_numbers = #tpu.dot_dimension_numbers<[1], [0], [0], [1], [0, 0, 1, 1], [], []>} : vector<64x128xbf16>, vector<128x128xbf16>, vector<64x128xf32> -> vector<64x128xf32>
    %c5_210 = arith.constant 5 : index
    %c0_211 = arith.constant 0 : index
    %c0_212 = arith.constant 0 : index
    %397 = vector.load %arg12[%c5_210, %c0_211, %c0_212] : memref<6x1x128xf32, #tpu.memory_space<vmem>>, vector<1x1x128xf32>
    %398 = vector.shape_cast %397 : vector<1x1x128xf32> to vector<1x128xf32>
    %399 = vector.broadcast %398 : vector<1x128xf32> to vector<64x128xf32>
    %400 = arith.addf %396, %399 : vector<64x128xf32>
    %cst_213 = arith.constant 0.000000e+00 : f32
    %401 = vector.broadcast %cst_213 : f32 to vector<64x128xf32>
    %402 = arith.cmpf ogt, %400, %401 : vector<64x128xf32>
    %cst_214 = arith.constant 2.000000e-01 : f32
    %403 = vector.broadcast %cst_214 : f32 to vector<64x128xf32>
    %404 = arith.mulf %403, %400 : vector<64x128xf32>
    %405 = arith.select %402, %400, %404 : vector<64x128xi1>, vector<64x128xf32>
    %406 = arith.truncf %405 : vector<64x128xf32> to vector<64x128xbf16>
    %c5_215 = arith.constant 5 : index
    %c0_216 = arith.constant 0 : index
    %c0_217 = arith.constant 0 : index
    %407 = vector.load %arg13[%c5_215, %c0_216, %c0_217] : memref<6x128x128xbf16, #tpu.memory_space<vmem>>, vector<1x128x128xbf16>
    %408 = vector.shape_cast %407 : vector<1x128x128xbf16> to vector<128x128xbf16>
    %cst_218 = arith.constant dense<0.000000e+00> : vector<64x128xf32>
    %409 = tpu.matmul %406, %408, %cst_218 {dimension_numbers = #tpu.dot_dimension_numbers<[1], [0], [0], [1], [0, 0, 1, 1], [], []>} : vector<64x128xbf16>, vector<128x128xbf16>, vector<64x128xf32> -> vector<64x128xf32>
    %c5_219 = arith.constant 5 : index
    %c0_220 = arith.constant 0 : index
    %c0_221 = arith.constant 0 : index
    %410 = vector.load %arg14[%c5_219, %c0_220, %c0_221] : memref<6x1x128xf32, #tpu.memory_space<vmem>>, vector<1x1x128xf32>
    %411 = vector.shape_cast %410 : vector<1x1x128xf32> to vector<1x128xf32>
    %412 = vector.broadcast %411 : vector<1x128xf32> to vector<64x128xf32>
    %413 = arith.addf %409, %412 : vector<64x128xf32>
    %414 = arith.addf %392, %413 : vector<64x128xf32>
    %415 = vector.shape_cast %414 : vector<64x128xf32> to vector<1x64x128xf32>
    %416 = vector.extract_strided_slice %415 {offsets = [0, 63, 0], sizes = [1, 1, 128], strides = [1, 1, 1]} : vector<1x64x128xf32> to vector<1x1x128xf32>
    %417 = vector.shape_cast %416 : vector<1x1x128xf32> to vector<1x128xf32>
    %418 = arith.truncf %417 : vector<1x128xf32> to vector<1x128xbf16>
    %c0_222 = arith.constant 0 : index
    %c0_223 = arith.constant 0 : index
    %419 = vector.load %arg15[%c0_222, %c0_223] : memref<128x128xbf16, #tpu.memory_space<vmem>>, vector<128x128xbf16>
    %cst_224 = arith.constant dense<0.000000e+00> : vector<1x128xf32>
    %420 = tpu.matmul %418, %419, %cst_224 {dimension_numbers = #tpu.dot_dimension_numbers<[1], [0], [0], [1], [0, 0, 1, 1], [], []>} : vector<1x128xbf16>, vector<128x128xbf16>, vector<1x128xf32> -> vector<1x128xf32>
    %c0_225 = arith.constant 0 : index
    %c0_226 = arith.constant 0 : index
    %421 = vector.load %arg16[%c0_225, %c0_226] : memref<1x128xf32, #tpu.memory_space<vmem>>, vector<1x128xf32>
    %422 = arith.addf %420, %421 : vector<1x128xf32>
    %423 = vector.shape_cast %422 : vector<1x128xf32> to vector<1x1x128xf32>
    %c0_227 = arith.constant 0 : index
    %c0_228 = arith.constant 0 : index
    %c0_229 = arith.constant 0 : index
    %424 = vector.load %arg17[%c0_227, %c0_228, %c0_229] : memref<1x1x128xf32, #tpu.memory_space<vmem>>, vector<1x1x128xf32>
    tpu.vector_store %arg17[%c0_227, %c0_228, %c0_229], %423 {strides = array<i32>} : memref<1x1x128xf32, #tpu.memory_space<vmem>>, vector<1x1x128xf32>,
    return
  }
  func.func @transform_0(%arg0: i32) -> (i32, i32) {
    %c0_i32 = arith.constant 0 : i32
    %c0_i32_0 = arith.constant 0 : i32
    return %arg0, %c0_i32 : i32, i32
  }
  func.func @transform_1(%arg0: i32) -> (i32, i32) {
    %c0_i32 = arith.constant 0 : i32
    %c0_i32_0 = arith.constant 0 : i32
    %c0_i32_1 = arith.constant 0 : i32
    return %c0_i32, %c0_i32_0 : i32, i32
  }
  func.func @transform_2(%arg0: i32) -> (i32, i32) {
    %c0_i32 = arith.constant 0 : i32
    %c0_i32_0 = arith.constant 0 : i32
    %c0_i32_1 = arith.constant 0 : i32
    return %c0_i32, %c0_i32_0 : i32, i32
  }
  func.func @transform_3(%arg0: i32) -> (i32, i32) {
    %c0_i32 = arith.constant 0 : i32
    %c0_i32_0 = arith.constant 0 : i32
    %c0_i32_1 = arith.constant 0 : i32
    return %c0_i32, %c0_i32_0 : i32, i32
  }
  func.func @transform_4(%arg0: i32) -> (i32, i32) {
    %c0_i32 = arith.constant 0 : i32
    %c0_i32_0 = arith.constant 0 : i32
    %c0_i32_1 = arith.constant 0 : i32
    return %c0_i32, %c0_i32_0 : i32, i32
  }
  func.func @transform_5(%arg0: i32) -> (i32, i32) {
    %c0_i32 = arith.constant 0 : i32
    %c0_i32_0 = arith.constant 0 : i32
    %c0_i32_1 = arith.constant 0 : i32
    return %c0_i32, %c0_i32_0 : i32, i32
  }
  func.func @transform_6(%arg0: i32) -> (i32, i32, i32) {
    %c0_i32 = arith.constant 0 : i32
    %c0_i32_0 = arith.constant 0 : i32
    %c0_i32_1 = arith.constant 0 : i32
    %c0_i32_2 = arith.constant 0 : i32
    return %c0_i32, %c0_i32_0, %c0_i32_1 : i32, i32, i32
  }
  func.func @transform_7(%arg0: i32) -> (i32, i32, i32) {
    %c0_i32 = arith.constant 0 : i32
    %c0_i32_0 = arith.constant 0 : i32
    %c0_i32_1 = arith.constant 0 : i32
    %c0_i32_2 = arith.constant 0 : i32
    return %c0_i32, %c0_i32_0, %c0_i32_1 : i32, i32, i32
  }
  func.func @transform_8(%arg0: i32) -> (i32, i32, i32) {
    %c0_i32 = arith.constant 0 : i32
    %c0_i32_0 = arith.constant 0 : i32
    %c0_i32_1 = arith.constant 0 : i32
    %c0_i32_2 = arith.constant 0 : i32
    return %c0_i32, %c0_i32_0, %c0_i32_1 : i32, i32, i32
  }
  func.func @transform_9(%arg0: i32) -> (i32, i32, i32) {
    %c0_i32 = arith.constant 0 : i32
    %c0_i32_0 = arith.constant 0 : i32
    %c0_i32_1 = arith.constant 0 : i32
    %c0_i32_2 = arith.constant 0 : i32
    return %c0_i32, %c0_i32_0, %c0_i32_1 : i32, i32, i32
  }
  func.func @transform_10(%arg0: i32) -> (i32, i32, i32) {
    %c0_i32 = arith.constant 0 : i32
    %c0_i32_0 = arith.constant 0 : i32
    %c0_i32_1 = arith.constant 0 : i32
    %c0_i32_2 = arith.constant 0 : i32
    return %c0_i32, %c0_i32_0, %c0_i32_1 : i32, i32, i32
  }
  func.func @transform_11(%arg0: i32) -> (i32, i32, i32) {
    %c0_i32 = arith.constant 0 : i32
    %c0_i32_0 = arith.constant 0 : i32
    %c0_i32_1 = arith.constant 0 : i32
    %c0_i32_2 = arith.constant 0 : i32
    return %c0_i32, %c0_i32_0, %c0_i32_1 : i32, i32, i32
  }
  func.func @transform_12(%arg0: i32) -> (i32, i32, i32) {
    %c0_i32 = arith.constant 0 : i32
    %c0_i32_0 = arith.constant 0 : i32
    %c0_i32_1 = arith.constant 0 : i32
    %c0_i32_2 = arith.constant 0 : i32
    return %c0_i32, %c0_i32_0, %c0_i32_1 : i32, i32, i32
  }
  func.func @transform_13(%arg0: i32) -> (i32, i32, i32) {
    %c0_i32 = arith.constant 0 : i32
    %c0_i32_0 = arith.constant 0 : i32
    %c0_i32_1 = arith.constant 0 : i32
    %c0_i32_2 = arith.constant 0 : i32
    return %c0_i32, %c0_i32_0, %c0_i32_1 : i32, i32, i32
  }
  func.func @transform_14(%arg0: i32) -> (i32, i32) {
    %c0_i32 = arith.constant 0 : i32
    %c0_i32_0 = arith.constant 0 : i32
    %c0_i32_1 = arith.constant 0 : i32
    return %c0_i32, %c0_i32_0 : i32, i32
  }
  func.func @transform_15(%arg0: i32) -> (i32, i32) {
    %c0_i32 = arith.constant 0 : i32
    %c0_i32_0 = arith.constant 0 : i32
    %c0_i32_1 = arith.constant 0 : i32
    return %c0_i32, %c0_i32_0 : i32, i32
  }
  func.func @transform_16(%arg0: i32) -> (i32, i32, i32) {
    %c0_i32 = arith.constant 0 : i32
    %c0_i32_0 = arith.constant 0 : i32
    %c0_i32_1 = arith.constant 0 : i32
    return %arg0, %c0_i32, %c0_i32_0 : i32, i32, i32
  }
}

</mosaic_0001>

<llo_original>
// kernel: encoder_forward.1
$region0: #{encoder_forward.1}
  #allocation0 [shape = 'u32[]', space=smem, size = 0x4, offset = 0x4, fixed_abs, tag = 'smem constant byte address 0x4 - core index']
  #allocation1 [shape = 'u32[144,128]{1,0:T(1,128)}', space=vmem, size = 0x12000, scoped, tag = 'internal scratch']
  %s0 = inlined_call_operand.vmem [shape: f32[128,512], index: 0, kind: input, shape index: {}]
  %s1 = inlined_call_operand.vmem [shape: bf16[512,768], index: 1, kind: input, shape index: {}]
  %s2 = inlined_call_operand.hbm [shape: bf16[384,128], index: 2, kind: input, shape index: {}]
  %s3 = inlined_call_operand.vmem [shape: f32[1,128], index: 3, kind: input, shape index: {}]
  %s4 = inlined_call_operand.vmem [shape: bf16[128,128], index: 4, kind: input, shape index: {}]
  %s5 = inlined_call_operand.vmem [shape: f32[1,128], index: 5, kind: input, shape index: {}]
  %s6 = inlined_call_operand.vmem [shape: bf16[6,128,384], index: 6, kind: input, shape index: {}]
  %s7 = inlined_call_operand.vmem [shape: f32[6,1,384], index: 7, kind: input, shape index: {}]
  %s8 = inlined_call_operand.vmem [shape: bf16[6,128,128], index: 8, kind: input, shape index: {}]
  %s9 = inlined_call_operand.vmem [shape: f32[6,1,128], index: 9, kind: input, shape index: {}]
  %s10 = inlined_call_operand.vmem [shape: bf16[6,128,128], index: 10, kind: input, shape index: {}]
  %s11 = inlined_call_operand.vmem [shape: f32[6,1,128], index: 11, kind: input, shape index: {}]
  %s12 = inlined_call_operand.hbm [shape: bf16[6,128,128], index: 12, kind: input, shape index: {}]
  %s13 = inlined_call_operand.vmem [shape: f32[6,1,128], index: 13, kind: input, shape index: {}]
  %s14 = inlined_call_operand.vmem [shape: bf16[128,128], index: 14, kind: input, shape index: {}]
  %s15 = inlined_call_operand.vmem [shape: f32[1,128], index: 15, kind: input, shape index: {}]
  %s16 = inlined_call_operand.hbm [shape: f32[2,1,128], index: 16, kind: output, shape index: {}]
  %s17 = sld [smem:[#allocation0]]
  $region105: #{encoder_forward.1} parent=0
    _
  %s19 = ssub.s32 1, %s17
  %s20 = scalar_select 0, %s19, %s17
  $region1: #{encoder_forward.1} parent=0
    #allocation2 [shape = 'u8[98304]{0}', space=vmem, size = 0x18000, scoped, tag = 'input window, operand 2, single buffered']
    #allocation3 [shape = 's32[2]{0}', space=sflag, size = 0x8, scoped, tag = 'scoped memory for encoder_forward.1']
    #allocation4 [shape = 's32[2]{0}', space=sflag, size = 0x8, scoped, tag = 'scoped memory for encoder_forward.1']
    #allocation5 [shape = 'u8[196608]{0}', space=vmem, size = 0x30000, scoped, tag = 'input window, operand 12, single buffered']
    #allocation6 [shape = 's32[1]{0}', space=sflag, size = 0x4, scoped, tag = 'scoped memory for encoder_forward.1']
    #allocation7 [shape = 'u8[1024]{0}', space=vmem, size = 0x400, scoped, tag = 'output window, operand 0']
    %21 = vsyncpa [#allocation3], 0
    %22 = vsyncpa [#allocation6], 0
    %23 = vsyncpa [#allocation4], 0
    %s24 = scalar_lea.sflag [#allocation4], 1
    %25 = vsyncpa %s24, 0
    loop: start=0, step=1, limit=4
    $region2: #{encoder_forward.1} parent=1 // loop_pre_header
      _
    $region3: #{encoder_forward.1} parent=1 // loop_header
      %s27 = sphi 0, %s31
      %p28 = scmp.ge.s32.totalorder %s27, 4
      %s37 = sphi 0, %s39
      %s40 = sphi 0, %s37
      %s41 = sphi 0, %s40
      %s57 = sphi 0, %s41
      %s61 = sphi 0, %s61
      %s63 = sphi 0, %s61
      %s64 = sphi 0, %s63
      %s78 = sphi 0, %s64
      %s82 = sphi 0, %s82
      %s84 = sphi 0, %s82
      %s85 = sphi 0, %s84
      %s99 = sphi 0, %s85
      %s103 = sphi 0, %s103
      %s105 = sphi 0, %s103
      %s106 = sphi 0, %s105
      %s120 = sphi 0, %s106
      %s124 = sphi 0, %s124
      %s126 = sphi 0, %s124
      %s127 = sphi 0, %s126
      %s141 = sphi 0, %s127
      %s145 = sphi 0, %s145
      %s147 = sphi 0, %s145
      %s148 = sphi 0, %s147
      %s162 = sphi 0, %s148
      %s166 = sphi 0, %s166
      %s168 = sphi 0, %s166
      %s169 = sphi 0, %s168
      %s183 = sphi 0, %s169
      %s187 = sphi 0, %s187
      %s189 = sphi 0, %s187
      %s190 = sphi 0, %s189
      %s204 = sphi 0, %s190
      %s208 = sphi 0, %s208
      %s210 = sphi 0, %s208
      %s211 = sphi 0, %s210
      %s225 = sphi 0, %s211
      %s229 = sphi 0, %s229
      %s231 = sphi 0, %s229
      %s232 = sphi 0, %s231
      %s246 = sphi 0, %s232
      %s250 = sphi 0, %s250
      %s252 = sphi 0, %s250
      %s253 = sphi 0, %s252
      %s267 = sphi 0, %s253
      %s271 = sphi 0, %s271
      %s273 = sphi 0, %s271
      %s274 = sphi 0, %s273
      %s288 = sphi 0, %s274
      %s292 = sphi 0, %s292
      %s294 = sphi 0, %s292
      %s295 = sphi 0, %s294
      %s309 = sphi 0, %s295
      %s313 = sphi 0, %s313
      %s315 = sphi 0, %s313
      %s316 = sphi 0, %s315
      %s330 = sphi 0, %s316
      %s334 = sphi 0, %s334
      %s336 = sphi 0, %s334
      %s337 = sphi 0, %s336
      %s351 = sphi 0, %s337
      %s355 = sphi 0, %s355
      %s357 = sphi 0, %s355
      %s358 = sphi 0, %s357
      %s372 = sphi 0, %s358
      %s378 = sphi 0, %s380
      %s381 = sphi 0, %s378
      %s382 = sphi 0, %s381
      %s398 = sphi 0, %s382
    $region4: #{encoder_forward.1} parent=1 // loop_header_branch
      %30 = sbr.rel (%p28) target = $region8
    $region5: #{encoder_forward.1} parent=1 // loop_body
      %s32 = ssub.s32 %s27, 1
      %s33 = ssub.s32 %s27, 2
      %s34 = sadd.s32 %s27, 1
      %s35 = ssub.s32 %s27, %s34
      %p36 = scmp.eq.s32.totalorder %s35, 0
      %s38 = sadd.s32 %s37, 1
      %s39 = scalar_select %p36, %s37, %s38
      %p42 = pneg %p36
      %p43 = scmp.eq.s32.totalorder %s27, 1
      %p44 = por %p42, %p43
      %p45 = scmp.ne.s32.totalorder %s37, %s40
      %p46 = scmp.eq.s32.totalorder %s27, 0
      %p47 = por %p45, %p46
      %p48 = scmp.ne.s32.totalorder %s37, %s40
      %p49 = scmp.eq.s32.totalorder %s32, 1
      %p50 = por %p48, %p49
      %p51 = scmp.ne.s32.totalorder %s40, %s41
      %p52 = scmp.eq.s32.totalorder %s32, 0
      %p53 = por %p51, %p52
      %p54 = scmp.ne.s32.totalorder %s40, %s41
      %p55 = scmp.eq.s32.totalorder %s33, 1
      %p56 = por %p54, %p55
      %p58 = scmp.ne.s32.totalorder %s41, %s57
      %p59 = scmp.eq.s32.totalorder %s33, 0
      %p60 = por %p58, %p59
      %s62 = sadd.s32 %s61, 1
      %p65 = scmp.eq.s32.totalorder %s27, 1
      %p66 = scmp.ne.s32.totalorder %s61, %s63
      %p67 = scmp.eq.s32.totalorder %s27, 0
      %p68 = por %p66, %p67
      %p69 = scmp.ne.s32.totalorder %s61, %s63
      %p70 = scmp.eq.s32.totalorder %s32, 1
      %p71 = por %p69, %p70
      %p72 = scmp.ne.s32.totalorder %s63, %s64
      %p73 = scmp.eq.s32.totalorder %s32, 0
      %p74 = por %p72, %p73
      %p75 = scmp.ne.s32.totalorder %s63, %s64
      %p76 = scmp.eq.s32.totalorder %s33, 1
      %p77 = por %p75, %p76
      %p79 = scmp.ne.s32.totalorder %s64, %s78
      %p80 = scmp.eq.s32.totalorder %s33, 0
      %p81 = por %p79, %p80
      %s83 = sadd.s32 %s82, 1
      %p86 = scmp.eq.s32.totalorder %s27, 1
      %p87 = scmp.ne.s32.totalorder %s82, %s84
      %p88 = scmp.eq.s32.totalorder %s27, 0
      %p89 = por %p87, %p88
      %p90 = scmp.ne.s32.totalorder %s82, %s84
      %p91 = scmp.eq.s32.totalorder %s32, 1
      %p92 = por %p90, %p91
      %p93 = scmp.ne.s32.totalorder %s84, %s85
      %p94 = scmp.eq.s32.totalorder %s32, 0
      %p95 = por %p93, %p94
      %p96 = scmp.ne.s32.totalorder %s84, %s85
      %p97 = scmp.eq.s32.totalorder %s33, 1
      %p98 = por %p96, %p97
      %p100 = scmp.ne.s32.totalorder %s85, %s99
      %p101 = scmp.eq.s32.totalorder %s33, 0
      %p102 = por %p100, %p101
      %s104 = sadd.s32 %s103, 1
      %p107 = scmp.eq.s32.totalorder %s27, 1
      %p108 = scmp.ne.s32.totalorder %s103, %s105
      %p109 = scmp.eq.s32.totalorder %s27, 0
      %p110 = por %p108, %p109
      %p111 = scmp.ne.s32.totalorder %s103, %s105
      %p112 = scmp.eq.s32.totalorder %s32, 1
      %p113 = por %p111, %p112
      %p114 = scmp.ne.s32.totalorder %s105, %s106
      %p115 = scmp.eq.s32.totalorder %s32, 0
      %p116 = por %p114, %p115
      %p117 = scmp.ne.s32.totalorder %s105, %s106
      %p118 = scmp.eq.s32.totalorder %s33, 1
      %p119 = por %p117, %p118
      %p121 = scmp.ne.s32.totalorder %s106, %s120
      %p122 = scmp.eq.s32.totalorder %s33, 0
      %p123 = por %p121, %p122
      %s125 = sadd.s32 %s124, 1
      %p128 = scmp.eq.s32.totalorder %s27, 1
      %p129 = scmp.ne.s32.totalorder %s124, %s126
      %p130 = scmp.eq.s32.totalorder %s27, 0
      %p131 = por %p129, %p130
      %p132 = scmp.ne.s32.totalorder %s124, %s126
      %p133 = scmp.eq.s32.totalorder %s32, 1
      %p134 = por %p132, %p133
      %p135 = scmp.ne.s32.totalorder %s126, %s127
      %p136 = scmp.eq.s32.totalorder %s32, 0
      %p137 = por %p135, %p136
      %p138 = scmp.ne.s32.totalorder %s126, %s127
      %p139 = scmp.eq.s32.totalorder %s33, 1
      %p140 = por %p138, %p139
      %p142 = scmp.ne.s32.totalorder %s127, %s141
      %p143 = scmp.eq.s32.totalorder %s33, 0
      %p144 = por %p142, %p143
      %s146 = sadd.s32 %s145, 1
      %p149 = scmp.eq.s32.totalorder %s27, 1
      %p150 = scmp.ne.s32.totalorder %s145, %s147
      %p151 = scmp.eq.s32.totalorder %s27, 0
      %p152 = por %p150, %p151
      %p153 = scmp.ne.s32.totalorder %s145, %s147
      %p154 = scmp.eq.s32.totalorder %s32, 1
      %p155 = por %p153, %p154
      %p156 = scmp.ne.s32.totalorder %s147, %s148
      %p157 = scmp.eq.s32.totalorder %s32, 0
      %p158 = por %p156, %p157
      %p159 = scmp.ne.s32.totalorder %s147, %s148
      %p160 = scmp.eq.s32.totalorder %s33, 1
      %p161 = por %p159, %p160
      %p163 = scmp.ne.s32.totalorder %s148, %s162
      %p164 = scmp.eq.s32.totalorder %s33, 0
      %p165 = por %p163, %p164
      %s167 = sadd.s32 %s166, 1
      %p170 = scmp.eq.s32.totalorder %s27, 1
      %p171 = scmp.ne.s32.totalorder %s166, %s168
      %p172 = scmp.eq.s32.totalorder %s27, 0
      %p173 = por %p171, %p172
      %p174 = scmp.ne.s32.totalorder %s166, %s168
      %p175 = scmp.eq.s32.totalorder %s32, 1
      %p176 = por %p174, %p175
      %p177 = scmp.ne.s32.totalorder %s168, %s169
      %p178 = scmp.eq.s32.totalorder %s32, 0
      %p179 = por %p177, %p178
      %p180 = scmp.ne.s32.totalorder %s168, %s169
      %p181 = scmp.eq.s32.totalorder %s33, 1
      %p182 = por %p180, %p181
      %p184 = scmp.ne.s32.totalorder %s169, %s183
      %p185 = scmp.eq.s32.totalorder %s33, 0
      %p186 = por %p184, %p185
      %s188 = sadd.s32 %s187, 1
      %p191 = scmp.eq.s32.totalorder %s27, 1
      %p192 = scmp.ne.s32.totalorder %s187, %s189
      %p193 = scmp.eq.s32.totalorder %s27, 0
      %p194 = por %p192, %p193
      %p195 = scmp.ne.s32.totalorder %s187, %s189
      %p196 = scmp.eq.s32.totalorder %s32, 1
      %p197 = por %p195, %p196
      %p198 = scmp.ne.s32.totalorder %s189, %s190
      %p199 = scmp.eq.s32.totalorder %s32, 0
      %p200 = por %p198, %p199
      %p201 = scmp.ne.s32.totalorder %s189, %s190
      %p202 = scmp.eq.s32.totalorder %s33, 1
      %p203 = por %p201, %p202
      %p205 = scmp.ne.s32.totalorder %s190, %s204
      %p206 = scmp.eq.s32.totalorder %s33, 0
      %p207 = por %p205, %p206
      %s209 = sadd.s32 %s208, 1
      %p212 = scmp.eq.s32.totalorder %s27, 1
      %p213 = scmp.ne.s32.totalorder %s208, %s210
      %p214 = scmp.eq.s32.totalorder %s27, 0
      %p215 = por %p213, %p214
      %p216 = scmp.ne.s32.totalorder %s208, %s210
      %p217 = scmp.eq.s32.totalorder %s32, 1
      %p218 = por %p216, %p217
      %p219 = scmp.ne.s32.totalorder %s210, %s211
      %p220 = scmp.eq.s32.totalorder %s32, 0
      %p221 = por %p219, %p220
      %p222 = scmp.ne.s32.totalorder %s210, %s211
      %p223 = scmp.eq.s32.totalorder %s33, 1
      %p224 = por %p222, %p223
      %p226 = scmp.ne.s32.totalorder %s211, %s225
      %p227 = scmp.eq.s32.totalorder %s33, 0
      %p228 = por %p226, %p227
      %s230 = sadd.s32 %s229, 1
      %p233 = scmp.eq.s32.totalorder %s27, 1
      %p234 = scmp.ne.s32.totalorder %s229, %s231
      %p235 = scmp.eq.s32.totalorder %s27, 0
      %p236 = por %p234, %p235
      %p237 = scmp.ne.s32.totalorder %s229, %s231
      %p238 = scmp.eq.s32.totalorder %s32, 1
      %p239 = por %p237, %p238
      %p240 = scmp.ne.s32.totalorder %s231, %s232
      %p241 = scmp.eq.s32.totalorder %s32, 0
      %p242 = por %p240, %p241
      %p243 = scmp.ne.s32.totalorder %s231, %s232
      %p244 = scmp.eq.s32.totalorder %s33, 1
      %p245 = por %p243, %p244
      %p247 = scmp.ne.s32.totalorder %s232, %s246
      %p248 = scmp.eq.s32.totalorder %s33, 0
      %p249 = por %p247, %p248
      %s251 = sadd.s32 %s250, 1
      %p254 = scmp.eq.s32.totalorder %s27, 1
      %p255 = scmp.ne.s32.totalorder %s250, %s252
      %p256 = scmp.eq.s32.totalorder %s27, 0
      %p257 = por %p255, %p256
      %p258 = scmp.ne.s32.totalorder %s250, %s252
      %p259 = scmp.eq.s32.totalorder %s32, 1
      %p260 = por %p258, %p259
      %p261 = scmp.ne.s32.totalorder %s252, %s253
      %p262 = scmp.eq.s32.totalorder %s32, 0
      %p263 = por %p261, %p262
      %p264 = scmp.ne.s32.totalorder %s252, %s253
      %p265 = scmp.eq.s32.totalorder %s33, 1
      %p266 = por %p264, %p265
      %p268 = scmp.ne.s32.totalorder %s253, %s267
      %p269 = scmp.eq.s32.totalorder %s33, 0
      %p270 = por %p268, %p269
      %s272 = sadd.s32 %s271, 1
      %p275 = scmp.eq.s32.totalorder %s27, 1
      %p276 = scmp.ne.s32.totalorder %s271, %s273
      %p277 = scmp.eq.s32.totalorder %s27, 0
      %p278 = por %p276, %p277
      %p279 = scmp.ne.s32.totalorder %s271, %s273
      %p280 = scmp.eq.s32.totalorder %s32, 1
      %p281 = por %p279, %p280
      %p282 = scmp.ne.s32.totalorder %s273, %s274
      %p283 = scmp.eq.s32.totalorder %s32, 0
      %p284 = por %p282, %p283
      %p285 = scmp.ne.s32.totalorder %s273, %s274
      %p286 = scmp.eq.s32.totalorder %s33, 1
      %p287 = por %p285, %p286
      %p289 = scmp.ne.s32.totalorder %s274, %s288
      %p290 = scmp.eq.s32.totalorder %s33, 0
      %p291 = por %p289, %p290
      %s293 = sadd.s32 %s292, 1
      %p296 = scmp.eq.s32.totalorder %s27, 1
      %p297 = scmp.ne.s32.totalorder %s292, %s294
      %p298 = scmp.eq.s32.totalorder %s27, 0
      %p299 = por %p297, %p298
      %p300 = scmp.ne.s32.totalorder %s292, %s294
      %p301 = scmp.eq.s32.totalorder %s32, 1
      %p302 = por %p300, %p301
      %p303 = scmp.ne.s32.totalorder %s294, %s295
      %p304 = scmp.eq.s32.totalorder %s32, 0
      %p305 = por %p303, %p304
      %p306 = scmp.ne.s32.totalorder %s294, %s295
      %p307 = scmp.eq.s32.totalorder %s33, 1
      %p308 = por %p306, %p307
      %p310 = scmp.ne.s32.totalorder %s295, %s309
      %p311 = scmp.eq.s32.totalorder %s33, 0
      %p312 = por %p310, %p311
      %s314 = sadd.s32 %s313, 1
      %p317 = scmp.eq.s32.totalorder %s27, 1
      %p318 = scmp.ne.s32.totalorder %s313, %s315
      %p319 = scmp.eq.s32.totalorder %s27, 0
      %p320 = por %p318, %p319
      %p321 = scmp.ne.s32.totalorder %s313, %s315
      %p322 = scmp.eq.s32.totalorder %s32, 1
      %p323 = por %p321, %p322
      %p324 = scmp.ne.s32.totalorder %s315, %s316
      %p325 = scmp.eq.s32.totalorder %s32, 0
      %p326 = por %p324, %p325
      %p327 = scmp.ne.s32.totalorder %s315, %s316
      %p328 = scmp.eq.s32.totalorder %s33, 1
      %p329 = por %p327, %p328
      %p331 = scmp.ne.s32.totalorder %s316, %s330
      %p332 = scmp.eq.s32.totalorder %s33, 0
      %p333 = por %p331, %p332
      %s335 = sadd.s32 %s334, 1
      %p338 = scmp.eq.s32.totalorder %s27, 1
      %p339 = scmp.ne.s32.totalorder %s334, %s336
      %p340 = scmp.eq.s32.totalorder %s27, 0
      %p341 = por %p339, %p340
      %p342 = scmp.ne.s32.totalorder %s334, %s336
      %p343 = scmp.eq.s32.totalorder %s32, 1
      %p344 = por %p342, %p343
      %p345 = scmp.ne.s32.totalorder %s336, %s337
      %p346 = scmp.eq.s32.totalorder %s32, 0
      %p347 = por %p345, %p346
      %p348 = scmp.ne.s32.totalorder %s336, %s337
      %p349 = scmp.eq.s32.totalorder %s33, 1
      %p350 = por %p348, %p349
      %p352 = scmp.ne.s32.totalorder %s337, %s351
      %p353 = scmp.eq.s32.totalorder %s33, 0
      %p354 = por %p352, %p353
      %s356 = sadd.s32 %s355, 1
      %p359 = scmp.eq.s32.totalorder %s27, 1
      %p360 = scmp.ne.s32.totalorder %s355, %s357
      %p361 = scmp.eq.s32.totalorder %s27, 0
      %p362 = por %p360, %p361
      %p363 = scmp.ne.s32.totalorder %s355, %s357
      %p364 = scmp.eq.s32.totalorder %s32, 1
      %p365 = por %p363, %p364
      %p366 = scmp.ne.s32.totalorder %s357, %s358
      %p367 = scmp.eq.s32.totalorder %s32, 0
      %p368 = por %p366, %p367
      %p369 = scmp.ne.s32.totalorder %s357, %s358
      %p370 = scmp.eq.s32.totalorder %s33, 1
      %p371 = por %p369, %p370
      %p373 = scmp.ne.s32.totalorder %s358, %s372
      %p374 = scmp.eq.s32.totalorder %s33, 0
      %p375 = por %p373, %p374
      %s376 = ssub.s32 %s27, %s34
      %p377 = scmp.eq.s32.totalorder %s376, 0
      %s379 = sadd.s32 %s378, 1
      %s380 = scalar_select %p377, %s378, %s379
      %p383 = pneg %p377
      %p384 = scmp.eq.s32.totalorder %s27, 1
      %p385 = por %p383, %p384
      %p386 = scmp.ne.s32.totalorder %s378, %s381
      %p387 = scmp.eq.s32.totalorder %s27, 0
      %p388 = por %p386, %p387
      %p389 = scmp.ne.s32.totalorder %s378, %s381
      %p390 = scmp.eq.s32.totalorder %s32, 1
      %p391 = por %p389, %p390
      %p392 = scmp.ne.s32.totalorder %s381, %s382
      %p393 = scmp.eq.s32.totalorder %s32, 0
      %p394 = por %p392, %p393
      %p395 = scmp.ne.s32.totalorder %s381, %s382
      %p396 = scmp.eq.s32.totalorder %s33, 1
      %p397 = por %p395, %p396
      %p399 = scmp.ne.s32.totalorder %s382, %s398
      %p400 = scmp.eq.s32.totalorder %s33, 0
      %p401 = por %p399, %p400
      %p402 = scmp.le.s32.totalorder 1, %s27
      %p403 = scmp.lt.s32.totalorder %s27, 3
      %p404 = pnand %p402, %p403
      %p405 = pneg %p404
      // Predicated region
      $region9: #{encoder_forward.1} parent=5 // pred_check
        _
      $region10: #{encoder_forward.1} parent=5 // pred_check_branch
        %407 = sbr.rel (%p404) target = $region12
      $region11: #{encoder_forward.1} parent=5 // pred_region
        %s408 = ssub.s32 %s27, 1
        // Predicated region
        $region13: #{encoder_forward.1} parent=11 // pred_check
          %p409 = pneg %p74
        $region14: #{encoder_forward.1} parent=11 // pred_check_branch
          %411 = sbr.rel (%p409) target = $region16
        $region15: #{encoder_forward.1} parent=11 // pred_region
          _
        $region16: #{encoder_forward.1} parent=11 // pred_fallthru
          _
        // Predicated region
        $region17: #{encoder_forward.1} parent=11 // pred_check
          %p412 = pneg %p95
        $region18: #{encoder_forward.1} parent=11 // pred_check_branch
          %414 = sbr.rel (%p412) target = $region20
        $region19: #{encoder_forward.1} parent=11 // pred_region
          %s416 = ssub.s32 3072, 3072
          %417 = vsyncadd [#allocation3], %s416
          %s418 = sshll.u32 [#allocation2], 4
          %s419 = int_to_ptr.vmem [resolvable:$true] %s418
          %424 = dma.hbm_to_vmem [thread:$0]  %s2, 3072, %s419, [#allocation3], 64, 64, 4
        $region20: #{encoder_forward.1} parent=11 // pred_fallthru
          _
        // Predicated region
        $region21: #{encoder_forward.1} parent=11 // pred_check
          %p425 = pneg %p116
        $region22: #{encoder_forward.1} parent=11 // pred_check_branch
          %427 = sbr.rel (%p425) target = $region24
        $region23: #{encoder_forward.1} parent=11 // pred_region
          _
        $region24: #{encoder_forward.1} parent=11 // pred_fallthru
          _
        // Predicated region
        $region25: #{encoder_forward.1} parent=11 // pred_check
          %p428 = pneg %p137
        $region26: #{encoder_forward.1} parent=11 // pred_check_branch
          %430 = sbr.rel (%p428) target = $region28
        $region27: #{encoder_forward.1} parent=11 // pred_region
          _
        $region28: #{encoder_forward.1} parent=11 // pred_fallthru
          _
        // Predicated region
        $region29: #{encoder_forward.1} parent=11 // pred_check
          %p431 = pneg %p158
        $region30: #{encoder_forward.1} parent=11 // pred_check_branch
          %433 = sbr.rel (%p431) target = $region32
        $region31: #{encoder_forward.1} parent=11 // pred_region
          _
        $region32: #{encoder_forward.1} parent=11 // pred_fallthru
          _
        // Predicated region
        $region33: #{encoder_forward.1} parent=11 // pred_check
          %p434 = pneg %p179
        $region34: #{encoder_forward.1} parent=11 // pred_check_branch
          %436 = sbr.rel (%p434) target = $region36
        $region35: #{encoder_forward.1} parent=11 // pred_region
          _
        $region36: #{encoder_forward.1} parent=11 // pred_fallthru
          _
        // Predicated region
        $region37: #{encoder_forward.1} parent=11 // pred_check
          %p437 = pneg %p200
        $region38: #{encoder_forward.1} parent=11 // pred_check_branch
          %439 = sbr.rel (%p437) target = $region40
        $region39: #{encoder_forward.1} parent=11 // pred_region
          _
        $region40: #{encoder_forward.1} parent=11 // pred_fallthru
          _
        // Predicated region
        $region41: #{encoder_forward.1} parent=11 // pred_check
          %p440 = pneg %p221
        $region42: #{encoder_forward.1} parent=11 // pred_check_branch
          %442 = sbr.rel (%p440) target = $region44
        $region43: #{encoder_forward.1} parent=11 // pred_region
          _
        $region44: #{encoder_forward.1} parent=11 // pred_fallthru
          _
        // Predicated region
        $region45: #{encoder_forward.1} parent=11 // pred_check
          %p443 = pneg %p242
        $region46: #{encoder_forward.1} parent=11 // pred_check_branch
          %445 = sbr.rel (%p443) target = $region48
        $region47: #{encoder_forward.1} parent=11 // pred_region
          _
        $region48: #{encoder_forward.1} parent=11 // pred_fallthru
          _
        // Predicated region
        $region49: #{encoder_forward.1} parent=11 // pred_check
          %p446 = pneg %p263
        $region50: #{encoder_forward.1} parent=11 // pred_check_branch
          %448 = sbr.rel (%p446) target = $region52
        $region51: #{encoder_forward.1} parent=11 // pred_region
          _
        $region52: #{encoder_forward.1} parent=11 // pred_fallthru
          _
        // Predicated region
        $region53: #{encoder_forward.1} parent=11 // pred_check
          %p449 = pneg %p284
        $region54: #{encoder_forward.1} parent=11 // pred_check_branch
          %451 = sbr.rel (%p449) target = $region56
        $region55: #{encoder_forward.1} parent=11 // pred_region
          _
        $region56: #{encoder_forward.1} parent=11 // pred_fallthru
          _
        // Predicated region
        $region57: #{encoder_forward.1} parent=11 // pred_check
          %p452 = pneg %p305
        $region58: #{encoder_forward.1} parent=11 // pred_check_branch
          %454 = sbr.rel (%p452) target = $region60
        $region59: #{encoder_forward.1} parent=11 // pred_region
          %s456 = ssub.s32 6144, 6144
          %457 = vsyncadd [#allocation6], %s456
          %s458 = sshll.u32 [#allocation5], 4
          %s459 = int_to_ptr.vmem [resolvable:$true] %s458
          %464 = dma.hbm_to_vmem [thread:$0]  %s12, 6144, %s459, [#allocation6], 64, 64, 4
        $region60: #{encoder_forward.1} parent=11 // pred_fallthru
          _
        // Predicated region
        $region61: #{encoder_forward.1} parent=11 // pred_check
          %p465 = pneg %p326
        $region62: #{encoder_forward.1} parent=11 // pred_check_branch
          %467 = sbr.rel (%p465) target = $region64
        $region63: #{encoder_forward.1} parent=11 // pred_region
          _
        $region64: #{encoder_forward.1} parent=11 // pred_fallthru
          _
        // Predicated region
        $region65: #{encoder_forward.1} parent=11 // pred_check
          %p468 = pneg %p347
        $region66: #{encoder_forward.1} parent=11 // pred_check_branch
          %470 = sbr.rel (%p468) target = $region68
        $region67: #{encoder_forward.1} parent=11 // pred_region
          _
        $region68: #{encoder_forward.1} parent=11 // pred_fallthru
          _
        // Predicated region
        $region69: #{encoder_forward.1} parent=11 // pred_check
          %p471 = pneg %p368
        $region70: #{encoder_forward.1} parent=11 // pred_check_branch
          %473 = sbr.rel (%p471) target = $region72
        $region71: #{encoder_forward.1} parent=11 // pred_region
          _
        $region72: #{encoder_forward.1} parent=11 // pred_fallthru
          _
      $region12: #{encoder_forward.1} parent=5 // pred_fallthru
        _
      %p474 = scmp.lt.s32.totalorder %s27, 2
      // Predicated region
      $region73: #{encoder_forward.1} parent=5 // pred_check
        %p475 = pneg %p474
      $region74: #{encoder_forward.1} parent=5 // pred_check_branch
        %477 = sbr.rel (%p475) target = $region76
      $region75: #{encoder_forward.1} parent=5 // pred_region
        // Predicated region
        $region77: #{encoder_forward.1} parent=75 // pred_check
          %p478 = pneg %p47
        $region78: #{encoder_forward.1} parent=75 // pred_check_branch
          %480 = sbr.rel (%p478) target = $region80
        $region79: #{encoder_forward.1} parent=75 // pred_region
          %s481 = smul.u32 8, %s27
          %p482 = scmp.lt.s32.totalorder %s481, 15
          %s483 = scalar_select %p482, %s481, 15
          %s484 = smul.addr %s483, 4
          %s485 = smul.addr %s484, 8
          %s486 = scalar_lea.vmem %s0, %s485
          %s487 = smul.u32 8, %s27
        $region80: #{encoder_forward.1} parent=75 // pred_fallthru
          _
      $region76: #{encoder_forward.1} parent=5 // pred_fallthru
        _
      %p488 = scmp.le.s32.totalorder 1, %s27
      %p489 = scmp.lt.s32.totalorder %s27, 3
      %p490 = pnand %p488, %p489
      %p491 = pneg %p490
      // Predicated region
      $region81: #{encoder_forward.1} parent=5 // pred_check
        _
      $region82: #{encoder_forward.1} parent=5 // pred_check_branch
        %493 = sbr.rel (%p490) target = $region84
      $region83: #{encoder_forward.1} parent=5 // pred_region
        %s494 = ssub.s32 %s27, 1
        // Predicated region
        $region85: #{encoder_forward.1} parent=83 // pred_check
          %p495 = pneg %p95
        $region86: #{encoder_forward.1} parent=83 // pred_check_branch
          %497 = sbr.rel (%p495) target = $region88
        $region87: #{encoder_forward.1} parent=83 // pred_region
          %498 = dma.done [#allocation3], 3072
        $region88: #{encoder_forward.1} parent=83 // pred_fallthru
          _
        // Predicated region
        $region89: #{encoder_forward.1} parent=83 // pred_check
          %p499 = pneg %p305
        $region90: #{encoder_forward.1} parent=83 // pred_check_branch
          %501 = sbr.rel (%p499) target = $region92
        $region91: #{encoder_forward.1} parent=83 // pred_region
          %502 = dma.done [#allocation6], 6144
        $region92: #{encoder_forward.1} parent=83 // pred_fallthru
          _
        %s503 = smul.u32 8, %s32
        %p504 = scmp.lt.s32.totalorder %s503, 15
        %s505 = scalar_select %p504, %s503, 15
        %s506 = smul.addr %s505, 4
        %s507 = smul.addr %s506, 8
        %s508 = scalar_lea.vmem %s0, %s507
        %p509 = pneg %p53
        %p510 = pneg %p50
        %p511 = pneg %p74
        %p512 = pneg %p71
        %p513 = pneg %p95
        %p514 = pneg %p92
        %p515 = pneg %p116
        %p516 = pneg %p113
        %p517 = pneg %p137
        %p518 = pneg %p134
        %p519 = pneg %p158
        %p520 = pneg %p155
        %p521 = pneg %p179
        %p522 = pneg %p176
        %p523 = pneg %p200
        %p524 = pneg %p197
        %p525 = pneg %p221
        %p526 = pneg %p218
        %p527 = pneg %p242
        %p528 = pneg %p239
        %p529 = pneg %p263
        %p530 = pneg %p260
        %p531 = pneg %p284
        %p532 = pneg %p281
        %p533 = pneg %p305
        %p534 = pneg %p302
        %p535 = pneg %p326
        %p536 = pneg %p323
        %p537 = pneg %p347
        %p538 = pneg %p344
        %p539 = pneg %p368
        %p540 = pneg %p365
        %p541 = pneg %p394
        %p542 = pneg %p391
        %s543 = sand.u32 %s381, 1
        %s544 = scalar_lea.sflag [#allocation4], %s543
        %s545 = sand.u32 %s381, 1
        %s546 = scalar_lea.vmem [#allocation7], %s545
        %s547 = smul.u32 8, %s32
        %p548 = scmp.lt.s32.totalorder %s547, 15
        %s549 = scalar_select %p548, %s547, 15
        %s550 = smul.addr %s549, 4
        %s551 = smul.addr %s550, 8
        %s552 = scalar_lea.vmem %s0, %s551
        %s553 = smul.u32 8, %s32
        %v555 = vld [vmem:[%s552] sm:$0xff]
        %v556 = vld [vmem:[%s552 + $0x8] sm:$0xff]
        %v557 = vld [vmem:[%s552 + $0x10] sm:$0xff]
        %v558 = vld [vmem:[%s552 + $0x18] sm:$0xff]
        %v559 = vld [vmem:[%s552 + $0x20] sm:$0xff]
        %v560 = vld [vmem:[%s552 + $0x28] sm:$0xff]
        %v561 = vld [vmem:[%s552 + $0x30] sm:$0xff]
        %v562 = vld [vmem:[%s552 + $0x38] sm:$0xff]
        %v563 = vld [vmem:[%s552 + $0x40] sm:$0xff]
        %v564 = vld [vmem:[%s552 + $0x48] sm:$0xff]
        %v565 = vld [vmem:[%s552 + $0x50] sm:$0xff]
        %v566 = vld [vmem:[%s552 + $0x58] sm:$0xff]
        %v567 = vld [vmem:[%s552 + $0x60] sm:$0xff]
        %v568 = vld [vmem:[%s552 + $0x68] sm:$0xff]
        %v569 = vld [vmem:[%s552 + $0x70] sm:$0xff]
        %v570 = vld [vmem:[%s552 + $0x78] sm:$0xff]
        %v571 = vld [vmem:[%s552 + $0x80] sm:$0xff]
        %v572 = vld [vmem:[%s552 + $0x88] sm:$0xff]
        %v573 = vld [vmem:[%s552 + $0x90] sm:$0xff]
        %v574 = vld [vmem:[%s552 + $0x98] sm:$0xff]
        %v575 = vld [vmem:[%s552 + $0xa0] sm:$0xff]
        %v576 = vld [vmem:[%s552 + $0xa8] sm:$0xff]
        %v577 = vld [vmem:[%s552 + $0xb0] sm:$0xff]
        %v578 = vld [vmem:[%s552 + $0xb8] sm:$0xff]
        %v579 = vld [vmem:[%s552 + $0xc0] sm:$0xff]
        %v580 = vld [vmem:[%s552 + $0xc8] sm:$0xff]
        %v581 = vld [vmem:[%s552 + $0xd0] sm:$0xff]
        %v582 = vld [vmem:[%s552 + $0xd8] sm:$0xff]
        %v583 = vld [vmem:[%s552 + $0xe0] sm:$0xff]
        %v584 = vld [vmem:[%s552 + $0xe8] sm:$0xff]
        %v585 = vld [vmem:[%s552 + $0xf0] sm:$0xff]
        %v586 = vld [vmem:[%s552 + $0xf8] sm:$0xff]
        %v587 = vpack.c.bf16 %v559, %v555
        %v588 = vpack.c.bf16 %v560, %v556
        %v589 = vpack.c.bf16 %v561, %v557
        %v590 = vpack.c.bf16 %v562, %v558
        %v591 = vpack.c.bf16 %v567, %v563
        %v592 = vpack.c.bf16 %v568, %v564
        %v593 = vpack.c.bf16 %v569, %v565
        %v594 = vpack.c.bf16 %v570, %v566
        %v595 = vpack.c.bf16 %v575, %v571
        %v596 = vpack.c.bf16 %v576, %v572
        %v597 = vpack.c.bf16 %v577, %v573
        %v598 = vpack.c.bf16 %v578, %v574
        %v599 = vpack.c.bf16 %v583, %v579
        %v600 = vpack.c.bf16 %v584, %v580
        %v601 = vpack.c.bf16 %v585, %v581
        %v602 = vpack.c.bf16 %v586, %v582
        %v603 = vld [vmem:[%s1] sm:$0xff]
        %v604 = vld [vmem:[%s1 + $0x8] sm:$0xff]
        %v605 = vld [vmem:[%s1 + $0x10] sm:$0xff]
        %v606 = vld [vmem:[%s1 + $0x18] sm:$0xff]
        %v607 = vld [vmem:[%s1 + $0x20] sm:$0xff]
        %v608 = vld [vmem:[%s1 + $0x28] sm:$0xff]
        %v609 = vld [vmem:[%s1 + $0x30] sm:$0xff]
        %v610 = vld [vmem:[%s1 + $0x38] sm:$0xff]
        %v611 = vld [vmem:[%s1 + $0x40] sm:$0xff]
        %v612 = vld [vmem:[%s1 + $0x48] sm:$0xff]
        %v613 = vld [vmem:[%s1 + $0x50] sm:$0xff]
        %v614 = vld [vmem:[%s1 + $0x58] sm:$0xff]
        %v615 = vld [vmem:[%s1 + $0x60] sm:$0xff]
        %v616 = vld [vmem:[%s1 + $0x68] sm:$0xff]
        %v617 = vld [vmem:[%s1 + $0x70] sm:$0xff]
        %v618 = vld [vmem:[%s1 + $0x78] sm:$0xff]
        %v619 = vld [vmem:[%s1 + $0x80] sm:$0xff]
        %v620 = vld [vmem:[%s1 + $0x88] sm:$0xff]
        %v621 = vld [vmem:[%s1 + $0x90] sm:$0xff]
        %v622 = vld [vmem:[%s1 + $0x98] sm:$0xff]
        %v623 = vld [vmem:[%s1 + $0xa0] sm:$0xff]
        %v624 = vld [vmem:[%s1 + $0xa8] sm:$0xff]
        %v625 = vld [vmem:[%s1 + $0xb0] sm:$0xff]
        %v626 = vld [vmem:[%s1 + $0xb8] sm:$0xff]
        %v627 = vld [vmem:[%s1 + $0xc0] sm:$0xff]
        %v628 = vld [vmem:[%s1 + $0xc8] sm:$0xff]
        %v629 = vld [vmem:[%s1 + $0xd0] sm:$0xff]
        %v630 = vld [vmem:[%s1 + $0xd8] sm:$0xff]
        %v631 = vld [vmem:[%s1 + $0xe0] sm:$0xff]
        %v632 = vld [vmem:[%s1 + $0xe8] sm:$0xff]
        %v633 = vld [vmem:[%s1 + $0xf0] sm:$0xff]
        %v634 = vld [vmem:[%s1 + $0xf8] sm:$0xff]
        %v635 = vld [vmem:[%s1 + $0x100] sm:$0xff]
        %v636 = vld [vmem:[%s1 + $0x108] sm:$0xff]
        %v637 = vld [vmem:[%s1 + $0x110] sm:$0xff]
        %v638 = vld [vmem:[%s1 + $0x118] sm:$0xff]
        %v639 = vld [vmem:[%s1 + $0x120] sm:$0xff]
        %v640 = vld [vmem:[%s1 + $0x128] sm:$0xff]
        %v641 = vld [vmem:[%s1 + $0x130] sm:$0xff]
        %v642 = vld [vmem:[%s1 + $0x138] sm:$0xff]
        %v643 = vld [vmem:[%s1 + $0x140] sm:$0xff]
        %v644 = vld [vmem:[%s1 + $0x148] sm:$0xff]
        %v645 = vld [vmem:[%s1 + $0x150] sm:$0xff]
        %v646 = vld [vmem:[%s1 + $0x158] sm:$0xff]
        %v647 = vld [vmem:[%s1 + $0x160] sm:$0xff]
        %v648 = vld [vmem:[%s1 + $0x168] sm:$0xff]
        %v649 = vld [vmem:[%s1 + $0x170] sm:$0xff]
        %v650 = vld [vmem:[%s1 + $0x178] sm:$0xff]
        %v651 = vld [vmem:[%s1 + $0x180] sm:$0xff]
        %v652 = vld [vmem:[%s1 + $0x188] sm:$0xff]
        %v653 = vld [vmem:[%s1 + $0x190] sm:$0xff]
        %v654 = vld [vmem:[%s1 + $0x198] sm:$0xff]
        %v655 = vld [vmem:[%s1 + $0x1a0] sm:$0xff]
        %v656 = vld [vmem:[%s1 + $0x1a8] sm:$0xff]
        %v657 = vld [vmem:[%s1 + $0x1b0] sm:$0xff]
        %v658 = vld [vmem:[%s1 + $0x1b8] sm:$0xff]
        %v659 = vld [vmem:[%s1 + $0x1c0] sm:$0xff]
        %v660 = vld [vmem:[%s1 + $0x1c8] sm:$0xff]
        %v661 = vld [vmem:[%s1 + $0x1d0] sm:$0xff]
        %v662 = vld [vmem:[%s1 + $0x1d8] sm:$0xff]
        %v663 = vld [vmem:[%s1 + $0x1e0] sm:$0xff]
        %v664 = vld [vmem:[%s1 + $0x1e8] sm:$0xff]
        %v665 = vld [vmem:[%s1 + $0x1f0] sm:$0xff]
        %v666 = vld [vmem:[%s1 + $0x1f8] sm:$0xff]
        %v667 = vld [vmem:[%s1 + $0x200] sm:$0xff]
        %v668 = vld [vmem:[%s1 + $0x208] sm:$0xff]
        %v669 = vld [vmem:[%s1 + $0x210] sm:$0xff]
        %v670 = vld [vmem:[%s1 + $0x218] sm:$0xff]
        %v671 = vld [vmem:[%s1 + $0x220] sm:$0xff]
        %v672 = vld [vmem:[%s1 + $0x228] sm:$0xff]
        %v673 = vld [vmem:[%s1 + $0x230] sm:$0xff]
        %v674 = vld [vmem:[%s1 + $0x238] sm:$0xff]
        %v675 = vld [vmem:[%s1 + $0x240] sm:$0xff]
        %v676 = vld [vmem:[%s1 + $0x248] sm:$0xff]
        %v677 = vld [vmem:[%s1 + $0x250] sm:$0xff]
        %v678 = vld [vmem:[%s1 + $0x258] sm:$0xff]
        %v679 = vld [vmem:[%s1 + $0x260] sm:$0xff]
        %v680 = vld [vmem:[%s1 + $0x268] sm:$0xff]
        %v681 = vld [vmem:[%s1 + $0x270] sm:$0xff]
        %v682 = vld [vmem:[%s1 + $0x278] sm:$0xff]
        %v683 = vld [vmem:[%s1 + $0x280] sm:$0xff]
        %v684 = vld [vmem:[%s1 + $0x288] sm:$0xff]
        %v685 = vld [vmem:[%s1 + $0x290] sm:$0xff]
        %v686 = vld [vmem:[%s1 + $0x298] sm:$0xff]
        %v687 = vld [vmem:[%s1 + $0x2a0] sm:$0xff]
        %v688 = vld [vmem:[%s1 + $0x2a8] sm:$0xff]
        %v689 = vld [vmem:[%s1 + $0x2b0] sm:$0xff]
        %v690 = vld [vmem:[%s1 + $0x2b8] sm:$0xff]
        %v691 = vld [vmem:[%s1 + $0x2c0] sm:$0xff]
        %v692 = vld [vmem:[%s1 + $0x2c8] sm:$0xff]
        %v693 = vld [vmem:[%s1 + $0x2d0] sm:$0xff]
        %v694 = vld [vmem:[%s1 + $0x2d8] sm:$0xff]
        %v695 = vld [vmem:[%s1 + $0x2e0] sm:$0xff]
        %v696 = vld [vmem:[%s1 + $0x2e8] sm:$0xff]
        %v697 = vld [vmem:[%s1 + $0x2f0] sm:$0xff]
        %v698 = vld [vmem:[%s1 + $0x2f8] sm:$0xff]
        %v699 = vld [vmem:[%s1 + $0x300] sm:$0xff]
        %v700 = vld [vmem:[%s1 + $0x308] sm:$0xff]
        %v701 = vld [vmem:[%s1 + $0x310] sm:$0xff]
        %v702 = vld [vmem:[%s1 + $0x318] sm:$0xff]
        %v703 = vld [vmem:[%s1 + $0x320] sm:$0xff]
        %v704 = vld [vmem:[%s1 + $0x328] sm:$0xff]
        %v705 = vld [vmem:[%s1 + $0x330] sm:$0xff]
        %v706 = vld [vmem:[%s1 + $0x338] sm:$0xff]
        %v707 = vld [vmem:[%s1 + $0x340] sm:$0xff]
        %v708 = vld [vmem:[%s1 + $0x348] sm:$0xff]
        %v709 = vld [vmem:[%s1 + $0x350] sm:$0xff]
        %v710 = vld [vmem:[%s1 + $0x358] sm:$0xff]
        %v711 = vld [vmem:[%s1 + $0x360] sm:$0xff]
        %v712 = vld [vmem:[%s1 + $0x368] sm:$0xff]
        %v713 = vld [vmem:[%s1 + $0x370] sm:$0xff]
        %v714 = vld [vmem:[%s1 + $0x378] sm:$0xff]
        %v715 = vld [vmem:[%s1 + $0x380] sm:$0xff]
        %v716 = vld [vmem:[%s1 + $0x388] sm:$0xff]
        %v717 = vld [vmem:[%s1 + $0x390] sm:$0xff]
        %v718 = vld [vmem:[%s1 + $0x398] sm:$0xff]
        %v719 = vld [vmem:[%s1 + $0x3a0] sm:$0xff]
        %v720 = vld [vmem:[%s1 + $0x3a8] sm:$0xff]
        %v721 = vld [vmem:[%s1 + $0x3b0] sm:$0xff]
        %v722 = vld [vmem:[%s1 + $0x3b8] sm:$0xff]
        %v723 = vld [vmem:[%s1 + $0x3c0] sm:$0xff]
        %v724 = vld [vmem:[%s1 + $0x3c8] sm:$0xff]
        %v725 = vld [vmem:[%s1 + $0x3d0] sm:$0xff]
        %v726 = vld [vmem:[%s1 + $0x3d8] sm:$0xff]
        %v727 = vld [vmem:[%s1 + $0x3e0] sm:$0xff]
        %v728 = vld [vmem:[%s1 + $0x3e8] sm:$0xff]
        %v729 = vld [vmem:[%s1 + $0x3f0] sm:$0xff]
        %v730 = vld [vmem:[%s1 + $0x3f8] sm:$0xff]
        %v731 = vld [vmem:[%s1 + $0x400] sm:$0xff]
        %v732 = vld [vmem:[%s1 + $0x408] sm:$0xff]
        %v733 = vld [vmem:[%s1 + $0x410] sm:$0xff]
        %v734 = vld [vmem:[%s1 + $0x418] sm:$0xff]
        %v735 = vld [vmem:[%s1 + $0x420] sm:$0xff]
        %v736 = vld [vmem:[%s1 + $0x428] sm:$0xff]
        %v737 = vld [vmem:[%s1 + $0x430] sm:$0xff]
        %v738 = vld [vmem:[%s1 + $0x438] sm:$0xff]
        %v739 = vld [vmem:[%s1 + $0x440] sm:$0xff]
        %v740 = vld [vmem:[%s1 + $0x448] sm:$0xff]
        %v741 = vld [vmem:[%s1 + $0x450] sm:$0xff]
        %v742 = vld [vmem:[%s1 + $0x458] sm:$0xff]
        %v743 = vld [vmem:[%s1 + $0x460] sm:$0xff]
        %v744 = vld [vmem:[%s1 + $0x468] sm:$0xff]
        %v745 = vld [vmem:[%s1 + $0x470] sm:$0xff]
        %v746 = vld [vmem:[%s1 + $0x478] sm:$0xff]
        %v747 = vld [vmem:[%s1 + $0x480] sm:$0xff]
        %v748 = vld [vmem:[%s1 + $0x488] sm:$0xff]
        %v749 = vld [vmem:[%s1 + $0x490] sm:$0xff]
        %v750 = vld [vmem:[%s1 + $0x498] sm:$0xff]
        %v751 = vld [vmem:[%s1 + $0x4a0] sm:$0xff]
        %v752 = vld [vmem:[%s1 + $0x4a8] sm:$0xff]
        %v753 = vld [vmem:[%s1 + $0x4b0] sm:$0xff]
        %v754 = vld [vmem:[%s1 + $0x4b8] sm:$0xff]
        %v755 = vld [vmem:[%s1 + $0x4c0] sm:$0xff]
        %v756 = vld [vmem:[%s1 + $0x4c8] sm:$0xff]
        %v757 = vld [vmem:[%s1 + $0x4d0] sm:$0xff]
        %v758 = vld [vmem:[%s1 + $0x4d8] sm:$0xff]
        %v759 = vld [vmem:[%s1 + $0x4e0] sm:$0xff]
        %v760 = vld [vmem:[%s1 + $0x4e8] sm:$0xff]
        %v761 = vld [vmem:[%s1 + $0x4f0] sm:$0xff]
        %v762 = vld [vmem:[%s1 + $0x4f8] sm:$0xff]
        %v763 = vld [vmem:[%s1 + $0x500] sm:$0xff]
        %v764 = vld [vmem:[%s1 + $0x508] sm:$0xff]
        %v765 = vld [vmem:[%s1 + $0x510] sm:$0xff]
        %v766 = vld [vmem:[%s1 + $0x518] sm:$0xff]
        %v767 = vld [vmem:[%s1 + $0x520] sm:$0xff]
        %v768 = vld [vmem:[%s1 + $0x528] sm:$0xff]
        %v769 = vld [vmem:[%s1 + $0x530] sm:$0xff]
        %v770 = vld [vmem:[%s1 + $0x538] sm:$0xff]
        %v771 = vld [vmem:[%s1 + $0x540] sm:$0xff]
        %v772 = vld [vmem:[%s1 + $0x548] sm:$0xff]
        %v773 = vld [vmem:[%s1 + $0x550] sm:$0xff]
        %v774 = vld [vmem:[%s1 + $0x558] sm:$0xff]
        %v775 = vld [vmem:[%s1 + $0x560] sm:$0xff]
        %v776 = vld [vmem:[%s1 + $0x568] sm:$0xff]
        %v777 = vld [vmem:[%s1 + $0x570] sm:$0xff]
        %v778 = vld [vmem:[%s1 + $0x578] sm:$0xff]
        %v779 = vld [vmem:[%s1 + $0x580] sm:$0xff]
        %v780 = vld [vmem:[%s1 + $0x588] sm:$0xff]
        %v781 = vld [vmem:[%s1 + $0x590] sm:$0xff]
        %v782 = vld [vmem:[%s1 + $0x598] sm:$0xff]
        %v783 = vld [vmem:[%s1 + $0x5a0] sm:$0xff]
        %v784 = vld [vmem:[%s1 + $0x5a8] sm:$0xff]
        %v785 = vld [vmem:[%s1 + $0x5b0] sm:$0xff]
        %v786 = vld [vmem:[%s1 + $0x5b8] sm:$0xff]
        %v787 = vld [vmem:[%s1 + $0x5c0] sm:$0xff]
        %v788 = vld [vmem:[%s1 + $0x5c8] sm:$0xff]
        %v789 = vld [vmem:[%s1 + $0x5d0] sm:$0xff]
        %v790 = vld [vmem:[%s1 + $0x5d8] sm:$0xff]
        %v791 = vld [vmem:[%s1 + $0x5e0] sm:$0xff]
        %v792 = vld [vmem:[%s1 + $0x5e8] sm:$0xff]
        %v793 = vld [vmem:[%s1 + $0x5f0] sm:$0xff]
        %v794 = vld [vmem:[%s1 + $0x5f8] sm:$0xff]
        %v987 = vunpack.c.l.b16 %v603
        %v988 = vunpack.c.h.b16 %v603
        %v989 = vunpack.c.l.b16 %v604
        %v990 = vunpack.c.h.b16 %v604
        %v991 = vunpack.c.l.b16 %v605
        %v992 = vunpack.c.h.b16 %v605
        %v993 = vunpack.c.l.b16 %v606
        %v994 = vunpack.c.h.b16 %v606
        %v995 = vunpack.c.l.b16 %v607
        %v996 = vunpack.c.h.b16 %v607
        %v997 = vunpack.c.l.b16 %v608
        %v998 = vunpack.c.h.b16 %v608
        %v999 = vunpack.c.l.b16 %v609
        %v1000 = vunpack.c.h.b16 %v609
        %v1001 = vunpack.c.l.b16 %v610
        %v1002 = vunpack.c.h.b16 %v610
        %v1003 = vunpack.c.l.b16 %v611
        %v1004 = vunpack.c.h.b16 %v611
        %v1005 = vunpack.c.l.b16 %v612
        %v1006 = vunpack.c.h.b16 %v612
        %v1007 = vunpack.c.l.b16 %v613
        %v1008 = vunpack.c.h.b16 %v613
        %v1009 = vunpack.c.l.b16 %v614
        %v1010 = vunpack.c.h.b16 %v614
        %v1011 = vunpack.c.l.b16 %v615
        %v1012 = vunpack.c.h.b16 %v615
        %v1013 = vunpack.c.l.b16 %v616
        %v1014 = vunpack.c.h.b16 %v616
        %v1015 = vunpack.c.l.b16 %v617
        %v1016 = vunpack.c.h.b16 %v617
        %v1017 = vunpack.c.l.b16 %v618
        %v1018 = vunpack.c.h.b16 %v618
        %v1019 = vunpack.c.l.b16 %v619
        %v1020 = vunpack.c.h.b16 %v619
        %v1021 = vunpack.c.l.b16 %v620
        %v1022 = vunpack.c.h.b16 %v620
        %v1023 = vunpack.c.l.b16 %v621
        %v1024 = vunpack.c.h.b16 %v621
        %v1025 = vunpack.c.l.b16 %v622
        %v1026 = vunpack.c.h.b16 %v622
        %v1027 = vunpack.c.l.b16 %v623
        %v1028 = vunpack.c.h.b16 %v623
        %v1029 = vunpack.c.l.b16 %v624
        %v1030 = vunpack.c.h.b16 %v624
        %v1031 = vunpack.c.l.b16 %v625
        %v1032 = vunpack.c.h.b16 %v625
        %v1033 = vunpack.c.l.b16 %v626
        %v1034 = vunpack.c.h.b16 %v626
        %v1035 = vunpack.c.l.b16 %v627
        %v1036 = vunpack.c.h.b16 %v627
        %v1037 = vunpack.c.l.b16 %v628
        %v1038 = vunpack.c.h.b16 %v628
        %v1039 = vunpack.c.l.b16 %v629
        %v1040 = vunpack.c.h.b16 %v629
        %v1041 = vunpack.c.l.b16 %v630
        %v1042 = vunpack.c.h.b16 %v630
        %v1043 = vunpack.c.l.b16 %v631
        %v1044 = vunpack.c.h.b16 %v631
        %v1045 = vunpack.c.l.b16 %v632
        %v1046 = vunpack.c.h.b16 %v632
        %v1047 = vunpack.c.l.b16 %v633
        %v1048 = vunpack.c.h.b16 %v633
        %v1049 = vunpack.c.l.b16 %v634
        %v1050 = vunpack.c.h.b16 %v634
        %v1051 = vunpack.c.l.b16 %v635
        %v1052 = vunpack.c.h.b16 %v635
        %v1053 = vunpack.c.l.b16 %v636
        %v1054 = vunpack.c.h.b16 %v636
        %v1055 = vunpack.c.l.b16 %v637
        %v1056 = vunpack.c.h.b16 %v637
        %v1057 = vunpack.c.l.b16 %v638
        %v1058 = vunpack.c.h.b16 %v638
        %v1059 = vunpack.c.l.b16 %v639
        %v1060 = vunpack.c.h.b16 %v639
        %v1061 = vunpack.c.l.b16 %v640
        %v1062 = vunpack.c.h.b16 %v640
        %v1063 = vunpack.c.l.b16 %v641
        %v1064 = vunpack.c.h.b16 %v641
        %v1065 = vunpack.c.l.b16 %v642
        %v1066 = vunpack.c.h.b16 %v642
        %v1067 = vunpack.c.l.b16 %v643
        %v1068 = vunpack.c.h.b16 %v643
        %v1069 = vunpack.c.l.b16 %v644
        %v1070 = vunpack.c.h.b16 %v644
        %v1071 = vunpack.c.l.b16 %v645
        %v1072 = vunpack.c.h.b16 %v645
        %v1073 = vunpack.c.l.b16 %v646
        %v1074 = vunpack.c.h.b16 %v646
        %v1075 = vunpack.c.l.b16 %v647
        %v1076 = vunpack.c.h.b16 %v647
        %v1077 = vunpack.c.l.b16 %v648
        %v1078 = vunpack.c.h.b16 %v648
        %v1079 = vunpack.c.l.b16 %v649
        %v1080 = vunpack.c.h.b16 %v649
        %v1081 = vunpack.c.l.b16 %v650
        %v1082 = vunpack.c.h.b16 %v650
        %v1083 = vunpack.c.l.b16 %v651
        %v1084 = vunpack.c.h.b16 %v651
        %v1085 = vunpack.c.l.b16 %v652
        %v1086 = vunpack.c.h.b16 %v652
        %v1087 = vunpack.c.l.b16 %v653
        %v1088 = vunpack.c.h.b16 %v653
        %v1089 = vunpack.c.l.b16 %v654
        %v1090 = vunpack.c.h.b16 %v654
        %v1091 = vunpack.c.l.b16 %v655
        %v1092 = vunpack.c.h.b16 %v655
        %v1093 = vunpack.c.l.b16 %v656
        %v1094 = vunpack.c.h.b16 %v656
        %v1095 = vunpack.c.l.b16 %v657
        %v1096 = vunpack.c.h.b16 %v657
        %v1097 = vunpack.c.l.b16 %v658
        %v1098 = vunpack.c.h.b16 %v658
        %v1099 = vunpack.c.l.b16 %v659
        %v1100 = vunpack.c.h.b16 %v659
        %v1101 = vunpack.c.l.b16 %v660
        %v1102 = vunpack.c.h.b16 %v660
        %v1103 = vunpack.c.l.b16 %v661
        %v1104 = vunpack.c.h.b16 %v661
        %v1105 = vunpack.c.l.b16 %v662
        %v1106 = vunpack.c.h.b16 %v662
        %v1107 = vunpack.c.l.b16 %v663
        %v1108 = vunpack.c.h.b16 %v663
        %v1109 = vunpack.c.l.b16 %v664
        %v1110 = vunpack.c.h.b16 %v664
        %v1111 = vunpack.c.l.b16 %v665
        %v1112 = vunpack.c.h.b16 %v665
        %v1113 = vunpack.c.l.b16 %v666
        %v1114 = vunpack.c.h.b16 %v666
        %v1115 = vunpack.c.l.b16 %v667
        %v1116 = vunpack.c.h.b16 %v667
        %v1117 = vunpack.c.l.b16 %v668
        %v1118 = vunpack.c.h.b16 %v668
        %v1119 = vunpack.c.l.b16 %v669
        %v1120 = vunpack.c.h.b16 %v669
        %v1121 = vunpack.c.l.b16 %v670
        %v1122 = vunpack.c.h.b16 %v670
        %v1123 = vunpack.c.l.b16 %v671
        %v1124 = vunpack.c.h.b16 %v671
        %v1125 = vunpack.c.l.b16 %v672
        %v1126 = vunpack.c.h.b16 %v672
        %v1127 = vunpack.c.l.b16 %v673
        %v1128 = vunpack.c.h.b16 %v673
        %v1129 = vunpack.c.l.b16 %v674
        %v1130 = vunpack.c.h.b16 %v674
        %v1131 = vunpack.c.l.b16 %v675
        %v1132 = vunpack.c.h.b16 %v675
        %v1133 = vunpack.c.l.b16 %v676
        %v1134 = vunpack.c.h.b16 %v676
        %v1135 = vunpack.c.l.b16 %v677
        %v1136 = vunpack.c.h.b16 %v677
        %v1137 = vunpack.c.l.b16 %v678
        %v1138 = vunpack.c.h.b16 %v678
        %v1139 = vunpack.c.l.b16 %v679
        %v1140 = vunpack.c.h.b16 %v679
        %v1141 = vunpack.c.l.b16 %v680
        %v1142 = vunpack.c.h.b16 %v680
        %v1143 = vunpack.c.l.b16 %v681
        %v1144 = vunpack.c.h.b16 %v681
        %v1145 = vunpack.c.l.b16 %v682
        %v1146 = vunpack.c.h.b16 %v682
        %v1147 = vunpack.c.l.b16 %v683
        %v1148 = vunpack.c.h.b16 %v683
        %v1149 = vunpack.c.l.b16 %v684
        %v1150 = vunpack.c.h.b16 %v684
        %v1151 = vunpack.c.l.b16 %v685
        %v1152 = vunpack.c.h.b16 %v685
        %v1153 = vunpack.c.l.b16 %v686
        %v1154 = vunpack.c.h.b16 %v686
        %v1155 = vunpack.c.l.b16 %v687
        %v1156 = vunpack.c.h.b16 %v687
        %v1157 = vunpack.c.l.b16 %v688
        %v1158 = vunpack.c.h.b16 %v688
        %v1159 = vunpack.c.l.b16 %v689
        %v1160 = vunpack.c.h.b16 %v689
        %v1161 = vunpack.c.l.b16 %v690
        %v1162 = vunpack.c.h.b16 %v690
        %v1163 = vunpack.c.l.b16 %v691
        %v1164 = vunpack.c.h.b16 %v691
        %v1165 = vunpack.c.l.b16 %v692
        %v1166 = vunpack.c.h.b16 %v692
        %v1167 = vunpack.c.l.b16 %v693
        %v1168 = vunpack.c.h.b16 %v693
        %v1169 = vunpack.c.l.b16 %v694
        %v1170 = vunpack.c.h.b16 %v694
        %v1171 = vunpack.c.l.b16 %v695
        %v1172 = vunpack.c.h.b16 %v695
        %v1173 = vunpack.c.l.b16 %v696
        %v1174 = vunpack.c.h.b16 %v696
        %v1175 = vunpack.c.l.b16 %v697
        %v1176 = vunpack.c.h.b16 %v697
        %v1177 = vunpack.c.l.b16 %v698
        %v1178 = vunpack.c.h.b16 %v698
        %v1179 = vunpack.c.l.b16 %v699
        %v1180 = vunpack.c.h.b16 %v699
        %v1181 = vunpack.c.l.b16 %v700
        %v1182 = vunpack.c.h.b16 %v700
        %v1183 = vunpack.c.l.b16 %v701
        %v1184 = vunpack.c.h.b16 %v701
        %v1185 = vunpack.c.l.b16 %v702
        %v1186 = vunpack.c.h.b16 %v702
        %v1187 = vunpack.c.l.b16 %v703
        %v1188 = vunpack.c.h.b16 %v703
        %v1189 = vunpack.c.l.b16 %v704
        %v1190 = vunpack.c.h.b16 %v704
        %v1191 = vunpack.c.l.b16 %v705
        %v1192 = vunpack.c.h.b16 %v705
        %v1193 = vunpack.c.l.b16 %v706
        %v1194 = vunpack.c.h.b16 %v706
        %v1195 = vunpack.c.l.b16 %v707
        %v1196 = vunpack.c.h.b16 %v707
        %v1197 = vunpack.c.l.b16 %v708
        %v1198 = vunpack.c.h.b16 %v708
        %v1199 = vunpack.c.l.b16 %v709
        %v1200 = vunpack.c.h.b16 %v709
        %v1201 = vunpack.c.l.b16 %v710
        %v1202 = vunpack.c.h.b16 %v710
        %v1203 = vunpack.c.l.b16 %v711
        %v1204 = vunpack.c.h.b16 %v711
        %v1205 = vunpack.c.l.b16 %v712
        %v1206 = vunpack.c.h.b16 %v712
        %v1207 = vunpack.c.l.b16 %v713
        %v1208 = vunpack.c.h.b16 %v713
        %v1209 = vunpack.c.l.b16 %v714
        %v1210 = vunpack.c.h.b16 %v714
        %v1211 = vunpack.c.l.b16 %v715
        %v1212 = vunpack.c.h.b16 %v715
        %v1213 = vunpack.c.l.b16 %v716
        %v1214 = vunpack.c.h.b16 %v716
        %v1215 = vunpack.c.l.b16 %v717
        %v1216 = vunpack.c.h.b16 %v717
        %v1217 = vunpack.c.l.b16 %v718
        %v1218 = vunpack.c.h.b16 %v718
        %v1219 = vunpack.c.l.b16 %v719
        %v1220 = vunpack.c.h.b16 %v719
        %v1221 = vunpack.c.l.b16 %v720
        %v1222 = vunpack.c.h.b16 %v720
        %v1223 = vunpack.c.l.b16 %v721
        %v1224 = vunpack.c.h.b16 %v721
        %v1225 = vunpack.c.l.b16 %v722
        %v1226 = vunpack.c.h.b16 %v722
        %v1227 = vunpack.c.l.b16 %v723
        %v1228 = vunpack.c.h.b16 %v723
        %v1229 = vunpack.c.l.b16 %v724
        %v1230 = vunpack.c.h.b16 %v724
        %v1231 = vunpack.c.l.b16 %v725
        %v1232 = vunpack.c.h.b16 %v725
        %v1233 = vunpack.c.l.b16 %v726
        %v1234 = vunpack.c.h.b16 %v726
        %v1235 = vunpack.c.l.b16 %v727
        %v1236 = vunpack.c.h.b16 %v727
        %v1237 = vunpack.c.l.b16 %v728
        %v1238 = vunpack.c.h.b16 %v728
        %v1239 = vunpack.c.l.b16 %v729
        %v1240 = vunpack.c.h.b16 %v729
        %v1241 = vunpack.c.l.b16 %v730
        %v1242 = vunpack.c.h.b16 %v730
        %v1243 = vunpack.c.l.b16 %v731
        %v1244 = vunpack.c.h.b16 %v731
        %v1245 = vunpack.c.l.b16 %v732
        %v1246 = vunpack.c.h.b16 %v732
        %v1247 = vunpack.c.l.b16 %v733
        %v1248 = vunpack.c.h.b16 %v733
        %v1249 = vunpack.c.l.b16 %v734
        %v1250 = vunpack.c.h.b16 %v734
        %v1251 = vunpack.c.l.b16 %v735
        %v1252 = vunpack.c.h.b16 %v735
        %v1253 = vunpack.c.l.b16 %v736
        %v1254 = vunpack.c.h.b16 %v736
        %v1255 = vunpack.c.l.b16 %v737
        %v1256 = vunpack.c.h.b16 %v737
        %v1257 = vunpack.c.l.b16 %v738
        %v1258 = vunpack.c.h.b16 %v738
        %v1259 = vunpack.c.l.b16 %v739
        %v1260 = vunpack.c.h.b16 %v739
        %v1261 = vunpack.c.l.b16 %v740
        %v1262 = vunpack.c.h.b16 %v740
        %v1263 = vunpack.c.l.b16 %v741
        %v1264 = vunpack.c.h.b16 %v741
        %v1265 = vunpack.c.l.b16 %v742
        %v1266 = vunpack.c.h.b16 %v742
        %v1267 = vunpack.c.l.b16 %v743
        %v1268 = vunpack.c.h.b16 %v743
        %v1269 = vunpack.c.l.b16 %v744
        %v1270 = vunpack.c.h.b16 %v744
        %v1271 = vunpack.c.l.b16 %v745
        %v1272 = vunpack.c.h.b16 %v745
        %v1273 = vunpack.c.l.b16 %v746
        %v1274 = vunpack.c.h.b16 %v746
        %v1275 = vunpack.c.l.b16 %v747
        %v1276 = vunpack.c.h.b16 %v747
        %v1277 = vunpack.c.l.b16 %v748
        %v1278 = vunpack.c.h.b16 %v748
        %v1279 = vunpack.c.l.b16 %v749
        %v1280 = vunpack.c.h.b16 %v749
        %v1281 = vunpack.c.l.b16 %v750
        %v1282 = vunpack.c.h.b16 %v750
        %v1283 = vunpack.c.l.b16 %v751
        %v1284 = vunpack.c.h.b16 %v751
        %v1285 = vunpack.c.l.b16 %v752
        %v1286 = vunpack.c.h.b16 %v752
        %v1287 = vunpack.c.l.b16 %v753
        %v1288 = vunpack.c.h.b16 %v753
        %v1289 = vunpack.c.l.b16 %v754
        %v1290 = vunpack.c.h.b16 %v754
        %v1291 = vunpack.c.l.b16 %v755
        %v1292 = vunpack.c.h.b16 %v755
        %v1293 = vunpack.c.l.b16 %v756
        %v1294 = vunpack.c.h.b16 %v756
        %v1295 = vunpack.c.l.b16 %v757
        %v1296 = vunpack.c.h.b16 %v757
        %v1297 = vunpack.c.l.b16 %v758
        %v1298 = vunpack.c.h.b16 %v758
        %v1299 = vunpack.c.l.b16 %v759
        %v1300 = vunpack.c.h.b16 %v759
        %v1301 = vunpack.c.l.b16 %v760
        %v1302 = vunpack.c.h.b16 %v760
        %v1303 = vunpack.c.l.b16 %v761
        %v1304 = vunpack.c.h.b16 %v761
        %v1305 = vunpack.c.l.b16 %v762
        %v1306 = vunpack.c.h.b16 %v762
        %v1307 = vunpack.c.l.b16 %v763
        %v1308 = vunpack.c.h.b16 %v763
        %v1309 = vunpack.c.l.b16 %v764
        %v1310 = vunpack.c.h.b16 %v764
        %v1311 = vunpack.c.l.b16 %v765
        %v1312 = vunpack.c.h.b16 %v765
        %v1313 = vunpack.c.l.b16 %v766
        %v1314 = vunpack.c.h.b16 %v766
        %v1315 = vunpack.c.l.b16 %v767
        %v1316 = vunpack.c.h.b16 %v767
        %v1317 = vunpack.c.l.b16 %v768
        %v1318 = vunpack.c.h.b16 %v768
        %v1319 = vunpack.c.l.b16 %v769
        %v1320 = vunpack.c.h.b16 %v769
        %v1321 = vunpack.c.l.b16 %v770
        %v1322 = vunpack.c.h.b16 %v770
        %v1323 = vunpack.c.l.b16 %v771
        %v1324 = vunpack.c.h.b16 %v771
        %v1325 = vunpack.c.l.b16 %v772
        %v1326 = vunpack.c.h.b16 %v772
        %v1327 = vunpack.c.l.b16 %v773
        %v1328 = vunpack.c.h.b16 %v773
        %v1329 = vunpack.c.l.b16 %v774
        %v1330 = vunpack.c.h.b16 %v774
        %v1331 = vunpack.c.l.b16 %v775
        %v1332 = vunpack.c.h.b16 %v775
        %v1333 = vunpack.c.l.b16 %v776
        %v1334 = vunpack.c.h.b16 %v776
        %v1335 = vunpack.c.l.b16 %v777
        %v1336 = vunpack.c.h.b16 %v777
        %v1337 = vunpack.c.l.b16 %v778
        %v1338 = vunpack.c.h.b16 %v778
        %v1339 = vunpack.c.l.b16 %v779
        %v1340 = vunpack.c.h.b16 %v779
        %v1341 = vunpack.c.l.b16 %v780
        %v1342 = vunpack.c.h.b16 %v780
        %v1343 = vunpack.c.l.b16 %v781
        %v1344 = vunpack.c.h.b16 %v781
        %v1345 = vunpack.c.l.b16 %v782
        %v1346 = vunpack.c.h.b16 %v782
        %v1347 = vunpack.c.l.b16 %v783
        %v1348 = vunpack.c.h.b16 %v783
        %v1349 = vunpack.c.l.b16 %v784
        %v1350 = vunpack.c.h.b16 %v784
        %v1351 = vunpack.c.l.b16 %v785
        %v1352 = vunpack.c.h.b16 %v785
        %v1353 = vunpack.c.l.b16 %v786
        %v1354 = vunpack.c.h.b16 %v786
        %v1355 = vunpack.c.l.b16 %v787
        %v1356 = vunpack.c.h.b16 %v787
        %v1357 = vunpack.c.l.b16 %v788
        %v1358 = vunpack.c.h.b16 %v788
        %v1359 = vunpack.c.l.b16 %v789
        %v1360 = vunpack.c.h.b16 %v789
        %v1361 = vunpack.c.l.b16 %v790
        %v1362 = vunpack.c.h.b16 %v790
        %v1363 = vunpack.c.l.b16 %v791
        %v1364 = vunpack.c.h.b16 %v791
        %v1365 = vunpack.c.l.b16 %v792
        %v1366 = vunpack.c.h.b16 %v792
        %v1367 = vunpack.c.l.b16 %v793
        %v1368 = vunpack.c.h.b16 %v793
        %v1369 = vunpack.c.l.b16 %v794
        %v1370 = vunpack.c.h.b16 %v794
        %v1371 = vpack.c.b16 %v993, %v987
        %v1372 = vpack.c.b16 %v994, %v988
        %v1373 = vpack.c.b16 %v995, %v989
        %v1374 = vpack.c.b16 %v996, %v990
        %v1375 = vpack.c.b16 %v997, %v991
        %v1376 = vpack.c.b16 %v998, %v992
        %v1377 = vpack.c.b16 %v1005, %v999
        %v1378 = vpack.c.b16 %v1006, %v1000
        %v1379 = vpack.c.b16 %v1007, %v1001
        %v1380 = vpack.c.b16 %v1008, %v1002
        %v1381 = vpack.c.b16 %v1009, %v1003
        %v1382 = vpack.c.b16 %v1010, %v1004
        %v1383 = vpack.c.b16 %v1017, %v1011
        %v1384 = vpack.c.b16 %v1018, %v1012
        %v1385 = vpack.c.b16 %v1019, %v1013
        %v1386 = vpack.c.b16 %v1020, %v1014
        %v1387 = vpack.c.b16 %v1021, %v1015
        %v1388 = vpack.c.b16 %v1022, %v1016
        %v1389 = vpack.c.b16 %v1029, %v1023
        %v1390 = vpack.c.b16 %v1030, %v1024
        %v1391 = vpack.c.b16 %v1031, %v1025
        %v1392 = vpack.c.b16 %v1032, %v1026
        %v1393 = vpack.c.b16 %v1033, %v1027
        %v1394 = vpack.c.b16 %v1034, %v1028
        %v1395 = vpack.c.b16 %v1041, %v1035
        %v1396 = vpack.c.b16 %v1042, %v1036
        %v1397 = vpack.c.b16 %v1043, %v1037
        %v1398 = vpack.c.b16 %v1044, %v1038
        %v1399 = vpack.c.b16 %v1045, %v1039
        %v1400 = vpack.c.b16 %v1046, %v1040
        %v1401 = vpack.c.b16 %v1053, %v1047
        %v1402 = vpack.c.b16 %v1054, %v1048
        %v1403 = vpack.c.b16 %v1055, %v1049
        %v1404 = vpack.c.b16 %v1056, %v1050
        %v1405 = vpack.c.b16 %v1057, %v1051
        %v1406 = vpack.c.b16 %v1058, %v1052
        %v1407 = vpack.c.b16 %v1065, %v1059
        %v1408 = vpack.c.b16 %v1066, %v1060
        %v1409 = vpack.c.b16 %v1067, %v1061
        %v1410 = vpack.c.b16 %v1068, %v1062
        %v1411 = vpack.c.b16 %v1069, %v1063
        %v1412 = vpack.c.b16 %v1070, %v1064
        %v1413 = vpack.c.b16 %v1077, %v1071
        %v1414 = vpack.c.b16 %v1078, %v1072
        %v1415 = vpack.c.b16 %v1079, %v1073
        %v1416 = vpack.c.b16 %v1080, %v1074
        %v1417 = vpack.c.b16 %v1081, %v1075
        %v1418 = vpack.c.b16 %v1082, %v1076
        %v1419 = vpack.c.b16 %v1089, %v1083
        %v1420 = vpack.c.b16 %v1090, %v1084
        %v1421 = vpack.c.b16 %v1091, %v1085
        %v1422 = vpack.c.b16 %v1092, %v1086
        %v1423 = vpack.c.b16 %v1093, %v1087
        %v1424 = vpack.c.b16 %v1094, %v1088
        %v1425 = vpack.c.b16 %v1101, %v1095
        %v1426 = vpack.c.b16 %v1102, %v1096
        %v1427 = vpack.c.b16 %v1103, %v1097
        %v1428 = vpack.c.b16 %v1104, %v1098
        %v1429 = vpack.c.b16 %v1105, %v1099
        %v1430 = vpack.c.b16 %v1106, %v1100
        %v1431 = vpack.c.b16 %v1113, %v1107
        %v1432 = vpack.c.b16 %v1114, %v1108
        %v1433 = vpack.c.b16 %v1115, %v1109
        %v1434 = vpack.c.b16 %v1116, %v1110
        %v1435 = vpack.c.b16 %v1117, %v1111
        %v1436 = vpack.c.b16 %v1118, %v1112
        %v1437 = vpack.c.b16 %v1125, %v1119
        %v1438 = vpack.c.b16 %v1126, %v1120
        %v1439 = vpack.c.b16 %v1127, %v1121
        %v1440 = vpack.c.b16 %v1128, %v1122
        %v1441 = vpack.c.b16 %v1129, %v1123
        %v1442 = vpack.c.b16 %v1130, %v1124
        %v1443 = vpack.c.b16 %v1137, %v1131
        %v1444 = vpack.c.b16 %v1138, %v1132
        %v1445 = vpack.c.b16 %v1139, %v1133
        %v1446 = vpack.c.b16 %v1140, %v1134
        %v1447 = vpack.c.b16 %v1141, %v1135
        %v1448 = vpack.c.b16 %v1142, %v1136
        %v1449 = vpack.c.b16 %v1149, %v1143
        %v1450 = vpack.c.b16 %v1150, %v1144
        %v1451 = vpack.c.b16 %v1151, %v1145
        %v1452 = vpack.c.b16 %v1152, %v1146
        %v1453 = vpack.c.b16 %v1153, %v1147
        %v1454 = vpack.c.b16 %v1154, %v1148
        %v1455 = vpack.c.b16 %v1161, %v1155
        %v1456 = vpack.c.b16 %v1162, %v1156
        %v1457 = vpack.c.b16 %v1163, %v1157
        %v1458 = vpack.c.b16 %v1164, %v1158
        %v1459 = vpack.c.b16 %v1165, %v1159
        %v1460 = vpack.c.b16 %v1166, %v1160
        %v1461 = vpack.c.b16 %v1173, %v1167
        %v1462 = vpack.c.b16 %v1174, %v1168
        %v1463 = vpack.c.b16 %v1175, %v1169
        %v1464 = vpack.c.b16 %v1176, %v1170
        %v1465 = vpack.c.b16 %v1177, %v1171
        %v1466 = vpack.c.b16 %v1178, %v1172
        %v1467 = vpack.c.b16 %v1185, %v1179
        %v1468 = vpack.c.b16 %v1186, %v1180
        %v1469 = vpack.c.b16 %v1187, %v1181
        %v1470 = vpack.c.b16 %v1188, %v1182
        %v1471 = vpack.c.b16 %v1189, %v1183
        %v1472 = vpack.c.b16 %v1190, %v1184
        %v1473 = vpack.c.b16 %v1197, %v1191
        %v1474 = vpack.c.b16 %v1198, %v1192
        %v1475 = vpack.c.b16 %v1199, %v1193
        %v1476 = vpack.c.b16 %v1200, %v1194
        %v1477 = vpack.c.b16 %v1201, %v1195
        %v1478 = vpack.c.b16 %v1202, %v1196
        %v1479 = vpack.c.b16 %v1209, %v1203
        %v1480 = vpack.c.b16 %v1210, %v1204
        %v1481 = vpack.c.b16 %v1211, %v1205
        %v1482 = vpack.c.b16 %v1212, %v1206
        %v1483 = vpack.c.b16 %v1213, %v1207
        %v1484 = vpack.c.b16 %v1214, %v1208
        %v1485 = vpack.c.b16 %v1221, %v1215
        %v1486 = vpack.c.b16 %v1222, %v1216
        %v1487 = vpack.c.b16 %v1223, %v1217
        %v1488 = vpack.c.b16 %v1224, %v1218
        %v1489 = vpack.c.b16 %v1225, %v1219
        %v1490 = vpack.c.b16 %v1226, %v1220
        %v1491 = vpack.c.b16 %v1233, %v1227
        %v1492 = vpack.c.b16 %v1234, %v1228
        %v1493 = vpack.c.b16 %v1235, %v1229
        %v1494 = vpack.c.b16 %v1236, %v1230
        %v1495 = vpack.c.b16 %v1237, %v1231
        %v1496 = vpack.c.b16 %v1238, %v1232
        %v1497 = vpack.c.b16 %v1245, %v1239
        %v1498 = vpack.c.b16 %v1246, %v1240
        %v1499 = vpack.c.b16 %v1247, %v1241
        %v1500 = vpack.c.b16 %v1248, %v1242
        %v1501 = vpack.c.b16 %v1249, %v1243
        %v1502 = vpack.c.b16 %v1250, %v1244
        %v1503 = vpack.c.b16 %v1257, %v1251
        %v1504 = vpack.c.b16 %v1258, %v1252
        %v1505 = vpack.c.b16 %v1259, %v1253
        %v1506 = vpack.c.b16 %v1260, %v1254
        %v1507 = vpack.c.b16 %v1261, %v1255
        %v1508 = vpack.c.b16 %v1262, %v1256
        %v1509 = vpack.c.b16 %v1269, %v1263
        %v1510 = vpack.c.b16 %v1270, %v1264
        %v1511 = vpack.c.b16 %v1271, %v1265
        %v1512 = vpack.c.b16 %v1272, %v1266
        %v1513 = vpack.c.b16 %v1273, %v1267
        %v1514 = vpack.c.b16 %v1274, %v1268
        %v1515 = vpack.c.b16 %v1281, %v1275
        %v1516 = vpack.c.b16 %v1282, %v1276
        %v1517 = vpack.c.b16 %v1283, %v1277
        %v1518 = vpack.c.b16 %v1284, %v1278
        %v1519 = vpack.c.b16 %v1285, %v1279
        %v1520 = vpack.c.b16 %v1286, %v1280
        %v1521 = vpack.c.b16 %v1293, %v1287
        %v1522 = vpack.c.b16 %v1294, %v1288
        %v1523 = vpack.c.b16 %v1295, %v1289
        %v1524 = vpack.c.b16 %v1296, %v1290
        %v1525 = vpack.c.b16 %v1297, %v1291
        %v1526 = vpack.c.b16 %v1298, %v1292
        %v1527 = vpack.c.b16 %v1305, %v1299
        %v1528 = vpack.c.b16 %v1306, %v1300
        %v1529 = vpack.c.b16 %v1307, %v1301
        %v1530 = vpack.c.b16 %v1308, %v1302
        %v1531 = vpack.c.b16 %v1309, %v1303
        %v1532 = vpack.c.b16 %v1310, %v1304
        %v1533 = vpack.c.b16 %v1317, %v1311
        %v1534 = vpack.c.b16 %v1318, %v1312
        %v1535 = vpack.c.b16 %v1319, %v1313
        %v1536 = vpack.c.b16 %v1320, %v1314
        %v1537 = vpack.c.b16 %v1321, %v1315
        %v1538 = vpack.c.b16 %v1322, %v1316
        %v1539 = vpack.c.b16 %v1329, %v1323
        %v1540 = vpack.c.b16 %v1330, %v1324
        %v1541 = vpack.c.b16 %v1331, %v1325
        %v1542 = vpack.c.b16 %v1332, %v1326
        %v1543 = vpack.c.b16 %v1333, %v1327
        %v1544 = vpack.c.b16 %v1334, %v1328
        %v1545 = vpack.c.b16 %v1341, %v1335
        %v1546 = vpack.c.b16 %v1342, %v1336
        %v1547 = vpack.c.b16 %v1343, %v1337
        %v1548 = vpack.c.b16 %v1344, %v1338
        %v1549 = vpack.c.b16 %v1345, %v1339
        %v1550 = vpack.c.b16 %v1346, %v1340
        %v1551 = vpack.c.b16 %v1353, %v1347
        %v1552 = vpack.c.b16 %v1354, %v1348
        %v1553 = vpack.c.b16 %v1355, %v1349
        %v1554 = vpack.c.b16 %v1356, %v1350
        %v1555 = vpack.c.b16 %v1357, %v1351
        %v1556 = vpack.c.b16 %v1358, %v1352
        %v1557 = vpack.c.b16 %v1365, %v1359
        %v1558 = vpack.c.b16 %v1366, %v1360
        %v1559 = vpack.c.b16 %v1367, %v1361
        %v1560 = vpack.c.b16 %v1368, %v1362
        %v1561 = vpack.c.b16 %v1369, %v1363
        %v1562 = vpack.c.b16 %v1370, %v1364
        %1755 = vmatprep.subr.bf16.mxu0 %v1372
        %1756 = vmatpush1.bf16.msra.mxu0 %v1371
        %1757 = vmatprep.subr.bf16.mxu0 %v1378
        %1758 = vmatpush1.bf16.msra.mxu0 %v1377
        %1759 = vmatprep.subr.bf16.mxu0 %v1384
        %1760 = vmatpush1.bf16.msra.mxu0 %v1383
        %1761 = vmatprep.subr.bf16.mxu0 %v1390
        %1762 = vmatpush1.bf16.msra.mxu0 %v1389
        %1763 = vmatprep.subr.bf16.mxu0 %v1396
        %1764 = vmatpush1.bf16.msra.mxu0 %v1395
        %1765 = vmatprep.subr.bf16.mxu0 %v1402
        %1766 = vmatpush1.bf16.msra.mxu0 %v1401
        %1767 = vmatprep.subr.bf16.mxu0 %v1408
        %1768 = vmatpush1.bf16.msra.mxu0 %v1407
        %1769 = vmatprep.subr.bf16.mxu0 %v1414
        %1770 = vmatpush1.bf16.msra.mxu0 %v1413
        %1771 = vmatprep.subr.bf16.mxu0 %v1420
        %1772 = vmatpush1.bf16.msra.mxu0 %v1419
        %1773 = vmatprep.subr.bf16.mxu0 %v1426
        %1774 = vmatpush1.bf16.msra.mxu0 %v1425
        %1775 = vmatprep.subr.bf16.mxu0 %v1432
        %1776 = vmatpush1.bf16.msra.mxu0 %v1431
        %1777 = vmatprep.subr.bf16.mxu0 %v1438
        %1778 = vmatpush1.bf16.msra.mxu0 %v1437
        %1779 = vmatprep.subr.bf16.mxu0 %v1444
        %1780 = vmatpush1.bf16.msra.mxu0 %v1443
        %1781 = vmatprep.subr.bf16.mxu0 %v1450
        %1782 = vmatpush1.bf16.msra.mxu0 %v1449
        %1783 = vmatprep.subr.bf16.mxu0 %v1456
        %1784 = vmatpush1.bf16.msra.mxu0 %v1455
        %1785 = vmatprep.subr.bf16.mxu0 %v1462
        %1786 = vmatpush1.bf16.msra.mxu0 %v1461
        %1787 = vmatprep.mubr.bf16.mxu0 %v588
        %1788 = vmatmul.mubr.bf16.gmra.mrb[0].mxu0 %v587
        %v1789 = vpop.f32.mrb[0].mxu0
        %v1790 = vadd.f32 0.0, %v1789
        %v1791 = vpop.f32.mrb[0].mxu0
        %v1792 = vadd.f32 0.0, %v1791
        %v1793 = vpop.f32.mrb[0].mxu0
        %v1794 = vadd.f32 0.0, %v1793
        %v1795 = vpop.f32.mrb[0].mxu0
        %v1796 = vadd.f32 0.0, %v1795
        %1797 = vmatprep.mubr.bf16.mxu0 %v592
        %1798 = vmatmul.mubr.bf16.gmra.mrb[0].mxu0 %v591
        %v1799 = vpop.f32.mrb[0].mxu0
        %v1800 = vadd.f32 0.0, %v1799
        %v1801 = vpop.f32.mrb[0].mxu0
        %v1802 = vadd.f32 0.0, %v1801
        %v1803 = vpop.f32.mrb[0].mxu0
        %v1804 = vadd.f32 0.0, %v1803
        %v1805 = vpop.f32.mrb[0].mxu0
        %v1806 = vadd.f32 0.0, %v1805
        %1807 = vmatprep.mubr.bf16.mxu0 %v596
        %1808 = vmatmul.mubr.bf16.gmra.mrb[0].mxu0 %v595
        %v1809 = vpop.f32.mrb[0].mxu0
        %v1810 = vadd.f32 0.0, %v1809
        %v1811 = vpop.f32.mrb[0].mxu0
        %v1812 = vadd.f32 0.0, %v1811
        %v1813 = vpop.f32.mrb[0].mxu0
        %v1814 = vadd.f32 0.0, %v1813
        %v1815 = vpop.f32.mrb[0].mxu0
        %v1816 = vadd.f32 0.0, %v1815
        %1817 = vmatprep.mubr.bf16.mxu0 %v600
        %1818 = vmatmul.mubr.bf16.gmra.mrb[0].mxu0 %v599
        %v1819 = vpop.f32.mrb[0].mxu0
        %v1820 = vadd.f32 0.0, %v1819
        %v1821 = vpop.f32.mrb[0].mxu0
        %v1822 = vadd.f32 0.0, %v1821
        %v1823 = vpop.f32.mrb[0].mxu0
        %v1824 = vadd.f32 0.0, %v1823
        %v1825 = vpop.f32.mrb[0].mxu0
        %v1826 = vadd.f32 0.0, %v1825
        %1827 = vdwg.mxu0
        %1828 = vmatprep.subr.bf16.mxu0 %v1468
        %1829 = vmatpush1.bf16.msra.mxu0 %v1467
        %1830 = vmatprep.subr.bf16.mxu0 %v1474
        %1831 = vmatpush1.bf16.msra.mxu0 %v1473
        %1832 = vmatprep.subr.bf16.mxu0 %v1480
        %1833 = vmatpush1.bf16.msra.mxu0 %v1479
        %1834 = vmatprep.subr.bf16.mxu0 %v1486
        %1835 = vmatpush1.bf16.msra.mxu0 %v1485
        %1836 = vmatprep.subr.bf16.mxu0 %v1492
        %1837 = vmatpush1.bf16.msra.mxu0 %v1491
        %1838 = vmatprep.subr.bf16.mxu0 %v1498
        %1839 = vmatpush1.bf16.msra.mxu0 %v1497
        %1840 = vmatprep.subr.bf16.mxu0 %v1504
        %1841 = vmatpush1.bf16.msra.mxu0 %v1503
        %1842 = vmatprep.subr.bf16.mxu0 %v1510
        %1843 = vmatpush1.bf16.msra.mxu0 %v1509
        %1844 = vmatprep.subr.bf16.mxu0 %v1516
        %1845 = vmatpush1.bf16.msra.mxu0 %v1515
        %1846 = vmatprep.subr.bf16.mxu0 %v1522
        %1847 = vmatpush1.bf16.msra.mxu0 %v1521
        %1848 = vmatprep.subr.bf16.mxu0 %v1528
        %1849 = vmatpush1.bf16.msra.mxu0 %v1527
        %1850 = vmatprep.subr.bf16.mxu0 %v1534
        %1851 = vmatpush1.bf16.msra.mxu0 %v1533
        %1852 = vmatprep.subr.bf16.mxu0 %v1540
        %1853 = vmatpush1.bf16.msra.mxu0 %v1539
        %1854 = vmatprep.subr.bf16.mxu0 %v1546
        %1855 = vmatpush1.bf16.msra.mxu0 %v1545
        %1856 = vmatprep.subr.bf16.mxu0 %v1552
        %1857 = vmatpush1.bf16.msra.mxu0 %v1551
        %1858 = vmatprep.subr.bf16.mxu0 %v1558
        %1859 = vmatpush1.bf16.msra.mxu0 %v1557
        %1860 = vmatprep.mubr.bf16.mxu0 %v590
        %1861 = vmatmul.mubr.bf16.gmra.mrb[0].mxu0 %v589
        %v1862 = vpop.f32.mrb[0].mxu0
        %v1863 = vadd.f32 %v1790, %v1862
        %v1864 = vpop.f32.mrb[0].mxu0
        %v1865 = vadd.f32 %v1792, %v1864
        %v1866 = vpop.f32.mrb[0].mxu0
        %v1867 = vadd.f32 %v1794, %v1866
        %v1868 = vpop.f32.mrb[0].mxu0
        %v1869 = vadd.f32 %v1796, %v1868
        %1870 = vmatprep.mubr.bf16.mxu0 %v594
        %1871 = vmatmul.mubr.bf16.gmra.mrb[0].mxu0 %v593
        %v1872 = vpop.f32.mrb[0].mxu0
        %v1873 = vadd.f32 %v1800, %v1872
        %v1874 = vpop.f32.mrb[0].mxu0
        %v1875 = vadd.f32 %v1802, %v1874
        %v1876 = vpop.f32.mrb[0].mxu0
        %v1877 = vadd.f32 %v1804, %v1876
        %v1878 = vpop.f32.mrb[0].mxu0
        %v1879 = vadd.f32 %v1806, %v1878
        %1880 = vmatprep.mubr.bf16.mxu0 %v598
        %1881 = vmatmul.mubr.bf16.gmra.mrb[0].mxu0 %v597
        %v1882 = vpop.f32.mrb[0].mxu0
        %v1883 = vadd.f32 %v1810, %v1882
        %v1884 = vpop.f32.mrb[0].mxu0
        %v1885 = vadd.f32 %v1812, %v1884
        %v1886 = vpop.f32.mrb[0].mxu0
        %v1887 = vadd.f32 %v1814, %v1886
        %v1888 = vpop.f32.mrb[0].mxu0
        %v1889 = vadd.f32 %v1816, %v1888
        %1890 = vmatprep.mubr.bf16.mxu0 %v602
        %1891 = vmatmul.mubr.bf16.gmra.mrb[0].mxu0 %v601
        %v1892 = vpop.f32.mrb[0].mxu0
        %v1893 = vadd.f32 %v1820, %v1892
        %v1894 = vpop.f32.mrb[0].mxu0
        %v1895 = vadd.f32 %v1822, %v1894
        %v1896 = vpop.f32.mrb[0].mxu0
        %v1897 = vadd.f32 %v1824, %v1896
        %v1898 = vpop.f32.mrb[0].mxu0
        %v1899 = vadd.f32 %v1826, %v1898
        %1900 = vdwg.mxu0
        %1901 = vmatprep.subr.bf16.mxu0 %v1374
        %1902 = vmatpush1.bf16.msra.mxu0 %v1373
        %1903 = vmatprep.subr.bf16.mxu0 %v1380
        %1904 = vmatpush1.bf16.msra.mxu0 %v1379
        %1905 = vmatprep.subr.bf16.mxu0 %v1386
        %1906 = vmatpush1.bf16.msra.mxu0 %v1385
        %1907 = vmatprep.subr.bf16.mxu0 %v1392
        %1908 = vmatpush1.bf16.msra.mxu0 %v1391
        %1909 = vmatprep.subr.bf16.mxu0 %v1398
        %1910 = vmatpush1.bf16.msra.mxu0 %v1397
        %1911 = vmatprep.subr.bf16.mxu0 %v1404
        %1912 = vmatpush1.bf16.msra.mxu0 %v1403
        %1913 = vmatprep.subr.bf16.mxu0 %v1410
        %1914 = vmatpush1.bf16.msra.mxu0 %v1409
        %1915 = vmatprep.subr.bf16.mxu0 %v1416
        %1916 = vmatpush1.bf16.msra.mxu0 %v1415
        %1917 = vmatprep.subr.bf16.mxu0 %v1422
        %1918 = vmatpush1.bf16.msra.mxu0 %v1421
        %1919 = vmatprep.subr.bf16.mxu0 %v1428
        %1920 = vmatpush1.bf16.msra.mxu0 %v1427
        %1921 = vmatprep.subr.bf16.mxu0 %v1434
        %1922 = vmatpush1.bf16.msra.mxu0 %v1433
        %1923 = vmatprep.subr.bf16.mxu0 %v1440
        %1924 = vmatpush1.bf16.msra.mxu0 %v1439
        %1925 = vmatprep.subr.bf16.mxu0 %v1446
        %1926 = vmatpush1.bf16.msra.mxu0 %v1445
        %1927 = vmatprep.subr.bf16.mxu0 %v1452
        %1928 = vmatpush1.bf16.msra.mxu0 %v1451
        %1929 = vmatprep.subr.bf16.mxu0 %v1458
        %1930 = vmatpush1.bf16.msra.mxu0 %v1457
        %1931 = vmatprep.subr.bf16.mxu0 %v1464
        %1932 = vmatpush1.bf16.msra.mxu0 %v1463
        %1933 = vmatprep.mubr.bf16.mxu0 %v588
        %1934 = vmatmul.mubr.bf16.gmra.mrb[0].mxu0 %v587
        %v1935 = vpop.f32.mrb[0].mxu0
        %v1936 = vadd.f32 0.0, %v1935
        %v1937 = vpop.f32.mrb[0].mxu0
        %v1938 = vadd.f32 0.0, %v1937
        %v1939 = vpop.f32.mrb[0].mxu0
        %v1940 = vadd.f32 0.0, %v1939
        %v1941 = vpop.f32.mrb[0].mxu0
        %v1942 = vadd.f32 0.0, %v1941
        %1943 = vmatprep.mubr.bf16.mxu0 %v592
        %1944 = vmatmul.mubr.bf16.gmra.mrb[0].mxu0 %v591
        %v1945 = vpop.f32.mrb[0].mxu0
        %v1946 = vadd.f32 0.0, %v1945
        %v1947 = vpop.f32.mrb[0].mxu0
        %v1948 = vadd.f32 0.0, %v1947
        %v1949 = vpop.f32.mrb[0].mxu0
        %v1950 = vadd.f32 0.0, %v1949
        %v1951 = vpop.f32.mrb[0].mxu0
        %v1952 = vadd.f32 0.0, %v1951
        %1953 = vmatprep.mubr.bf16.mxu0 %v596
        %1954 = vmatmul.mubr.bf16.gmra.mrb[0].mxu0 %v595
        %v1955 = vpop.f32.mrb[0].mxu0
        %v1956 = vadd.f32 0.0, %v1955
        %v1957 = vpop.f32.mrb[0].mxu0
        %v1958 = vadd.f32 0.0, %v1957
        %v1959 = vpop.f32.mrb[0].mxu0
        %v1960 = vadd.f32 0.0, %v1959
        %v1961 = vpop.f32.mrb[0].mxu0
        %v1962 = vadd.f32 0.0, %v1961
        %1963 = vmatprep.mubr.bf16.mxu0 %v600
        %1964 = vmatmul.mubr.bf16.gmra.mrb[0].mxu0 %v599
        %v1965 = vpop.f32.mrb[0].mxu0
        %v1966 = vadd.f32 0.0, %v1965
        %v1967 = vpop.f32.mrb[0].mxu0
        %v1968 = vadd.f32 0.0, %v1967
        %v1969 = vpop.f32.mrb[0].mxu0
        %v1970 = vadd.f32 0.0, %v1969
        %v1971 = vpop.f32.mrb[0].mxu0
        %v1972 = vadd.f32 0.0, %v1971
        %1973 = vdwg.mxu0
        %1974 = vmatprep.subr.bf16.mxu0 %v1470
        %1975 = vmatpush1.bf16.msra.mxu0 %v1469
        %1976 = vmatprep.subr.bf16.mxu0 %v1476
        %1977 = vmatpush1.bf16.msra.mxu0 %v1475
        %1978 = vmatprep.subr.bf16.mxu0 %v1482
        %1979 = vmatpush1.bf16.msra.mxu0 %v1481
        %1980 = vmatprep.subr.bf16.mxu0 %v1488
        %1981 = vmatpush1.bf16.msra.mxu0 %v1487
        %1982 = vmatprep.subr.bf16.mxu0 %v1494
        %1983 = vmatpush1.bf16.msra.mxu0 %v1493
        %1984 = vmatprep.subr.bf16.mxu0 %v1500
        %1985 = vmatpush1.bf16.msra.mxu0 %v1499
        %1986 = vmatprep.subr.bf16.mxu0 %v1506
        %1987 = vmatpush1.bf16.msra.mxu0 %v1505
        %1988 = vmatprep.subr.bf16.mxu0 %v1512
        %1989 = vmatpush1.bf16.msra.mxu0 %v1511
        %1990 = vmatprep.subr.bf16.mxu0 %v1518
        %1991 = vmatpush1.bf16.msra.mxu0 %v1517
        %1992 = vmatprep.subr.bf16.mxu0 %v1524
        %1993 = vmatpush1.bf16.msra.mxu0 %v1523
        %1994 = vmatprep.subr.bf16.mxu0 %v1530
        %1995 = vmatpush1.bf16.msra.mxu0 %v1529
        %1996 = vmatprep.subr.bf16.mxu0 %v1536
        %1997 = vmatpush1.bf16.msra.mxu0 %v1535
        %1998 = vmatprep.subr.bf16.mxu0 %v1542
        %1999 = vmatpush1.bf16.msra.mxu0 %v1541
        %2000 = vmatprep.subr.bf16.mxu0 %v1548
        %2001 = vmatpush1.bf16.msra.mxu0 %v1547
        %2002 = vmatprep.subr.bf16.mxu0 %v1554
        %2003 = vmatpush1.bf16.msra.mxu0 %v1553
        %2004 = vmatprep.subr.bf16.mxu0 %v1560
        %2005 = vmatpush1.bf16.msra.mxu0 %v1559
        %2006 = vmatprep.mubr.bf16.mxu0 %v590
        %2007 = vmatmul.mubr.bf16.gmra.mrb[0].mxu0 %v589
        %v2008 = vpop.f32.mrb[0].mxu0
        %v2009 = vadd.f32 %v1936, %v2008
        %v2010 = vpop.f32.mrb[0].mxu0
        %v2011 = vadd.f32 %v1938, %v2010
        %v2012 = vpop.f32.mrb[0].mxu0
        %v2013 = vadd.f32 %v1940, %v2012
        %v2014 = vpop.f32.mrb[0].mxu0
        %v2015 = vadd.f32 %v1942, %v2014
        %2016 = vmatprep.mubr.bf16.mxu0 %v594
        %2017 = vmatmul.mubr.bf16.gmra.mrb[0].mxu0 %v593
        %v2018 = vpop.f32.mrb[0].mxu0
        %v2019 = vadd.f32 %v1946, %v2018
        %v2020 = vpop.f32.mrb[0].mxu0
        %v2021 = vadd.f32 %v1948, %v2020
        %v2022 = vpop.f32.mrb[0].mxu0
        %v2023 = vadd.f32 %v1950, %v2022
        %v2024 = vpop.f32.mrb[0].mxu0
        %v2025 = vadd.f32 %v1952, %v2024
        %2026 = vmatprep.mubr.bf16.mxu0 %v598
        %2027 = vmatmul.mubr.bf16.gmra.mrb[0].mxu0 %v597
        %v2028 = vpop.f32.mrb[0].mxu0
        %v2029 = vadd.f32 %v1956, %v2028
        %v2030 = vpop.f32.mrb[0].mxu0
        %v2031 = vadd.f32 %v1958, %v2030
        %v2032 = vpop.f32.mrb[0].mxu0
        %v2033 = vadd.f32 %v1960, %v2032
        %v2034 = vpop.f32.mrb[0].mxu0
        %v2035 = vadd.f32 %v1962, %v2034
        %2036 = vmatprep.mubr.bf16.mxu0 %v602
        %2037 = vmatmul.mubr.bf16.gmra.mrb[0].mxu0 %v601
        %v2038 = vpop.f32.mrb[0].mxu0
        %v2039 = vadd.f32 %v1966, %v2038
        %v2040 = vpop.f32.mrb[0].mxu0
        %v2041 = vadd.f32 %v1968, %v2040
        %v2042 = vpop.f32.mrb[0].mxu0
        %v2043 = vadd.f32 %v1970, %v2042
        %v2044 = vpop.f32.mrb[0].mxu0
        %v2045 = vadd.f32 %v1972, %v2044
        %2046 = vdwg.mxu0
        %2047 = vmatprep.subr.bf16.mxu0 %v1376
        %2048 = vmatpush1.bf16.msra.mxu0 %v1375
        %2049 = vmatprep.subr.bf16.mxu0 %v1382
        %2050 = vmatpush1.bf16.msra.mxu0 %v1381
        %2051 = vmatprep.subr.bf16.mxu0 %v1388
        %2052 = vmatpush1.bf16.msra.mxu0 %v1387
        %2053 = vmatprep.subr.bf16.mxu0 %v1394
        %2054 = vmatpush1.bf16.msra.mxu0 %v1393
        %2055 = vmatprep.subr.bf16.mxu0 %v1400
        %2056 = vmatpush1.bf16.msra.mxu0 %v1399
        %2057 = vmatprep.subr.bf16.mxu0 %v1406
        %2058 = vmatpush1.bf16.msra.mxu0 %v1405
        %2059 = vmatprep.subr.bf16.mxu0 %v1412
        %2060 = vmatpush1.bf16.msra.mxu0 %v1411
        %2061 = vmatprep.subr.bf16.mxu0 %v1418
        %2062 = vmatpush1.bf16.msra.mxu0 %v1417
        %2063 = vmatprep.subr.bf16.mxu0 %v1424
        %2064 = vmatpush1.bf16.msra.mxu0 %v1423
        %2065 = vmatprep.subr.bf16.mxu0 %v1430
        %2066 = vmatpush1.bf16.msra.mxu0 %v1429
        %2067 = vmatprep.subr.bf16.mxu0 %v1436
        %2068 = vmatpush1.bf16.msra.mxu0 %v1435
        %2069 = vmatprep.subr.bf16.mxu0 %v1442
        %2070 = vmatpush1.bf16.msra.mxu0 %v1441
        %2071 = vmatprep.subr.bf16.mxu0 %v1448
        %2072 = vmatpush1.bf16.msra.mxu0 %v1447
        %2073 = vmatprep.subr.bf16.mxu0 %v1454
        %2074 = vmatpush1.bf16.msra.mxu0 %v1453
        %2075 = vmatprep.subr.bf16.mxu0 %v1460
        %2076 = vmatpush1.bf16.msra.mxu0 %v1459
        %2077 = vmatprep.subr.bf16.mxu0 %v1466
        %2078 = vmatpush1.bf16.msra.mxu0 %v1465
        %2079 = vmatprep.mubr.bf16.mxu0 %v588
        %2080 = vmatmul.mubr.bf16.gmra.mrb[0].mxu0 %v587
        %v2081 = vpop.f32.mrb[0].mxu0
        %v2082 = vadd.f32 0.0, %v2081
        %v2083 = vpop.f32.mrb[0].mxu0
        %v2084 = vadd.f32 0.0, %v2083
        %v2085 = vpop.f32.mrb[0].mxu0
        %v2086 = vadd.f32 0.0, %v2085
        %v2087 = vpop.f32.mrb[0].mxu0
        %v2088 = vadd.f32 0.0, %v2087
        %2089 = vmatprep.mubr.bf16.mxu0 %v592
        %2090 = vmatmul.mubr.bf16.gmra.mrb[0].mxu0 %v591
        %v2091 = vpop.f32.mrb[0].mxu0
        %v2092 = vadd.f32 0.0, %v2091
        %v2093 = vpop.f32.mrb[0].mxu0
        %v2094 = vadd.f32 0.0, %v2093
        %v2095 = vpop.f32.mrb[0].mxu0
        %v2096 = vadd.f32 0.0, %v2095
        %v2097 = vpop.f32.mrb[0].mxu0
        %v2098 = vadd.f32 0.0, %v2097
        %2099 = vmatprep.mubr.bf16.mxu0 %v596
        %2100 = vmatmul.mubr.bf16.gmra.mrb[0].mxu0 %v595
        %v2101 = vpop.f32.mrb[0].mxu0
        %v2102 = vadd.f32 0.0, %v2101
        %v2103 = vpop.f32.mrb[0].mxu0
        %v2104 = vadd.f32 0.0, %v2103
        %v2105 = vpop.f32.mrb[0].mxu0
        %v2106 = vadd.f32 0.0, %v2105
        %v2107 = vpop.f32.mrb[0].mxu0
        %v2108 = vadd.f32 0.0, %v2107
        %2109 = vmatprep.mubr.bf16.mxu0 %v600
        %2110 = vmatmul.mubr.bf16.gmra.mrb[0].mxu0 %v599
        %v2111 = vpop.f32.mrb[0].mxu0
        %v2112 = vadd.f32 0.0, %v2111
        %v2113 = vpop.f32.mrb[0].mxu0
        %v2114 = vadd.f32 0.0, %v2113
        %v2115 = vpop.f32.mrb[0].mxu0
        %v2116 = vadd.f32 0.0, %v2115
        %v2117 = vpop.f32.mrb[0].mxu0
        %v2118 = vadd.f32 0.0, %v2117
        %2119 = vdwg.mxu0
        %2120 = vmatprep.subr.bf16.mxu0 %v1472
        %2121 = vmatpush1.bf16.msra.mxu0 %v1471
        %2122 = vmatprep.subr.bf16.mxu0 %v1478
        %2123 = vmatpush1.bf16.msra.mxu0 %v1477
        %2124 = vmatprep.subr.bf16.mxu0 %v1484
        %2125 = vmatpush1.bf16.msra.mxu0 %v1483
        %2126 = vmatprep.subr.bf16.mxu0 %v1490
        %2127 = vmatpush1.bf16.msra.mxu0 %v1489
        %2128 = vmatprep.subr.bf16.mxu0 %v1496
        %2129 = vmatpush1.bf16.msra.mxu0 %v1495
        %2130 = vmatprep.subr.bf16.mxu0 %v1502
        %2131 = vmatpush1.bf16.msra.mxu0 %v1501
        %2132 = vmatprep.subr.bf16.mxu0 %v1508
        %2133 = vmatpush1.bf16.msra.mxu0 %v1507
        %2134 = vmatprep.subr.bf16.mxu0 %v1514
        %2135 = vmatpush1.bf16.msra.mxu0 %v1513
        %2136 = vmatprep.subr.bf16.mxu0 %v1520
        %2137 = vmatpush1.bf16.msra.mxu0 %v1519
        %2138 = vmatprep.subr.bf16.mxu0 %v1526
        %2139 = vmatpush1.bf16.msra.mxu0 %v1525
        %2140 = vmatprep.subr.bf16.mxu0 %v1532
        %2141 = vmatpush1.bf16.msra.mxu0 %v1531
        %2142 = vmatprep.subr.bf16.mxu0 %v1538
        %2143 = vmatpush1.bf16.msra.mxu0 %v1537
        %2144 = vmatprep.subr.bf16.mxu0 %v1544
        %2145 = vmatpush1.bf16.msra.mxu0 %v1543
        %2146 = vmatprep.subr.bf16.mxu0 %v1550
        %2147 = vmatpush1.bf16.msra.mxu0 %v1549
        %2148 = vmatprep.subr.bf16.mxu0 %v1556
        %2149 = vmatpush1.bf16.msra.mxu0 %v1555
        %2150 = vmatprep.subr.bf16.mxu0 %v1562
        %2151 = vmatpush1.bf16.msra.mxu0 %v1561
        %2152 = vmatprep.mubr.bf16.mxu0 %v590
        %2153 = vmatmul.mubr.bf16.gmra.mrb[0].mxu0 %v589
        %v2154 = vpop.f32.mrb[0].mxu0
        %v2155 = vadd.f32 %v2082, %v2154
        %v2156 = vpop.f32.mrb[0].mxu0
        %v2157 = vadd.f32 %v2084, %v2156
        %v2158 = vpop.f32.mrb[0].mxu0
        %v2159 = vadd.f32 %v2086, %v2158
        %v2160 = vpop.f32.mrb[0].mxu0
        %v2161 = vadd.f32 %v2088, %v2160
        %2162 = vmatprep.mubr.bf16.mxu0 %v594
        %2163 = vmatmul.mubr.bf16.gmra.mrb[0].mxu0 %v593
        %v2164 = vpop.f32.mrb[0].mxu0
        %v2165 = vadd.f32 %v2092, %v2164
        %v2166 = vpop.f32.mrb[0].mxu0
        %v2167 = vadd.f32 %v2094, %v2166
        %v2168 = vpop.f32.mrb[0].mxu0
        %v2169 = vadd.f32 %v2096, %v2168
        %v2170 = vpop.f32.mrb[0].mxu0
        %v2171 = vadd.f32 %v2098, %v2170
        %2172 = vmatprep.mubr.bf16.mxu0 %v598
        %2173 = vmatmul.mubr.bf16.gmra.mrb[0].mxu0 %v597
        %v2174 = vpop.f32.mrb[0].mxu0
        %v2175 = vadd.f32 %v2102, %v2174
        %v2176 = vpop.f32.mrb[0].mxu0
        %v2177 = vadd.f32 %v2104, %v2176
        %v2178 = vpop.f32.mrb[0].mxu0
        %v2179 = vadd.f32 %v2106, %v2178
        %v2180 = vpop.f32.mrb[0].mxu0
        %v2181 = vadd.f32 %v2108, %v2180
        %2182 = vmatprep.mubr.bf16.mxu0 %v602
        %2183 = vmatmul.mubr.bf16.gmra.mrb[0].mxu0 %v601
        %v2184 = vpop.f32.mrb[0].mxu0
        %v2185 = vadd.f32 %v2112, %v2184
        %v2186 = vpop.f32.mrb[0].mxu0
        %v2187 = vadd.f32 %v2114, %v2186
        %v2188 = vpop.f32.mrb[0].mxu0
        %v2189 = vadd.f32 %v2116, %v2188
        %v2190 = vpop.f32.mrb[0].mxu0
        %v2191 = vadd.f32 %v2118, %v2190
        %2192 = vdwg.mxu0
        %v2193 = vmul.f32 %v1863, %v1863
        %v2194 = vmul.f32 %v1865, %v1865
        %v2195 = vmul.f32 %v2009, %v2009
        %v2196 = vmul.f32 %v1867, %v1867
        %v2197 = vmul.f32 %v1869, %v1869
        %v2198 = vmul.f32 %v2013, %v2013
        %v2199 = vmul.f32 %v1873, %v1873
        %v2200 = vmul.f32 %v1875, %v1875
        %v2201 = vmul.f32 %v2019, %v2019
        %v2202 = vmul.f32 %v1877, %v1877
        %v2203 = vmul.f32 %v1879, %v1879
        %v2204 = vmul.f32 %v2023, %v2023
        %v2205 = vmul.f32 %v1883, %v1883
        %v2206 = vmul.f32 %v1885, %v1885
        %v2207 = vmul.f32 %v2029, %v2029
        %v2208 = vmul.f32 %v1887, %v1887
        %v2209 = vmul.f32 %v1889, %v1889
        %v2210 = vmul.f32 %v2033, %v2033
        %v2211 = vmul.f32 %v1893, %v1893
        %v2212 = vmul.f32 %v1895, %v1895
        %v2213 = vmul.f32 %v2039, %v2039
        %v2214 = vmul.f32 %v1897, %v1897
        %v2215 = vmul.f32 %v1899, %v1899
        %v2216 = vmul.f32 %v2043, %v2043
        %v2217 = vmul.f32 %v2011, %v2011
        %v2218 = vmul.f32 %v2155, %v2155
        %v2219 = vmul.f32 %v2157, %v2157
        %v2220 = vmul.f32 %v2015, %v2015
        %v2221 = vmul.f32 %v2159, %v2159
        %v2222 = vmul.f32 %v2161, %v2161
        %v2223 = vmul.f32 %v2021, %v2021
        %v2224 = vmul.f32 %v2165, %v2165
        %v2225 = vmul.f32 %v2167, %v2167
        %v2226 = vmul.f32 %v2025, %v2025
        %v2227 = vmul.f32 %v2169, %v2169
        %v2228 = vmul.f32 %v2171, %v2171
        %v2229 = vmul.f32 %v2031, %v2031
        %v2230 = vmul.f32 %v2175, %v2175
        %v2231 = vmul.f32 %v2177, %v2177
        %v2232 = vmul.f32 %v2035, %v2035
        %v2233 = vmul.f32 %v2179, %v2179
        %v2234 = vmul.f32 %v2181, %v2181
        %v2235 = vmul.f32 %v2041, %v2041
        %v2236 = vmul.f32 %v2185, %v2185
        %v2237 = vmul.f32 %v2187, %v2187
        %v2238 = vmul.f32 %v2045, %v2045
        %v2239 = vmul.f32 %v2189, %v2189
        %v2240 = vmul.f32 %v2191, %v2191
        %v2241 = vadd.f32 %v2193, %v2217
        %v2242 = vadd.f32 %v2194, %v2218
        %v2243 = vadd.f32 %v2195, %v2219
        %v2244 = vadd.f32 %v2196, %v2220
        %v2245 = vadd.f32 %v2197, %v2221
        %v2246 = vadd.f32 %v2198, %v2222
        %v2247 = vadd.f32 %v2199, %v2223
        %v2248 = vadd.f32 %v2200, %v2224
        %v2249 = vadd.f32 %v2201, %v2225
        %v2250 = vadd.f32 %v2202, %v2226
        %v2251 = vadd.f32 %v2203, %v2227
        %v2252 = vadd.f32 %v2204, %v2228
        %v2253 = vadd.f32 %v2205, %v2229
        %v2254 = vadd.f32 %v2206, %v2230
        %v2255 = vadd.f32 %v2207, %v2231
        %v2256 = vadd.f32 %v2208, %v2232
        %v2257 = vadd.f32 %v2209, %v2233
        %v2258 = vadd.f32 %v2210, %v2234
        %v2259 = vadd.f32 %v2211, %v2235
        %v2260 = vadd.f32 %v2212, %v2236
        %v2261 = vadd.f32 %v2213, %v2237
        %v2262 = vadd.f32 %v2214, %v2238
        %v2263 = vadd.f32 %v2215, %v2239
        %v2264 = vadd.f32 %v2216, %v2240
        %v2265 = vadd.f32 %v2241, 1e-24
        %v2266 = vadd.f32 %v2242, 1e-24
        %v2267 = vadd.f32 %v2243, 1e-24
        %v2268 = vadd.f32 %v2244, 1e-24
        %v2269 = vadd.f32 %v2245, 1e-24
        %v2270 = vadd.f32 %v2246, 1e-24
        %v2271 = vadd.f32 %v2247, 1e-24
        %v2272 = vadd.f32 %v2248, 1e-24
        %v2273 = vadd.f32 %v2249, 1e-24
        %v2274 = vadd.f32 %v2250, 1e-24
        %v2275 = vadd.f32 %v2251, 1e-24
        %v2276 = vadd.f32 %v2252, 1e-24
        %v2277 = vadd.f32 %v2253, 1e-24
        %v2278 = vadd.f32 %v2254, 1e-24
        %v2279 = vadd.f32 %v2255, 1e-24
        %v2280 = vadd.f32 %v2256, 1e-24
        %v2281 = vadd.f32 %v2257, 1e-24
        %v2282 = vadd.f32 %v2258, 1e-24
        %v2283 = vadd.f32 %v2259, 1e-24
        %v2284 = vadd.f32 %v2260, 1e-24
        %v2285 = vadd.f32 %v2261, 1e-24
        %v2286 = vadd.f32 %v2262, 1e-24
        %v2287 = vadd.f32 %v2263, 1e-24
        %v2288 = vadd.f32 %v2264, 1e-24
        %v2289 = vlog2.pop %v2265
        %v2290 = vmul.f32 %v2289, 0.6931472
        %v2291 = vlog2.pop %v2266
        %v2292 = vmul.f32 %v2291, 0.6931472
        %v2293 = vlog2.pop %v2267
        %v2294 = vmul.f32 %v2293, 0.6931472
        %v2295 = vlog2.pop %v2268
        %v2296 = vmul.f32 %v2295, 0.6931472
        %v2297 = vlog2.pop %v2269
        %v2298 = vmul.f32 %v2297, 0.6931472
        %v2299 = vlog2.pop %v2270
        %v2300 = vmul.f32 %v2299, 0.6931472
        %v2301 = vlog2.pop %v2271
        %v2302 = vmul.f32 %v2301, 0.6931472
        %v2303 = vlog2.pop %v2272
        %v2304 = vmul.f32 %v2303, 0.6931472
        %v2305 = vlog2.pop %v2273
        %v2306 = vmul.f32 %v2305, 0.6931472
        %v2307 = vlog2.pop %v2274
        %v2308 = vmul.f32 %v2307, 0.6931472
        %v2309 = vlog2.pop %v2275
        %v2310 = vmul.f32 %v2309, 0.6931472
        %v2311 = vlog2.pop %v2276
        %v2312 = vmul.f32 %v2311, 0.6931472
        %v2313 = vlog2.pop %v2277
        %v2314 = vmul.f32 %v2313, 0.6931472
        %v2315 = vlog2.pop %v2278
        %v2316 = vmul.f32 %v2315, 0.6931472
        %v2317 = vlog2.pop %v2279
        %v2318 = vmul.f32 %v2317, 0.6931472
        %v2319 = vlog2.pop %v2280
        %v2320 = vmul.f32 %v2319, 0.6931472
        %v2321 = vlog2.pop %v2281
        %v2322 = vmul.f32 %v2321, 0.6931472
        %v2323 = vlog2.pop %v2282
        %v2324 = vmul.f32 %v2323, 0.6931472
        %v2325 = vlog2.pop %v2283
        %v2326 = vmul.f32 %v2325, 0.6931472
        %v2327 = vlog2.pop %v2284
        %v2328 = vmul.f32 %v2327, 0.6931472
        %v2329 = vlog2.pop %v2285
        %v2330 = vmul.f32 %v2329, 0.6931472
        %v2331 = vlog2.pop %v2286
        %v2332 = vmul.f32 %v2331, 0.6931472
        %v2333 = vlog2.pop %v2287
        %v2334 = vmul.f32 %v2333, 0.6931472
        %v2335 = vlog2.pop %v2288
        %v2336 = vmul.f32 %v2335, 0.6931472
        %v2337 = vmul.f32 %v2290, 0.5
        %v2338 = vmul.f32 %v2292, 0.5
        %v2339 = vmul.f32 %v2294, 0.5
        %v2340 = vmul.f32 %v2296, 0.5
        %v2341 = vmul.f32 %v2298, 0.5
        %v2342 = vmul.f32 %v2300, 0.5
        %v2343 = vmul.f32 %v2302, 0.5
        %v2344 = vmul.f32 %v2304, 0.5
        %v2345 = vmul.f32 %v2306, 0.5
        %v2346 = vmul.f32 %v2308, 0.5
        %v2347 = vmul.f32 %v2310, 0.5
        %v2348 = vmul.f32 %v2312, 0.5
        %v2349 = vmul.f32 %v2314, 0.5
        %v2350 = vmul.f32 %v2316, 0.5
        %v2351 = vmul.f32 %v2318, 0.5
        %v2352 = vmul.f32 %v2320, 0.5
        %v2353 = vmul.f32 %v2322, 0.5
        %v2354 = vmul.f32 %v2324, 0.5
        %v2355 = vmul.f32 %v2326, 0.5
        %v2356 = vmul.f32 %v2328, 0.5
        %v2357 = vmul.f32 %v2330, 0.5
        %v2358 = vmul.f32 %v2332, 0.5
        %v2359 = vmul.f32 %v2334, 0.5
        %v2360 = vmul.f32 %v2336, 0.5
        %v2361 = vpack.c.bf16 %v2340, %v2337
        %v2362 = vpack.c.bf16 %v2341, %v2338
        %v2363 = vpack.c.bf16 %v2342, %v2339
        %v2364 = vpack.c.bf16 %v2346, %v2343
        %v2365 = vpack.c.bf16 %v2347, %v2344
        %v2366 = vpack.c.bf16 %v2348, %v2345
        %v2367 = vpack.c.bf16 %v2352, %v2349
        %v2368 = vpack.c.bf16 %v2353, %v2350
        %v2369 = vpack.c.bf16 %v2354, %v2351
        %v2370 = vpack.c.bf16 %v2358, %v2355
        %v2371 = vpack.c.bf16 %v2359, %v2356
        %v2372 = vpack.c.bf16 %v2360, %v2357
        %v2373 = vld [vmem:[#allocation2] sm:$0xf]
        %v2374 = vld [vmem:[#allocation2 + $0x4] sm:$0xf]
        %v2375 = vld [vmem:[#allocation2 + $0x8] sm:$0xf]
        %v2376 = vld [vmem:[#allocation2 + $0xc] sm:$0xf]
        %v2377 = vld [vmem:[#allocation2 + $0x10] sm:$0xf]
        %v2378 = vld [vmem:[#allocation2 + $0x14] sm:$0xf]
        %v2379 = vld [vmem:[#allocation2 + $0x18] sm:$0xf]
        %v2380 = vld [vmem:[#allocation2 + $0x1c] sm:$0xf]
        %v2381 = vld [vmem:[#allocation2 + $0x20] sm:$0xf]
        %v2382 = vld [vmem:[#allocation2 + $0x24] sm:$0xf]
        %v2383 = vld [vmem:[#allocation2 + $0x28] sm:$0xf]
        %v2384 = vld [vmem:[#allocation2 + $0x2c] sm:$0xf]
        %v2385 = vld [vmem:[#allocation2 + $0x30] sm:$0xf]
        %v2386 = vld [vmem:[#allocation2 + $0x34] sm:$0xf]
        %v2387 = vld [vmem:[#allocation2 + $0x38] sm:$0xf]
        %v2388 = vld [vmem:[#allocation2 + $0x3c] sm:$0xf]
        %v2389 = vld [vmem:[#allocation2 + $0x40] sm:$0xf]
        %v2390 = vld [vmem:[#allocation2 + $0x44] sm:$0xf]
        %v2391 = vld [vmem:[#allocation2 + $0x48] sm:$0xf]
        %v2392 = vld [vmem:[#allocation2 + $0x4c] sm:$0xf]
        %v2393 = vld [vmem:[#allocation2 + $0x50] sm:$0xf]
        %v2394 = vld [vmem:[#allocation2 + $0x54] sm:$0xf]
        %v2395 = vld [vmem:[#allocation2 + $0x58] sm:$0xf]
        %v2396 = vld [vmem:[#allocation2 + $0x5c] sm:$0xf]
        %v2397 = vld [vmem:[#allocation2 + $0x60] sm:$0xf]
        %v2398 = vld [vmem:[#allocation2 + $0x64] sm:$0xf]
        %v2399 = vld [vmem:[#allocation2 + $0x68] sm:$0xf]
        %v2400 = vld [vmem:[#allocation2 + $0x6c] sm:$0xf]
        %v2401 = vld [vmem:[#allocation2 + $0x70] sm:$0xf]
        %v2402 = vld [vmem:[#allocation2 + $0x74] sm:$0xf]
        %v2403 = vld [vmem:[#allocation2 + $0x78] sm:$0xf]
        %v2404 = vld [vmem:[#allocation2 + $0x7c] sm:$0xf]
        %v2405 = vld [vmem:[#allocation2 + $0x80] sm:$0xf]
        %v2406 = vld [vmem:[#allocation2 + $0x84] sm:$0xf]
        %v2407 = vld [vmem:[#allocation2 + $0x88] sm:$0xf]
        %v2408 = vld [vmem:[#allocation2 + $0x8c] sm:$0xf]
        %v2409 = vld [vmem:[#allocation2 + $0x90] sm:$0xf]
        %v2410 = vld [vmem:[#allocation2 + $0x94] sm:$0xf]
        %v2411 = vld [vmem:[#allocation2 + $0x98] sm:$0xf]
        %v2412 = vld [vmem:[#allocation2 + $0x9c] sm:$0xf]
        %v2413 = vld [vmem:[#allocation2 + $0xa0] sm:$0xf]
        %v2414 = vld [vmem:[#allocation2 + $0xa4] sm:$0xf]
        %v2415 = vld [vmem:[#allocation2 + $0xa8] sm:$0xf]
        %v2416 = vld [vmem:[#allocation2 + $0xac] sm:$0xf]
        %v2417 = vld [vmem:[#allocation2 + $0xb0] sm:$0xf]
        %v2418 = vld [vmem:[#allocation2 + $0xb4] sm:$0xf]
        %v2419 = vld [vmem:[#allocation2 + $0xb8] sm:$0xf]
        %v2420 = vld [vmem:[#allocation2 + $0xbc] sm:$0xf]
        %v2421 = vld [vmem:[%s3] sm:$0x1]
        %v2423 = vlaneseq
        %v2424 = vshrl.u32 %v2423, 7
        %v2425 = vsub.s32 0, %v2424
        %v2426 = vrot.slane %v2421, %v2425
        %v2476 = vunpack.c.l.b16 %v2373
        %v2477 = vunpack.c.l.b16 %v2374
        %v2478 = vunpack.c.l.b16 %v2375
        %v2479 = vunpack.c.l.b16 %v2376
        %v2480 = vunpack.c.l.b16 %v2377
        %v2481 = vunpack.c.l.b16 %v2378
        %v2482 = vunpack.c.l.b16 %v2379
        %v2483 = vunpack.c.l.b16 %v2380
        %v2484 = vunpack.c.l.b16 %v2381
        %v2485 = vunpack.c.l.b16 %v2382
        %v2486 = vunpack.c.l.b16 %v2383
        %v2487 = vunpack.c.l.b16 %v2384
        %v2488 = vunpack.c.l.b16 %v2385
        %v2489 = vunpack.c.l.b16 %v2386
        %v2490 = vunpack.c.l.b16 %v2387
        %v2491 = vunpack.c.l.b16 %v2388
        %v2492 = vunpack.c.l.b16 %v2389
        %v2493 = vunpack.c.l.b16 %v2390
        %v2494 = vunpack.c.l.b16 %v2391
        %v2495 = vunpack.c.l.b16 %v2392
        %v2496 = vunpack.c.l.b16 %v2393
        %v2497 = vunpack.c.l.b16 %v2394
        %v2498 = vunpack.c.l.b16 %v2395
        %v2499 = vunpack.c.l.b16 %v2396
        %v2500 = vunpack.c.l.b16 %v2397
        %v2501 = vunpack.c.l.b16 %v2398
        %v2502 = vunpack.c.l.b16 %v2399
        %v2503 = vunpack.c.l.b16 %v2400
        %v2504 = vunpack.c.l.b16 %v2401
        %v2505 = vunpack.c.l.b16 %v2402
        %v2506 = vunpack.c.l.b16 %v2403
        %v2507 = vunpack.c.l.b16 %v2404
        %v2508 = vunpack.c.l.b16 %v2405
        %v2509 = vunpack.c.l.b16 %v2406
        %v2510 = vunpack.c.l.b16 %v2407
        %v2511 = vunpack.c.l.b16 %v2408
        %v2512 = vunpack.c.l.b16 %v2409
        %v2513 = vunpack.c.l.b16 %v2410
        %v2514 = vunpack.c.l.b16 %v2411
        %v2515 = vunpack.c.l.b16 %v2412
        %v2516 = vunpack.c.l.b16 %v2413
        %v2517 = vunpack.c.l.b16 %v2414
        %v2518 = vunpack.c.l.b16 %v2415
        %v2519 = vunpack.c.l.b16 %v2416
        %v2520 = vunpack.c.l.b16 %v2417
        %v2521 = vunpack.c.l.b16 %v2418
        %v2522 = vunpack.c.l.b16 %v2419
        %v2523 = vunpack.c.l.b16 %v2420
        %v2524 = vpack.c.b16 %v2477, %v2476
        %v2525 = vpack.c.b16 %v2479, %v2478
        %v2526 = vpack.c.b16 %v2481, %v2480
        %v2527 = vpack.c.b16 %v2483, %v2482
        %v2528 = vpack.c.b16 %v2485, %v2484
        %v2529 = vpack.c.b16 %v2487, %v2486
        %v2530 = vpack.c.b16 %v2489, %v2488
        %v2531 = vpack.c.b16 %v2491, %v2490
        %v2532 = vpack.c.b16 %v2493, %v2492
        %v2533 = vpack.c.b16 %v2495, %v2494
        %v2534 = vpack.c.b16 %v2497, %v2496
        %v2535 = vpack.c.b16 %v2499, %v2498
        %v2536 = vpack.c.b16 %v2501, %v2500
        %v2537 = vpack.c.b16 %v2503, %v2502
        %v2538 = vpack.c.b16 %v2505, %v2504
        %v2539 = vpack.c.b16 %v2507, %v2506
        %v2540 = vpack.c.b16 %v2509, %v2508
        %v2541 = vpack.c.b16 %v2511, %v2510
        %v2542 = vpack.c.b16 %v2513, %v2512
        %v2543 = vpack.c.b16 %v2515, %v2514
        %v2544 = vpack.c.b16 %v2517, %v2516
        %v2545 = vpack.c.b16 %v2519, %v2518
        %v2546 = vpack.c.b16 %v2521, %v2520
        %v2547 = vpack.c.b16 %v2523, %v2522
        %2572 = vmatprep.subr.bf16.mxu0 0
        %2573 = vmatpush1.bf16.msra.mxu0 %v2524
        %2574 = vmatprep.subr.bf16.mxu0 0
        %2575 = vmatpush1.bf16.msra.mxu0 %v2525
        %2576 = vmatprep.subr.bf16.mxu0 0
        %2577 = vmatpush1.bf16.msra.mxu0 %v2526
        %2578 = vmatprep.subr.bf16.mxu0 0
        %2579 = vmatpush1.bf16.msra.mxu0 %v2527
        %2580 = vmatprep.subr.bf16.mxu0 0
        %2581 = vmatpush1.bf16.msra.mxu0 %v2528
        %2582 = vmatprep.subr.bf16.mxu0 0
        %2583 = vmatpush1.bf16.msra.mxu0 %v2529
        %2584 = vmatprep.subr.bf16.mxu0 0
        %2585 = vmatpush1.bf16.msra.mxu0 %v2530
        %2586 = vmatprep.subr.bf16.mxu0 0
        %2587 = vmatpush1.bf16.msra.mxu0 %v2531
        %2588 = vmatprep.subr.bf16.mxu0 0
        %2589 = vmatpush1.bf16.msra.mxu0 %v2532
        %2590 = vmatprep.subr.bf16.mxu0 0
        %2591 = vmatpush1.bf16.msra.mxu0 %v2533
        %2592 = vmatprep.subr.bf16.mxu0 0
        %2593 = vmatpush1.bf16.msra.mxu0 %v2534
        %2594 = vmatprep.subr.bf16.mxu0 0
        %2595 = vmatpush1.bf16.msra.mxu0 %v2535
        %2596 = vmatprep.subr.bf16.mxu0 0
        %2597 = vmatpush1.bf16.msra.mxu0 %v2536
        %2598 = vmatprep.subr.bf16.mxu0 0
        %2599 = vmatpush1.bf16.msra.mxu0 %v2537
        %2600 = vmatprep.subr.bf16.mxu0 0
        %2601 = vmatpush1.bf16.msra.mxu0 %v2538
        %2602 = vmatprep.subr.bf16.mxu0 0
        %2603 = vmatpush1.bf16.msra.mxu0 %v2539
        %2604 = vmatprep.mubr.bf16.mxu0 %v2362
        %2605 = vmatmul.mubr.bf16.gmra.mrb[0].mxu0 %v2361
        %v2606 = vpop.f32.mrb[0].mxu0
        %v2607 = vadd.f32 %v2426, %v2606
        %v2608 = vpop.f32.mrb[0].mxu0
        %v2609 = vpop.f32.mrb[0].mxu0
        %v2610 = vadd.f32 %v2426, %v2609
        %v2611 = vpop.f32.mrb[0].mxu0
        %2612 = vmatprep.mubr.bf16.mxu0 %v2365
        %2613 = vmatmul.mubr.bf16.gmra.mrb[0].mxu0 %v2364
        %v2614 = vpop.f32.mrb[0].mxu0
        %v2615 = vadd.f32 %v2426, %v2614
        %v2616 = vpop.f32.mrb[0].mxu0
        %v2617 = vpop.f32.mrb[0].mxu0
        %v2618 = vadd.f32 %v2426, %v2617
        %v2619 = vpop.f32.mrb[0].mxu0
        %2620 = vmatprep.mubr.bf16.mxu0 %v2368
        %2621 = vmatmul.mubr.bf16.gmra.mrb[0].mxu0 %v2367
        %v2622 = vpop.f32.mrb[0].mxu0
        %v2623 = vadd.f32 %v2426, %v2622
        %v2624 = vpop.f32.mrb[0].mxu0
        %v2625 = vpop.f32.mrb[0].mxu0
        %v2626 = vadd.f32 %v2426, %v2625
        %v2627 = vpop.f32.mrb[0].mxu0
        %2628 = vmatprep.mubr.bf16.mxu0 %v2371
        %2629 = vmatmul.mubr.bf16.gmra.mrb[0].mxu0 %v2370
        %v2630 = vpop.f32.mrb[0].mxu0
        %v2631 = vadd.f32 %v2426, %v2630
        %v2632 = vpop.f32.mrb[0].mxu0
        %v2633 = vpop.f32.mrb[0].mxu0
        %v2634 = vadd.f32 %v2426, %v2633
        %v2635 = vpop.f32.mrb[0].mxu0
        %2636 = vdwg.mxu0
        %2637 = vmatprep.subr.bf16.mxu0 0
        %2638 = vmatpush1.bf16.msra.mxu0 %v2540
        %2639 = vmatprep.subr.bf16.mxu0 0
        %2640 = vmatpush1.bf16.msra.mxu0 %v2541
        %2641 = vmatprep.subr.bf16.mxu0 0
        %2642 = vmatpush1.bf16.msra.mxu0 %v2542
        %2643 = vmatprep.subr.bf16.mxu0 0
        %2644 = vmatpush1.bf16.msra.mxu0 %v2543
        %2645 = vmatprep.subr.bf16.mxu0 0
        %2646 = vmatpush1.bf16.msra.mxu0 %v2544
        %2647 = vmatprep.subr.bf16.mxu0 0
        %2648 = vmatpush1.bf16.msra.mxu0 %v2545
        %2649 = vmatprep.subr.bf16.mxu0 0
        %2650 = vmatpush1.bf16.msra.mxu0 %v2546
        %2651 = vmatprep.subr.bf16.mxu0 0
        %2652 = vmatpush1.bf16.msra.mxu0 %v2547
        %2653 = vmatprep.subr.bf16.mxu0 0
        %2654 = vmatpush1.bf16.msra.mxu0 0
        %2655 = vmatprep.subr.bf16.mxu0 0
        %2656 = vmatpush1.bf16.msra.mxu0 0
        %2657 = vmatprep.subr.bf16.mxu0 0
        %2658 = vmatpush1.bf16.msra.mxu0 0
        %2659 = vmatprep.subr.bf16.mxu0 0
        %2660 = vmatpush1.bf16.msra.mxu0 0
        %2661 = vmatprep.subr.bf16.mxu0 0
        %2662 = vmatpush1.bf16.msra.mxu0 0
        %2663 = vmatprep.subr.bf16.mxu0 0
        %2664 = vmatpush1.bf16.msra.mxu0 0
        %2665 = vmatprep.subr.bf16.mxu0 0
        %2666 = vmatpush1.bf16.msra.mxu0 0
        %2667 = vmatprep.subr.bf16.mxu0 0
        %2668 = vmatpush1.bf16.msra.mxu0 0
        %2669 = vmatprep.mubr.bf16.mxu0 0
        %2670 = vmatmul.mubr.bf16.gmra.mrb[0].mxu0 %v2363
        %v2671 = vpop.f32.mrb[0].mxu0
        %v2672 = vadd.f32 %v2607, %v2671
        %v2673 = vpop.f32.mrb[0].mxu0
        %v2674 = vpop.f32.mrb[0].mxu0
        %v2675 = vadd.f32 %v2610, %v2674
        %v2676 = vpop.f32.mrb[0].mxu0
        %2677 = vmatprep.mubr.bf16.mxu0 0
        %2678 = vmatmul.mubr.bf16.gmra.mrb[0].mxu0 %v2366
        %v2679 = vpop.f32.mrb[0].mxu0
        %v2680 = vadd.f32 %v2615, %v2679
        %v2681 = vpop.f32.mrb[0].mxu0
        %v2682 = vpop.f32.mrb[0].mxu0
        %v2683 = vadd.f32 %v2618, %v2682
        %v2684 = vpop.f32.mrb[0].mxu0
        %2685 = vmatprep.mubr.bf16.mxu0 0
        %2686 = vmatmul.mubr.bf16.gmra.mrb[0].mxu0 %v2369
        %v2687 = vpop.f32.mrb[0].mxu0
        %v2688 = vadd.f32 %v2623, %v2687
        %v2689 = vpop.f32.mrb[0].mxu0
        %v2690 = vpop.f32.mrb[0].mxu0
        %v2691 = vadd.f32 %v2626, %v2690
        %v2692 = vpop.f32.mrb[0].mxu0
        %2693 = vmatprep.mubr.bf16.mxu0 0
        %2694 = vmatmul.mubr.bf16.gmra.mrb[0].mxu0 %v2372
        %v2695 = vpop.f32.mrb[0].mxu0
        %v2696 = vadd.f32 %v2631, %v2695
        %v2697 = vpop.f32.mrb[0].mxu0
        %v2698 = vpop.f32.mrb[0].mxu0
        %v2699 = vadd.f32 %v2634, %v2698
        %v2700 = vpop.f32.mrb[0].mxu0
        %2701 = vdwg.mxu0
        %vm2702 = vcmp.gt.f32.partialorder %v2672, 0.0
        %vm2703 = vcmp.gt.f32.partialorder %v2675, 0.0
        %vm2704 = vcmp.gt.f32.partialorder %v2680, 0.0
        %vm2705 = vcmp.gt.f32.partialorder %v2683, 0.0
        %vm2706 = vcmp.gt.f32.partialorder %v2688, 0.0
        %vm2707 = vcmp.gt.f32.partialorder %v2691, 0.0
        %vm2708 = vcmp.gt.f32.partialorder %v2696, 0.0
        %vm2709 = vcmp.gt.f32.partialorder %v2699, 0.0
        %v2710 = vmul.f32 %v2672, 0.2
        %v2711 = vmul.f32 %v2675, 0.2
        %v2712 = vmul.f32 %v2680, 0.2
        %v2713 = vmul.f32 %v2683, 0.2
        %v2714 = vmul.f32 %v2688, 0.2
        %v2715 = vmul.f32 %v2691, 0.2
        %v2716 = vmul.f32 %v2696, 0.2
        %v2717 = vmul.f32 %v2699, 0.2
        %v2718 = vsel %vm2702, %v2672, %v2710
        %v2719 = vsel %vm2703, %v2675, %v2711
        %v2720 = vsel %vm2704, %v2680, %v2712
        %v2721 = vsel %vm2705, %v2683, %v2713
        %v2722 = vsel %vm2706, %v2688, %v2714
        %v2723 = vsel %vm2707, %v2691, %v2715
        %v2724 = vsel %vm2708, %v2696, %v2716
        %v2725 = vsel %vm2709, %v2699, %v2717
        %v2726 = vpack.c.bf16 %v2719, %v2718
        %v2727 = vpack.c.bf16 %v2721, %v2720
        %v2728 = vpack.c.bf16 %v2723, %v2722
        %v2729 = vpack.c.bf16 %v2725, %v2724
        %v2730 = vld [vmem:[%s4] sm:$0xf]
        %v2731 = vld [vmem:[%s4 + $0x4] sm:$0xf]
        %v2732 = vld [vmem:[%s4 + $0x8] sm:$0xf]
        %v2733 = vld [vmem:[%s4 + $0xc] sm:$0xf]
        %v2734 = vld [vmem:[%s4 + $0x10] sm:$0xf]
        %v2735 = vld [vmem:[%s4 + $0x14] sm:$0xf]
        %v2736 = vld [vmem:[%s4 + $0x18] sm:$0xf]
        %v2737 = vld [vmem:[%s4 + $0x1c] sm:$0xf]
        %v2738 = vld [vmem:[%s4 + $0x20] sm:$0xf]
        %v2739 = vld [vmem:[%s4 + $0x24] sm:$0xf]
        %v2740 = vld [vmem:[%s4 + $0x28] sm:$0xf]
        %v2741 = vld [vmem:[%s4 + $0x2c] sm:$0xf]
        %v2742 = vld [vmem:[%s4 + $0x30] sm:$0xf]
        %v2743 = vld [vmem:[%s4 + $0x34] sm:$0xf]
        %v2744 = vld [vmem:[%s4 + $0x38] sm:$0xf]
        %v2745 = vld [vmem:[%s4 + $0x3c] sm:$0xf]
        %v2746 = vld [vmem:[%s5] sm:$0x1]
        %v2748 = vlaneseq
        %v2749 = vshrl.u32 %v2748, 7
        %v2750 = vsub.s32 0, %v2749
        %v2751 = vrot.slane %v2746, %v2750
        %v2769 = vunpack.c.l.b16 %v2730
        %v2770 = vunpack.c.l.b16 %v2731
        %v2771 = vunpack.c.l.b16 %v2732
        %v2772 = vunpack.c.l.b16 %v2733
        %v2773 = vunpack.c.l.b16 %v2734
        %v2774 = vunpack.c.l.b16 %v2735
        %v2775 = vunpack.c.l.b16 %v2736
        %v2776 = vunpack.c.l.b16 %v2737
        %v2777 = vunpack.c.l.b16 %v2738
        %v2778 = vunpack.c.l.b16 %v2739
        %v2779 = vunpack.c.l.b16 %v2740
        %v2780 = vunpack.c.l.b16 %v2741
        %v2781 = vunpack.c.l.b16 %v2742
        %v2782 = vunpack.c.l.b16 %v2743
        %v2783 = vunpack.c.l.b16 %v2744
        %v2784 = vunpack.c.l.b16 %v2745
        %v2785 = vpack.c.b16 %v2770, %v2769
        %v2786 = vpack.c.b16 %v2772, %v2771
        %v2787 = vpack.c.b16 %v2774, %v2773
        %v2788 = vpack.c.b16 %v2776, %v2775
        %v2789 = vpack.c.b16 %v2778, %v2777
        %v2790 = vpack.c.b16 %v2780, %v2779
        %v2791 = vpack.c.b16 %v2782, %v2781
        %v2792 = vpack.c.b16 %v2784, %v2783
        %2801 = vmatprep.subr.bf16.mxu0 0
        %2802 = vmatpush1.bf16.msra.mxu0 %v2785
        %2803 = vmatprep.subr.bf16.mxu0 0
        %2804 = vmatpush1.bf16.msra.mxu0 %v2786
        %2805 = vmatprep.subr.bf16.mxu0 0
        %2806 = vmatpush1.bf16.msra.mxu0 %v2787
        %2807 = vmatprep.subr.bf16.mxu0 0
        %2808 = vmatpush1.bf16.msra.mxu0 %v2788
        %2809 = vmatprep.subr.bf16.mxu0 0
        %2810 = vmatpush1.bf16.msra.mxu0 %v2789
        %2811 = vmatprep.subr.bf16.mxu0 0
        %2812 = vmatpush1.bf16.msra.mxu0 %v2790
        %2813 = vmatprep.subr.bf16.mxu0 0
        %2814 = vmatpush1.bf16.msra.mxu0 %v2791
        %2815 = vmatprep.subr.bf16.mxu0 0
        %2816 = vmatpush1.bf16.msra.mxu0 %v2792
        %2817 = vmatprep.subr.bf16.mxu0 0
        %2818 = vmatpush1.bf16.msra.mxu0 0
        %2819 = vmatprep.subr.bf16.mxu0 0
        %2820 = vmatpush1.bf16.msra.mxu0 0
        %2821 = vmatprep.subr.bf16.mxu0 0
        %2822 = vmatpush1.bf16.msra.mxu0 0
        %2823 = vmatprep.subr.bf16.mxu0 0
        %2824 = vmatpush1.bf16.msra.mxu0 0
        %2825 = vmatprep.subr.bf16.mxu0 0
        %2826 = vmatpush1.bf16.msra.mxu0 0
        %2827 = vmatprep.subr.bf16.mxu0 0
        %2828 = vmatpush1.bf16.msra.mxu0 0
        %2829 = vmatprep.subr.bf16.mxu0 0
        %2830 = vmatpush1.bf16.msra.mxu0 0
        %2831 = vmatprep.subr.bf16.mxu0 0
        %2832 = vmatpush1.bf16.msra.mxu0 0
        %2833 = vmatprep.mubr.bf16.mxu0 0
        %2834 = vmatmul.mubr.bf16.gmra.mrb[0].mxu0 %v2726
        %v2835 = vpop.f32.mrb[0].mxu0
        %v2836 = vadd.f32 %v2751, %v2835
        %v2837 = vpop.f32.mrb[0].mxu0
        %v2838 = vpop.f32.mrb[0].mxu0
        %v2839 = vadd.f32 %v2751, %v2838
        %v2840 = vpop.f32.mrb[0].mxu0
        %2841 = vmatprep.mubr.bf16.mxu0 0
        %2842 = vmatmul.mubr.bf16.gmra.mrb[0].mxu0 %v2727
        %v2843 = vpop.f32.mrb[0].mxu0
        %v2844 = vadd.f32 %v2751, %v2843
        %v2845 = vpop.f32.mrb[0].mxu0
        %v2846 = vpop.f32.mrb[0].mxu0
        %v2847 = vadd.f32 %v2751, %v2846
        %v2848 = vpop.f32.mrb[0].mxu0
        %2849 = vmatprep.mubr.bf16.mxu0 0
        %2850 = vmatmul.mubr.bf16.gmra.mrb[0].mxu0 %v2728
        %v2851 = vpop.f32.mrb[0].mxu0
        %v2852 = vadd.f32 %v2751, %v2851
        %v2853 = vpop.f32.mrb[0].mxu0
        %v2854 = vpop.f32.mrb[0].mxu0
        %v2855 = vadd.f32 %v2751, %v2854
        %v2856 = vpop.f32.mrb[0].mxu0
        %2857 = vmatprep.mubr.bf16.mxu0 0
        %2858 = vmatmul.mubr.bf16.gmra.mrb[0].mxu0 %v2729
        %v2859 = vpop.f32.mrb[0].mxu0
        %v2860 = vadd.f32 %v2751, %v2859
        %v2861 = vpop.f32.mrb[0].mxu0
        %v2862 = vpop.f32.mrb[0].mxu0
        %v2863 = vadd.f32 %v2751, %v2862
        %v2864 = vpop.f32.mrb[0].mxu0
        %2865 = vdwg.mxu0
        %v2866 = vpack.c.bf16 %v2839, %v2836
        %v2867 = vpack.c.bf16 %v2847, %v2844
        %v2868 = vpack.c.bf16 %v2855, %v2852
        %v2869 = vpack.c.bf16 %v2863, %v2860
        %v2870 = vld [vmem:[%s6] sm:$0xff]
        %v2871 = vld [vmem:[%s6 + $0x8] sm:$0xf]
        %v2872 = vld [vmem:[%s6 + $0xc] sm:$0xff]
        %v2873 = vld [vmem:[%s6 + $0x14] sm:$0xf]
        %v2874 = vld [vmem:[%s6 + $0x18] sm:$0xff]
        %v2875 = vld [vmem:[%s6 + $0x20] sm:$0xf]
        %v2876 = vld [vmem:[%s6 + $0x24] sm:$0xff]
        %v2877 = vld [vmem:[%s6 + $0x2c] sm:$0xf]
        %v2878 = vld [vmem:[%s6 + $0x30] sm:$0xff]
        %v2879 = vld [vmem:[%s6 + $0x38] sm:$0xf]
        %v2880 = vld [vmem:[%s6 + $0x3c] sm:$0xff]
        %v2881 = vld [vmem:[%s6 + $0x44] sm:$0xf]
        %v2882 = vld [vmem:[%s6 + $0x48] sm:$0xff]
        %v2883 = vld [vmem:[%s6 + $0x50] sm:$0xf]
        %v2884 = vld [vmem:[%s6 + $0x54] sm:$0xff]
        %v2885 = vld [vmem:[%s6 + $0x5c] sm:$0xf]
        %v2886 = vld [vmem:[%s6 + $0x60] sm:$0xff]
        %v2887 = vld [vmem:[%s6 + $0x68] sm:$0xf]
        %v2888 = vld [vmem:[%s6 + $0x6c] sm:$0xff]
        %v2889 = vld [vmem:[%s6 + $0x74] sm:$0xf]
        %v2890 = vld [vmem:[%s6 + $0x78] sm:$0xff]
        %v2891 = vld [vmem:[%s6 + $0x80] sm:$0xf]
        %v2892 = vld [vmem:[%s6 + $0x84] sm:$0xff]
        %v2893 = vld [vmem:[%s6 + $0x8c] sm:$0xf]
        %v2894 = vld [vmem:[%s6 + $0x90] sm:$0xff]
        %v2895 = vld [vmem:[%s6 + $0x98] sm:$0xf]
        %v2896 = vld [vmem:[%s6 + $0x9c] sm:$0xff]
        %v2897 = vld [vmem:[%s6 + $0xa4] sm:$0xf]
        %v2898 = vld [vmem:[%s6 + $0xa8] sm:$0xff]
        %v2899 = vld [vmem:[%s6 + $0xb0] sm:$0xf]
        %v2900 = vld [vmem:[%s6 + $0xb4] sm:$0xff]
        %v2901 = vld [vmem:[%s6 + $0xbc] sm:$0xf]
        %v2902 = vld [vmem:[%s7] sm:$0x7]
        %v2904 = vlaneseq
        %v2905 = vshrl.u32 %v2904, 7
        %v2906 = vsub.s32 0, %v2905
        %v2907 = vrot.slane %v2902, %v2906
        %v2908 = vlaneseq
        %v2909 = vshrl.u32 %v2908, 7
        %v2910 = vsub.s32 1, %v2909
        %v2911 = vrot.slane %v2902, %v2910
        %v2912 = vlaneseq
        %v2913 = vshrl.u32 %v2912, 7
        %v2914 = vsub.s32 2, %v2913
        %v2915 = vrot.slane %v2902, %v2914
        %v2951 = vunpack.c.l.b16 %v2870
        %v2952 = vunpack.c.h.b16 %v2870
        %v2953 = vunpack.c.l.b16 %v2871
        %v2954 = vunpack.c.l.b16 %v2872
        %v2955 = vunpack.c.h.b16 %v2872
        %v2956 = vunpack.c.l.b16 %v2873
        %v2957 = vunpack.c.l.b16 %v2874
        %v2958 = vunpack.c.h.b16 %v2874
        %v2959 = vunpack.c.l.b16 %v2875
        %v2960 = vunpack.c.l.b16 %v2876
        %v2961 = vunpack.c.h.b16 %v2876
        %v2962 = vunpack.c.l.b16 %v2877
        %v2963 = vunpack.c.l.b16 %v2878
        %v2964 = vunpack.c.h.b16 %v2878
        %v2965 = vunpack.c.l.b16 %v2879
        %v2966 = vunpack.c.l.b16 %v2880
        %v2967 = vunpack.c.h.b16 %v2880
        %v2968 = vunpack.c.l.b16 %v2881
        %v2969 = vunpack.c.l.b16 %v2882
        %v2970 = vunpack.c.h.b16 %v2882
        %v2971 = vunpack.c.l.b16 %v2883
        %v2972 = vunpack.c.l.b16 %v2884
        %v2973 = vunpack.c.h.b16 %v2884
        %v2974 = vunpack.c.l.b16 %v2885
        %v2975 = vunpack.c.l.b16 %v2886
        %v2976 = vunpack.c.h.b16 %v2886
        %v2977 = vunpack.c.l.b16 %v2887
        %v2978 = vunpack.c.l.b16 %v2888
        %v2979 = vunpack.c.h.b16 %v2888
        %v2980 = vunpack.c.l.b16 %v2889
        %v2981 = vunpack.c.l.b16 %v2890
        %v2982 = vunpack.c.h.b16 %v2890
        %v2983 = vunpack.c.l.b16 %v2891
        %v2984 = vunpack.c.l.b16 %v2892
        %v2985 = vunpack.c.h.b16 %v2892
        %v2986 = vunpack.c.l.b16 %v2893
        %v2987 = vunpack.c.l.b16 %v2894
        %v2988 = vunpack.c.h.b16 %v2894
        %v2989 = vunpack.c.l.b16 %v2895
        %v2990 = vunpack.c.l.b16 %v2896
        %v2991 = vunpack.c.h.b16 %v2896
        %v2992 = vunpack.c.l.b16 %v2897
        %v2993 = vunpack.c.l.b16 %v2898
        %v2994 = vunpack.c.h.b16 %v2898
        %v2995 = vunpack.c.l.b16 %v2899
        %v2996 = vunpack.c.l.b16 %v2900
        %v2997 = vunpack.c.h.b16 %v2900
        %v2998 = vunpack.c.l.b16 %v2901
        %v2999 = vpack.c.b16 %v2954, %v2951
        %v3000 = vpack.c.b16 %v2955, %v2952
        %v3001 = vpack.c.b16 %v2956, %v2953
        %v3002 = vpack.c.b16 %v2960, %v2957
        %v3003 = vpack.c.b16 %v2961, %v2958
        %v3004 = vpack.c.b16 %v2962, %v2959
        %v3005 = vpack.c.b16 %v2966, %v2963
        %v3006 = vpack.c.b16 %v2967, %v2964
        %v3007 = vpack.c.b16 %v2968, %v2965
        %v3008 = vpack.c.b16 %v2972, %v2969
        %v3009 = vpack.c.b16 %v2973, %v2970
        %v3010 = vpack.c.b16 %v2974, %v2971
        %v3011 = vpack.c.b16 %v2978, %v2975
        %v3012 = vpack.c.b16 %v2979, %v2976
        %v3013 = vpack.c.b16 %v2980, %v2977
        %v3014 = vpack.c.b16 %v2984, %v2981
        %v3015 = vpack.c.b16 %v2985, %v2982
        %v3016 = vpack.c.b16 %v2986, %v2983
        %v3017 = vpack.c.b16 %v2990, %v2987
        %v3018 = vpack.c.b16 %v2991, %v2988
        %v3019 = vpack.c.b16 %v2992, %v2989
        %v3020 = vpack.c.b16 %v2996, %v2993
        %v3021 = vpack.c.b16 %v2997, %v2994
        %v3022 = vpack.c.b16 %v2998, %v2995
        %3047 = vmatprep.subr.bf16.mxu0 %v3000
        %3048 = vmatpush1.bf16.msra.mxu0 %v2999
        %3049 = vmatprep.subr.bf16.mxu0 %v3003
        %3050 = vmatpush1.bf16.msra.mxu0 %v3002
        %3051 = vmatprep.subr.bf16.mxu0 %v3006
        %3052 = vmatpush1.bf16.msra.mxu0 %v3005
        %3053 = vmatprep.subr.bf16.mxu0 %v3009
        %3054 = vmatpush1.bf16.msra.mxu0 %v3008
        %3055 = vmatprep.subr.bf16.mxu0 %v3012
        %3056 = vmatpush1.bf16.msra.mxu0 %v3011
        %3057 = vmatprep.subr.bf16.mxu0 %v3015
        %3058 = vmatpush1.bf16.msra.mxu0 %v3014
        %3059 = vmatprep.subr.bf16.mxu0 %v3018
        %3060 = vmatpush1.bf16.msra.mxu0 %v3017
        %3061 = vmatprep.subr.bf16.mxu0 %v3021
        %3062 = vmatpush1.bf16.msra.mxu0 %v3020
        %3063 = vmatprep.subr.bf16.mxu0 0
        %3064 = vmatpush1.bf16.msra.mxu0 0
        %3065 = vmatprep.subr.bf16.mxu0 0
        %3066 = vmatpush1.bf16.msra.mxu0 0
        %3067 = vmatprep.subr.bf16.mxu0 0
        %3068 = vmatpush1.bf16.msra.mxu0 0
        %3069 = vmatprep.subr.bf16.mxu0 0
        %3070 = vmatpush1.bf16.msra.mxu0 0
        %3071 = vmatprep.subr.bf16.mxu0 0
        %3072 = vmatpush1.bf16.msra.mxu0 0
        %3073 = vmatprep.subr.bf16.mxu0 0
        %3074 = vmatpush1.bf16.msra.mxu0 0
        %3075 = vmatprep.subr.bf16.mxu0 0
        %3076 = vmatpush1.bf16.msra.mxu0 0
        %3077 = vmatprep.subr.bf16.mxu0 0
        %3078 = vmatpush1.bf16.msra.mxu0 0
        %3079 = vmatprep.mubr.bf16.mxu0 0
        %3080 = vmatmul.mubr.bf16.gmra.mrb[0].mxu0 %v2866
        %v3081 = vpop.f32.mrb[0].mxu0
        %v3082 = vadd.f32 %v2907, %v3081
        %v3083 = vpop.f32.mrb[0].mxu0
        %v3084 = vadd.f32 %v2911, %v3083
        %v3085 = vpop.f32.mrb[0].mxu0
        %v3086 = vadd.f32 %v2907, %v3085
        %v3087 = vpop.f32.mrb[0].mxu0
        %v3088 = vadd.f32 %v2911, %v3087
        %3089 = vmatprep.mubr.bf16.mxu0 0
        %3090 = vmatmul.mubr.bf16.gmra.mrb[0].mxu0 %v2867
        %v3091 = vpop.f32.mrb[0].mxu0
        %v3092 = vadd.f32 %v2907, %v3091
        %v3093 = vpop.f32.mrb[0].mxu0
        %v3094 = vadd.f32 %v2911, %v3093
        %v3095 = vpop.f32.mrb[0].mxu0
        %v3096 = vadd.f32 %v2907, %v3095
        %v3097 = vpop.f32.mrb[0].mxu0
        %v3098 = vadd.f32 %v2911, %v3097
        %3099 = vmatprep.mubr.bf16.mxu0 0
        %3100 = vmatmul.mubr.bf16.gmra.mrb[0].mxu0 %v2868
        %v3101 = vpop.f32.mrb[0].mxu0
        %v3102 = vadd.f32 %v2907, %v3101
        %v3103 = vpop.f32.mrb[0].mxu0
        %v3104 = vadd.f32 %v2911, %v3103
        %v3105 = vpop.f32.mrb[0].mxu0
        %v3106 = vadd.f32 %v2907, %v3105
        %v3107 = vpop.f32.mrb[0].mxu0
        %v3108 = vadd.f32 %v2911, %v3107
        %3109 = vmatprep.mubr.bf16.mxu0 0
        %3110 = vmatmul.mubr.bf16.gmra.mrb[0].mxu0 %v2869
        %v3111 = vpop.f32.mrb[0].mxu0
        %v3112 = vadd.f32 %v2907, %v3111
        %v3113 = vpop.f32.mrb[0].mxu0
        %v3114 = vadd.f32 %v2911, %v3113
        %v3115 = vpop.f32.mrb[0].mxu0
        %v3116 = vadd.f32 %v2907, %v3115
        %v3117 = vpop.f32.mrb[0].mxu0
        %v3118 = vadd.f32 %v2911, %v3117
        %3119 = vdwg.mxu0
        %3120 = vmatprep.subr.bf16.mxu0 0
        %3121 = vmatpush1.bf16.msra.mxu0 %v3001
        %3122 = vmatprep.subr.bf16.mxu0 0
        %3123 = vmatpush1.bf16.msra.mxu0 %v3004
        %3124 = vmatprep.subr.bf16.mxu0 0
        %3125 = vmatpush1.bf16.msra.mxu0 %v3007
        %3126 = vmatprep.subr.bf16.mxu0 0
        %3127 = vmatpush1.bf16.msra.mxu0 %v3010
        %3128 = vmatprep.subr.bf16.mxu0 0
        %3129 = vmatpush1.bf16.msra.mxu0 %v3013
        %3130 = vmatprep.subr.bf16.mxu0 0
        %3131 = vmatpush1.bf16.msra.mxu0 %v3016
        %3132 = vmatprep.subr.bf16.mxu0 0
        %3133 = vmatpush1.bf16.msra.mxu0 %v3019
        %3134 = vmatprep.subr.bf16.mxu0 0
        %3135 = vmatpush1.bf16.msra.mxu0 %v3022
        %3136 = vmatprep.subr.bf16.mxu0 0
        %3137 = vmatpush1.bf16.msra.mxu0 0
        %3138 = vmatprep.subr.bf16.mxu0 0
        %3139 = vmatpush1.bf16.msra.mxu0 0
        %3140 = vmatprep.subr.bf16.mxu0 0
        %3141 = vmatpush1.bf16.msra.mxu0 0
        %3142 = vmatprep.subr.bf16.mxu0 0
        %3143 = vmatpush1.bf16.msra.mxu0 0
        %3144 = vmatprep.subr.bf16.mxu0 0
        %3145 = vmatpush1.bf16.msra.mxu0 0
        %3146 = vmatprep.subr.bf16.mxu0 0
        %3147 = vmatpush1.bf16.msra.mxu0 0
        %3148 = vmatprep.subr.bf16.mxu0 0
        %3149 = vmatpush1.bf16.msra.mxu0 0
        %3150 = vmatprep.subr.bf16.mxu0 0
        %3151 = vmatpush1.bf16.msra.mxu0 0
        %3152 = vmatprep.mubr.bf16.mxu0 0
        %3153 = vmatmul.mubr.bf16.gmra.mrb[0].mxu0 %v2866
        %v3154 = vpop.f32.mrb[0].mxu0
        %v3155 = vadd.f32 %v2915, %v3154
        %v3156 = vpop.f32.mrb[0].mxu0
        %v3157 = vpop.f32.mrb[0].mxu0
        %v3158 = vadd.f32 %v2915, %v3157
        %v3159 = vpop.f32.mrb[0].mxu0
        %3160 = vmatprep.mubr.bf16.mxu0 0
        %3161 = vmatmul.mubr.bf16.gmra.mrb[0].mxu0 %v2867
        %v3162 = vpop.f32.mrb[0].mxu0
        %v3163 = vadd.f32 %v2915, %v3162
        %v3164 = vpop.f32.mrb[0].mxu0
        %v3165 = vpop.f32.mrb[0].mxu0
        %v3166 = vadd.f32 %v2915, %v3165
        %v3167 = vpop.f32.mrb[0].mxu0
        %3168 = vmatprep.mubr.bf16.mxu0 0
        %3169 = vmatmul.mubr.bf16.gmra.mrb[0].mxu0 %v2868
        %v3170 = vpop.f32.mrb[0].mxu0
        %v3171 = vadd.f32 %v2915, %v3170
        %v3172 = vpop.f32.mrb[0].mxu0
        %v3173 = vpop.f32.mrb[0].mxu0
        %v3174 = vadd.f32 %v2915, %v3173
        %v3175 = vpop.f32.mrb[0].mxu0
        %3176 = vmatprep.mubr.bf16.mxu0 0
        %3177 = vmatmul.mubr.bf16.gmra.mrb[0].mxu0 %v2869
        %v3178 = vpop.f32.mrb[0].mxu0
        %v3179 = vadd.f32 %v2915, %v3178
        %v3180 = vpop.f32.mrb[0].mxu0
        %v3181 = vpop.f32.mrb[0].mxu0
        %v3182 = vadd.f32 %v2915, %v3181
        %v3183 = vpop.f32.mrb[0].mxu0
        %3184 = vdwg.mxu0
        %v3185 = vpack.c.bf16 %v3086, %v3082
        %v3186 = vpack.c.bf16 %v3096, %v3092
        %v3187 = vpack.c.bf16 %v3106, %v3102
        %v3188 = vpack.c.bf16 %v3116, %v3112
        %v3189 = vpack.c.bf16 %v3088, %v3084
        %v3190 = vpack.c.bf16 %v3098, %v3094
        %v3191 = vpack.c.bf16 %v3108, %v3104
        %v3192 = vpack.c.bf16 %v3118, %v3114
        %3193 = vmatprep.subr.bf16.mxu0 0
        %3194 = vmatpush1.bf16.xpose.msra.mxu0 %v3189
        %3195 = vmatprep.subr.bf16.mxu0 0
        %3196 = vmatpush1.bf16.xpose.msra.mxu0 %v3190
        %3197 = vmatprep.subr.bf16.mxu0 0
        %3198 = vmatpush1.bf16.xpose.msra.mxu0 %v3191
        %3199 = vmatprep.subr.bf16.mxu0 0
        %3200 = vmatpush1.bf16.xpose.msra.mxu0 %v3192
        %3201 = vmatprep.subr.bf16.mxu0 0
        %3202 = vmatpush1.bf16.xpose.msra.mxu0 0
        %3203 = vmatprep.subr.bf16.mxu0 0
        %3204 = vmatpush1.bf16.xpose.msra.mxu0 0
        %3205 = vmatprep.subr.bf16.mxu0 0
        %3206 = vmatpush1.bf16.xpose.msra.mxu0 0
        %3207 = vmatprep.subr.bf16.mxu0 0
        %3208 = vmatpush1.bf16.xpose.msra.mxu0 0
        %3209 = vmatprep.subr.bf16.mxu0 0
        %3210 = vmatpush1.bf16.xpose.msra.mxu0 0
        %3211 = vmatprep.subr.bf16.mxu0 0
        %3212 = vmatpush1.bf16.xpose.msra.mxu0 0
        %3213 = vmatprep.subr.bf16.mxu0 0
        %3214 = vmatpush1.bf16.xpose.msra.mxu0 0
        %3215 = vmatprep.subr.bf16.mxu0 0
        %3216 = vmatpush1.bf16.xpose.msra.mxu0 0
        %3217 = vmatprep.subr.bf16.mxu0 0
        %3218 = vmatpush1.bf16.xpose.msra.mxu0 0
        %3219 = vmatprep.subr.bf16.mxu0 0
        %3220 = vmatpush1.bf16.xpose.msra.mxu0 0
        %3221 = vmatprep.subr.bf16.mxu0 0
        %3222 = vmatpush1.bf16.xpose.msra.mxu0 0
        %3223 = vmatprep.subr.bf16.mxu0 0
        %3224 = vmatpush1.bf16.xpose.msra.mxu0 0
        %3225 = vmatprep.mubr.bf16.mxu0 0
        %3226 = vmatmul.mubr.bf16.gmra.mrb[0].mxu0 %v3185
        %v3227 = vpop.f32.mrb[0].mxu0
        %v3228 = vadd.f32 0.0, %v3227
        %v3229 = vpop.f32.mrb[0].mxu0
        %v3230 = vpop.f32.mrb[0].mxu0
        %v3231 = vadd.f32 0.0, %v3230
        %v3232 = vpop.f32.mrb[0].mxu0
        %3233 = vmatprep.mubr.bf16.mxu0 0
        %3234 = vmatmul.mubr.bf16.gmra.mrb[0].mxu0 %v3186
        %v3235 = vpop.f32.mrb[0].mxu0
        %v3236 = vadd.f32 0.0, %v3235
        %v3237 = vpop.f32.mrb[0].mxu0
        %v3238 = vpop.f32.mrb[0].mxu0
        %v3239 = vadd.f32 0.0, %v3238
        %v3240 = vpop.f32.mrb[0].mxu0
        %3241 = vmatprep.mubr.bf16.mxu0 0
        %3242 = vmatmul.mubr.bf16.gmra.mrb[0].mxu0 %v3187
        %v3243 = vpop.f32.mrb[0].mxu0
        %v3244 = vadd.f32 0.0, %v3243
        %v3245 = vpop.f32.mrb[0].mxu0
        %v3246 = vpop.f32.mrb[0].mxu0
        %v3247 = vadd.f32 0.0, %v3246
        %v3248 = vpop.f32.mrb[0].mxu0
        %3249 = vmatprep.mubr.bf16.mxu0 0
        %3250 = vmatmul.mubr.bf16.gmra.mrb[0].mxu0 %v3188
        %v3251 = vpop.f32.mrb[0].mxu0
        %v3252 = vadd.f32 0.0, %v3251
        %v3253 = vpop.f32.mrb[0].mxu0
        %v3254 = vpop.f32.mrb[0].mxu0
        %v3255 = vadd.f32 0.0, %v3254
        %v3256 = vpop.f32.mrb[0].mxu0
        %3257 = vdwg.mxu0
        %v3258 = vmul.f32 %v3228, 0.088388346
        %v3259 = vmul.f32 %v3231, 0.088388346
        %v3260 = vmul.f32 %v3236, 0.088388346
        %v3261 = vmul.f32 %v3239, 0.088388346
        %v3262 = vmul.f32 %v3244, 0.088388346
        %v3263 = vmul.f32 %v3247, 0.088388346
        %v3264 = vmul.f32 %v3252, 0.088388346
        %v3265 = vmul.f32 %v3255, 0.088388346
        %vm3266 = vcmask 523264
        %v3267 = vsel %vm3266, %v3258, -inf
        %3268 = vmax.xlane.f32.xlu0 %v3267
        %v3269 = vpop.xlane.xlu0 %3268
        %v3270 = vsel %vm3266, %v3259, -inf
        %3271 = vmax.xlane.f32.xlu0 %v3270
        %v3272 = vpop.xlane.xlu0 %3271
        %v3273 = vsel %vm3266, %v3260, -inf
        %3274 = vmax.xlane.f32.xlu0 %v3273
        %v3275 = vpop.xlane.xlu0 %3274
        %v3276 = vsel %vm3266, %v3261, -inf
        %3277 = vmax.xlane.f32.xlu0 %v3276
        %v3278 = vpop.xlane.xlu0 %3277
        %v3279 = vsel %vm3266, %v3262, -inf
        %3280 = vmax.xlane.f32.xlu0 %v3279
        %v3281 = vpop.xlane.xlu0 %3280
        %v3282 = vsel %vm3266, %v3263, -inf
        %3283 = vmax.xlane.f32.xlu0 %v3282
        %v3284 = vpop.xlane.xlu0 %3283
        %v3285 = vsel %vm3266, %v3264, -inf
        %3286 = vmax.xlane.f32.xlu0 %v3285
        %v3287 = vpop.xlane.xlu0 %3286
        %v3288 = vsel %vm3266, %v3265, -inf
        %3289 = vmax.xlane.f32.xlu0 %v3288
        %v3290 = vpop.xlane.xlu0 %3289
        %v3291 = vsub.f32 %v3258, %v3269
        %v3292 = vsub.f32 %v3259, %v3272
        %v3293 = vsub.f32 %v3260, %v3275
        %v3294 = vsub.f32 %v3261, %v3278
        %v3295 = vsub.f32 %v3262, %v3281
        %v3296 = vsub.f32 %v3263, %v3284
        %v3297 = vsub.f32 %v3264, %v3287
        %v3298 = vsub.f32 %v3265, %v3290
        %v3299 = vmul.f32 %v3291, 1.442695
        %v3300 = vpow.pop %v3299
        %v3301 = vmul.f32 %v3292, 1.442695
        %v3302 = vpow.pop %v3301
        %v3303 = vmul.f32 %v3293, 1.442695
        %v3304 = vpow.pop %v3303
        %v3305 = vmul.f32 %v3294, 1.442695
        %v3306 = vpow.pop %v3305
        %v3307 = vmul.f32 %v3295, 1.442695
        %v3308 = vpow.pop %v3307
        %v3309 = vmul.f32 %v3296, 1.442695
        %v3310 = vpow.pop %v3309
        %v3311 = vmul.f32 %v3297, 1.442695
        %v3312 = vpow.pop %v3311
        %v3313 = vmul.f32 %v3298, 1.442695
        %v3314 = vpow.pop %v3313
        %v3315 = vsel %vm3266, %v3300, 0.0
        %3316 = vadd.xlane.f32.xlu0 %v3315
        %v3317 = vpop.xlane.xlu0 %3316
        %v3318 = vsel %vm3266, %v3302, 0.0
        %3319 = vadd.xlane.f32.xlu0 %v3318
        %v3320 = vpop.xlane.xlu0 %3319
        %v3321 = vsel %vm3266, %v3304, 0.0
        %3322 = vadd.xlane.f32.xlu0 %v3321
        %v3323 = vpop.xlane.xlu0 %3322
        %v3324 = vsel %vm3266, %v3306, 0.0
        %3325 = vadd.xlane.f32.xlu0 %v3324
        %v3326 = vpop.xlane.xlu0 %3325
        %v3327 = vsel %vm3266, %v3308, 0.0
        %3328 = vadd.xlane.f32.xlu0 %v3327
        %v3329 = vpop.xlane.xlu0 %3328
        %v3330 = vsel %vm3266, %v3310, 0.0
        %3331 = vadd.xlane.f32.xlu0 %v3330
        %v3332 = vpop.xlane.xlu0 %3331
        %v3333 = vsel %vm3266, %v3312, 0.0
        %3334 = vadd.xlane.f32.xlu0 %v3333
        %v3335 = vpop.xlane.xlu0 %3334
        %v3336 = vsel %vm3266, %v3314, 0.0
        %3337 = vadd.xlane.f32.xlu0 %v3336
        %v3338 = vpop.xlane.xlu0 %3337
        %v3339 = vrcp.pop %v3317
        %v3340 = vrcp.pop %v3320
        %v3341 = vrcp.pop %v3323
        %v3342 = vrcp.pop %v3326
        %v3343 = vrcp.pop %v3329
        %v3344 = vrcp.pop %v3332
        %v3345 = vrcp.pop %v3335
        %v3346 = vrcp.pop %v3338
        %v3347 = vmul.f32 %v3300, %v3339
        %v3348 = vmul.f32 %v3302, %v3340
        %v3349 = vmul.f32 %v3304, %v3341
        %v3350 = vmul.f32 %v3306, %v3342
        %v3351 = vmul.f32 %v3308, %v3343
        %v3352 = vmul.f32 %v3310, %v3344
        %v3353 = vmul.f32 %v3312, %v3345
        %v3354 = vmul.f32 %v3314, %v3346
        %v3355 = vpack.c.bf16 %v3348, %v3347
        %v3356 = vpack.c.bf16 %v3350, %v3349
        %v3357 = vpack.c.bf16 %v3352, %v3351
        %v3358 = vpack.c.bf16 %v3354, %v3353
        %v3359 = vpack.c.bf16 %v3158, %v3155
        %v3360 = vpack.c.bf16 %v3166, %v3163
        %v3361 = vpack.c.bf16 %v3174, %v3171
        %v3362 = vpack.c.bf16 %v3182, %v3179
        %v3364 = vsel %vm3266, %v3355, 0
        %v3367 = vsel %vm3266, %v3356, 0
        %v3370 = vsel %vm3266, %v3357, 0
        %v3373 = vsel %vm3266, %v3358, 0
        %3375 = vmatprep.subr.bf16.mxu0 0
        %3376 = vmatpush1.bf16.msra.mxu0 %v3359
        %3377 = vmatprep.subr.bf16.mxu0 0
        %3378 = vmatpush1.bf16.msra.mxu0 %v3360
        %3379 = vmatprep.subr.bf16.mxu0 0
        %3380 = vmatpush1.bf16.msra.mxu0 %v3361
        %3381 = vmatprep.subr.bf16.mxu0 0
        %3382 = vmatpush1.bf16.msra.mxu0 %v3362
        %3383 = vmatprep.subr.bf16.mxu0 0
        %3384 = vmatpush1.bf16.msra.mxu0 0
        %3385 = vmatprep.subr.bf16.mxu0 0
        %3386 = vmatpush1.bf16.msra.mxu0 0
        %3387 = vmatprep.subr.bf16.mxu0 0
        %3388 = vmatpush1.bf16.msra.mxu0 0
        %3389 = vmatprep.subr.bf16.mxu0 0
        %3390 = vmatpush1.bf16.msra.mxu0 0
        %3391 = vmatprep.subr.bf16.mxu0 0
        %3392 = vmatpush1.bf16.msra.mxu0 0
        %3393 = vmatprep.subr.bf16.mxu0 0
        %3394 = vmatpush1.bf16.msra.mxu0 0
        %3395 = vmatprep.subr.bf16.mxu0 0
        %3396 = vmatpush1.bf16.msra.mxu0 0
        %3397 = vmatprep.subr.bf16.mxu0 0
        %3398 = vmatpush1.bf16.msra.mxu0 0
        %3399 = vmatprep.subr.bf16.mxu0 0
        %3400 = vmatpush1.bf16.msra.mxu0 0
        %3401 = vmatprep.subr.bf16.mxu0 0
        %3402 = vmatpush1.bf16.msra.mxu0 0
        %3403 = vmatprep.subr.bf16.mxu0 0
        %3404 = vmatpush1.bf16.msra.mxu0 0
        %3405 = vmatprep.subr.bf16.mxu0 0
        %3406 = vmatpush1.bf16.msra.mxu0 0
        %3407 = vmatprep.mubr.bf16.mxu0 0
        %3408 = vmatmul.mubr.bf16.gmra.mrb[0].mxu0 %v3364
        %v3409 = vpop.f32.mrb[0].mxu0
        %v3410 = vadd.f32 0.0, %v3409
        %v3411 = vpop.f32.mrb[0].mxu0
        %v3412 = vpop.f32.mrb[0].mxu0
        %v3413 = vadd.f32 0.0, %v3412
        %v3414 = vpop.f32.mrb[0].mxu0
        %3415 = vmatprep.mubr.bf16.mxu0 0
        %3416 = vmatmul.mubr.bf16.gmra.mrb[0].mxu0 %v3367
        %v3417 = vpop.f32.mrb[0].mxu0
        %v3418 = vadd.f32 0.0, %v3417
        %v3419 = vpop.f32.mrb[0].mxu0
        %v3420 = vpop.f32.mrb[0].mxu0
        %v3421 = vadd.f32 0.0, %v3420
        %v3422 = vpop.f32.mrb[0].mxu0
        %3423 = vmatprep.mubr.bf16.mxu0 0
        %3424 = vmatmul.mubr.bf16.gmra.mrb[0].mxu0 %v3370
        %v3425 = vpop.f32.mrb[0].mxu0
        %v3426 = vadd.f32 0.0, %v3425
        %v3427 = vpop.f32.mrb[0].mxu0
        %v3428 = vpop.f32.mrb[0].mxu0
        %v3429 = vadd.f32 0.0, %v3428
        %v3430 = vpop.f32.mrb[0].mxu0
        %3431 = vmatprep.mubr.bf16.mxu0 0
        %3432 = vmatmul.mubr.bf16.gmra.mrb[0].mxu0 %v3373
        %v3433 = vpop.f32.mrb[0].mxu0
        %v3434 = vadd.f32 0.0, %v3433
        %v3435 = vpop.f32.mrb[0].mxu0
        %v3436 = vpop.f32.mrb[0].mxu0
        %v3437 = vadd.f32 0.0, %v3436
        %v3438 = vpop.f32.mrb[0].mxu0
        %3439 = vdwg.mxu0
        %v3440 = vpack.c.bf16 %v3413, %v3410
        %v3441 = vpack.c.bf16 %v3421, %v3418
        %v3442 = vpack.c.bf16 %v3429, %v3426
        %v3443 = vpack.c.bf16 %v3437, %v3434
        %v3444 = vld [vmem:[%s8] sm:$0xf]
        %v3445 = vld [vmem:[%s8 + $0x4] sm:$0xf]
        %v3446 = vld [vmem:[%s8 + $0x8] sm:$0xf]
        %v3447 = vld [vmem:[%s8 + $0xc] sm:$0xf]
        %v3448 = vld [vmem:[%s8 + $0x10] sm:$0xf]
        %v3449 = vld [vmem:[%s8 + $0x14] sm:$0xf]
        %v3450 = vld [vmem:[%s8 + $0x18] sm:$0xf]
        %v3451 = vld [vmem:[%s8 + $0x1c] sm:$0xf]
        %v3452 = vld [vmem:[%s8 + $0x20] sm:$0xf]
        %v3453 = vld [vmem:[%s8 + $0x24] sm:$0xf]
        %v3454 = vld [vmem:[%s8 + $0x28] sm:$0xf]
        %v3455 = vld [vmem:[%s8 + $0x2c] sm:$0xf]
        %v3456 = vld [vmem:[%s8 + $0x30] sm:$0xf]
        %v3457 = vld [vmem:[%s8 + $0x34] sm:$0xf]
        %v3458 = vld [vmem:[%s8 + $0x38] sm:$0xf]
        %v3459 = vld [vmem:[%s8 + $0x3c] sm:$0xf]
        %v3460 = vld [vmem:[%s9] sm:$0x1]
        %v3462 = vlaneseq
        %v3463 = vshrl.u32 %v3462, 7
        %v3464 = vsub.s32 0, %v3463
        %v3465 = vrot.slane %v3460, %v3464
        %v3483 = vunpack.c.l.b16 %v3444
        %v3484 = vunpack.c.l.b16 %v3445
        %v3485 = vunpack.c.l.b16 %v3446
        %v3486 = vunpack.c.l.b16 %v3447
        %v3487 = vunpack.c.l.b16 %v3448
        %v3488 = vunpack.c.l.b16 %v3449
        %v3489 = vunpack.c.l.b16 %v3450
        %v3490 = vunpack.c.l.b16 %v3451
        %v3491 = vunpack.c.l.b16 %v3452
        %v3492 = vunpack.c.l.b16 %v3453
        %v3493 = vunpack.c.l.b16 %v3454
        %v3494 = vunpack.c.l.b16 %v3455
        %v3495 = vunpack.c.l.b16 %v3456
        %v3496 = vunpack.c.l.b16 %v3457
        %v3497 = vunpack.c.l.b16 %v3458
        %v3498 = vunpack.c.l.b16 %v3459
        %v3499 = vpack.c.b16 %v3484, %v3483
        %v3500 = vpack.c.b16 %v3486, %v3485
        %v3501 = vpack.c.b16 %v3488, %v3487
        %v3502 = vpack.c.b16 %v3490, %v3489
        %v3503 = vpack.c.b16 %v3492, %v3491
        %v3504 = vpack.c.b16 %v3494, %v3493
        %v3505 = vpack.c.b16 %v3496, %v3495
        %v3506 = vpack.c.b16 %v3498, %v3497
        %3515 = vmatprep.subr.bf16.mxu0 0
        %3516 = vmatpush1.bf16.msra.mxu0 %v3499
        %3517 = vmatprep.subr.bf16.mxu0 0
        %3518 = vmatpush1.bf16.msra.mxu0 %v3500
        %3519 = vmatprep.subr.bf16.mxu0 0
        %3520 = vmatpush1.bf16.msra.mxu0 %v3501
        %3521 = vmatprep.subr.bf16.mxu0 0
        %3522 = vmatpush1.bf16.msra.mxu0 %v3502
        %3523 = vmatprep.subr.bf16.mxu0 0
        %3524 = vmatpush1.bf16.msra.mxu0 %v3503
        %3525 = vmatprep.subr.bf16.mxu0 0
        %3526 = vmatpush1.bf16.msra.mxu0 %v3504
        %3527 = vmatprep.subr.bf16.mxu0 0
        %3528 = vmatpush1.bf16.msra.mxu0 %v3505
        %3529 = vmatprep.subr.bf16.mxu0 0
        %3530 = vmatpush1.bf16.msra.mxu0 %v3506
        %3531 = vmatprep.subr.bf16.mxu0 0
        %3532 = vmatpush1.bf16.msra.mxu0 0
        %3533 = vmatprep.subr.bf16.mxu0 0
        %3534 = vmatpush1.bf16.msra.mxu0 0
        %3535 = vmatprep.subr.bf16.mxu0 0
        %3536 = vmatpush1.bf16.msra.mxu0 0
        %3537 = vmatprep.subr.bf16.mxu0 0
        %3538 = vmatpush1.bf16.msra.mxu0 0
        %3539 = vmatprep.subr.bf16.mxu0 0
        %3540 = vmatpush1.bf16.msra.mxu0 0
        %3541 = vmatprep.subr.bf16.mxu0 0
        %3542 = vmatpush1.bf16.msra.mxu0 0
        %3543 = vmatprep.subr.bf16.mxu0 0
        %3544 = vmatpush1.bf16.msra.mxu0 0
        %3545 = vmatprep.subr.bf16.mxu0 0
        %3546 = vmatpush1.bf16.msra.mxu0 0
        %3547 = vmatprep.mubr.bf16.mxu0 0
        %3548 = vmatmul.mubr.bf16.gmra.mrb[0].mxu0 %v3440
        %v3549 = vpop.f32.mrb[0].mxu0
        %v3550 = vadd.f32 %v3465, %v3549
        %v3551 = vpop.f32.mrb[0].mxu0
        %v3552 = vpop.f32.mrb[0].mxu0
        %v3553 = vadd.f32 %v3465, %v3552
        %v3554 = vpop.f32.mrb[0].mxu0
        %3555 = vmatprep.mubr.bf16.mxu0 0
        %3556 = vmatmul.mubr.bf16.gmra.mrb[0].mxu0 %v3441
        %v3557 = vpop.f32.mrb[0].mxu0
        %v3558 = vadd.f32 %v3465, %v3557
        %v3559 = vpop.f32.mrb[0].mxu0
        %v3560 = vpop.f32.mrb[0].mxu0
        %v3561 = vadd.f32 %v3465, %v3560
        %v3562 = vpop.f32.mrb[0].mxu0
        %3563 = vmatprep.mubr.bf16.mxu0 0
        %3564 = vmatmul.mubr.bf16.gmra.mrb[0].mxu0 %v3442
        %v3565 = vpop.f32.mrb[0].mxu0
        %v3566 = vadd.f32 %v3465, %v3565
        %v3567 = vpop.f32.mrb[0].mxu0
        %v3568 = vpop.f32.mrb[0].mxu0
        %v3569 = vadd.f32 %v3465, %v3568
        %v3570 = vpop.f32.mrb[0].mxu0
        %3571 = vmatprep.mubr.bf16.mxu0 0
        %3572 = vmatmul.mubr.bf16.gmra.mrb[0].mxu0 %v3443
        %v3573 = vpop.f32.mrb[0].mxu0
        %v3574 = vadd.f32 %v3465, %v3573
        %v3575 = vpop.f32.mrb[0].mxu0
        %v3576 = vpop.f32.mrb[0].mxu0
        %v3577 = vadd.f32 %v3465, %v3576
        %v3578 = vpop.f32.mrb[0].mxu0
        %3579 = vdwg.mxu0
        %v3580 = vadd.f32 %v2836, %v3550
        %v3581 = vadd.f32 %v2839, %v3553
        %v3582 = vadd.f32 %v2844, %v3558
        %v3583 = vadd.f32 %v2847, %v3561
        %v3584 = vadd.f32 %v2852, %v3566
        %v3585 = vadd.f32 %v2855, %v3569
        %v3586 = vadd.f32 %v2860, %v3574
        %v3587 = vadd.f32 %v2863, %v3577
        %v3588 = vpack.c.bf16 %v3581, %v3580
        %v3589 = vpack.c.bf16 %v3583, %v3582
        %v3590 = vpack.c.bf16 %v3585, %v3584
        %v3591 = vpack.c.bf16 %v3587, %v3586
        %v3592 = vld [vmem:[%s10] sm:$0xf]
        %v3593 = vld [vmem:[%s10 + $0x4] sm:$0xf]
        %v3594 = vld [vmem:[%s10 + $0x8] sm:$0xf]
        %v3595 = vld [vmem:[%s10 + $0xc] sm:$0xf]
        %v3596 = vld [vmem:[%s10 + $0x10] sm:$0xf]
        %v3597 = vld [vmem:[%s10 + $0x14] sm:$0xf]
        %v3598 = vld [vmem:[%s10 + $0x18] sm:$0xf]
        %v3599 = vld [vmem:[%s10 + $0x1c] sm:$0xf]
        %v3600 = vld [vmem:[%s10 + $0x20] sm:$0xf]
        %v3601 = vld [vmem:[%s10 + $0x24] sm:$0xf]
        %v3602 = vld [vmem:[%s10 + $0x28] sm:$0xf]
        %v3603 = vld [vmem:[%s10 + $0x2c] sm:$0xf]
        %v3604 = vld [vmem:[%s10 + $0x30] sm:$0xf]
        %v3605 = vld [vmem:[%s10 + $0x34] sm:$0xf]
        %v3606 = vld [vmem:[%s10 + $0x38] sm:$0xf]
        %v3607 = vld [vmem:[%s10 + $0x3c] sm:$0xf]
        %v3608 = vld [vmem:[%s11] sm:$0x1]
        %v3610 = vlaneseq
        %v3611 = vshrl.u32 %v3610, 7
        %v3612 = vsub.s32 0, %v3611
        %v3613 = vrot.slane %v3608, %v3612
        %v3631 = vunpack.c.l.b16 %v3592
        %v3632 = vunpack.c.l.b16 %v3593
        %v3633 = vunpack.c.l.b16 %v3594
        %v3634 = vunpack.c.l.b16 %v3595
        %v3635 = vunpack.c.l.b16 %v3596
        %v3636 = vunpack.c.l.b16 %v3597
        %v3637 = vunpack.c.l.b16 %v3598
        %v3638 = vunpack.c.l.b16 %v3599
        %v3639 = vunpack.c.l.b16 %v3600
        %v3640 = vunpack.c.l.b16 %v3601
        %v3641 = vunpack.c.l.b16 %v3602
        %v3642 = vunpack.c.l.b16 %v3603
        %v3643 = vunpack.c.l.b16 %v3604
        %v3644 = vunpack.c.l.b16 %v3605
        %v3645 = vunpack.c.l.b16 %v3606
        %v3646 = vunpack.c.l.b16 %v3607
        %v3647 = vpack.c.b16 %v3632, %v3631
        %v3648 = vpack.c.b16 %v3634, %v3633
        %v3649 = vpack.c.b16 %v3636, %v3635
        %v3650 = vpack.c.b16 %v3638, %v3637
        %v3651 = vpack.c.b16 %v3640, %v3639
        %v3652 = vpack.c.b16 %v3642, %v3641
        %v3653 = vpack.c.b16 %v3644, %v3643
        %v3654 = vpack.c.b16 %v3646, %v3645
        %3663 = vmatprep.subr.bf16.mxu0 0
        %3664 = vmatpush1.bf16.msra.mxu0 %v3647
        %3665 = vmatprep.subr.bf16.mxu0 0
        %3666 = vmatpush1.bf16.msra.mxu0 %v3648
        %3667 = vmatprep.subr.bf16.mxu0 0
        %3668 = vmatpush1.bf16.msra.mxu0 %v3649
        %3669 = vmatprep.subr.bf16.mxu0 0
        %3670 = vmatpush1.bf16.msra.mxu0 %v3650
        %3671 = vmatprep.subr.bf16.mxu0 0
        %3672 = vmatpush1.bf16.msra.mxu0 %v3651
        %3673 = vmatprep.subr.bf16.mxu0 0
        %3674 = vmatpush1.bf16.msra.mxu0 %v3652
        %3675 = vmatprep.subr.bf16.mxu0 0
        %3676 = vmatpush1.bf16.msra.mxu0 %v3653
        %3677 = vmatprep.subr.bf16.mxu0 0
        %3678 = vmatpush1.bf16.msra.mxu0 %v3654
        %3679 = vmatprep.subr.bf16.mxu0 0
        %3680 = vmatpush1.bf16.msra.mxu0 0
        %3681 = vmatprep.subr.bf16.mxu0 0
        %3682 = vmatpush1.bf16.msra.mxu0 0
        %3683 = vmatprep.subr.bf16.mxu0 0
        %3684 = vmatpush1.bf16.msra.mxu0 0
        %3685 = vmatprep.subr.bf16.mxu0 0
        %3686 = vmatpush1.bf16.msra.mxu0 0
        %3687 = vmatprep.subr.bf16.mxu0 0
        %3688 = vmatpush1.bf16.msra.mxu0 0
        %3689 = vmatprep.subr.bf16.mxu0 0
        %3690 = vmatpush1.bf16.msra.mxu0 0
        %3691 = vmatprep.subr.bf16.mxu0 0
        %3692 = vmatpush1.bf16.msra.mxu0 0
        %3693 = vmatprep.subr.bf16.mxu0 0
        %3694 = vmatpush1.bf16.msra.mxu0 0
        %3695 = vmatprep.mubr.bf16.mxu0 0
        %3696 = vmatmul.mubr.bf16.gmra.mrb[0].mxu0 %v3588
        %v3697 = vpop.f32.mrb[0].mxu0
        %v3698 = vadd.f32 %v3613, %v3697
        %v3699 = vpop.f32.mrb[0].mxu0
        %v3700 = vpop.f32.mrb[0].mxu0
        %v3701 = vadd.f32 %v3613, %v3700
        %v3702 = vpop.f32.mrb[0].mxu0
        %3703 = vmatprep.mubr.bf16.mxu0 0
        %3704 = vmatmul.mubr.bf16.gmra.mrb[0].mxu0 %v3589
        %v3705 = vpop.f32.mrb[0].mxu0
        %v3706 = vadd.f32 %v3613, %v3705
        %v3707 = vpop.f32.mrb[0].mxu0
        %v3708 = vpop.f32.mrb[0].mxu0
        %v3709 = vadd.f32 %v3613, %v3708
        %v3710 = vpop.f32.mrb[0].mxu0
        %3711 = vmatprep.mubr.bf16.mxu0 0
        %3712 = vmatmul.mubr.bf16.gmra.mrb[0].mxu0 %v3590
        %v3713 = vpop.f32.mrb[0].mxu0
        %v3714 = vadd.f32 %v3613, %v3713
        %v3715 = vpop.f32.mrb[0].mxu0
        %v3716 = vpop.f32.mrb[0].mxu0
        %v3717 = vadd.f32 %v3613, %v3716
        %v3718 = vpop.f32.mrb[0].mxu0
        %3719 = vmatprep.mubr.bf16.mxu0 0
        %3720 = vmatmul.mubr.bf16.gmra.mrb[0].mxu0 %v3591
        %v3721 = vpop.f32.mrb[0].mxu0
        %v3722 = vadd.f32 %v3613, %v3721
        %v3723 = vpop.f32.mrb[0].mxu0
        %v3724 = vpop.f32.mrb[0].mxu0
        %v3725 = vadd.f32 %v3613, %v3724
        %v3726 = vpop.f32.mrb[0].mxu0
        %3727 = vdwg.mxu0
        %vm3728 = vcmp.gt.f32.partialorder %v3698, 0.0
        %vm3729 = vcmp.gt.f32.partialorder %v3701, 0.0
        %vm3730 = vcmp.gt.f32.partialorder %v3706, 0.0
        %vm3731 = vcmp.gt.f32.partialorder %v3709, 0.0
        %vm3732 = vcmp.gt.f32.partialorder %v3714, 0.0
        %vm3733 = vcmp.gt.f32.partialorder %v3717, 0.0
        %vm3734 = vcmp.gt.f32.partialorder %v3722, 0.0
        %vm3735 = vcmp.gt.f32.partialorder %v3725, 0.0
        %v3736 = vmul.f32 %v3698, 0.2
        %v3737 = vmul.f32 %v3701, 0.2
        %v3738 = vmul.f32 %v3706, 0.2
        %v3739 = vmul.f32 %v3709, 0.2
        %v3740 = vmul.f32 %v3714, 0.2
        %v3741 = vmul.f32 %v3717, 0.2
        %v3742 = vmul.f32 %v3722, 0.2
        %v3743 = vmul.f32 %v3725, 0.2
        %v3744 = vsel %vm3728, %v3698, %v3736
        %v3745 = vsel %vm3729, %v3701, %v3737
        %v3746 = vsel %vm3730, %v3706, %v3738
        %v3747 = vsel %vm3731, %v3709, %v3739
        %v3748 = vsel %vm3732, %v3714, %v3740
        %v3749 = vsel %vm3733, %v3717, %v3741
        %v3750 = vsel %vm3734, %v3722, %v3742
        %v3751 = vsel %vm3735, %v3725, %v3743
        %v3752 = vpack.c.bf16 %v3745, %v3744
        %v3753 = vpack.c.bf16 %v3747, %v3746
        %v3754 = vpack.c.bf16 %v3749, %v3748
        %v3755 = vpack.c.bf16 %v3751, %v3750
        %v3756 = vld [vmem:[#allocation5] sm:$0xf]
        %v3757 = vld [vmem:[#allocation5 + $0x4] sm:$0xf]
        %v3758 = vld [vmem:[#allocation5 + $0x8] sm:$0xf]
        %v3759 = vld [vmem:[#allocation5 + $0xc] sm:$0xf]
        %v3760 = vld [vmem:[#allocation5 + $0x10] sm:$0xf]
        %v3761 = vld [vmem:[#allocation5 + $0x14] sm:$0xf]
        %v3762 = vld [vmem:[#allocation5 + $0x18] sm:$0xf]
        %v3763 = vld [vmem:[#allocation5 + $0x1c] sm:$0xf]
        %v3764 = vld [vmem:[#allocation5 + $0x20] sm:$0xf]
        %v3765 = vld [vmem:[#allocation5 + $0x24] sm:$0xf]
        %v3766 = vld [vmem:[#allocation5 + $0x28] sm:$0xf]
        %v3767 = vld [vmem:[#allocation5 + $0x2c] sm:$0xf]
        %v3768 = vld [vmem:[#allocation5 + $0x30] sm:$0xf]
        %v3769 = vld [vmem:[#allocation5 + $0x34] sm:$0xf]
        %v3770 = vld [vmem:[#allocation5 + $0x38] sm:$0xf]
        %v3771 = vld [vmem:[#allocation5 + $0x3c] sm:$0xf]
        %v3772 = vld [vmem:[%s13] sm:$0x1]
        %v3774 = vlaneseq
        %v3775 = vshrl.u32 %v3774, 7
        %v3776 = vsub.s32 0, %v3775
        %v3777 = vrot.slane %v3772, %v3776
        %v3795 = vunpack.c.l.b16 %v3756
        %v3796 = vunpack.c.l.b16 %v3757
        %v3797 = vunpack.c.l.b16 %v3758
        %v3798 = vunpack.c.l.b16 %v3759
        %v3799 = vunpack.c.l.b16 %v3760
        %v3800 = vunpack.c.l.b16 %v3761
        %v3801 = vunpack.c.l.b16 %v3762
        %v3802 = vunpack.c.l.b16 %v3763
        %v3803 = vunpack.c.l.b16 %v3764
        %v3804 = vunpack.c.l.b16 %v3765
        %v3805 = vunpack.c.l.b16 %v3766
        %v3806 = vunpack.c.l.b16 %v3767
        %v3807 = vunpack.c.l.b16 %v3768
        %v3808 = vunpack.c.l.b16 %v3769
        %v3809 = vunpack.c.l.b16 %v3770
        %v3810 = vunpack.c.l.b16 %v3771
        %v3811 = vpack.c.b16 %v3796, %v3795
        %v3812 = vpack.c.b16 %v3798, %v3797
        %v3813 = vpack.c.b16 %v3800, %v3799
        %v3814 = vpack.c.b16 %v3802, %v3801
        %v3815 = vpack.c.b16 %v3804, %v3803
        %v3816 = vpack.c.b16 %v3806, %v3805
        %v3817 = vpack.c.b16 %v3808, %v3807
        %v3818 = vpack.c.b16 %v3810, %v3809
        %3827 = vmatprep.subr.bf16.mxu0 0
        %3828 = vmatpush1.bf16.msra.mxu0 %v3811
        %3829 = vmatprep.subr.bf16.mxu0 0
        %3830 = vmatpush1.bf16.msra.mxu0 %v3812
        %3831 = vmatprep.subr.bf16.mxu0 0
        %3832 = vmatpush1.bf16.msra.mxu0 %v3813
        %3833 = vmatprep.subr.bf16.mxu0 0
        %3834 = vmatpush1.bf16.msra.mxu0 %v3814
        %3835 = vmatprep.subr.bf16.mxu0 0
        %3836 = vmatpush1.bf16.msra.mxu0 %v3815
        %3837 = vmatprep.subr.bf16.mxu0 0
        %3838 = vmatpush1.bf16.msra.mxu0 %v3816
        %3839 = vmatprep.subr.bf16.mxu0 0
        %3840 = vmatpush1.bf16.msra.mxu0 %v3817
        %3841 = vmatprep.subr.bf16.mxu0 0
        %3842 = vmatpush1.bf16.msra.mxu0 %v3818
        %3843 = vmatprep.subr.bf16.mxu0 0
        %3844 = vmatpush1.bf16.msra.mxu0 0
        %3845 = vmatprep.subr.bf16.mxu0 0
        %3846 = vmatpush1.bf16.msra.mxu0 0
        %3847 = vmatprep.subr.bf16.mxu0 0
        %3848 = vmatpush1.bf16.msra.mxu0 0
        %3849 = vmatprep.subr.bf16.mxu0 0
        %3850 = vmatpush1.bf16.msra.mxu0 0
        %3851 = vmatprep.subr.bf16.mxu0 0
        %3852 = vmatpush1.bf16.msra.mxu0 0
        %3853 = vmatprep.subr.bf16.mxu0 0
        %3854 = vmatpush1.bf16.msra.mxu0 0
        %3855 = vmatprep.subr.bf16.mxu0 0
        %3856 = vmatpush1.bf16.msra.mxu0 0
        %3857 = vmatprep.subr.bf16.mxu0 0
        %3858 = vmatpush1.bf16.msra.mxu0 0
        %3859 = vmatprep.mubr.bf16.mxu0 0
        %3860 = vmatmul.mubr.bf16.gmra.mrb[0].mxu0 %v3752
        %v3861 = vpop.f32.mrb[0].mxu0
        %v3862 = vadd.f32 %v3777, %v3861
        %v3863 = vpop.f32.mrb[0].mxu0
        %v3864 = vpop.f32.mrb[0].mxu0
        %v3865 = vadd.f32 %v3777, %v3864
        %v3866 = vpop.f32.mrb[0].mxu0
        %3867 = vmatprep.mubr.bf16.mxu0 0
        %3868 = vmatmul.mubr.bf16.gmra.mrb[0].mxu0 %v3753
        %v3869 = vpop.f32.mrb[0].mxu0
        %v3870 = vadd.f32 %v3777, %v3869
        %v3871 = vpop.f32.mrb[0].mxu0
        %v3872 = vpop.f32.mrb[0].mxu0
        %v3873 = vadd.f32 %v3777, %v3872
        %v3874 = vpop.f32.mrb[0].mxu0
        %3875 = vmatprep.mubr.bf16.mxu0 0
        %3876 = vmatmul.mubr.bf16.gmra.mrb[0].mxu0 %v3754
        %v3877 = vpop.f32.mrb[0].mxu0
        %v3878 = vadd.f32 %v3777, %v3877
        %v3879 = vpop.f32.mrb[0].mxu0
        %v3880 = vpop.f32.mrb[0].mxu0
        %v3881 = vadd.f32 %v3777, %v3880
        %v3882 = vpop.f32.mrb[0].mxu0
        %3883 = vmatprep.mubr.bf16.mxu0 0
        %3884 = vmatmul.mubr.bf16.gmra.mrb[0].mxu0 %v3755
        %v3885 = vpop.f32.mrb[0].mxu0
        %v3886 = vadd.f32 %v3777, %v3885
        %v3887 = vpop.f32.mrb[0].mxu0
        %v3888 = vpop.f32.mrb[0].mxu0
        %v3889 = vadd.f32 %v3777, %v3888
        %v3890 = vpop.f32.mrb[0].mxu0
        %3891 = vdwg.mxu0
        %v3892 = vadd.f32 %v3580, %v3862
        %v3893 = vadd.f32 %v3581, %v3865
        %v3894 = vadd.f32 %v3582, %v3870
        %v3895 = vadd.f32 %v3583, %v3873
        %v3896 = vadd.f32 %v3584, %v3878
        %v3897 = vadd.f32 %v3585, %v3881
        %v3898 = vadd.f32 %v3586, %v3886
        %v3899 = vadd.f32 %v3587, %v3889
        %v3900 = vpack.c.bf16 %v3893, %v3892
        %v3901 = vpack.c.bf16 %v3895, %v3894
        %v3902 = vpack.c.bf16 %v3897, %v3896
        %v3903 = vpack.c.bf16 %v3899, %v3898
        %s3904 = scalar_lea.vmem %s6, 192
        %v3905 = vld [vmem:[%s3904] sm:$0xff]
        %v3906 = vld [vmem:[%s3904 + $0x8] sm:$0xf]
        %v3907 = vld [vmem:[%s3904 + $0xc] sm:$0xff]
        %v3908 = vld [vmem:[%s3904 + $0x14] sm:$0xf]
        %v3909 = vld [vmem:[%s3904 + $0x18] sm:$0xff]
        %v3910 = vld [vmem:[%s3904 + $0x20] sm:$0xf]
        %v3911 = vld [vmem:[%s3904 + $0x24] sm:$0xff]
        %v3912 = vld [vmem:[%s3904 + $0x2c] sm:$0xf]
        %v3913 = vld [vmem:[%s3904 + $0x30] sm:$0xff]
        %v3914 = vld [vmem:[%s3904 + $0x38] sm:$0xf]
        %v3915 = vld [vmem:[%s3904 + $0x3c] sm:$0xff]
        %v3916 = vld [vmem:[%s3904 + $0x44] sm:$0xf]
        %v3917 = vld [vmem:[%s3904 + $0x48] sm:$0xff]
        %v3918 = vld [vmem:[%s3904 + $0x50] sm:$0xf]
        %v3919 = vld [vmem:[%s3904 + $0x54] sm:$0xff]
        %v3920 = vld [vmem:[%s3904 + $0x5c] sm:$0xf]
        %v3921 = vld [vmem:[%s3904 + $0x60] sm:$0xff]
        %v3922 = vld [vmem:[%s3904 + $0x68] sm:$0xf]
        %v3923 = vld [vmem:[%s3904 + $0x6c] sm:$0xff]
        %v3924 = vld [vmem:[%s3904 + $0x74] sm:$0xf]
        %v3925 = vld [vmem:[%s3904 + $0x78] sm:$0xff]
        %v3926 = vld [vmem:[%s3904 + $0x80] sm:$0xf]
        %v3927 = vld [vmem:[%s3904 + $0x84] sm:$0xff]
        %v3928 = vld [vmem:[%s3904 + $0x8c] sm:$0xf]
        %v3929 = vld [vmem:[%s3904 + $0x90] sm:$0xff]
        %v3930 = vld [vmem:[%s3904 + $0x98] sm:$0xf]
        %v3931 = vld [vmem:[%s3904 + $0x9c] sm:$0xff]
        %v3932 = vld [vmem:[%s3904 + $0xa4] sm:$0xf]
        %v3933 = vld [vmem:[%s3904 + $0xa8] sm:$0xff]
        %v3934 = vld [vmem:[%s3904 + $0xb0] sm:$0xf]
        %v3935 = vld [vmem:[%s3904 + $0xb4] sm:$0xff]
        %v3936 = vld [vmem:[%s3904 + $0xbc] sm:$0xf]
        %s3937 = scalar_lea.vmem %s7, 3
        %v3938 = vld [vmem:[%s3937] sm:$0x7]
        %v3940 = vlaneseq
        %v3941 = vshrl.u32 %v3940, 7
        %v3942 = vsub.s32 0, %v3941
        %v3943 = vrot.slane %v3938, %v3942
        %v3944 = vlaneseq
        %v3945 = vshrl.u32 %v3944, 7
        %v3946 = vsub.s32 1, %v3945
        %v3947 = vrot.slane %v3938, %v3946
        %v3948 = vlaneseq
        %v3949 = vshrl.u32 %v3948, 7
        %v3950 = vsub.s32 2, %v3949
        %v3951 = vrot.slane %v3938, %v3950
        %v3987 = vunpack.c.l.b16 %v3905
        %v3988 = vunpack.c.h.b16 %v3905
        %v3989 = vunpack.c.l.b16 %v3906
        %v3990 = vunpack.c.l.b16 %v3907
        %v3991 = vunpack.c.h.b16 %v3907
        %v3992 = vunpack.c.l.b16 %v3908
        %v3993 = vunpack.c.l.b16 %v3909
        %v3994 = vunpack.c.h.b16 %v3909
        %v3995 = vunpack.c.l.b16 %v3910
        %v3996 = vunpack.c.l.b16 %v3911
        %v3997 = vunpack.c.h.b16 %v3911
        %v3998 = vunpack.c.l.b16 %v3912
        %v3999 = vunpack.c.l.b16 %v3913
        %v4000 = vunpack.c.h.b16 %v3913
        %v4001 = vunpack.c.l.b16 %v3914
        %v4002 = vunpack.c.l.b16 %v3915
        %v4003 = vunpack.c.h.b16 %v3915
        %v4004 = vunpack.c.l.b16 %v3916
        %v4005 = vunpack.c.l.b16 %v3917
        %v4006 = vunpack.c.h.b16 %v3917
        %v4007 = vunpack.c.l.b16 %v3918
        %v4008 = vunpack.c.l.b16 %v3919
        %v4009 = vunpack.c.h.b16 %v3919
        %v4010 = vunpack.c.l.b16 %v3920
        %v4011 = vunpack.c.l.b16 %v3921
        %v4012 = vunpack.c.h.b16 %v3921
        %v4013 = vunpack.c.l.b16 %v3922
        %v4014 = vunpack.c.l.b16 %v3923
        %v4015 = vunpack.c.h.b16 %v3923
        %v4016 = vunpack.c.l.b16 %v3924
        %v4017 = vunpack.c.l.b16 %v3925
        %v4018 = vunpack.c.h.b16 %v3925
        %v4019 = vunpack.c.l.b16 %v3926
        %v4020 = vunpack.c.l.b16 %v3927
        %v4021 = vunpack.c.h.b16 %v3927
        %v4022 = vunpack.c.l.b16 %v3928
        %v4023 = vunpack.c.l.b16 %v3929
        %v4024 = vunpack.c.h.b16 %v3929
        %v4025 = vunpack.c.l.b16 %v3930
        %v4026 = vunpack.c.l.b16 %v3931
        %v4027 = vunpack.c.h.b16 %v3931
        %v4028 = vunpack.c.l.b16 %v3932
        %v4029 = vunpack.c.l.b16 %v3933
        %v4030 = vunpack.c.h.b16 %v3933
        %v4031 = vunpack.c.l.b16 %v3934
        %v4032 = vunpack.c.l.b16 %v3935
        %v4033 = vunpack.c.h.b16 %v3935
        %v4034 = vunpack.c.l.b16 %v3936
        %v4035 = vpack.c.b16 %v3990, %v3987
        %v4036 = vpack.c.b16 %v3991, %v3988
        %v4037 = vpack.c.b16 %v3992, %v3989
        %v4038 = vpack.c.b16 %v3996, %v3993
        %v4039 = vpack.c.b16 %v3997, %v3994
        %v4040 = vpack.c.b16 %v3998, %v3995
        %v4041 = vpack.c.b16 %v4002, %v3999
        %v4042 = vpack.c.b16 %v4003, %v4000
        %v4043 = vpack.c.b16 %v4004, %v4001
        %v4044 = vpack.c.b16 %v4008, %v4005
        %v4045 = vpack.c.b16 %v4009, %v4006
        %v4046 = vpack.c.b16 %v4010, %v4007
        %v4047 = vpack.c.b16 %v4014, %v4011
        %v4048 = vpack.c.b16 %v4015, %v4012
        %v4049 = vpack.c.b16 %v4016, %v4013
        %v4050 = vpack.c.b16 %v4020, %v4017
        %v4051 = vpack.c.b16 %v4021, %v4018
        %v4052 = vpack.c.b16 %v4022, %v4019
        %v4053 = vpack.c.b16 %v4026, %v4023
        %v4054 = vpack.c.b16 %v4027, %v4024
        %v4055 = vpack.c.b16 %v4028, %v4025
        %v4056 = vpack.c.b16 %v4032, %v4029
        %v4057 = vpack.c.b16 %v4033, %v4030
        %v4058 = vpack.c.b16 %v4034, %v4031
        %4083 = vmatprep.subr.bf16.mxu0 %v4036
        %4084 = vmatpush1.bf16.msra.mxu0 %v4035
        %4085 = vmatprep.subr.bf16.mxu0 %v4039
        %4086 = vmatpush1.bf16.msra.mxu0 %v4038
        %4087 = vmatprep.subr.bf16.mxu0 %v4042
        %4088 = vmatpush1.bf16.msra.mxu0 %v4041
        %4089 = vmatprep.subr.bf16.mxu0 %v4045
        %4090 = vmatpush1.bf16.msra.mxu0 %v4044
        %4091 = vmatprep.subr.bf16.mxu0 %v4048
        %4092 = vmatpush1.bf16.msra.mxu0 %v4047
        %4093 = vmatprep.subr.bf16.mxu0 %v4051
        %4094 = vmatpush1.bf16.msra.mxu0 %v4050
        %4095 = vmatprep.subr.bf16.mxu0 %v4054
        %4096 = vmatpush1.bf16.msra.mxu0 %v4053
        %4097 = vmatprep.subr.bf16.mxu0 %v4057
        %4098 = vmatpush1.bf16.msra.mxu0 %v4056
        %4099 = vmatprep.subr.bf16.mxu0 0
        %4100 = vmatpush1.bf16.msra.mxu0 0
        %4101 = vmatprep.subr.bf16.mxu0 0
        %4102 = vmatpush1.bf16.msra.mxu0 0
        %4103 = vmatprep.subr.bf16.mxu0 0
        %4104 = vmatpush1.bf16.msra.mxu0 0
        %4105 = vmatprep.subr.bf16.mxu0 0
        %4106 = vmatpush1.bf16.msra.mxu0 0
        %4107 = vmatprep.subr.bf16.mxu0 0
        %4108 = vmatpush1.bf16.msra.mxu0 0
        %4109 = vmatprep.subr.bf16.mxu0 0
        %4110 = vmatpush1.bf16.msra.mxu0 0
        %4111 = vmatprep.subr.bf16.mxu0 0
        %4112 = vmatpush1.bf16.msra.mxu0 0
        %4113 = vmatprep.subr.bf16.mxu0 0
        %4114 = vmatpush1.bf16.msra.mxu0 0
        %4115 = vmatprep.mubr.bf16.mxu0 0
        %4116 = vmatmul.mubr.bf16.gmra.mrb[0].mxu0 %v3900
        %v4117 = vpop.f32.mrb[0].mxu0
        %v4118 = vadd.f32 %v3943, %v4117
        %v4119 = vpop.f32.mrb[0].mxu0
        %v4120 = vadd.f32 %v3947, %v4119
        %v4121 = vpop.f32.mrb[0].mxu0
        %v4122 = vadd.f32 %v3943, %v4121
        %v4123 = vpop.f32.mrb[0].mxu0
        %v4124 = vadd.f32 %v3947, %v4123
        %4125 = vmatprep.mubr.bf16.mxu0 0
        %4126 = vmatmul.mubr.bf16.gmra.mrb[0].mxu0 %v3901
        %v4127 = vpop.f32.mrb[0].mxu0
        %v4128 = vadd.f32 %v3943, %v4127
        %v4129 = vpop.f32.mrb[0].mxu0
        %v4130 = vadd.f32 %v3947, %v4129
        %v4131 = vpop.f32.mrb[0].mxu0
        %v4132 = vadd.f32 %v3943, %v4131
        %v4133 = vpop.f32.mrb[0].mxu0
        %v4134 = vadd.f32 %v3947, %v4133
        %4135 = vmatprep.mubr.bf16.mxu0 0
        %4136 = vmatmul.mubr.bf16.gmra.mrb[0].mxu0 %v3902
        %v4137 = vpop.f32.mrb[0].mxu0
        %v4138 = vadd.f32 %v3943, %v4137
        %v4139 = vpop.f32.mrb[0].mxu0
        %v4140 = vadd.f32 %v3947, %v4139
        %v4141 = vpop.f32.mrb[0].mxu0
        %v4142 = vadd.f32 %v3943, %v4141
        %v4143 = vpop.f32.mrb[0].mxu0
        %v4144 = vadd.f32 %v3947, %v4143
        %4145 = vmatprep.mubr.bf16.mxu0 0
        %4146 = vmatmul.mubr.bf16.gmra.mrb[0].mxu0 %v3903
        %v4147 = vpop.f32.mrb[0].mxu0
        %v4148 = vadd.f32 %v3943, %v4147
        %v4149 = vpop.f32.mrb[0].mxu0
        %v4150 = vadd.f32 %v3947, %v4149
        %v4151 = vpop.f32.mrb[0].mxu0
        %v4152 = vadd.f32 %v3943, %v4151
        %v4153 = vpop.f32.mrb[0].mxu0
        %v4154 = vadd.f32 %v3947, %v4153
        %4155 = vdwg.mxu0
        %4156 = vmatprep.subr.bf16.mxu0 0
        %4157 = vmatpush1.bf16.msra.mxu0 %v4037
        %4158 = vmatprep.subr.bf16.mxu0 0
        %4159 = vmatpush1.bf16.msra.mxu0 %v4040
        %4160 = vmatprep.subr.bf16.mxu0 0
        %4161 = vmatpush1.bf16.msra.mxu0 %v4043
        %4162 = vmatprep.subr.bf16.mxu0 0
        %4163 = vmatpush1.bf16.msra.mxu0 %v4046
        %4164 = vmatprep.subr.bf16.mxu0 0
        %4165 = vmatpush1.bf16.msra.mxu0 %v4049
        %4166 = vmatprep.subr.bf16.mxu0 0
        %4167 = vmatpush1.bf16.msra.mxu0 %v4052
        %4168 = vmatprep.subr.bf16.mxu0 0
        %4169 = vmatpush1.bf16.msra.mxu0 %v4055
        %4170 = vmatprep.subr.bf16.mxu0 0
        %4171 = vmatpush1.bf16.msra.mxu0 %v4058
        %4172 = vmatprep.subr.bf16.mxu0 0
        %4173 = vmatpush1.bf16.msra.mxu0 0
        %4174 = vmatprep.subr.bf16.mxu0 0
        %4175 = vmatpush1.bf16.msra.mxu0 0
        %4176 = vmatprep.subr.bf16.mxu0 0
        %4177 = vmatpush1.bf16.msra.mxu0 0
        %4178 = vmatprep.subr.bf16.mxu0 0
        %4179 = vmatpush1.bf16.msra.mxu0 0
        %4180 = vmatprep.subr.bf16.mxu0 0
        %4181 = vmatpush1.bf16.msra.mxu0 0
        %4182 = vmatprep.subr.bf16.mxu0 0
        %4183 = vmatpush1.bf16.msra.mxu0 0
        %4184 = vmatprep.subr.bf16.mxu0 0
        %4185 = vmatpush1.bf16.msra.mxu0 0
        %4186 = vmatprep.subr.bf16.mxu0 0
        %4187 = vmatpush1.bf16.msra.mxu0 0
        %4188 = vmatprep.mubr.bf16.mxu0 0
        %4189 = vmatmul.mubr.bf16.gmra.mrb[0].mxu0 %v3900
        %v4190 = vpop.f32.mrb[0].mxu0
        %v4191 = vadd.f32 %v3951, %v4190
        %v4192 = vpop.f32.mrb[0].mxu0
        %v4193 = vpop.f32.mrb[0].mxu0
        %v4194 = vadd.f32 %v3951, %v4193
        %v4195 = vpop.f32.mrb[0].mxu0
        %4196 = vmatprep.mubr.bf16.mxu0 0
        %4197 = vmatmul.mubr.bf16.gmra.mrb[0].mxu0 %v3901
        %v4198 = vpop.f32.mrb[0].mxu0
        %v4199 = vadd.f32 %v3951, %v4198
        %v4200 = vpop.f32.mrb[0].mxu0
        %v4201 = vpop.f32.mrb[0].mxu0
        %v4202 = vadd.f32 %v3951, %v4201
        %v4203 = vpop.f32.mrb[0].mxu0
        %4204 = vmatprep.mubr.bf16.mxu0 0
        %4205 = vmatmul.mubr.bf16.gmra.mrb[0].mxu0 %v3902
        %v4206 = vpop.f32.mrb[0].mxu0
        %v4207 = vadd.f32 %v3951, %v4206
        %v4208 = vpop.f32.mrb[0].mxu0
        %v4209 = vpop.f32.mrb[0].mxu0
        %v4210 = vadd.f32 %v3951, %v4209
        %v4211 = vpop.f32.mrb[0].mxu0
        %4212 = vmatprep.mubr.bf16.mxu0 0
        %4213 = vmatmul.mubr.bf16.gmra.mrb[0].mxu0 %v3903
        %v4214 = vpop.f32.mrb[0].mxu0
        %v4215 = vadd.f32 %v3951, %v4214
        %v4216 = vpop.f32.mrb[0].mxu0
        %v4217 = vpop.f32.mrb[0].mxu0
        %v4218 = vadd.f32 %v3951, %v4217
        %v4219 = vpop.f32.mrb[0].mxu0
        %4220 = vdwg.mxu0
        %v4221 = vpack.c.bf16 %v4122, %v4118
        %v4222 = vpack.c.bf16 %v4132, %v4128
        %v4223 = vpack.c.bf16 %v4142, %v4138
        %v4224 = vpack.c.bf16 %v4152, %v4148
        %v4225 = vpack.c.bf16 %v4124, %v4120
        %v4226 = vpack.c.bf16 %v4134, %v4130
        %v4227 = vpack.c.bf16 %v4144, %v4140
        %v4228 = vpack.c.bf16 %v4154, %v4150
        %4229 = vmatprep.subr.bf16.mxu0 0
        %4230 = vmatpush1.bf16.xpose.msra.mxu0 %v4225
        %4231 = vmatprep.subr.bf16.mxu0 0
        %4232 = vmatpush1.bf16.xpose.msra.mxu0 %v4226
        %4233 = vmatprep.subr.bf16.mxu0 0
        %4234 = vmatpush1.bf16.xpose.msra.mxu0 %v4227
        %4235 = vmatprep.subr.bf16.mxu0 0
        %4236 = vmatpush1.bf16.xpose.msra.mxu0 %v4228
        %4237 = vmatprep.subr.bf16.mxu0 0
        %4238 = vmatpush1.bf16.xpose.msra.mxu0 0
        %4239 = vmatprep.subr.bf16.mxu0 0
        %4240 = vmatpush1.bf16.xpose.msra.mxu0 0
        %4241 = vmatprep.subr.bf16.mxu0 0
        %4242 = vmatpush1.bf16.xpose.msra.mxu0 0
        %4243 = vmatprep.subr.bf16.mxu0 0
        %4244 = vmatpush1.bf16.xpose.msra.mxu0 0
        %4245 = vmatprep.subr.bf16.mxu0 0
        %4246 = vmatpush1.bf16.xpose.msra.mxu0 0
        %4247 = vmatprep.subr.bf16.mxu0 0
        %4248 = vmatpush1.bf16.xpose.msra.mxu0 0
        %4249 = vmatprep.subr.bf16.mxu0 0
        %4250 = vmatpush1.bf16.xpose.msra.mxu0 0
        %4251 = vmatprep.subr.bf16.mxu0 0
        %4252 = vmatpush1.bf16.xpose.msra.mxu0 0
        %4253 = vmatprep.subr.bf16.mxu0 0
        %4254 = vmatpush1.bf16.xpose.msra.mxu0 0
        %4255 = vmatprep.subr.bf16.mxu0 0
        %4256 = vmatpush1.bf16.xpose.msra.mxu0 0
        %4257 = vmatprep.subr.bf16.mxu0 0
        %4258 = vmatpush1.bf16.xpose.msra.mxu0 0
        %4259 = vmatprep.subr.bf16.mxu0 0
        %4260 = vmatpush1.bf16.xpose.msra.mxu0 0
        %4261 = vmatprep.mubr.bf16.mxu0 0
        %4262 = vmatmul.mubr.bf16.gmra.mrb[0].mxu0 %v4221
        %v4263 = vpop.f32.mrb[0].mxu0
        %v4264 = vadd.f32 0.0, %v4263
        %v4265 = vpop.f32.mrb[0].mxu0
        %v4266 = vpop.f32.mrb[0].mxu0
        %v4267 = vadd.f32 0.0, %v4266
        %v4268 = vpop.f32.mrb[0].mxu0
        %4269 = vmatprep.mubr.bf16.mxu0 0
        %4270 = vmatmul.mubr.bf16.gmra.mrb[0].mxu0 %v4222
        %v4271 = vpop.f32.mrb[0].mxu0
        %v4272 = vadd.f32 0.0, %v4271
        %v4273 = vpop.f32.mrb[0].mxu0
        %v4274 = vpop.f32.mrb[0].mxu0
        %v4275 = vadd.f32 0.0, %v4274
        %v4276 = vpop.f32.mrb[0].mxu0
        %4277 = vmatprep.mubr.bf16.mxu0 0
        %4278 = vmatmul.mubr.bf16.gmra.mrb[0].mxu0 %v4223
        %v4279 = vpop.f32.mrb[0].mxu0
        %v4280 = vadd.f32 0.0, %v4279
        %v4281 = vpop.f32.mrb[0].mxu0
        %v4282 = vpop.f32.mrb[0].mxu0
        %v4283 = vadd.f32 0.0, %v4282
        %v4284 = vpop.f32.mrb[0].mxu0
        %4285 = vmatprep.mubr.bf16.mxu0 0
        %4286 = vmatmul.mubr.bf16.gmra.mrb[0].mxu0 %v4224
        %v4287 = vpop.f32.mrb[0].mxu0
        %v4288 = vadd.f32 0.0, %v4287
        %v4289 = vpop.f32.mrb[0].mxu0
        %v4290 = vpop.f32.mrb[0].mxu0
        %v4291 = vadd.f32 0.0, %v4290
        %v4292 = vpop.f32.mrb[0].mxu0
        %4293 = vdwg.mxu0
        %v4294 = vmul.f32 %v4264, 0.088388346
        %v4295 = vmul.f32 %v4267, 0.088388346
        %v4296 = vmul.f32 %v4272, 0.088388346
        %v4297 = vmul.f32 %v4275, 0.088388346
        %v4298 = vmul.f32 %v4280, 0.088388346
        %v4299 = vmul.f32 %v4283, 0.088388346
        %v4300 = vmul.f32 %v4288, 0.088388346
        %v4301 = vmul.f32 %v4291, 0.088388346
        %v4302 = vsel %vm3266, %v4294, -inf
        %4303 = vmax.xlane.f32.xlu0 %v4302
        %v4304 = vpop.xlane.xlu0 %4303
        %v4305 = vsel %vm3266, %v4295, -inf
        %4306 = vmax.xlane.f32.xlu0 %v4305
        %v4307 = vpop.xlane.xlu0 %4306
        %v4308 = vsel %vm3266, %v4296, -inf
        %4309 = vmax.xlane.f32.xlu0 %v4308
        %v4310 = vpop.xlane.xlu0 %4309
        %v4311 = vsel %vm3266, %v4297, -inf
        %4312 = vmax.xlane.f32.xlu0 %v4311
        %v4313 = vpop.xlane.xlu0 %4312
        %v4314 = vsel %vm3266, %v4298, -inf
        %4315 = vmax.xlane.f32.xlu0 %v4314
        %v4316 = vpop.xlane.xlu0 %4315
        %v4317 = vsel %vm3266, %v4299, -inf
        %4318 = vmax.xlane.f32.xlu0 %v4317
        %v4319 = vpop.xlane.xlu0 %4318
        %v4320 = vsel %vm3266, %v4300, -inf
        %4321 = vmax.xlane.f32.xlu0 %v4320
        %v4322 = vpop.xlane.xlu0 %4321
        %v4323 = vsel %vm3266, %v4301, -inf
        %4324 = vmax.xlane.f32.xlu0 %v4323
        %v4325 = vpop.xlane.xlu0 %4324
        %v4326 = vsub.f32 %v4294, %v4304
        %v4327 = vsub.f32 %v4295, %v4307
        %v4328 = vsub.f32 %v4296, %v4310
        %v4329 = vsub.f32 %v4297, %v4313
        %v4330 = vsub.f32 %v4298, %v4316
        %v4331 = vsub.f32 %v4299, %v4319
        %v4332 = vsub.f32 %v4300, %v4322
        %v4333 = vsub.f32 %v4301, %v4325
        %v4334 = vmul.f32 %v4326, 1.442695
        %v4335 = vpow.pop %v4334
        %v4336 = vmul.f32 %v4327, 1.442695
        %v4337 = vpow.pop %v4336
        %v4338 = vmul.f32 %v4328, 1.442695
        %v4339 = vpow.pop %v4338
        %v4340 = vmul.f32 %v4329, 1.442695
        %v4341 = vpow.pop %v4340
        %v4342 = vmul.f32 %v4330, 1.442695
        %v4343 = vpow.pop %v4342
        %v4344 = vmul.f32 %v4331, 1.442695
        %v4345 = vpow.pop %v4344
        %v4346 = vmul.f32 %v4332, 1.442695
        %v4347 = vpow.pop %v4346
        %v4348 = vmul.f32 %v4333, 1.442695
        %v4349 = vpow.pop %v4348
        %v4350 = vsel %vm3266, %v4335, 0.0
        %4351 = vadd.xlane.f32.xlu0 %v4350
        %v4352 = vpop.xlane.xlu0 %4351
        %v4353 = vsel %vm3266, %v4337, 0.0
        %4354 = vadd.xlane.f32.xlu0 %v4353
        %v4355 = vpop.xlane.xlu0 %4354
        %v4356 = vsel %vm3266, %v4339, 0.0
        %4357 = vadd.xlane.f32.xlu0 %v4356
        %v4358 = vpop.xlane.xlu0 %4357
        %v4359 = vsel %vm3266, %v4341, 0.0
        %4360 = vadd.xlane.f32.xlu0 %v4359
        %v4361 = vpop.xlane.xlu0 %4360
        %v4362 = vsel %vm3266, %v4343, 0.0
        %4363 = vadd.xlane.f32.xlu0 %v4362
        %v4364 = vpop.xlane.xlu0 %4363
        %v4365 = vsel %vm3266, %v4345, 0.0
        %4366 = vadd.xlane.f32.xlu0 %v4365
        %v4367 = vpop.xlane.xlu0 %4366
        %v4368 = vsel %vm3266, %v4347, 0.0
        %4369 = vadd.xlane.f32.xlu0 %v4368
        %v4370 = vpop.xlane.xlu0 %4369
        %v4371 = vsel %vm3266, %v4349, 0.0
        %4372 = vadd.xlane.f32.xlu0 %v4371
        %v4373 = vpop.xlane.xlu0 %4372
        %v4374 = vrcp.pop %v4352
        %v4375 = vrcp.pop %v4355
        %v4376 = vrcp.pop %v4358
        %v4377 = vrcp.pop %v4361
        %v4378 = vrcp.pop %v4364
        %v4379 = vrcp.pop %v4367
        %v4380 = vrcp.pop %v4370
        %v4381 = vrcp.pop %v4373
        %v4382 = vmul.f32 %v4335, %v4374
        %v4383 = vmul.f32 %v4337, %v4375
        %v4384 = vmul.f32 %v4339, %v4376
        %v4385 = vmul.f32 %v4341, %v4377
        %v4386 = vmul.f32 %v4343, %v4378
        %v4387 = vmul.f32 %v4345, %v4379
        %v4388 = vmul.f32 %v4347, %v4380
        %v4389 = vmul.f32 %v4349, %v4381
        %v4390 = vpack.c.bf16 %v4383, %v4382
        %v4391 = vpack.c.bf16 %v4385, %v4384
        %v4392 = vpack.c.bf16 %v4387, %v4386
        %v4393 = vpack.c.bf16 %v4389, %v4388
        %v4394 = vpack.c.bf16 %v4194, %v4191
        %v4395 = vpack.c.bf16 %v4202, %v4199
        %v4396 = vpack.c.bf16 %v4210, %v4207
        %v4397 = vpack.c.bf16 %v4218, %v4215
        %v4399 = vsel %vm3266, %v4390, 0
        %v4402 = vsel %vm3266, %v4391, 0
        %v4405 = vsel %vm3266, %v4392, 0
        %v4408 = vsel %vm3266, %v4393, 0
        %4410 = vmatprep.subr.bf16.mxu0 0
        %4411 = vmatpush1.bf16.msra.mxu0 %v4394
        %4412 = vmatprep.subr.bf16.mxu0 0
        %4413 = vmatpush1.bf16.msra.mxu0 %v4395
        %4414 = vmatprep.subr.bf16.mxu0 0
        %4415 = vmatpush1.bf16.msra.mxu0 %v4396
        %4416 = vmatprep.subr.bf16.mxu0 0
        %4417 = vmatpush1.bf16.msra.mxu0 %v4397
        %4418 = vmatprep.subr.bf16.mxu0 0
        %4419 = vmatpush1.bf16.msra.mxu0 0
        %4420 = vmatprep.subr.bf16.mxu0 0
        %4421 = vmatpush1.bf16.msra.mxu0 0
        %4422 = vmatprep.subr.bf16.mxu0 0
        %4423 = vmatpush1.bf16.msra.mxu0 0
        %4424 = vmatprep.subr.bf16.mxu0 0
        %4425 = vmatpush1.bf16.msra.mxu0 0
        %4426 = vmatprep.subr.bf16.mxu0 0
        %4427 = vmatpush1.bf16.msra.mxu0 0
        %4428 = vmatprep.subr.bf16.mxu0 0
        %4429 = vmatpush1.bf16.msra.mxu0 0
        %4430 = vmatprep.subr.bf16.mxu0 0
        %4431 = vmatpush1.bf16.msra.mxu0 0
        %4432 = vmatprep.subr.bf16.mxu0 0
        %4433 = vmatpush1.bf16.msra.mxu0 0
        %4434 = vmatprep.subr.bf16.mxu0 0
        %4435 = vmatpush1.bf16.msra.mxu0 0
        %4436 = vmatprep.subr.bf16.mxu0 0
        %4437 = vmatpush1.bf16.msra.mxu0 0
        %4438 = vmatprep.subr.bf16.mxu0 0
        %4439 = vmatpush1.bf16.msra.mxu0 0
        %4440 = vmatprep.subr.bf16.mxu0 0
        %4441 = vmatpush1.bf16.msra.mxu0 0
        %4442 = vmatprep.mubr.bf16.mxu0 0
        %4443 = vmatmul.mubr.bf16.gmra.mrb[0].mxu0 %v4399
        %v4444 = vpop.f32.mrb[0].mxu0
        %v4445 = vadd.f32 0.0, %v4444
        %v4446 = vpop.f32.mrb[0].mxu0
        %v4447 = vpop.f32.mrb[0].mxu0
        %v4448 = vadd.f32 0.0, %v4447
        %v4449 = vpop.f32.mrb[0].mxu0
        %4450 = vmatprep.mubr.bf16.mxu0 0
        %4451 = vmatmul.mubr.bf16.gmra.mrb[0].mxu0 %v4402
        %v4452 = vpop.f32.mrb[0].mxu0
        %v4453 = vadd.f32 0.0, %v4452
        %v4454 = vpop.f32.mrb[0].mxu0
        %v4455 = vpop.f32.mrb[0].mxu0
        %v4456 = vadd.f32 0.0, %v4455
        %v4457 = vpop.f32.mrb[0].mxu0
        %4458 = vmatprep.mubr.bf16.mxu0 0
        %4459 = vmatmul.mubr.bf16.gmra.mrb[0].mxu0 %v4405
        %v4460 = vpop.f32.mrb[0].mxu0
        %v4461 = vadd.f32 0.0, %v4460
        %v4462 = vpop.f32.mrb[0].mxu0
        %v4463 = vpop.f32.mrb[0].mxu0
        %v4464 = vadd.f32 0.0, %v4463
        %v4465 = vpop.f32.mrb[0].mxu0
        %4466 = vmatprep.mubr.bf16.mxu0 0
        %4467 = vmatmul.mubr.bf16.gmra.mrb[0].mxu0 %v4408
        %v4468 = vpop.f32.mrb[0].mxu0
        %v4469 = vadd.f32 0.0, %v4468
        %v4470 = vpop.f32.mrb[0].mxu0
        %v4471 = vpop.f32.mrb[0].mxu0
        %v4472 = vadd.f32 0.0, %v4471
        %v4473 = vpop.f32.mrb[0].mxu0
        %4474 = vdwg.mxu0
        %v4475 = vpack.c.bf16 %v4448, %v4445
        %v4476 = vpack.c.bf16 %v4456, %v4453
        %v4477 = vpack.c.bf16 %v4464, %v4461
        %v4478 = vpack.c.bf16 %v4472, %v4469
        %s4479 = scalar_lea.vmem %s8, 64
        %v4480 = vld [vmem:[%s4479] sm:$0xf]
        %v4481 = vld [vmem:[%s4479 + $0x4] sm:$0xf]
        %v4482 = vld [vmem:[%s4479 + $0x8] sm:$0xf]
        %v4483 = vld [vmem:[%s4479 + $0xc] sm:$0xf]
        %v4484 = vld [vmem:[%s4479 + $0x10] sm:$0xf]
        %v4485 = vld [vmem:[%s4479 + $0x14] sm:$0xf]
        %v4486 = vld [vmem:[%s4479 + $0x18] sm:$0xf]
        %v4487 = vld [vmem:[%s4479 + $0x1c] sm:$0xf]
        %v4488 = vld [vmem:[%s4479 + $0x20] sm:$0xf]
        %v4489 = vld [vmem:[%s4479 + $0x24] sm:$0xf]
        %v4490 = vld [vmem:[%s4479 + $0x28] sm:$0xf]
        %v4491 = vld [vmem:[%s4479 + $0x2c] sm:$0xf]
        %v4492 = vld [vmem:[%s4479 + $0x30] sm:$0xf]
        %v4493 = vld [vmem:[%s4479 + $0x34] sm:$0xf]
        %v4494 = vld [vmem:[%s4479 + $0x38] sm:$0xf]
        %v4495 = vld [vmem:[%s4479 + $0x3c] sm:$0xf]
        %s4496 = scalar_lea.vmem %s9, 1
        %v4497 = vld [vmem:[%s4496] sm:$0x1]
        %v4499 = vlaneseq
        %v4500 = vshrl.u32 %v4499, 7
        %v4501 = vsub.s32 0, %v4500
        %v4502 = vrot.slane %v4497, %v4501
        %v4520 = vunpack.c.l.b16 %v4480
        %v4521 = vunpack.c.l.b16 %v4481
        %v4522 = vunpack.c.l.b16 %v4482
        %v4523 = vunpack.c.l.b16 %v4483
        %v4524 = vunpack.c.l.b16 %v4484
        %v4525 = vunpack.c.l.b16 %v4485
        %v4526 = vunpack.c.l.b16 %v4486
        %v4527 = vunpack.c.l.b16 %v4487
        %v4528 = vunpack.c.l.b16 %v4488
        %v4529 = vunpack.c.l.b16 %v4489
        %v4530 = vunpack.c.l.b16 %v4490
        %v4531 = vunpack.c.l.b16 %v4491
        %v4532 = vunpack.c.l.b16 %v4492
        %v4533 = vunpack.c.l.b16 %v4493
        %v4534 = vunpack.c.l.b16 %v4494
        %v4535 = vunpack.c.l.b16 %v4495
        %v4536 = vpack.c.b16 %v4521, %v4520
        %v4537 = vpack.c.b16 %v4523, %v4522
        %v4538 = vpack.c.b16 %v4525, %v4524
        %v4539 = vpack.c.b16 %v4527, %v4526
        %v4540 = vpack.c.b16 %v4529, %v4528
        %v4541 = vpack.c.b16 %v4531, %v4530
        %v4542 = vpack.c.b16 %v4533, %v4532
        %v4543 = vpack.c.b16 %v4535, %v4534
        %4552 = vmatprep.subr.bf16.mxu0 0
        %4553 = vmatpush1.bf16.msra.mxu0 %v4536
        %4554 = vmatprep.subr.bf16.mxu0 0
        %4555 = vmatpush1.bf16.msra.mxu0 %v4537
        %4556 = vmatprep.subr.bf16.mxu0 0
        %4557 = vmatpush1.bf16.msra.mxu0 %v4538
        %4558 = vmatprep.subr.bf16.mxu0 0
        %4559 = vmatpush1.bf16.msra.mxu0 %v4539
        %4560 = vmatprep.subr.bf16.mxu0 0
        %4561 = vmatpush1.bf16.msra.mxu0 %v4540
        %4562 = vmatprep.subr.bf16.mxu0 0
        %4563 = vmatpush1.bf16.msra.mxu0 %v4541
        %4564 = vmatprep.subr.bf16.mxu0 0
        %4565 = vmatpush1.bf16.msra.mxu0 %v4542
        %4566 = vmatprep.subr.bf16.mxu0 0
        %4567 = vmatpush1.bf16.msra.mxu0 %v4543
        %4568 = vmatprep.subr.bf16.mxu0 0
        %4569 = vmatpush1.bf16.msra.mxu0 0
        %4570 = vmatprep.subr.bf16.mxu0 0
        %4571 = vmatpush1.bf16.msra.mxu0 0
        %4572 = vmatprep.subr.bf16.mxu0 0
        %4573 = vmatpush1.bf16.msra.mxu0 0
        %4574 = vmatprep.subr.bf16.mxu0 0
        %4575 = vmatpush1.bf16.msra.mxu0 0
        %4576 = vmatprep.subr.bf16.mxu0 0
        %4577 = vmatpush1.bf16.msra.mxu0 0
        %4578 = vmatprep.subr.bf16.mxu0 0
        %4579 = vmatpush1.bf16.msra.mxu0 0
        %4580 = vmatprep.subr.bf16.mxu0 0
        %4581 = vmatpush1.bf16.msra.mxu0 0
        %4582 = vmatprep.subr.bf16.mxu0 0
        %4583 = vmatpush1.bf16.msra.mxu0 0
        %4584 = vmatprep.mubr.bf16.mxu0 0
        %4585 = vmatmul.mubr.bf16.gmra.mrb[0].mxu0 %v4475
        %v4586 = vpop.f32.mrb[0].mxu0
        %v4587 = vadd.f32 %v4502, %v4586
        %v4588 = vpop.f32.mrb[0].mxu0
        %v4589 = vpop.f32.mrb[0].mxu0
        %v4590 = vadd.f32 %v4502, %v4589
        %v4591 = vpop.f32.mrb[0].mxu0
        %4592 = vmatprep.mubr.bf16.mxu0 0
        %4593 = vmatmul.mubr.bf16.gmra.mrb[0].mxu0 %v4476
        %v4594 = vpop.f32.mrb[0].mxu0
        %v4595 = vadd.f32 %v4502, %v4594
        %v4596 = vpop.f32.mrb[0].mxu0
        %v4597 = vpop.f32.mrb[0].mxu0
        %v4598 = vadd.f32 %v4502, %v4597
        %v4599 = vpop.f32.mrb[0].mxu0
        %4600 = vmatprep.mubr.bf16.mxu0 0
        %4601 = vmatmul.mubr.bf16.gmra.mrb[0].mxu0 %v4477
        %v4602 = vpop.f32.mrb[0].mxu0
        %v4603 = vadd.f32 %v4502, %v4602
        %v4604 = vpop.f32.mrb[0].mxu0
        %v4605 = vpop.f32.mrb[0].mxu0
        %v4606 = vadd.f32 %v4502, %v4605
        %v4607 = vpop.f32.mrb[0].mxu0
        %4608 = vmatprep.mubr.bf16.mxu0 0
        %4609 = vmatmul.mubr.bf16.gmra.mrb[0].mxu0 %v4478
        %v4610 = vpop.f32.mrb[0].mxu0
        %v4611 = vadd.f32 %v4502, %v4610
        %v4612 = vpop.f32.mrb[0].mxu0
        %v4613 = vpop.f32.mrb[0].mxu0
        %v4614 = vadd.f32 %v4502, %v4613
        %v4615 = vpop.f32.mrb[0].mxu0
        %4616 = vdwg.mxu0
        %v4617 = vadd.f32 %v3892, %v4587
        %v4618 = vadd.f32 %v3893, %v4590
        %v4619 = vadd.f32 %v3894, %v4595
        %v4620 = vadd.f32 %v3895, %v4598
        %v4621 = vadd.f32 %v3896, %v4603
        %v4622 = vadd.f32 %v3897, %v4606
        %v4623 = vadd.f32 %v3898, %v4611
        %v4624 = vadd.f32 %v3899, %v4614
        %v4625 = vpack.c.bf16 %v4618, %v4617
        %v4626 = vpack.c.bf16 %v4620, %v4619
        %v4627 = vpack.c.bf16 %v4622, %v4621
        %v4628 = vpack.c.bf16 %v4624, %v4623
        %s4629 = scalar_lea.vmem %s10, 64
        %v4630 = vld [vmem:[%s4629] sm:$0xf]
        %v4631 = vld [vmem:[%s4629 + $0x4] sm:$0xf]
        %v4632 = vld [vmem:[%s4629 + $0x8] sm:$0xf]
        %v4633 = vld [vmem:[%s4629 + $0xc] sm:$0xf]
        %v4634 = vld [vmem:[%s4629 + $0x10] sm:$0xf]
        %v4635 = vld [vmem:[%s4629 + $0x14] sm:$0xf]
        %v4636 = vld [vmem:[%s4629 + $0x18] sm:$0xf]
        %v4637 = vld [vmem:[%s4629 + $0x1c] sm:$0xf]
        %v4638 = vld [vmem:[%s4629 + $0x20] sm:$0xf]
        %v4639 = vld [vmem:[%s4629 + $0x24] sm:$0xf]
        %v4640 = vld [vmem:[%s4629 + $0x28] sm:$0xf]
        %v4641 = vld [vmem:[%s4629 + $0x2c] sm:$0xf]
        %v4642 = vld [vmem:[%s4629 + $0x30] sm:$0xf]
        %v4643 = vld [vmem:[%s4629 + $0x34] sm:$0xf]
        %v4644 = vld [vmem:[%s4629 + $0x38] sm:$0xf]
        %v4645 = vld [vmem:[%s4629 + $0x3c] sm:$0xf]
        %s4646 = scalar_lea.vmem %s11, 1
        %v4647 = vld [vmem:[%s4646] sm:$0x1]
        %v4649 = vlaneseq
        %v4650 = vshrl.u32 %v4649, 7
        %v4651 = vsub.s32 0, %v4650
        %v4652 = vrot.slane %v4647, %v4651
        %v4670 = vunpack.c.l.b16 %v4630
        %v4671 = vunpack.c.l.b16 %v4631
        %v4672 = vunpack.c.l.b16 %v4632
        %v4673 = vunpack.c.l.b16 %v4633
        %v4674 = vunpack.c.l.b16 %v4634
        %v4675 = vunpack.c.l.b16 %v4635
        %v4676 = vunpack.c.l.b16 %v4636
        %v4677 = vunpack.c.l.b16 %v4637
        %v4678 = vunpack.c.l.b16 %v4638
        %v4679 = vunpack.c.l.b16 %v4639
        %v4680 = vunpack.c.l.b16 %v4640
        %v4681 = vunpack.c.l.b16 %v4641
        %v4682 = vunpack.c.l.b16 %v4642
        %v4683 = vunpack.c.l.b16 %v4643
        %v4684 = vunpack.c.l.b16 %v4644
        %v4685 = vunpack.c.l.b16 %v4645
        %v4686 = vpack.c.b16 %v4671, %v4670
        %v4687 = vpack.c.b16 %v4673, %v4672
        %v4688 = vpack.c.b16 %v4675, %v4674
        %v4689 = vpack.c.b16 %v4677, %v4676
        %v4690 = vpack.c.b16 %v4679, %v4678
        %v4691 = vpack.c.b16 %v4681, %v4680
        %v4692 = vpack.c.b16 %v4683, %v4682
        %v4693 = vpack.c.b16 %v4685, %v4684
        %4702 = vmatprep.subr.bf16.mxu0 0
        %4703 = vmatpush1.bf16.msra.mxu0 %v4686
        %4704 = vmatprep.subr.bf16.mxu0 0
        %4705 = vmatpush1.bf16.msra.mxu0 %v4687
        %4706 = vmatprep.subr.bf16.mxu0 0
        %4707 = vmatpush1.bf16.msra.mxu0 %v4688
        %4708 = vmatprep.subr.bf16.mxu0 0
        %4709 = vmatpush1.bf16.msra.mxu0 %v4689
        %4710 = vmatprep.subr.bf16.mxu0 0
        %4711 = vmatpush1.bf16.msra.mxu0 %v4690
        %4712 = vmatprep.subr.bf16.mxu0 0
        %4713 = vmatpush1.bf16.msra.mxu0 %v4691
        %4714 = vmatprep.subr.bf16.mxu0 0
        %4715 = vmatpush1.bf16.msra.mxu0 %v4692
        %4716 = vmatprep.subr.bf16.mxu0 0
        %4717 = vmatpush1.bf16.msra.mxu0 %v4693
        %4718 = vmatprep.subr.bf16.mxu0 0
        %4719 = vmatpush1.bf16.msra.mxu0 0
        %4720 = vmatprep.subr.bf16.mxu0 0
        %4721 = vmatpush1.bf16.msra.mxu0 0
        %4722 = vmatprep.subr.bf16.mxu0 0
        %4723 = vmatpush1.bf16.msra.mxu0 0
        %4724 = vmatprep.subr.bf16.mxu0 0
        %4725 = vmatpush1.bf16.msra.mxu0 0
        %4726 = vmatprep.subr.bf16.mxu0 0
        %4727 = vmatpush1.bf16.msra.mxu0 0
        %4728 = vmatprep.subr.bf16.mxu0 0
        %4729 = vmatpush1.bf16.msra.mxu0 0
        %4730 = vmatprep.subr.bf16.mxu0 0
        %4731 = vmatpush1.bf16.msra.mxu0 0
        %4732 = vmatprep.subr.bf16.mxu0 0
        %4733 = vmatpush1.bf16.msra.mxu0 0
        %4734 = vmatprep.mubr.bf16.mxu0 0
        %4735 = vmatmul.mubr.bf16.gmra.mrb[0].mxu0 %v4625
        %v4736 = vpop.f32.mrb[0].mxu0
        %v4737 = vadd.f32 %v4652, %v4736
        %v4738 = vpop.f32.mrb[0].mxu0
        %v4739 = vpop.f32.mrb[0].mxu0
        %v4740 = vadd.f32 %v4652, %v4739
        %v4741 = vpop.f32.mrb[0].mxu0
        %4742 = vmatprep.mubr.bf16.mxu0 0
        %4743 = vmatmul.mubr.bf16.gmra.mrb[0].mxu0 %v4626
        %v4744 = vpop.f32.mrb[0].mxu0
        %v4745 = vadd.f32 %v4652, %v4744
        %v4746 = vpop.f32.mrb[0].mxu0
        %v4747 = vpop.f32.mrb[0].mxu0
        %v4748 = vadd.f32 %v4652, %v4747
        %v4749 = vpop.f32.mrb[0].mxu0
        %4750 = vmatprep.mubr.bf16.mxu0 0
        %4751 = vmatmul.mubr.bf16.gmra.mrb[0].mxu0 %v4627
        %v4752 = vpop.f32.mrb[0].mxu0
        %v4753 = vadd.f32 %v4652, %v4752
        %v4754 = vpop.f32.mrb[0].mxu0
        %v4755 = vpop.f32.mrb[0].mxu0
        %v4756 = vadd.f32 %v4652, %v4755
        %v4757 = vpop.f32.mrb[0].mxu0
        %4758 = vmatprep.mubr.bf16.mxu0 0
        %4759 = vmatmul.mubr.bf16.gmra.mrb[0].mxu0 %v4628
        %v4760 = vpop.f32.mrb[0].mxu0
        %v4761 = vadd.f32 %v4652, %v4760
        %v4762 = vpop.f32.mrb[0].mxu0
        %v4763 = vpop.f32.mrb[0].mxu0
        %v4764 = vadd.f32 %v4652, %v4763
        %v4765 = vpop.f32.mrb[0].mxu0
        %4766 = vdwg.mxu0
        %vm4767 = vcmp.gt.f32.partialorder %v4737, 0.0
        %vm4768 = vcmp.gt.f32.partialorder %v4740, 0.0
        %vm4769 = vcmp.gt.f32.partialorder %v4745, 0.0
        %vm4770 = vcmp.gt.f32.partialorder %v4748, 0.0
        %vm4771 = vcmp.gt.f32.partialorder %v4753, 0.0
        %vm4772 = vcmp.gt.f32.partialorder %v4756, 0.0
        %vm4773 = vcmp.gt.f32.partialorder %v4761, 0.0
        %vm4774 = vcmp.gt.f32.partialorder %v4764, 0.0
        %v4775 = vmul.f32 %v4737, 0.2
        %v4776 = vmul.f32 %v4740, 0.2
        %v4777 = vmul.f32 %v4745, 0.2
        %v4778 = vmul.f32 %v4748, 0.2
        %v4779 = vmul.f32 %v4753, 0.2
        %v4780 = vmul.f32 %v4756, 0.2
        %v4781 = vmul.f32 %v4761, 0.2
        %v4782 = vmul.f32 %v4764, 0.2
        %v4783 = vsel %vm4767, %v4737, %v4775
        %v4784 = vsel %vm4768, %v4740, %v4776
        %v4785 = vsel %vm4769, %v4745, %v4777
        %v4786 = vsel %vm4770, %v4748, %v4778
        %v4787 = vsel %vm4771, %v4753, %v4779
        %v4788 = vsel %vm4772, %v4756, %v4780
        %v4789 = vsel %vm4773, %v4761, %v4781
        %v4790 = vsel %vm4774, %v4764, %v4782
        %v4791 = vpack.c.bf16 %v4784, %v4783
        %v4792 = vpack.c.bf16 %v4786, %v4785
        %v4793 = vpack.c.bf16 %v4788, %v4787
        %v4794 = vpack.c.bf16 %v4790, %v4789
        %s4795 = scalar_lea.vmem [#allocation5], 64
        %v4796 = vld [vmem:[%s4795] sm:$0xf]
        %v4797 = vld [vmem:[%s4795 + $0x4] sm:$0xf]
        %v4798 = vld [vmem:[%s4795 + $0x8] sm:$0xf]
        %v4799 = vld [vmem:[%s4795 + $0xc] sm:$0xf]
        %v4800 = vld [vmem:[%s4795 + $0x10] sm:$0xf]
        %v4801 = vld [vmem:[%s4795 + $0x14] sm:$0xf]
        %v4802 = vld [vmem:[%s4795 + $0x18] sm:$0xf]
        %v4803 = vld [vmem:[%s4795 + $0x1c] sm:$0xf]
        %v4804 = vld [vmem:[%s4795 + $0x20] sm:$0xf]
        %v4805 = vld [vmem:[%s4795 + $0x24] sm:$0xf]
        %v4806 = vld [vmem:[%s4795 + $0x28] sm:$0xf]
        %v4807 = vld [vmem:[%s4795 + $0x2c] sm:$0xf]
        %v4808 = vld [vmem:[%s4795 + $0x30] sm:$0xf]
        %v4809 = vld [vmem:[%s4795 + $0x34] sm:$0xf]
        %v4810 = vld [vmem:[%s4795 + $0x38] sm:$0xf]
        %v4811 = vld [vmem:[%s4795 + $0x3c] sm:$0xf]
        %s4812 = scalar_lea.vmem %s13, 1
        %v4813 = vld [vmem:[%s4812] sm:$0x1]
        %v4815 = vlaneseq
        %v4816 = vshrl.u32 %v4815, 7
        %v4817 = vsub.s32 0, %v4816
        %v4818 = vrot.slane %v4813, %v4817
        %v4836 = vunpack.c.l.b16 %v4796
        %v4837 = vunpack.c.l.b16 %v4797
        %v4838 = vunpack.c.l.b16 %v4798
        %v4839 = vunpack.c.l.b16 %v4799
        %v4840 = vunpack.c.l.b16 %v4800
        %v4841 = vunpack.c.l.b16 %v4801
        %v4842 = vunpack.c.l.b16 %v4802
        %v4843 = vunpack.c.l.b16 %v4803
        %v4844 = vunpack.c.l.b16 %v4804
        %v4845 = vunpack.c.l.b16 %v4805
        %v4846 = vunpack.c.l.b16 %v4806
        %v4847 = vunpack.c.l.b16 %v4807
        %v4848 = vunpack.c.l.b16 %v4808
        %v4849 = vunpack.c.l.b16 %v4809
        %v4850 = vunpack.c.l.b16 %v4810
        %v4851 = vunpack.c.l.b16 %v4811
        %v4852 = vpack.c.b16 %v4837, %v4836
        %v4853 = vpack.c.b16 %v4839, %v4838
        %v4854 = vpack.c.b16 %v4841, %v4840
        %v4855 = vpack.c.b16 %v4843, %v4842
        %v4856 = vpack.c.b16 %v4845, %v4844
        %v4857 = vpack.c.b16 %v4847, %v4846
        %v4858 = vpack.c.b16 %v4849, %v4848
        %v4859 = vpack.c.b16 %v4851, %v4850
        %4868 = vmatprep.subr.bf16.mxu0 0
        %4869 = vmatpush1.bf16.msra.mxu0 %v4852
        %4870 = vmatprep.subr.bf16.mxu0 0
        %4871 = vmatpush1.bf16.msra.mxu0 %v4853
        %4872 = vmatprep.subr.bf16.mxu0 0
        %4873 = vmatpush1.bf16.msra.mxu0 %v4854
        %4874 = vmatprep.subr.bf16.mxu0 0
        %4875 = vmatpush1.bf16.msra.mxu0 %v4855
        %4876 = vmatprep.subr.bf16.mxu0 0
        %4877 = vmatpush1.bf16.msra.mxu0 %v4856
        %4878 = vmatprep.subr.bf16.mxu0 0
        %4879 = vmatpush1.bf16.msra.mxu0 %v4857
        %4880 = vmatprep.subr.bf16.mxu0 0
        %4881 = vmatpush1.bf16.msra.mxu0 %v4858
        %4882 = vmatprep.subr.bf16.mxu0 0
        %4883 = vmatpush1.bf16.msra.mxu0 %v4859
        %4884 = vmatprep.subr.bf16.mxu0 0
        %4885 = vmatpush1.bf16.msra.mxu0 0
        %4886 = vmatprep.subr.bf16.mxu0 0
        %4887 = vmatpush1.bf16.msra.mxu0 0
        %4888 = vmatprep.subr.bf16.mxu0 0
        %4889 = vmatpush1.bf16.msra.mxu0 0
        %4890 = vmatprep.subr.bf16.mxu0 0
        %4891 = vmatpush1.bf16.msra.mxu0 0
        %4892 = vmatprep.subr.bf16.mxu0 0
        %4893 = vmatpush1.bf16.msra.mxu0 0
        %4894 = vmatprep.subr.bf16.mxu0 0
        %4895 = vmatpush1.bf16.msra.mxu0 0
        %4896 = vmatprep.subr.bf16.mxu0 0
        %4897 = vmatpush1.bf16.msra.mxu0 0
        %4898 = vmatprep.subr.bf16.mxu0 0
        %4899 = vmatpush1.bf16.msra.mxu0 0
        %4900 = vmatprep.mubr.bf16.mxu0 0
        %4901 = vmatmul.mubr.bf16.gmra.mrb[0].mxu0 %v4791
        %v4902 = vpop.f32.mrb[0].mxu0
        %v4903 = vadd.f32 %v4818, %v4902
        %v4904 = vpop.f32.mrb[0].mxu0
        %v4905 = vpop.f32.mrb[0].mxu0
        %v4906 = vadd.f32 %v4818, %v4905
        %v4907 = vpop.f32.mrb[0].mxu0
        %4908 = vmatprep.mubr.bf16.mxu0 0
        %4909 = vmatmul.mubr.bf16.gmra.mrb[0].mxu0 %v4792
        %v4910 = vpop.f32.mrb[0].mxu0
        %v4911 = vadd.f32 %v4818, %v4910
        %v4912 = vpop.f32.mrb[0].mxu0
        %v4913 = vpop.f32.mrb[0].mxu0
        %v4914 = vadd.f32 %v4818, %v4913
        %v4915 = vpop.f32.mrb[0].mxu0
        %4916 = vmatprep.mubr.bf16.mxu0 0
        %4917 = vmatmul.mubr.bf16.gmra.mrb[0].mxu0 %v4793
        %v4918 = vpop.f32.mrb[0].mxu0
        %v4919 = vadd.f32 %v4818, %v4918
        %v4920 = vpop.f32.mrb[0].mxu0
        %v4921 = vpop.f32.mrb[0].mxu0
        %v4922 = vadd.f32 %v4818, %v4921
        %v4923 = vpop.f32.mrb[0].mxu0
        %4924 = vmatprep.mubr.bf16.mxu0 0
        %4925 = vmatmul.mubr.bf16.gmra.mrb[0].mxu0 %v4794
        %v4926 = vpop.f32.mrb[0].mxu0
        %v4927 = vadd.f32 %v4818, %v4926
        %v4928 = vpop.f32.mrb[0].mxu0
        %v4929 = vpop.f32.mrb[0].mxu0
        %v4930 = vadd.f32 %v4818, %v4929
        %v4931 = vpop.f32.mrb[0].mxu0
        %4932 = vdwg.mxu0
        %v4933 = vadd.f32 %v4617, %v4903
        %v4934 = vadd.f32 %v4618, %v4906
        %v4935 = vadd.f32 %v4619, %v4911
        %v4936 = vadd.f32 %v4620, %v4914
        %v4937 = vadd.f32 %v4621, %v4919
        %v4938 = vadd.f32 %v4622, %v4922
        %v4939 = vadd.f32 %v4623, %v4927
        %v4940 = vadd.f32 %v4624, %v4930
        %v4941 = vpack.c.bf16 %v4934, %v4933
        %v4942 = vpack.c.bf16 %v4936, %v4935
        %v4943 = vpack.c.bf16 %v4938, %v4937
        %v4944 = vpack.c.bf16 %v4940, %v4939
        %s4945 = scalar_lea.vmem %s6, 384
        %v4946 = vld [vmem:[%s4945] sm:$0xff]
        %v4947 = vld [vmem:[%s4945 + $0x8] sm:$0xf]
        %v4948 = vld [vmem:[%s4945 + $0xc] sm:$0xff]
        %v4949 = vld [vmem:[%s4945 + $0x14] sm:$0xf]
        %v4950 = vld [vmem:[%s4945 + $0x18] sm:$0xff]
        %v4951 = vld [vmem:[%s4945 + $0x20] sm:$0xf]
        %v4952 = vld [vmem:[%s4945 + $0x24] sm:$0xff]
        %v4953 = vld [vmem:[%s4945 + $0x2c] sm:$0xf]
        %v4954 = vld [vmem:[%s4945 + $0x30] sm:$0xff]
        %v4955 = vld [vmem:[%s4945 + $0x38] sm:$0xf]
        %v4956 = vld [vmem:[%s4945 + $0x3c] sm:$0xff]
        %v4957 = vld [vmem:[%s4945 + $0x44] sm:$0xf]
        %v4958 = vld [vmem:[%s4945 + $0x48] sm:$0xff]
        %v4959 = vld [vmem:[%s4945 + $0x50] sm:$0xf]
        %v4960 = vld [vmem:[%s4945 + $0x54] sm:$0xff]
        %v4961 = vld [vmem:[%s4945 + $0x5c] sm:$0xf]
        %v4962 = vld [vmem:[%s4945 + $0x60] sm:$0xff]
        %v4963 = vld [vmem:[%s4945 + $0x68] sm:$0xf]
        %v4964 = vld [vmem:[%s4945 + $0x6c] sm:$0xff]
        %v4965 = vld [vmem:[%s4945 + $0x74] sm:$0xf]
        %v4966 = vld [vmem:[%s4945 + $0x78] sm:$0xff]
        %v4967 = vld [vmem:[%s4945 + $0x80] sm:$0xf]
        %v4968 = vld [vmem:[%s4945 + $0x84] sm:$0xff]
        %v4969 = vld [vmem:[%s4945 + $0x8c] sm:$0xf]
        %v4970 = vld [vmem:[%s4945 + $0x90] sm:$0xff]
        %v4971 = vld [vmem:[%s4945 + $0x98] sm:$0xf]
        %v4972 = vld [vmem:[%s4945 + $0x9c] sm:$0xff]
        %v4973 = vld [vmem:[%s4945 + $0xa4] sm:$0xf]
        %v4974 = vld [vmem:[%s4945 + $0xa8] sm:$0xff]
        %v4975 = vld [vmem:[%s4945 + $0xb0] sm:$0xf]
        %v4976 = vld [vmem:[%s4945 + $0xb4] sm:$0xff]
        %v4977 = vld [vmem:[%s4945 + $0xbc] sm:$0xf]
        %s4978 = scalar_lea.vmem %s7, 6
        %v4979 = vld [vmem:[%s4978] sm:$0x7]
        %v4981 = vlaneseq
        %v4982 = vshrl.u32 %v4981, 7
        %v4983 = vsub.s32 0, %v4982
        %v4984 = vrot.slane %v4979, %v4983
        %v4985 = vlaneseq
        %v4986 = vshrl.u32 %v4985, 7
        %v4987 = vsub.s32 1, %v4986
        %v4988 = vrot.slane %v4979, %v4987
        %v4989 = vlaneseq
        %v4990 = vshrl.u32 %v4989, 7
        %v4991 = vsub.s32 2, %v4990
        %v4992 = vrot.slane %v4979, %v4991
        %v5028 = vunpack.c.l.b16 %v4946
        %v5029 = vunpack.c.h.b16 %v4946
        %v5030 = vunpack.c.l.b16 %v4947
        %v5031 = vunpack.c.l.b16 %v4948
        %v5032 = vunpack.c.h.b16 %v4948
        %v5033 = vunpack.c.l.b16 %v4949
        %v5034 = vunpack.c.l.b16 %v4950
        %v5035 = vunpack.c.h.b16 %v4950
        %v5036 = vunpack.c.l.b16 %v4951
        %v5037 = vunpack.c.l.b16 %v4952
        %v5038 = vunpack.c.h.b16 %v4952
        %v5039 = vunpack.c.l.b16 %v4953
        %v5040 = vunpack.c.l.b16 %v4954
        %v5041 = vunpack.c.h.b16 %v4954
        %v5042 = vunpack.c.l.b16 %v4955
        %v5043 = vunpack.c.l.b16 %v4956
        %v5044 = vunpack.c.h.b16 %v4956
        %v5045 = vunpack.c.l.b16 %v4957
        %v5046 = vunpack.c.l.b16 %v4958
        %v5047 = vunpack.c.h.b16 %v4958
        %v5048 = vunpack.c.l.b16 %v4959
        %v5049 = vunpack.c.l.b16 %v4960
        %v5050 = vunpack.c.h.b16 %v4960
        %v5051 = vunpack.c.l.b16 %v4961
        %v5052 = vunpack.c.l.b16 %v4962
        %v5053 = vunpack.c.h.b16 %v4962
        %v5054 = vunpack.c.l.b16 %v4963
        %v5055 = vunpack.c.l.b16 %v4964
        %v5056 = vunpack.c.h.b16 %v4964
        %v5057 = vunpack.c.l.b16 %v4965
        %v5058 = vunpack.c.l.b16 %v4966
        %v5059 = vunpack.c.h.b16 %v4966
        %v5060 = vunpack.c.l.b16 %v4967
        %v5061 = vunpack.c.l.b16 %v4968
        %v5062 = vunpack.c.h.b16 %v4968
        %v5063 = vunpack.c.l.b16 %v4969
        %v5064 = vunpack.c.l.b16 %v4970
        %v5065 = vunpack.c.h.b16 %v4970
        %v5066 = vunpack.c.l.b16 %v4971
        %v5067 = vunpack.c.l.b16 %v4972
        %v5068 = vunpack.c.h.b16 %v4972
        %v5069 = vunpack.c.l.b16 %v4973
        %v5070 = vunpack.c.l.b16 %v4974
        %v5071 = vunpack.c.h.b16 %v4974
        %v5072 = vunpack.c.l.b16 %v4975
        %v5073 = vunpack.c.l.b16 %v4976
        %v5074 = vunpack.c.h.b16 %v4976
        %v5075 = vunpack.c.l.b16 %v4977
        %v5076 = vpack.c.b16 %v5031, %v5028
        %v5077 = vpack.c.b16 %v5032, %v5029
        %v5078 = vpack.c.b16 %v5033, %v5030
        %v5079 = vpack.c.b16 %v5037, %v5034
        %v5080 = vpack.c.b16 %v5038, %v5035
        %v5081 = vpack.c.b16 %v5039, %v5036
        %v5082 = vpack.c.b16 %v5043, %v5040
        %v5083 = vpack.c.b16 %v5044, %v5041
        %v5084 = vpack.c.b16 %v5045, %v5042
        %v5085 = vpack.c.b16 %v5049, %v5046
        %v5086 = vpack.c.b16 %v5050, %v5047
        %v5087 = vpack.c.b16 %v5051, %v5048
        %v5088 = vpack.c.b16 %v5055, %v5052
        %v5089 = vpack.c.b16 %v5056, %v5053
        %v5090 = vpack.c.b16 %v5057, %v5054
        %v5091 = vpack.c.b16 %v5061, %v5058
        %v5092 = vpack.c.b16 %v5062, %v5059
        %v5093 = vpack.c.b16 %v5063, %v5060
        %v5094 = vpack.c.b16 %v5067, %v5064
        %v5095 = vpack.c.b16 %v5068, %v5065
        %v5096 = vpack.c.b16 %v5069, %v5066
        %v5097 = vpack.c.b16 %v5073, %v5070
        %v5098 = vpack.c.b16 %v5074, %v5071
        %v5099 = vpack.c.b16 %v5075, %v5072
        %5124 = vmatprep.subr.bf16.mxu0 %v5077
        %5125 = vmatpush1.bf16.msra.mxu0 %v5076
        %5126 = vmatprep.subr.bf16.mxu0 %v5080
        %5127 = vmatpush1.bf16.msra.mxu0 %v5079
        %5128 = vmatprep.subr.bf16.mxu0 %v5083
        %5129 = vmatpush1.bf16.msra.mxu0 %v5082
        %5130 = vmatprep.subr.bf16.mxu0 %v5086
        %5131 = vmatpush1.bf16.msra.mxu0 %v5085
        %5132 = vmatprep.subr.bf16.mxu0 %v5089
        %5133 = vmatpush1.bf16.msra.mxu0 %v5088
        %5134 = vmatprep.subr.bf16.mxu0 %v5092
        %5135 = vmatpush1.bf16.msra.mxu0 %v5091
        %5136 = vmatprep.subr.bf16.mxu0 %v5095
        %5137 = vmatpush1.bf16.msra.mxu0 %v5094
        %5138 = vmatprep.subr.bf16.mxu0 %v5098
        %5139 = vmatpush1.bf16.msra.mxu0 %v5097
        %5140 = vmatprep.subr.bf16.mxu0 0
        %5141 = vmatpush1.bf16.msra.mxu0 0
        %5142 = vmatprep.subr.bf16.mxu0 0
        %5143 = vmatpush1.bf16.msra.mxu0 0
        %5144 = vmatprep.subr.bf16.mxu0 0
        %5145 = vmatpush1.bf16.msra.mxu0 0
        %5146 = vmatprep.subr.bf16.mxu0 0
        %5147 = vmatpush1.bf16.msra.mxu0 0
        %5148 = vmatprep.subr.bf16.mxu0 0
        %5149 = vmatpush1.bf16.msra.mxu0 0
        %5150 = vmatprep.subr.bf16.mxu0 0
        %5151 = vmatpush1.bf16.msra.mxu0 0
        %5152 = vmatprep.subr.bf16.mxu0 0
        %5153 = vmatpush1.bf16.msra.mxu0 0
        %5154 = vmatprep.subr.bf16.mxu0 0
        %5155 = vmatpush1.bf16.msra.mxu0 0
        %5156 = vmatprep.mubr.bf16.mxu0 0
        %5157 = vmatmul.mubr.bf16.gmra.mrb[0].mxu0 %v4941
        %v5158 = vpop.f32.mrb[0].mxu0
        %v5159 = vadd.f32 %v4984, %v5158
        %v5160 = vpop.f32.mrb[0].mxu0
        %v5161 = vadd.f32 %v4988, %v5160
        %v5162 = vpop.f32.mrb[0].mxu0
        %v5163 = vadd.f32 %v4984, %v5162
        %v5164 = vpop.f32.mrb[0].mxu0
        %v5165 = vadd.f32 %v4988, %v5164
        %5166 = vmatprep.mubr.bf16.mxu0 0
        %5167 = vmatmul.mubr.bf16.gmra.mrb[0].mxu0 %v4942
        %v5168 = vpop.f32.mrb[0].mxu0
        %v5169 = vadd.f32 %v4984, %v5168
        %v5170 = vpop.f32.mrb[0].mxu0
        %v5171 = vadd.f32 %v4988, %v5170
        %v5172 = vpop.f32.mrb[0].mxu0
        %v5173 = vadd.f32 %v4984, %v5172
        %v5174 = vpop.f32.mrb[0].mxu0
        %v5175 = vadd.f32 %v4988, %v5174
        %5176 = vmatprep.mubr.bf16.mxu0 0
        %5177 = vmatmul.mubr.bf16.gmra.mrb[0].mxu0 %v4943
        %v5178 = vpop.f32.mrb[0].mxu0
        %v5179 = vadd.f32 %v4984, %v5178
        %v5180 = vpop.f32.mrb[0].mxu0
        %v5181 = vadd.f32 %v4988, %v5180
        %v5182 = vpop.f32.mrb[0].mxu0
        %v5183 = vadd.f32 %v4984, %v5182
        %v5184 = vpop.f32.mrb[0].mxu0
        %v5185 = vadd.f32 %v4988, %v5184
        %5186 = vmatprep.mubr.bf16.mxu0 0
        %5187 = vmatmul.mubr.bf16.gmra.mrb[0].mxu0 %v4944
        %v5188 = vpop.f32.mrb[0].mxu0
        %v5189 = vadd.f32 %v4984, %v5188
        %v5190 = vpop.f32.mrb[0].mxu0
        %v5191 = vadd.f32 %v4988, %v5190
        %v5192 = vpop.f32.mrb[0].mxu0
        %v5193 = vadd.f32 %v4984, %v5192
        %v5194 = vpop.f32.mrb[0].mxu0
        %v5195 = vadd.f32 %v4988, %v5194
        %5196 = vdwg.mxu0
        %5197 = vmatprep.subr.bf16.mxu0 0
        %5198 = vmatpush1.bf16.msra.mxu0 %v5078
        %5199 = vmatprep.subr.bf16.mxu0 0
        %5200 = vmatpush1.bf16.msra.mxu0 %v5081
        %5201 = vmatprep.subr.bf16.mxu0 0
        %5202 = vmatpush1.bf16.msra.mxu0 %v5084
        %5203 = vmatprep.subr.bf16.mxu0 0
        %5204 = vmatpush1.bf16.msra.mxu0 %v5087
        %5205 = vmatprep.subr.bf16.mxu0 0
        %5206 = vmatpush1.bf16.msra.mxu0 %v5090
        %5207 = vmatprep.subr.bf16.mxu0 0
        %5208 = vmatpush1.bf16.msra.mxu0 %v5093
        %5209 = vmatprep.subr.bf16.mxu0 0
        %5210 = vmatpush1.bf16.msra.mxu0 %v5096
        %5211 = vmatprep.subr.bf16.mxu0 0
        %5212 = vmatpush1.bf16.msra.mxu0 %v5099
        %5213 = vmatprep.subr.bf16.mxu0 0
        %5214 = vmatpush1.bf16.msra.mxu0 0
        %5215 = vmatprep.subr.bf16.mxu0 0
        %5216 = vmatpush1.bf16.msra.mxu0 0
        %5217 = vmatprep.subr.bf16.mxu0 0
        %5218 = vmatpush1.bf16.msra.mxu0 0
        %5219 = vmatprep.subr.bf16.mxu0 0
        %5220 = vmatpush1.bf16.msra.mxu0 0
        %5221 = vmatprep.subr.bf16.mxu0 0
        %5222 = vmatpush1.bf16.msra.mxu0 0
        %5223 = vmatprep.subr.bf16.mxu0 0
        %5224 = vmatpush1.bf16.msra.mxu0 0
        %5225 = vmatprep.subr.bf16.mxu0 0
        %5226 = vmatpush1.bf16.msra.mxu0 0
        %5227 = vmatprep.subr.bf16.mxu0 0
        %5228 = vmatpush1.bf16.msra.mxu0 0
        %5229 = vmatprep.mubr.bf16.mxu0 0
        %5230 = vmatmul.mubr.bf16.gmra.mrb[0].mxu0 %v4941
        %v5231 = vpop.f32.mrb[0].mxu0
        %v5232 = vadd.f32 %v4992, %v5231
        %v5233 = vpop.f32.mrb[0].mxu0
        %v5234 = vpop.f32.mrb[0].mxu0
        %v5235 = vadd.f32 %v4992, %v5234
        %v5236 = vpop.f32.mrb[0].mxu0
        %5237 = vmatprep.mubr.bf16.mxu0 0
        %5238 = vmatmul.mubr.bf16.gmra.mrb[0].mxu0 %v4942
        %v5239 = vpop.f32.mrb[0].mxu0
        %v5240 = vadd.f32 %v4992, %v5239
        %v5241 = vpop.f32.mrb[0].mxu0
        %v5242 = vpop.f32.mrb[0].mxu0
        %v5243 = vadd.f32 %v4992, %v5242
        %v5244 = vpop.f32.mrb[0].mxu0
        %5245 = vmatprep.mubr.bf16.mxu0 0
        %5246 = vmatmul.mubr.bf16.gmra.mrb[0].mxu0 %v4943
        %v5247 = vpop.f32.mrb[0].mxu0
        %v5248 = vadd.f32 %v4992, %v5247
        %v5249 = vpop.f32.mrb[0].mxu0
        %v5250 = vpop.f32.mrb[0].mxu0
        %v5251 = vadd.f32 %v4992, %v5250
        %v5252 = vpop.f32.mrb[0].mxu0
        %5253 = vmatprep.mubr.bf16.mxu0 0
        %5254 = vmatmul.mubr.bf16.gmra.mrb[0].mxu0 %v4944
        %v5255 = vpop.f32.mrb[0].mxu0
        %v5256 = vadd.f32 %v4992, %v5255
        %v5257 = vpop.f32.mrb[0].mxu0
        %v5258 = vpop.f32.mrb[0].mxu0
        %v5259 = vadd.f32 %v4992, %v5258
        %v5260 = vpop.f32.mrb[0].mxu0
        %5261 = vdwg.mxu0
        %v5262 = vpack.c.bf16 %v5163, %v5159
        %v5263 = vpack.c.bf16 %v5173, %v5169
        %v5264 = vpack.c.bf16 %v5183, %v5179
        %v5265 = vpack.c.bf16 %v5193, %v5189
        %v5266 = vpack.c.bf16 %v5165, %v5161
        %v5267 = vpack.c.bf16 %v5175, %v5171
        %v5268 = vpack.c.bf16 %v5185, %v5181
        %v5269 = vpack.c.bf16 %v5195, %v5191
        %5270 = vmatprep.subr.bf16.mxu0 0
        %5271 = vmatpush1.bf16.xpose.msra.mxu0 %v5266
        %5272 = vmatprep.subr.bf16.mxu0 0
        %5273 = vmatpush1.bf16.xpose.msra.mxu0 %v5267
        %5274 = vmatprep.subr.bf16.mxu0 0
        %5275 = vmatpush1.bf16.xpose.msra.mxu0 %v5268
        %5276 = vmatprep.subr.bf16.mxu0 0
        %5277 = vmatpush1.bf16.xpose.msra.mxu0 %v5269
        %5278 = vmatprep.subr.bf16.mxu0 0
        %5279 = vmatpush1.bf16.xpose.msra.mxu0 0
        %5280 = vmatprep.subr.bf16.mxu0 0
        %5281 = vmatpush1.bf16.xpose.msra.mxu0 0
        %5282 = vmatprep.subr.bf16.mxu0 0
        %5283 = vmatpush1.bf16.xpose.msra.mxu0 0
        %5284 = vmatprep.subr.bf16.mxu0 0
        %5285 = vmatpush1.bf16.xpose.msra.mxu0 0
        %5286 = vmatprep.subr.bf16.mxu0 0
        %5287 = vmatpush1.bf16.xpose.msra.mxu0 0
        %5288 = vmatprep.subr.bf16.mxu0 0
        %5289 = vmatpush1.bf16.xpose.msra.mxu0 0
        %5290 = vmatprep.subr.bf16.mxu0 0
        %5291 = vmatpush1.bf16.xpose.msra.mxu0 0
        %5292 = vmatprep.subr.bf16.mxu0 0
        %5293 = vmatpush1.bf16.xpose.msra.mxu0 0
        %5294 = vmatprep.subr.bf16.mxu0 0
        %5295 = vmatpush1.bf16.xpose.msra.mxu0 0
        %5296 = vmatprep.subr.bf16.mxu0 0
        %5297 = vmatpush1.bf16.xpose.msra.mxu0 0
        %5298 = vmatprep.subr.bf16.mxu0 0
        %5299 = vmatpush1.bf16.xpose.msra.mxu0 0
        %5300 = vmatprep.subr.bf16.mxu0 0
        %5301 = vmatpush1.bf16.xpose.msra.mxu0 0
        %5302 = vmatprep.mubr.bf16.mxu0 0
        %5303 = vmatmul.mubr.bf16.gmra.mrb[0].mxu0 %v5262
        %v5304 = vpop.f32.mrb[0].mxu0
        %v5305 = vadd.f32 0.0, %v5304
        %v5306 = vpop.f32.mrb[0].mxu0
        %v5307 = vpop.f32.mrb[0].mxu0
        %v5308 = vadd.f32 0.0, %v5307
        %v5309 = vpop.f32.mrb[0].mxu0
        %5310 = vmatprep.mubr.bf16.mxu0 0
        %5311 = vmatmul.mubr.bf16.gmra.mrb[0].mxu0 %v5263
        %v5312 = vpop.f32.mrb[0].mxu0
        %v5313 = vadd.f32 0.0, %v5312
        %v5314 = vpop.f32.mrb[0].mxu0
        %v5315 = vpop.f32.mrb[0].mxu0
        %v5316 = vadd.f32 0.0, %v5315
        %v5317 = vpop.f32.mrb[0].mxu0
        %5318 = vmatprep.mubr.bf16.mxu0 0
        %5319 = vmatmul.mubr.bf16.gmra.mrb[0].mxu0 %v5264
        %v5320 = vpop.f32.mrb[0].mxu0
        %v5321 = vadd.f32 0.0, %v5320
        %v5322 = vpop.f32.mrb[0].mxu0
        %v5323 = vpop.f32.mrb[0].mxu0
        %v5324 = vadd.f32 0.0, %v5323
        %v5325 = vpop.f32.mrb[0].mxu0
        %5326 = vmatprep.mubr.bf16.mxu0 0
        %5327 = vmatmul.mubr.bf16.gmra.mrb[0].mxu0 %v5265
        %v5328 = vpop.f32.mrb[0].mxu0
        %v5329 = vadd.f32 0.0, %v5328
        %v5330 = vpop.f32.mrb[0].mxu0
        %v5331 = vpop.f32.mrb[0].mxu0
        %v5332 = vadd.f32 0.0, %v5331
        %v5333 = vpop.f32.mrb[0].mxu0
        %5334 = vdwg.mxu0
        %v5335 = vmul.f32 %v5305, 0.088388346
        %v5336 = vmul.f32 %v5308, 0.088388346
        %v5337 = vmul.f32 %v5313, 0.088388346
        %v5338 = vmul.f32 %v5316, 0.088388346
        %v5339 = vmul.f32 %v5321, 0.088388346
        %v5340 = vmul.f32 %v5324, 0.088388346
        %v5341 = vmul.f32 %v5329, 0.088388346
        %v5342 = vmul.f32 %v5332, 0.088388346
        %v5343 = vsel %vm3266, %v5335, -inf
        %5344 = vmax.xlane.f32.xlu0 %v5343
        %v5345 = vpop.xlane.xlu0 %5344
        %v5346 = vsel %vm3266, %v5336, -inf
        %5347 = vmax.xlane.f32.xlu0 %v5346
        %v5348 = vpop.xlane.xlu0 %5347
        %v5349 = vsel %vm3266, %v5337, -inf
        %5350 = vmax.xlane.f32.xlu0 %v5349
        %v5351 = vpop.xlane.xlu0 %5350
        %v5352 = vsel %vm3266, %v5338, -inf
        %5353 = vmax.xlane.f32.xlu0 %v5352
        %v5354 = vpop.xlane.xlu0 %5353
        %v5355 = vsel %vm3266, %v5339, -inf
        %5356 = vmax.xlane.f32.xlu0 %v5355
        %v5357 = vpop.xlane.xlu0 %5356
        %v5358 = vsel %vm3266, %v5340, -inf
        %5359 = vmax.xlane.f32.xlu0 %v5358
        %v5360 = vpop.xlane.xlu0 %5359
        %v5361 = vsel %vm3266, %v5341, -inf
        %5362 = vmax.xlane.f32.xlu0 %v5361
        %v5363 = vpop.xlane.xlu0 %5362
        %v5364 = vsel %vm3266, %v5342, -inf
        %5365 = vmax.xlane.f32.xlu0 %v5364
        %v5366 = vpop.xlane.xlu0 %5365
        %v5367 = vsub.f32 %v5335, %v5345
        %v5368 = vsub.f32 %v5336, %v5348
        %v5369 = vsub.f32 %v5337, %v5351
        %v5370 = vsub.f32 %v5338, %v5354
        %v5371 = vsub.f32 %v5339, %v5357
        %v5372 = vsub.f32 %v5340, %v5360
        %v5373 = vsub.f32 %v5341, %v5363
        %v5374 = vsub.f32 %v5342, %v5366
        %v5375 = vmul.f32 %v5367, 1.442695
        %v5376 = vpow.pop %v5375
        %v5377 = vmul.f32 %v5368, 1.442695
        %v5378 = vpow.pop %v5377
        %v5379 = vmul.f32 %v5369, 1.442695
        %v5380 = vpow.pop %v5379
        %v5381 = vmul.f32 %v5370, 1.442695
        %v5382 = vpow.pop %v5381
        %v5383 = vmul.f32 %v5371, 1.442695
        %v5384 = vpow.pop %v5383
        %v5385 = vmul.f32 %v5372, 1.442695
        %v5386 = vpow.pop %v5385
        %v5387 = vmul.f32 %v5373, 1.442695
        %v5388 = vpow.pop %v5387
        %v5389 = vmul.f32 %v5374, 1.442695
        %v5390 = vpow.pop %v5389
        %v5391 = vsel %vm3266, %v5376, 0.0
        %5392 = vadd.xlane.f32.xlu0 %v5391
        %v5393 = vpop.xlane.xlu0 %5392
        %v5394 = vsel %vm3266, %v5378, 0.0
        %5395 = vadd.xlane.f32.xlu0 %v5394
        %v5396 = vpop.xlane.xlu0 %5395
        %v5397 = vsel %vm3266, %v5380, 0.0
        %5398 = vadd.xlane.f32.xlu0 %v5397
        %v5399 = vpop.xlane.xlu0 %5398
        %v5400 = vsel %vm3266, %v5382, 0.0
        %5401 = vadd.xlane.f32.xlu0 %v5400
        %v5402 = vpop.xlane.xlu0 %5401
        %v5403 = vsel %vm3266, %v5384, 0.0
        %5404 = vadd.xlane.f32.xlu0 %v5403
        %v5405 = vpop.xlane.xlu0 %5404
        %v5406 = vsel %vm3266, %v5386, 0.0
        %5407 = vadd.xlane.f32.xlu0 %v5406
        %v5408 = vpop.xlane.xlu0 %5407
        %v5409 = vsel %vm3266, %v5388, 0.0
        %5410 = vadd.xlane.f32.xlu0 %v5409
        %v5411 = vpop.xlane.xlu0 %5410
        %v5412 = vsel %vm3266, %v5390, 0.0
        %5413 = vadd.xlane.f32.xlu0 %v5412
        %v5414 = vpop.xlane.xlu0 %5413
        %v5415 = vrcp.pop %v5393
        %v5416 = vrcp.pop %v5396
        %v5417 = vrcp.pop %v5399
        %v5418 = vrcp.pop %v5402
        %v5419 = vrcp.pop %v5405
        %v5420 = vrcp.pop %v5408
        %v5421 = vrcp.pop %v5411
        %v5422 = vrcp.pop %v5414
        %v5423 = vmul.f32 %v5376, %v5415
        %v5424 = vmul.f32 %v5378, %v5416
        %v5425 = vmul.f32 %v5380, %v5417
        %v5426 = vmul.f32 %v5382, %v5418
        %v5427 = vmul.f32 %v5384, %v5419
        %v5428 = vmul.f32 %v5386, %v5420
        %v5429 = vmul.f32 %v5388, %v5421
        %v5430 = vmul.f32 %v5390, %v5422
        %v5431 = vpack.c.bf16 %v5424, %v5423
        %v5432 = vpack.c.bf16 %v5426, %v5425
        %v5433 = vpack.c.bf16 %v5428, %v5427
        %v5434 = vpack.c.bf16 %v5430, %v5429
        %v5435 = vpack.c.bf16 %v5235, %v5232
        %v5436 = vpack.c.bf16 %v5243, %v5240
        %v5437 = vpack.c.bf16 %v5251, %v5248
        %v5438 = vpack.c.bf16 %v5259, %v5256
        %v5440 = vsel %vm3266, %v5431, 0
        %v5443 = vsel %vm3266, %v5432, 0
        %v5446 = vsel %vm3266, %v5433, 0
        %v5449 = vsel %vm3266, %v5434, 0
        %5451 = vmatprep.subr.bf16.mxu0 0
        %5452 = vmatpush1.bf16.msra.mxu0 %v5435
        %5453 = vmatprep.subr.bf16.mxu0 0
        %5454 = vmatpush1.bf16.msra.mxu0 %v5436
        %5455 = vmatprep.subr.bf16.mxu0 0
        %5456 = vmatpush1.bf16.msra.mxu0 %v5437
        %5457 = vmatprep.subr.bf16.mxu0 0
        %5458 = vmatpush1.bf16.msra.mxu0 %v5438
        %5459 = vmatprep.subr.bf16.mxu0 0
        %5460 = vmatpush1.bf16.msra.mxu0 0
        %5461 = vmatprep.subr.bf16.mxu0 0
        %5462 = vmatpush1.bf16.msra.mxu0 0
        %5463 = vmatprep.subr.bf16.mxu0 0
        %5464 = vmatpush1.bf16.msra.mxu0 0
        %5465 = vmatprep.subr.bf16.mxu0 0
        %5466 = vmatpush1.bf16.msra.mxu0 0
        %5467 = vmatprep.subr.bf16.mxu0 0
        %5468 = vmatpush1.bf16.msra.mxu0 0
        %5469 = vmatprep.subr.bf16.mxu0 0
        %5470 = vmatpush1.bf16.msra.mxu0 0
        %5471 = vmatprep.subr.bf16.mxu0 0
        %5472 = vmatpush1.bf16.msra.mxu0 0
        %5473 = vmatprep.subr.bf16.mxu0 0
        %5474 = vmatpush1.bf16.msra.mxu0 0
        %5475 = vmatprep.subr.bf16.mxu0 0
        %5476 = vmatpush1.bf16.msra.mxu0 0
        %5477 = vmatprep.subr.bf16.mxu0 0
        %5478 = vmatpush1.bf16.msra.mxu0 0
        %5479 = vmatprep.subr.bf16.mxu0 0
        %5480 = vmatpush1.bf16.msra.mxu0 0
        %5481 = vmatprep.subr.bf16.mxu0 0
        %5482 = vmatpush1.bf16.msra.mxu0 0
        %5483 = vmatprep.mubr.bf16.mxu0 0
        %5484 = vmatmul.mubr.bf16.gmra.mrb[0].mxu0 %v5440
        %v5485 = vpop.f32.mrb[0].mxu0
        %v5486 = vadd.f32 0.0, %v5485
        %v5487 = vpop.f32.mrb[0].mxu0
        %v5488 = vpop.f32.mrb[0].mxu0
        %v5489 = vadd.f32 0.0, %v5488
        %v5490 = vpop.f32.mrb[0].mxu0
        %5491 = vmatprep.mubr.bf16.mxu0 0
        %5492 = vmatmul.mubr.bf16.gmra.mrb[0].mxu0 %v5443
        %v5493 = vpop.f32.mrb[0].mxu0
        %v5494 = vadd.f32 0.0, %v5493
        %v5495 = vpop.f32.mrb[0].mxu0
        %v5496 = vpop.f32.mrb[0].mxu0
        %v5497 = vadd.f32 0.0, %v5496
        %v5498 = vpop.f32.mrb[0].mxu0
        %5499 = vmatprep.mubr.bf16.mxu0 0
        %5500 = vmatmul.mubr.bf16.gmra.mrb[0].mxu0 %v5446
        %v5501 = vpop.f32.mrb[0].mxu0
        %v5502 = vadd.f32 0.0, %v5501
        %v5503 = vpop.f32.mrb[0].mxu0
        %v5504 = vpop.f32.mrb[0].mxu0
        %v5505 = vadd.f32 0.0, %v5504
        %v5506 = vpop.f32.mrb[0].mxu0
        %5507 = vmatprep.mubr.bf16.mxu0 0
        %5508 = vmatmul.mubr.bf16.gmra.mrb[0].mxu0 %v5449
        %v5509 = vpop.f32.mrb[0].mxu0
        %v5510 = vadd.f32 0.0, %v5509
        %v5511 = vpop.f32.mrb[0].mxu0
        %v5512 = vpop.f32.mrb[0].mxu0
        %v5513 = vadd.f32 0.0, %v5512
        %v5514 = vpop.f32.mrb[0].mxu0
        %5515 = vdwg.mxu0
        %v5516 = vpack.c.bf16 %v5489, %v5486
        %v5517 = vpack.c.bf16 %v5497, %v5494
        %v5518 = vpack.c.bf16 %v5505, %v5502
        %v5519 = vpack.c.bf16 %v5513, %v5510
        %s5520 = scalar_lea.vmem %s8, 128
        %v5521 = vld [vmem:[%s5520] sm:$0xf]
        %v5522 = vld [vmem:[%s5520 + $0x4] sm:$0xf]
        %v5523 = vld [vmem:[%s5520 + $0x8] sm:$0xf]
        %v5524 = vld [vmem:[%s5520 + $0xc] sm:$0xf]
        %v5525 = vld [vmem:[%s5520 + $0x10] sm:$0xf]
        %v5526 = vld [vmem:[%s5520 + $0x14] sm:$0xf]
        %v5527 = vld [vmem:[%s5520 + $0x18] sm:$0xf]
        %v5528 = vld [vmem:[%s5520 + $0x1c] sm:$0xf]
        %v5529 = vld [vmem:[%s5520 + $0x20] sm:$0xf]
        %v5530 = vld [vmem:[%s5520 + $0x24] sm:$0xf]
        %v5531 = vld [vmem:[%s5520 + $0x28] sm:$0xf]
        %v5532 = vld [vmem:[%s5520 + $0x2c] sm:$0xf]
        %v5533 = vld [vmem:[%s5520 + $0x30] sm:$0xf]
        %v5534 = vld [vmem:[%s5520 + $0x34] sm:$0xf]
        %v5535 = vld [vmem:[%s5520 + $0x38] sm:$0xf]
        %v5536 = vld [vmem:[%s5520 + $0x3c] sm:$0xf]
        %s5537 = scalar_lea.vmem %s9, 2
        %v5538 = vld [vmem:[%s5537] sm:$0x1]
        %v5540 = vlaneseq
        %v5541 = vshrl.u32 %v5540, 7
        %v5542 = vsub.s32 0, %v5541
        %v5543 = vrot.slane %v5538, %v5542
        %v5561 = vunpack.c.l.b16 %v5521
        %v5562 = vunpack.c.l.b16 %v5522
        %v5563 = vunpack.c.l.b16 %v5523
        %v5564 = vunpack.c.l.b16 %v5524
        %v5565 = vunpack.c.l.b16 %v5525
        %v5566 = vunpack.c.l.b16 %v5526
        %v5567 = vunpack.c.l.b16 %v5527
        %v5568 = vunpack.c.l.b16 %v5528
        %v5569 = vunpack.c.l.b16 %v5529
        %v5570 = vunpack.c.l.b16 %v5530
        %v5571 = vunpack.c.l.b16 %v5531
        %v5572 = vunpack.c.l.b16 %v5532
        %v5573 = vunpack.c.l.b16 %v5533
        %v5574 = vunpack.c.l.b16 %v5534
        %v5575 = vunpack.c.l.b16 %v5535
        %v5576 = vunpack.c.l.b16 %v5536
        %v5577 = vpack.c.b16 %v5562, %v5561
        %v5578 = vpack.c.b16 %v5564, %v5563
        %v5579 = vpack.c.b16 %v5566, %v5565
        %v5580 = vpack.c.b16 %v5568, %v5567
        %v5581 = vpack.c.b16 %v5570, %v5569
        %v5582 = vpack.c.b16 %v5572, %v5571
        %v5583 = vpack.c.b16 %v5574, %v5573
        %v5584 = vpack.c.b16 %v5576, %v5575
        %5593 = vmatprep.subr.bf16.mxu0 0
        %5594 = vmatpush1.bf16.msra.mxu0 %v5577
        %5595 = vmatprep.subr.bf16.mxu0 0
        %5596 = vmatpush1.bf16.msra.mxu0 %v5578
        %5597 = vmatprep.subr.bf16.mxu0 0
        %5598 = vmatpush1.bf16.msra.mxu0 %v5579
        %5599 = vmatprep.subr.bf16.mxu0 0
        %5600 = vmatpush1.bf16.msra.mxu0 %v5580
        %5601 = vmatprep.subr.bf16.mxu0 0
        %5602 = vmatpush1.bf16.msra.mxu0 %v5581
        %5603 = vmatprep.subr.bf16.mxu0 0
        %5604 = vmatpush1.bf16.msra.mxu0 %v5582
        %5605 = vmatprep.subr.bf16.mxu0 0
        %5606 = vmatpush1.bf16.msra.mxu0 %v5583
        %5607 = vmatprep.subr.bf16.mxu0 0
        %5608 = vmatpush1.bf16.msra.mxu0 %v5584
        %5609 = vmatprep.subr.bf16.mxu0 0
        %5610 = vmatpush1.bf16.msra.mxu0 0
        %5611 = vmatprep.subr.bf16.mxu0 0
        %5612 = vmatpush1.bf16.msra.mxu0 0
        %5613 = vmatprep.subr.bf16.mxu0 0
        %5614 = vmatpush1.bf16.msra.mxu0 0
        %5615 = vmatprep.subr.bf16.mxu0 0
        %5616 = vmatpush1.bf16.msra.mxu0 0
        %5617 = vmatprep.subr.bf16.mxu0 0
        %5618 = vmatpush1.bf16.msra.mxu0 0
        %5619 = vmatprep.subr.bf16.mxu0 0
        %5620 = vmatpush1.bf16.msra.mxu0 0
        %5621 = vmatprep.subr.bf16.mxu0 0
        %5622 = vmatpush1.bf16.msra.mxu0 0
        %5623 = vmatprep.subr.bf16.mxu0 0
        %5624 = vmatpush1.bf16.msra.mxu0 0
        %5625 = vmatprep.mubr.bf16.mxu0 0
        %5626 = vmatmul.mubr.bf16.gmra.mrb[0].mxu0 %v5516
        %v5627 = vpop.f32.mrb[0].mxu0
        %v5628 = vadd.f32 %v5543, %v5627
        %v5629 = vpop.f32.mrb[0].mxu0
        %v5630 = vpop.f32.mrb[0].mxu0
        %v5631 = vadd.f32 %v5543, %v5630
        %v5632 = vpop.f32.mrb[0].mxu0
        %5633 = vmatprep.mubr.bf16.mxu0 0
        %5634 = vmatmul.mubr.bf16.gmra.mrb[0].mxu0 %v5517
        %v5635 = vpop.f32.mrb[0].mxu0
        %v5636 = vadd.f32 %v5543, %v5635
        %v5637 = vpop.f32.mrb[0].mxu0
        %v5638 = vpop.f32.mrb[0].mxu0
        %v5639 = vadd.f32 %v5543, %v5638
        %v5640 = vpop.f32.mrb[0].mxu0
        %5641 = vmatprep.mubr.bf16.mxu0 0
        %5642 = vmatmul.mubr.bf16.gmra.mrb[0].mxu0 %v5518
        %v5643 = vpop.f32.mrb[0].mxu0
        %v5644 = vadd.f32 %v5543, %v5643
        %v5645 = vpop.f32.mrb[0].mxu0
        %v5646 = vpop.f32.mrb[0].mxu0
        %v5647 = vadd.f32 %v5543, %v5646
        %v5648 = vpop.f32.mrb[0].mxu0
        %5649 = vmatprep.mubr.bf16.mxu0 0
        %5650 = vmatmul.mubr.bf16.gmra.mrb[0].mxu0 %v5519
        %v5651 = vpop.f32.mrb[0].mxu0
        %v5652 = vadd.f32 %v5543, %v5651
        %v5653 = vpop.f32.mrb[0].mxu0
        %v5654 = vpop.f32.mrb[0].mxu0
        %v5655 = vadd.f32 %v5543, %v5654
        %v5656 = vpop.f32.mrb[0].mxu0
        %5657 = vdwg.mxu0
        %v5658 = vadd.f32 %v4933, %v5628
        %v5659 = vadd.f32 %v4934, %v5631
        %v5660 = vadd.f32 %v4935, %v5636
        %v5661 = vadd.f32 %v4936, %v5639
        %v5662 = vadd.f32 %v4937, %v5644
        %v5663 = vadd.f32 %v4938, %v5647
        %v5664 = vadd.f32 %v4939, %v5652
        %v5665 = vadd.f32 %v4940, %v5655
        %v5666 = vpack.c.bf16 %v5659, %v5658
        %v5667 = vpack.c.bf16 %v5661, %v5660
        %v5668 = vpack.c.bf16 %v5663, %v5662
        %v5669 = vpack.c.bf16 %v5665, %v5664
        %s5670 = scalar_lea.vmem %s10, 128
        %v5671 = vld [vmem:[%s5670] sm:$0xf]
        %v5672 = vld [vmem:[%s5670 + $0x4] sm:$0xf]
        %v5673 = vld [vmem:[%s5670 + $0x8] sm:$0xf]
        %v5674 = vld [vmem:[%s5670 + $0xc] sm:$0xf]
        %v5675 = vld [vmem:[%s5670 + $0x10] sm:$0xf]
        %v5676 = vld [vmem:[%s5670 + $0x14] sm:$0xf]
        %v5677 = vld [vmem:[%s5670 + $0x18] sm:$0xf]
        %v5678 = vld [vmem:[%s5670 + $0x1c] sm:$0xf]
        %v5679 = vld [vmem:[%s5670 + $0x20] sm:$0xf]
        %v5680 = vld [vmem:[%s5670 + $0x24] sm:$0xf]
        %v5681 = vld [vmem:[%s5670 + $0x28] sm:$0xf]
        %v5682 = vld [vmem:[%s5670 + $0x2c] sm:$0xf]
        %v5683 = vld [vmem:[%s5670 + $0x30] sm:$0xf]
        %v5684 = vld [vmem:[%s5670 + $0x34] sm:$0xf]
        %v5685 = vld [vmem:[%s5670 + $0x38] sm:$0xf]
        %v5686 = vld [vmem:[%s5670 + $0x3c] sm:$0xf]
        %s5687 = scalar_lea.vmem %s11, 2
        %v5688 = vld [vmem:[%s5687] sm:$0x1]
        %v5690 = vlaneseq
        %v5691 = vshrl.u32 %v5690, 7
        %v5692 = vsub.s32 0, %v5691
        %v5693 = vrot.slane %v5688, %v5692
        %v5711 = vunpack.c.l.b16 %v5671
        %v5712 = vunpack.c.l.b16 %v5672
        %v5713 = vunpack.c.l.b16 %v5673
        %v5714 = vunpack.c.l.b16 %v5674
        %v5715 = vunpack.c.l.b16 %v5675
        %v5716 = vunpack.c.l.b16 %v5676
        %v5717 = vunpack.c.l.b16 %v5677
        %v5718 = vunpack.c.l.b16 %v5678
        %v5719 = vunpack.c.l.b16 %v5679
        %v5720 = vunpack.c.l.b16 %v5680
        %v5721 = vunpack.c.l.b16 %v5681
        %v5722 = vunpack.c.l.b16 %v5682
        %v5723 = vunpack.c.l.b16 %v5683
        %v5724 = vunpack.c.l.b16 %v5684
        %v5725 = vunpack.c.l.b16 %v5685
        %v5726 = vunpack.c.l.b16 %v5686
        %v5727 = vpack.c.b16 %v5712, %v5711
        %v5728 = vpack.c.b16 %v5714, %v5713
        %v5729 = vpack.c.b16 %v5716, %v5715
        %v5730 = vpack.c.b16 %v5718, %v5717
        %v5731 = vpack.c.b16 %v5720, %v5719
        %v5732 = vpack.c.b16 %v5722, %v5721
        %v5733 = vpack.c.b16 %v5724, %v5723
        %v5734 = vpack.c.b16 %v5726, %v5725
        %5743 = vmatprep.subr.bf16.mxu0 0
        %5744 = vmatpush1.bf16.msra.mxu0 %v5727
        %5745 = vmatprep.subr.bf16.mxu0 0
        %5746 = vmatpush1.bf16.msra.mxu0 %v5728
        %5747 = vmatprep.subr.bf16.mxu0 0
        %5748 = vmatpush1.bf16.msra.mxu0 %v5729
        %5749 = vmatprep.subr.bf16.mxu0 0
        %5750 = vmatpush1.bf16.msra.mxu0 %v5730
        %5751 = vmatprep.subr.bf16.mxu0 0
        %5752 = vmatpush1.bf16.msra.mxu0 %v5731
        %5753 = vmatprep.subr.bf16.mxu0 0
        %5754 = vmatpush1.bf16.msra.mxu0 %v5732
        %5755 = vmatprep.subr.bf16.mxu0 0
        %5756 = vmatpush1.bf16.msra.mxu0 %v5733
        %5757 = vmatprep.subr.bf16.mxu0 0
        %5758 = vmatpush1.bf16.msra.mxu0 %v5734
        %5759 = vmatprep.subr.bf16.mxu0 0
        %5760 = vmatpush1.bf16.msra.mxu0 0
        %5761 = vmatprep.subr.bf16.mxu0 0
        %5762 = vmatpush1.bf16.msra.mxu0 0
        %5763 = vmatprep.subr.bf16.mxu0 0
        %5764 = vmatpush1.bf16.msra.mxu0 0
        %5765 = vmatprep.subr.bf16.mxu0 0
        %5766 = vmatpush1.bf16.msra.mxu0 0
        %5767 = vmatprep.subr.bf16.mxu0 0
        %5768 = vmatpush1.bf16.msra.mxu0 0
        %5769 = vmatprep.subr.bf16.mxu0 0
        %5770 = vmatpush1.bf16.msra.mxu0 0
        %5771 = vmatprep.subr.bf16.mxu0 0
        %5772 = vmatpush1.bf16.msra.mxu0 0
        %5773 = vmatprep.subr.bf16.mxu0 0
        %5774 = vmatpush1.bf16.msra.mxu0 0
        %5775 = vmatprep.mubr.bf16.mxu0 0
        %5776 = vmatmul.mubr.bf16.gmra.mrb[0].mxu0 %v5666
        %v5777 = vpop.f32.mrb[0].mxu0
        %v5778 = vadd.f32 %v5693, %v5777
        %v5779 = vpop.f32.mrb[0].mxu0
        %v5780 = vpop.f32.mrb[0].mxu0
        %v5781 = vadd.f32 %v5693, %v5780
        %v5782 = vpop.f32.mrb[0].mxu0
        %5783 = vmatprep.mubr.bf16.mxu0 0
        %5784 = vmatmul.mubr.bf16.gmra.mrb[0].mxu0 %v5667
        %v5785 = vpop.f32.mrb[0].mxu0
        %v5786 = vadd.f32 %v5693, %v5785
        %v5787 = vpop.f32.mrb[0].mxu0
        %v5788 = vpop.f32.mrb[0].mxu0
        %v5789 = vadd.f32 %v5693, %v5788
        %v5790 = vpop.f32.mrb[0].mxu0
        %5791 = vmatprep.mubr.bf16.mxu0 0
        %5792 = vmatmul.mubr.bf16.gmra.mrb[0].mxu0 %v5668
        %v5793 = vpop.f32.mrb[0].mxu0
        %v5794 = vadd.f32 %v5693, %v5793
        %v5795 = vpop.f32.mrb[0].mxu0
        %v5796 = vpop.f32.mrb[0].mxu0
        %v5797 = vadd.f32 %v5693, %v5796
        %v5798 = vpop.f32.mrb[0].mxu0
        %5799 = vmatprep.mubr.bf16.mxu0 0
        %5800 = vmatmul.mubr.bf16.gmra.mrb[0].mxu0 %v5669
        %v5801 = vpop.f32.mrb[0].mxu0
        %v5802 = vadd.f32 %v5693, %v5801
        %v5803 = vpop.f32.mrb[0].mxu0
        %v5804 = vpop.f32.mrb[0].mxu0
        %v5805 = vadd.f32 %v5693, %v5804
        %v5806 = vpop.f32.mrb[0].mxu0
        %5807 = vdwg.mxu0
        %vm5808 = vcmp.gt.f32.partialorder %v5778, 0.0
        %vm5809 = vcmp.gt.f32.partialorder %v5781, 0.0
        %vm5810 = vcmp.gt.f32.partialorder %v5786, 0.0
        %vm5811 = vcmp.gt.f32.partialorder %v5789, 0.0
        %vm5812 = vcmp.gt.f32.partialorder %v5794, 0.0
        %vm5813 = vcmp.gt.f32.partialorder %v5797, 0.0
        %vm5814 = vcmp.gt.f32.partialorder %v5802, 0.0
        %vm5815 = vcmp.gt.f32.partialorder %v5805, 0.0
        %v5816 = vmul.f32 %v5778, 0.2
        %v5817 = vmul.f32 %v5781, 0.2
        %v5818 = vmul.f32 %v5786, 0.2
        %v5819 = vmul.f32 %v5789, 0.2
        %v5820 = vmul.f32 %v5794, 0.2
        %v5821 = vmul.f32 %v5797, 0.2
        %v5822 = vmul.f32 %v5802, 0.2
        %v5823 = vmul.f32 %v5805, 0.2
        %v5824 = vsel %vm5808, %v5778, %v5816
        %v5825 = vsel %vm5809, %v5781, %v5817
        %v5826 = vsel %vm5810, %v5786, %v5818
        %v5827 = vsel %vm5811, %v5789, %v5819
        %v5828 = vsel %vm5812, %v5794, %v5820
        %v5829 = vsel %vm5813, %v5797, %v5821
        %v5830 = vsel %vm5814, %v5802, %v5822
        %v5831 = vsel %vm5815, %v5805, %v5823
        %v5832 = vpack.c.bf16 %v5825, %v5824
        %v5833 = vpack.c.bf16 %v5827, %v5826
        %v5834 = vpack.c.bf16 %v5829, %v5828
        %v5835 = vpack.c.bf16 %v5831, %v5830
        %s5836 = scalar_lea.vmem [#allocation5], 128
        %v5837 = vld [vmem:[%s5836] sm:$0xf]
        %v5838 = vld [vmem:[%s5836 + $0x4] sm:$0xf]
        %v5839 = vld [vmem:[%s5836 + $0x8] sm:$0xf]
        %v5840 = vld [vmem:[%s5836 + $0xc] sm:$0xf]
        %v5841 = vld [vmem:[%s5836 + $0x10] sm:$0xf]
        %v5842 = vld [vmem:[%s5836 + $0x14] sm:$0xf]
        %v5843 = vld [vmem:[%s5836 + $0x18] sm:$0xf]
        %v5844 = vld [vmem:[%s5836 + $0x1c] sm:$0xf]
        %v5845 = vld [vmem:[%s5836 + $0x20] sm:$0xf]
        %v5846 = vld [vmem:[%s5836 + $0x24] sm:$0xf]
        %v5847 = vld [vmem:[%s5836 + $0x28] sm:$0xf]
        %v5848 = vld [vmem:[%s5836 + $0x2c] sm:$0xf]
        %v5849 = vld [vmem:[%s5836 + $0x30] sm:$0xf]
        %v5850 = vld [vmem:[%s5836 + $0x34] sm:$0xf]
        %v5851 = vld [vmem:[%s5836 + $0x38] sm:$0xf]
        %v5852 = vld [vmem:[%s5836 + $0x3c] sm:$0xf]
        %s5853 = scalar_lea.vmem %s13, 2
        %v5854 = vld [vmem:[%s5853] sm:$0x1]
        %v5856 = vlaneseq
        %v5857 = vshrl.u32 %v5856, 7
        %v5858 = vsub.s32 0, %v5857
        %v5859 = vrot.slane %v5854, %v5858
        %v5877 = vunpack.c.l.b16 %v5837
        %v5878 = vunpack.c.l.b16 %v5838
        %v5879 = vunpack.c.l.b16 %v5839
        %v5880 = vunpack.c.l.b16 %v5840
        %v5881 = vunpack.c.l.b16 %v5841
        %v5882 = vunpack.c.l.b16 %v5842
        %v5883 = vunpack.c.l.b16 %v5843
        %v5884 = vunpack.c.l.b16 %v5844
        %v5885 = vunpack.c.l.b16 %v5845
        %v5886 = vunpack.c.l.b16 %v5846
        %v5887 = vunpack.c.l.b16 %v5847
        %v5888 = vunpack.c.l.b16 %v5848
        %v5889 = vunpack.c.l.b16 %v5849
        %v5890 = vunpack.c.l.b16 %v5850
        %v5891 = vunpack.c.l.b16 %v5851
        %v5892 = vunpack.c.l.b16 %v5852
        %v5893 = vpack.c.b16 %v5878, %v5877
        %v5894 = vpack.c.b16 %v5880, %v5879
        %v5895 = vpack.c.b16 %v5882, %v5881
        %v5896 = vpack.c.b16 %v5884, %v5883
        %v5897 = vpack.c.b16 %v5886, %v5885
        %v5898 = vpack.c.b16 %v5888, %v5887
        %v5899 = vpack.c.b16 %v5890, %v5889
        %v5900 = vpack.c.b16 %v5892, %v5891
        %5909 = vmatprep.subr.bf16.mxu0 0
        %5910 = vmatpush1.bf16.msra.mxu0 %v5893
        %5911 = vmatprep.subr.bf16.mxu0 0
        %5912 = vmatpush1.bf16.msra.mxu0 %v5894
        %5913 = vmatprep.subr.bf16.mxu0 0
        %5914 = vmatpush1.bf16.msra.mxu0 %v5895
        %5915 = vmatprep.subr.bf16.mxu0 0
        %5916 = vmatpush1.bf16.msra.mxu0 %v5896
        %5917 = vmatprep.subr.bf16.mxu0 0
        %5918 = vmatpush1.bf16.msra.mxu0 %v5897
        %5919 = vmatprep.subr.bf16.mxu0 0
        %5920 = vmatpush1.bf16.msra.mxu0 %v5898
        %5921 = vmatprep.subr.bf16.mxu0 0
        %5922 = vmatpush1.bf16.msra.mxu0 %v5899
        %5923 = vmatprep.subr.bf16.mxu0 0
        %5924 = vmatpush1.bf16.msra.mxu0 %v5900
        %5925 = vmatprep.subr.bf16.mxu0 0
        %5926 = vmatpush1.bf16.msra.mxu0 0
        %5927 = vmatprep.subr.bf16.mxu0 0
        %5928 = vmatpush1.bf16.msra.mxu0 0
        %5929 = vmatprep.subr.bf16.mxu0 0
        %5930 = vmatpush1.bf16.msra.mxu0 0
        %5931 = vmatprep.subr.bf16.mxu0 0
        %5932 = vmatpush1.bf16.msra.mxu0 0
        %5933 = vmatprep.subr.bf16.mxu0 0
        %5934 = vmatpush1.bf16.msra.mxu0 0
        %5935 = vmatprep.subr.bf16.mxu0 0
        %5936 = vmatpush1.bf16.msra.mxu0 0
        %5937 = vmatprep.subr.bf16.mxu0 0
        %5938 = vmatpush1.bf16.msra.mxu0 0
        %5939 = vmatprep.subr.bf16.mxu0 0
        %5940 = vmatpush1.bf16.msra.mxu0 0
        %5941 = vmatprep.mubr.bf16.mxu0 0
        %5942 = vmatmul.mubr.bf16.gmra.mrb[0].mxu0 %v5832
        %v5943 = vpop.f32.mrb[0].mxu0
        %v5944 = vadd.f32 %v5859, %v5943
        %v5945 = vpop.f32.mrb[0].mxu0
        %v5946 = vpop.f32.mrb[0].mxu0
        %v5947 = vadd.f32 %v5859, %v5946
        %v5948 = vpop.f32.mrb[0].mxu0
        %5949 = vmatprep.mubr.bf16.mxu0 0
        %5950 = vmatmul.mubr.bf16.gmra.mrb[0].mxu0 %v5833
        %v5951 = vpop.f32.mrb[0].mxu0
        %v5952 = vadd.f32 %v5859, %v5951
        %v5953 = vpop.f32.mrb[0].mxu0
        %v5954 = vpop.f32.mrb[0].mxu0
        %v5955 = vadd.f32 %v5859, %v5954
        %v5956 = vpop.f32.mrb[0].mxu0
        %5957 = vmatprep.mubr.bf16.mxu0 0
        %5958 = vmatmul.mubr.bf16.gmra.mrb[0].mxu0 %v5834
        %v5959 = vpop.f32.mrb[0].mxu0
        %v5960 = vadd.f32 %v5859, %v5959
        %v5961 = vpop.f32.mrb[0].mxu0
        %v5962 = vpop.f32.mrb[0].mxu0
        %v5963 = vadd.f32 %v5859, %v5962
        %v5964 = vpop.f32.mrb[0].mxu0
        %5965 = vmatprep.mubr.bf16.mxu0 0
        %5966 = vmatmul.mubr.bf16.gmra.mrb[0].mxu0 %v5835
        %v5967 = vpop.f32.mrb[0].mxu0
        %v5968 = vadd.f32 %v5859, %v5967
        %v5969 = vpop.f32.mrb[0].mxu0
        %v5970 = vpop.f32.mrb[0].mxu0
        %v5971 = vadd.f32 %v5859, %v5970
        %v5972 = vpop.f32.mrb[0].mxu0
        %5973 = vdwg.mxu0
        %v5974 = vadd.f32 %v5658, %v5944
        %v5975 = vadd.f32 %v5659, %v5947
        %v5976 = vadd.f32 %v5660, %v5952
        %v5977 = vadd.f32 %v5661, %v5955
        %v5978 = vadd.f32 %v5662, %v5960
        %v5979 = vadd.f32 %v5663, %v5963
        %v5980 = vadd.f32 %v5664, %v5968
        %v5981 = vadd.f32 %v5665, %v5971
        %v5982 = vpack.c.bf16 %v5975, %v5974
        %v5983 = vpack.c.bf16 %v5977, %v5976
        %v5984 = vpack.c.bf16 %v5979, %v5978
        %v5985 = vpack.c.bf16 %v5981, %v5980
        %s5986 = scalar_lea.vmem %s6, 576
        %v5987 = vld [vmem:[%s5986] sm:$0xff]
        %v5988 = vld [vmem:[%s5986 + $0x8] sm:$0xf]
        %v5989 = vld [vmem:[%s5986 + $0xc] sm:$0xff]
        %v5990 = vld [vmem:[%s5986 + $0x14] sm:$0xf]
        %v5991 = vld [vmem:[%s5986 + $0x18] sm:$0xff]
        %v5992 = vld [vmem:[%s5986 + $0x20] sm:$0xf]
        %v5993 = vld [vmem:[%s5986 + $0x24] sm:$0xff]
        %v5994 = vld [vmem:[%s5986 + $0x2c] sm:$0xf]
        %v5995 = vld [vmem:[%s5986 + $0x30] sm:$0xff]
        %v5996 = vld [vmem:[%s5986 + $0x38] sm:$0xf]
        %v5997 = vld [vmem:[%s5986 + $0x3c] sm:$0xff]
        %v5998 = vld [vmem:[%s5986 + $0x44] sm:$0xf]
        %v5999 = vld [vmem:[%s5986 + $0x48] sm:$0xff]
        %v6000 = vld [vmem:[%s5986 + $0x50] sm:$0xf]
        %v6001 = vld [vmem:[%s5986 + $0x54] sm:$0xff]
        %v6002 = vld [vmem:[%s5986 + $0x5c] sm:$0xf]
        %v6003 = vld [vmem:[%s5986 + $0x60] sm:$0xff]
        %v6004 = vld [vmem:[%s5986 + $0x68] sm:$0xf]
        %v6005 = vld [vmem:[%s5986 + $0x6c] sm:$0xff]
        %v6006 = vld [vmem:[%s5986 + $0x74] sm:$0xf]
        %v6007 = vld [vmem:[%s5986 + $0x78] sm:$0xff]
        %v6008 = vld [vmem:[%s5986 + $0x80] sm:$0xf]
        %v6009 = vld [vmem:[%s5986 + $0x84] sm:$0xff]
        %v6010 = vld [vmem:[%s5986 + $0x8c] sm:$0xf]
        %v6011 = vld [vmem:[%s5986 + $0x90] sm:$0xff]
        %v6012 = vld [vmem:[%s5986 + $0x98] sm:$0xf]
        %v6013 = vld [vmem:[%s5986 + $0x9c] sm:$0xff]
        %v6014 = vld [vmem:[%s5986 + $0xa4] sm:$0xf]
        %v6015 = vld [vmem:[%s5986 + $0xa8] sm:$0xff]
        %v6016 = vld [vmem:[%s5986 + $0xb0] sm:$0xf]
        %v6017 = vld [vmem:[%s5986 + $0xb4] sm:$0xff]
        %v6018 = vld [vmem:[%s5986 + $0xbc] sm:$0xf]
        %s6019 = scalar_lea.vmem %s7, 9
        %v6020 = vld [vmem:[%s6019] sm:$0x7]
        %v6022 = vlaneseq
        %v6023 = vshrl.u32 %v6022, 7
        %v6024 = vsub.s32 0, %v6023
        %v6025 = vrot.slane %v6020, %v6024
        %v6026 = vlaneseq
        %v6027 = vshrl.u32 %v6026, 7
        %v6028 = vsub.s32 1, %v6027
        %v6029 = vrot.slane %v6020, %v6028
        %v6030 = vlaneseq
        %v6031 = vshrl.u32 %v6030, 7
        %v6032 = vsub.s32 2, %v6031
        %v6033 = vrot.slane %v6020, %v6032
        %v6069 = vunpack.c.l.b16 %v5987
        %v6070 = vunpack.c.h.b16 %v5987
        %v6071 = vunpack.c.l.b16 %v5988
        %v6072 = vunpack.c.l.b16 %v5989
        %v6073 = vunpack.c.h.b16 %v5989
        %v6074 = vunpack.c.l.b16 %v5990
        %v6075 = vunpack.c.l.b16 %v5991
        %v6076 = vunpack.c.h.b16 %v5991
        %v6077 = vunpack.c.l.b16 %v5992
        %v6078 = vunpack.c.l.b16 %v5993
        %v6079 = vunpack.c.h.b16 %v5993
        %v6080 = vunpack.c.l.b16 %v5994
        %v6081 = vunpack.c.l.b16 %v5995
        %v6082 = vunpack.c.h.b16 %v5995
        %v6083 = vunpack.c.l.b16 %v5996
        %v6084 = vunpack.c.l.b16 %v5997
        %v6085 = vunpack.c.h.b16 %v5997
        %v6086 = vunpack.c.l.b16 %v5998
        %v6087 = vunpack.c.l.b16 %v5999
        %v6088 = vunpack.c.h.b16 %v5999
        %v6089 = vunpack.c.l.b16 %v6000
        %v6090 = vunpack.c.l.b16 %v6001
        %v6091 = vunpack.c.h.b16 %v6001
        %v6092 = vunpack.c.l.b16 %v6002
        %v6093 = vunpack.c.l.b16 %v6003
        %v6094 = vunpack.c.h.b16 %v6003
        %v6095 = vunpack.c.l.b16 %v6004
        %v6096 = vunpack.c.l.b16 %v6005
        %v6097 = vunpack.c.h.b16 %v6005
        %v6098 = vunpack.c.l.b16 %v6006
        %v6099 = vunpack.c.l.b16 %v6007
        %v6100 = vunpack.c.h.b16 %v6007
        %v6101 = vunpack.c.l.b16 %v6008
        %v6102 = vunpack.c.l.b16 %v6009
        %v6103 = vunpack.c.h.b16 %v6009
        %v6104 = vunpack.c.l.b16 %v6010
        %v6105 = vunpack.c.l.b16 %v6011
        %v6106 = vunpack.c.h.b16 %v6011
        %v6107 = vunpack.c.l.b16 %v6012
        %v6108 = vunpack.c.l.b16 %v6013
        %v6109 = vunpack.c.h.b16 %v6013
        %v6110 = vunpack.c.l.b16 %v6014
        %v6111 = vunpack.c.l.b16 %v6015
        %v6112 = vunpack.c.h.b16 %v6015
        %v6113 = vunpack.c.l.b16 %v6016
        %v6114 = vunpack.c.l.b16 %v6017
        %v6115 = vunpack.c.h.b16 %v6017
        %v6116 = vunpack.c.l.b16 %v6018
        %v6117 = vpack.c.b16 %v6072, %v6069
        %v6118 = vpack.c.b16 %v6073, %v6070
        %v6119 = vpack.c.b16 %v6074, %v6071
        %v6120 = vpack.c.b16 %v6078, %v6075
        %v6121 = vpack.c.b16 %v6079, %v6076
        %v6122 = vpack.c.b16 %v6080, %v6077
        %v6123 = vpack.c.b16 %v6084, %v6081
        %v6124 = vpack.c.b16 %v6085, %v6082
        %v6125 = vpack.c.b16 %v6086, %v6083
        %v6126 = vpack.c.b16 %v6090, %v6087
        %v6127 = vpack.c.b16 %v6091, %v6088
        %v6128 = vpack.c.b16 %v6092, %v6089
        %v6129 = vpack.c.b16 %v6096, %v6093
        %v6130 = vpack.c.b16 %v6097, %v6094
        %v6131 = vpack.c.b16 %v6098, %v6095
        %v6132 = vpack.c.b16 %v6102, %v6099
        %v6133 = vpack.c.b16 %v6103, %v6100
        %v6134 = vpack.c.b16 %v6104, %v6101
        %v6135 = vpack.c.b16 %v6108, %v6105
        %v6136 = vpack.c.b16 %v6109, %v6106
        %v6137 = vpack.c.b16 %v6110, %v6107
        %v6138 = vpack.c.b16 %v6114, %v6111
        %v6139 = vpack.c.b16 %v6115, %v6112
        %v6140 = vpack.c.b16 %v6116, %v6113
        %6165 = vmatprep.subr.bf16.mxu0 %v6118
        %6166 = vmatpush1.bf16.msra.mxu0 %v6117
        %6167 = vmatprep.subr.bf16.mxu0 %v6121
        %6168 = vmatpush1.bf16.msra.mxu0 %v6120
        %6169 = vmatprep.subr.bf16.mxu0 %v6124
        %6170 = vmatpush1.bf16.msra.mxu0 %v6123
        %6171 = vmatprep.subr.bf16.mxu0 %v6127
        %6172 = vmatpush1.bf16.msra.mxu0 %v6126
        %6173 = vmatprep.subr.bf16.mxu0 %v6130
        %6174 = vmatpush1.bf16.msra.mxu0 %v6129
        %6175 = vmatprep.subr.bf16.mxu0 %v6133
        %6176 = vmatpush1.bf16.msra.mxu0 %v6132
        %6177 = vmatprep.subr.bf16.mxu0 %v6136
        %6178 = vmatpush1.bf16.msra.mxu0 %v6135
        %6179 = vmatprep.subr.bf16.mxu0 %v6139
        %6180 = vmatpush1.bf16.msra.mxu0 %v6138
        %6181 = vmatprep.subr.bf16.mxu0 0
        %6182 = vmatpush1.bf16.msra.mxu0 0
        %6183 = vmatprep.subr.bf16.mxu0 0
        %6184 = vmatpush1.bf16.msra.mxu0 0
        %6185 = vmatprep.subr.bf16.mxu0 0
        %6186 = vmatpush1.bf16.msra.mxu0 0
        %6187 = vmatprep.subr.bf16.mxu0 0
        %6188 = vmatpush1.bf16.msra.mxu0 0
        %6189 = vmatprep.subr.bf16.mxu0 0
        %6190 = vmatpush1.bf16.msra.mxu0 0
        %6191 = vmatprep.subr.bf16.mxu0 0
        %6192 = vmatpush1.bf16.msra.mxu0 0
        %6193 = vmatprep.subr.bf16.mxu0 0
        %6194 = vmatpush1.bf16.msra.mxu0 0
        %6195 = vmatprep.subr.bf16.mxu0 0
        %6196 = vmatpush1.bf16.msra.mxu0 0
        %6197 = vmatprep.mubr.bf16.mxu0 0
        %6198 = vmatmul.mubr.bf16.gmra.mrb[0].mxu0 %v5982
        %v6199 = vpop.f32.mrb[0].mxu0
        %v6200 = vadd.f32 %v6025, %v6199
        %v6201 = vpop.f32.mrb[0].mxu0
        %v6202 = vadd.f32 %v6029, %v6201
        %v6203 = vpop.f32.mrb[0].mxu0
        %v6204 = vadd.f32 %v6025, %v6203
        %v6205 = vpop.f32.mrb[0].mxu0
        %v6206 = vadd.f32 %v6029, %v6205
        %6207 = vmatprep.mubr.bf16.mxu0 0
        %6208 = vmatmul.mubr.bf16.gmra.mrb[0].mxu0 %v5983
        %v6209 = vpop.f32.mrb[0].mxu0
        %v6210 = vadd.f32 %v6025, %v6209
        %v6211 = vpop.f32.mrb[0].mxu0
        %v6212 = vadd.f32 %v6029, %v6211
        %v6213 = vpop.f32.mrb[0].mxu0
        %v6214 = vadd.f32 %v6025, %v6213
        %v6215 = vpop.f32.mrb[0].mxu0
        %v6216 = vadd.f32 %v6029, %v6215
        %6217 = vmatprep.mubr.bf16.mxu0 0
        %6218 = vmatmul.mubr.bf16.gmra.mrb[0].mxu0 %v5984
        %v6219 = vpop.f32.mrb[0].mxu0
        %v6220 = vadd.f32 %v6025, %v6219
        %v6221 = vpop.f32.mrb[0].mxu0
        %v6222 = vadd.f32 %v6029, %v6221
        %v6223 = vpop.f32.mrb[0].mxu0
        %v6224 = vadd.f32 %v6025, %v6223
        %v6225 = vpop.f32.mrb[0].mxu0
        %v6226 = vadd.f32 %v6029, %v6225
        %6227 = vmatprep.mubr.bf16.mxu0 0
        %6228 = vmatmul.mubr.bf16.gmra.mrb[0].mxu0 %v5985
        %v6229 = vpop.f32.mrb[0].mxu0
        %v6230 = vadd.f32 %v6025, %v6229
        %v6231 = vpop.f32.mrb[0].mxu0
        %v6232 = vadd.f32 %v6029, %v6231
        %v6233 = vpop.f32.mrb[0].mxu0
        %v6234 = vadd.f32 %v6025, %v6233
        %v6235 = vpop.f32.mrb[0].mxu0
        %v6236 = vadd.f32 %v6029, %v6235
        %6237 = vdwg.mxu0
        %6238 = vmatprep.subr.bf16.mxu0 0
        %6239 = vmatpush1.bf16.msra.mxu0 %v6119
        %6240 = vmatprep.subr.bf16.mxu0 0
        %6241 = vmatpush1.bf16.msra.mxu0 %v6122
        %6242 = vmatprep.subr.bf16.mxu0 0
        %6243 = vmatpush1.bf16.msra.mxu0 %v6125
        %6244 = vmatprep.subr.bf16.mxu0 0
        %6245 = vmatpush1.bf16.msra.mxu0 %v6128
        %6246 = vmatprep.subr.bf16.mxu0 0
        %6247 = vmatpush1.bf16.msra.mxu0 %v6131
        %6248 = vmatprep.subr.bf16.mxu0 0
        %6249 = vmatpush1.bf16.msra.mxu0 %v6134
        %6250 = vmatprep.subr.bf16.mxu0 0
        %6251 = vmatpush1.bf16.msra.mxu0 %v6137
        %6252 = vmatprep.subr.bf16.mxu0 0
        %6253 = vmatpush1.bf16.msra.mxu0 %v6140
        %6254 = vmatprep.subr.bf16.mxu0 0
        %6255 = vmatpush1.bf16.msra.mxu0 0
        %6256 = vmatprep.subr.bf16.mxu0 0
        %6257 = vmatpush1.bf16.msra.mxu0 0
        %6258 = vmatprep.subr.bf16.mxu0 0
        %6259 = vmatpush1.bf16.msra.mxu0 0
        %6260 = vmatprep.subr.bf16.mxu0 0
        %6261 = vmatpush1.bf16.msra.mxu0 0
        %6262 = vmatprep.subr.bf16.mxu0 0
        %6263 = vmatpush1.bf16.msra.mxu0 0
        %6264 = vmatprep.subr.bf16.mxu0 0
        %6265 = vmatpush1.bf16.msra.mxu0 0
        %6266 = vmatprep.subr.bf16.mxu0 0
        %6267 = vmatpush1.bf16.msra.mxu0 0
        %6268 = vmatprep.subr.bf16.mxu0 0
        %6269 = vmatpush1.bf16.msra.mxu0 0
        %6270 = vmatprep.mubr.bf16.mxu0 0
        %6271 = vmatmul.mubr.bf16.gmra.mrb[0].mxu0 %v5982
        %v6272 = vpop.f32.mrb[0].mxu0
        %v6273 = vadd.f32 %v6033, %v6272
        %v6274 = vpop.f32.mrb[0].mxu0
        %v6275 = vpop.f32.mrb[0].mxu0
        %v6276 = vadd.f32 %v6033, %v6275
        %v6277 = vpop.f32.mrb[0].mxu0
        %6278 = vmatprep.mubr.bf16.mxu0 0
        %6279 = vmatmul.mubr.bf16.gmra.mrb[0].mxu0 %v5983
        %v6280 = vpop.f32.mrb[0].mxu0
        %v6281 = vadd.f32 %v6033, %v6280
        %v6282 = vpop.f32.mrb[0].mxu0
        %v6283 = vpop.f32.mrb[0].mxu0
        %v6284 = vadd.f32 %v6033, %v6283
        %v6285 = vpop.f32.mrb[0].mxu0
        %6286 = vmatprep.mubr.bf16.mxu0 0
        %6287 = vmatmul.mubr.bf16.gmra.mrb[0].mxu0 %v5984
        %v6288 = vpop.f32.mrb[0].mxu0
        %v6289 = vadd.f32 %v6033, %v6288
        %v6290 = vpop.f32.mrb[0].mxu0
        %v6291 = vpop.f32.mrb[0].mxu0
        %v6292 = vadd.f32 %v6033, %v6291
        %v6293 = vpop.f32.mrb[0].mxu0
        %6294 = vmatprep.mubr.bf16.mxu0 0
        %6295 = vmatmul.mubr.bf16.gmra.mrb[0].mxu0 %v5985
        %v6296 = vpop.f32.mrb[0].mxu0
        %v6297 = vadd.f32 %v6033, %v6296
        %v6298 = vpop.f32.mrb[0].mxu0
        %v6299 = vpop.f32.mrb[0].mxu0
        %v6300 = vadd.f32 %v6033, %v6299
        %v6301 = vpop.f32.mrb[0].mxu0
        %6302 = vdwg.mxu0
        %v6303 = vpack.c.bf16 %v6204, %v6200
        %v6304 = vpack.c.bf16 %v6214, %v6210
        %v6305 = vpack.c.bf16 %v6224, %v6220
        %v6306 = vpack.c.bf16 %v6234, %v6230
        %v6307 = vpack.c.bf16 %v6206, %v6202
        %v6308 = vpack.c.bf16 %v6216, %v6212
        %v6309 = vpack.c.bf16 %v6226, %v6222
        %v6310 = vpack.c.bf16 %v6236, %v6232
        %6311 = vmatprep.subr.bf16.mxu0 0
        %6312 = vmatpush1.bf16.xpose.msra.mxu0 %v6307
        %6313 = vmatprep.subr.bf16.mxu0 0
        %6314 = vmatpush1.bf16.xpose.msra.mxu0 %v6308
        %6315 = vmatprep.subr.bf16.mxu0 0
        %6316 = vmatpush1.bf16.xpose.msra.mxu0 %v6309
        %6317 = vmatprep.subr.bf16.mxu0 0
        %6318 = vmatpush1.bf16.xpose.msra.mxu0 %v6310
        %6319 = vmatprep.subr.bf16.mxu0 0
        %6320 = vmatpush1.bf16.xpose.msra.mxu0 0
        %6321 = vmatprep.subr.bf16.mxu0 0
        %6322 = vmatpush1.bf16.xpose.msra.mxu0 0
        %6323 = vmatprep.subr.bf16.mxu0 0
        %6324 = vmatpush1.bf16.xpose.msra.mxu0 0
        %6325 = vmatprep.subr.bf16.mxu0 0
        %6326 = vmatpush1.bf16.xpose.msra.mxu0 0
        %6327 = vmatprep.subr.bf16.mxu0 0
        %6328 = vmatpush1.bf16.xpose.msra.mxu0 0
        %6329 = vmatprep.subr.bf16.mxu0 0
        %6330 = vmatpush1.bf16.xpose.msra.mxu0 0
        %6331 = vmatprep.subr.bf16.mxu0 0
        %6332 = vmatpush1.bf16.xpose.msra.mxu0 0
        %6333 = vmatprep.subr.bf16.mxu0 0
        %6334 = vmatpush1.bf16.xpose.msra.mxu0 0
        %6335 = vmatprep.subr.bf16.mxu0 0
        %6336 = vmatpush1.bf16.xpose.msra.mxu0 0
        %6337 = vmatprep.subr.bf16.mxu0 0
        %6338 = vmatpush1.bf16.xpose.msra.mxu0 0
        %6339 = vmatprep.subr.bf16.mxu0 0
        %6340 = vmatpush1.bf16.xpose.msra.mxu0 0
        %6341 = vmatprep.subr.bf16.mxu0 0
        %6342 = vmatpush1.bf16.xpose.msra.mxu0 0
        %6343 = vmatprep.mubr.bf16.mxu0 0
        %6344 = vmatmul.mubr.bf16.gmra.mrb[0].mxu0 %v6303
        %v6345 = vpop.f32.mrb[0].mxu0
        %v6346 = vadd.f32 0.0, %v6345
        %v6347 = vpop.f32.mrb[0].mxu0
        %v6348 = vpop.f32.mrb[0].mxu0
        %v6349 = vadd.f32 0.0, %v6348
        %v6350 = vpop.f32.mrb[0].mxu0
        %6351 = vmatprep.mubr.bf16.mxu0 0
        %6352 = vmatmul.mubr.bf16.gmra.mrb[0].mxu0 %v6304
        %v6353 = vpop.f32.mrb[0].mxu0
        %v6354 = vadd.f32 0.0, %v6353
        %v6355 = vpop.f32.mrb[0].mxu0
        %v6356 = vpop.f32.mrb[0].mxu0
        %v6357 = vadd.f32 0.0, %v6356
        %v6358 = vpop.f32.mrb[0].mxu0
        %6359 = vmatprep.mubr.bf16.mxu0 0
        %6360 = vmatmul.mubr.bf16.gmra.mrb[0].mxu0 %v6305
        %v6361 = vpop.f32.mrb[0].mxu0
        %v6362 = vadd.f32 0.0, %v6361
        %v6363 = vpop.f32.mrb[0].mxu0
        %v6364 = vpop.f32.mrb[0].mxu0
        %v6365 = vadd.f32 0.0, %v6364
        %v6366 = vpop.f32.mrb[0].mxu0
        %6367 = vmatprep.mubr.bf16.mxu0 0
        %6368 = vmatmul.mubr.bf16.gmra.mrb[0].mxu0 %v6306
        %v6369 = vpop.f32.mrb[0].mxu0
        %v6370 = vadd.f32 0.0, %v6369
        %v6371 = vpop.f32.mrb[0].mxu0
        %v6372 = vpop.f32.mrb[0].mxu0
        %v6373 = vadd.f32 0.0, %v6372
        %v6374 = vpop.f32.mrb[0].mxu0
        %6375 = vdwg.mxu0
        %v6376 = vmul.f32 %v6346, 0.088388346
        %v6377 = vmul.f32 %v6349, 0.088388346
        %v6378 = vmul.f32 %v6354, 0.088388346
        %v6379 = vmul.f32 %v6357, 0.088388346
        %v6380 = vmul.f32 %v6362, 0.088388346
        %v6381 = vmul.f32 %v6365, 0.088388346
        %v6382 = vmul.f32 %v6370, 0.088388346
        %v6383 = vmul.f32 %v6373, 0.088388346
        %v6384 = vsel %vm3266, %v6376, -inf
        %6385 = vmax.xlane.f32.xlu0 %v6384
        %v6386 = vpop.xlane.xlu0 %6385
        %v6387 = vsel %vm3266, %v6377, -inf
        %6388 = vmax.xlane.f32.xlu0 %v6387
        %v6389 = vpop.xlane.xlu0 %6388
        %v6390 = vsel %vm3266, %v6378, -inf
        %6391 = vmax.xlane.f32.xlu0 %v6390
        %v6392 = vpop.xlane.xlu0 %6391
        %v6393 = vsel %vm3266, %v6379, -inf
        %6394 = vmax.xlane.f32.xlu0 %v6393
        %v6395 = vpop.xlane.xlu0 %6394
        %v6396 = vsel %vm3266, %v6380, -inf
        %6397 = vmax.xlane.f32.xlu0 %v6396
        %v6398 = vpop.xlane.xlu0 %6397
        %v6399 = vsel %vm3266, %v6381, -inf
        %6400 = vmax.xlane.f32.xlu0 %v6399
        %v6401 = vpop.xlane.xlu0 %6400
        %v6402 = vsel %vm3266, %v6382, -inf
        %6403 = vmax.xlane.f32.xlu0 %v6402
        %v6404 = vpop.xlane.xlu0 %6403
        %v6405 = vsel %vm3266, %v6383, -inf
        %6406 = vmax.xlane.f32.xlu0 %v6405
        %v6407 = vpop.xlane.xlu0 %6406
        %v6408 = vsub.f32 %v6376, %v6386
        %v6409 = vsub.f32 %v6377, %v6389
        %v6410 = vsub.f32 %v6378, %v6392
        %v6411 = vsub.f32 %v6379, %v6395
        %v6412 = vsub.f32 %v6380, %v6398
        %v6413 = vsub.f32 %v6381, %v6401
        %v6414 = vsub.f32 %v6382, %v6404
        %v6415 = vsub.f32 %v6383, %v6407
        %v6416 = vmul.f32 %v6408, 1.442695
        %v6417 = vpow.pop %v6416
        %v6418 = vmul.f32 %v6409, 1.442695
        %v6419 = vpow.pop %v6418
        %v6420 = vmul.f32 %v6410, 1.442695
        %v6421 = vpow.pop %v6420
        %v6422 = vmul.f32 %v6411, 1.442695
        %v6423 = vpow.pop %v6422
        %v6424 = vmul.f32 %v6412, 1.442695
        %v6425 = vpow.pop %v6424
        %v6426 = vmul.f32 %v6413, 1.442695
        %v6427 = vpow.pop %v6426
        %v6428 = vmul.f32 %v6414, 1.442695
        %v6429 = vpow.pop %v6428
        %v6430 = vmul.f32 %v6415, 1.442695
        %v6431 = vpow.pop %v6430
        %v6432 = vsel %vm3266, %v6417, 0.0
        %6433 = vadd.xlane.f32.xlu0 %v6432
        %v6434 = vpop.xlane.xlu0 %6433
        %v6435 = vsel %vm3266, %v6419, 0.0
        %6436 = vadd.xlane.f32.xlu0 %v6435
        %v6437 = vpop.xlane.xlu0 %6436
        %v6438 = vsel %vm3266, %v6421, 0.0
        %6439 = vadd.xlane.f32.xlu0 %v6438
        %v6440 = vpop.xlane.xlu0 %6439
        %v6441 = vsel %vm3266, %v6423, 0.0
        %6442 = vadd.xlane.f32.xlu0 %v6441
        %v6443 = vpop.xlane.xlu0 %6442
        %v6444 = vsel %vm3266, %v6425, 0.0
        %6445 = vadd.xlane.f32.xlu0 %v6444
        %v6446 = vpop.xlane.xlu0 %6445
        %v6447 = vsel %vm3266, %v6427, 0.0
        %6448 = vadd.xlane.f32.xlu0 %v6447
        %v6449 = vpop.xlane.xlu0 %6448
        %v6450 = vsel %vm3266, %v6429, 0.0
        %6451 = vadd.xlane.f32.xlu0 %v6450
        %v6452 = vpop.xlane.xlu0 %6451
        %v6453 = vsel %vm3266, %v6431, 0.0
        %6454 = vadd.xlane.f32.xlu0 %v6453
        %v6455 = vpop.xlane.xlu0 %6454
        %v6456 = vrcp.pop %v6434
        %v6457 = vrcp.pop %v6437
        %v6458 = vrcp.pop %v6440
        %v6459 = vrcp.pop %v6443
        %v6460 = vrcp.pop %v6446
        %v6461 = vrcp.pop %v6449
        %v6462 = vrcp.pop %v6452
        %v6463 = vrcp.pop %v6455
        %v6464 = vmul.f32 %v6417, %v6456
        %v6465 = vmul.f32 %v6419, %v6457
        %v6466 = vmul.f32 %v6421, %v6458
        %v6467 = vmul.f32 %v6423, %v6459
        %v6468 = vmul.f32 %v6425, %v6460
        %v6469 = vmul.f32 %v6427, %v6461
        %v6470 = vmul.f32 %v6429, %v6462
        %v6471 = vmul.f32 %v6431, %v6463
        %v6472 = vpack.c.bf16 %v6465, %v6464
        %v6473 = vpack.c.bf16 %v6467, %v6466
        %v6474 = vpack.c.bf16 %v6469, %v6468
        %v6475 = vpack.c.bf16 %v6471, %v6470
        %v6476 = vpack.c.bf16 %v6276, %v6273
        %v6477 = vpack.c.bf16 %v6284, %v6281
        %v6478 = vpack.c.bf16 %v6292, %v6289
        %v6479 = vpack.c.bf16 %v6300, %v6297
        %v6481 = vsel %vm3266, %v6472, 0
        %v6484 = vsel %vm3266, %v6473, 0
        %v6487 = vsel %vm3266, %v6474, 0
        %v6490 = vsel %vm3266, %v6475, 0
        %6492 = vmatprep.subr.bf16.mxu0 0
        %6493 = vmatpush1.bf16.msra.mxu0 %v6476
        %6494 = vmatprep.subr.bf16.mxu0 0
        %6495 = vmatpush1.bf16.msra.mxu0 %v6477
        %6496 = vmatprep.subr.bf16.mxu0 0
        %6497 = vmatpush1.bf16.msra.mxu0 %v6478
        %6498 = vmatprep.subr.bf16.mxu0 0
        %6499 = vmatpush1.bf16.msra.mxu0 %v6479
        %6500 = vmatprep.subr.bf16.mxu0 0
        %6501 = vmatpush1.bf16.msra.mxu0 0
        %6502 = vmatprep.subr.bf16.mxu0 0
        %6503 = vmatpush1.bf16.msra.mxu0 0
        %6504 = vmatprep.subr.bf16.mxu0 0
        %6505 = vmatpush1.bf16.msra.mxu0 0
        %6506 = vmatprep.subr.bf16.mxu0 0
        %6507 = vmatpush1.bf16.msra.mxu0 0
        %6508 = vmatprep.subr.bf16.mxu0 0
        %6509 = vmatpush1.bf16.msra.mxu0 0
        %6510 = vmatprep.subr.bf16.mxu0 0
        %6511 = vmatpush1.bf16.msra.mxu0 0
        %6512 = vmatprep.subr.bf16.mxu0 0
        %6513 = vmatpush1.bf16.msra.mxu0 0
        %6514 = vmatprep.subr.bf16.mxu0 0
        %6515 = vmatpush1.bf16.msra.mxu0 0
        %6516 = vmatprep.subr.bf16.mxu0 0
        %6517 = vmatpush1.bf16.msra.mxu0 0
        %6518 = vmatprep.subr.bf16.mxu0 0
        %6519 = vmatpush1.bf16.msra.mxu0 0
        %6520 = vmatprep.subr.bf16.mxu0 0
        %6521 = vmatpush1.bf16.msra.mxu0 0
        %6522 = vmatprep.subr.bf16.mxu0 0
        %6523 = vmatpush1.bf16.msra.mxu0 0
        %6524 = vmatprep.mubr.bf16.mxu0 0
        %6525 = vmatmul.mubr.bf16.gmra.mrb[0].mxu0 %v6481
        %v6526 = vpop.f32.mrb[0].mxu0
        %v6527 = vadd.f32 0.0, %v6526
        %v6528 = vpop.f32.mrb[0].mxu0
        %v6529 = vpop.f32.mrb[0].mxu0
        %v6530 = vadd.f32 0.0, %v6529
        %v6531 = vpop.f32.mrb[0].mxu0
        %6532 = vmatprep.mubr.bf16.mxu0 0
        %6533 = vmatmul.mubr.bf16.gmra.mrb[0].mxu0 %v6484
        %v6534 = vpop.f32.mrb[0].mxu0
        %v6535 = vadd.f32 0.0, %v6534
        %v6536 = vpop.f32.mrb[0].mxu0
        %v6537 = vpop.f32.mrb[0].mxu0
        %v6538 = vadd.f32 0.0, %v6537
        %v6539 = vpop.f32.mrb[0].mxu0
        %6540 = vmatprep.mubr.bf16.mxu0 0
        %6541 = vmatmul.mubr.bf16.gmra.mrb[0].mxu0 %v6487
        %v6542 = vpop.f32.mrb[0].mxu0
        %v6543 = vadd.f32 0.0, %v6542
        %v6544 = vpop.f32.mrb[0].mxu0
        %v6545 = vpop.f32.mrb[0].mxu0
        %v6546 = vadd.f32 0.0, %v6545
        %v6547 = vpop.f32.mrb[0].mxu0
        %6548 = vmatprep.mubr.bf16.mxu0 0
        %6549 = vmatmul.mubr.bf16.gmra.mrb[0].mxu0 %v6490
        %v6550 = vpop.f32.mrb[0].mxu0
        %v6551 = vadd.f32 0.0, %v6550
        %v6552 = vpop.f32.mrb[0].mxu0
        %v6553 = vpop.f32.mrb[0].mxu0
        %v6554 = vadd.f32 0.0, %v6553
        %v6555 = vpop.f32.mrb[0].mxu0
        %6556 = vdwg.mxu0
        %v6557 = vpack.c.bf16 %v6530, %v6527
        %v6558 = vpack.c.bf16 %v6538, %v6535
        %v6559 = vpack.c.bf16 %v6546, %v6543
        %v6560 = vpack.c.bf16 %v6554, %v6551
        %s6561 = scalar_lea.vmem %s8, 192
        %v6562 = vld [vmem:[%s6561] sm:$0xf]
        %v6563 = vld [vmem:[%s6561 + $0x4] sm:$0xf]
        %v6564 = vld [vmem:[%s6561 + $0x8] sm:$0xf]
        %v6565 = vld [vmem:[%s6561 + $0xc] sm:$0xf]
        %v6566 = vld [vmem:[%s6561 + $0x10] sm:$0xf]
        %v6567 = vld [vmem:[%s6561 + $0x14] sm:$0xf]
        %v6568 = vld [vmem:[%s6561 + $0x18] sm:$0xf]
        %v6569 = vld [vmem:[%s6561 + $0x1c] sm:$0xf]
        %v6570 = vld [vmem:[%s6561 + $0x20] sm:$0xf]
        %v6571 = vld [vmem:[%s6561 + $0x24] sm:$0xf]
        %v6572 = vld [vmem:[%s6561 + $0x28] sm:$0xf]
        %v6573 = vld [vmem:[%s6561 + $0x2c] sm:$0xf]
        %v6574 = vld [vmem:[%s6561 + $0x30] sm:$0xf]
        %v6575 = vld [vmem:[%s6561 + $0x34] sm:$0xf]
        %v6576 = vld [vmem:[%s6561 + $0x38] sm:$0xf]
        %v6577 = vld [vmem:[%s6561 + $0x3c] sm:$0xf]
        %s6578 = scalar_lea.vmem %s9, 3
        %v6579 = vld [vmem:[%s6578] sm:$0x1]
        %v6581 = vlaneseq
        %v6582 = vshrl.u32 %v6581, 7
        %v6583 = vsub.s32 0, %v6582
        %v6584 = vrot.slane %v6579, %v6583
        %v6602 = vunpack.c.l.b16 %v6562
        %v6603 = vunpack.c.l.b16 %v6563
        %v6604 = vunpack.c.l.b16 %v6564
        %v6605 = vunpack.c.l.b16 %v6565
        %v6606 = vunpack.c.l.b16 %v6566
        %v6607 = vunpack.c.l.b16 %v6567
        %v6608 = vunpack.c.l.b16 %v6568
        %v6609 = vunpack.c.l.b16 %v6569
        %v6610 = vunpack.c.l.b16 %v6570
        %v6611 = vunpack.c.l.b16 %v6571
        %v6612 = vunpack.c.l.b16 %v6572
        %v6613 = vunpack.c.l.b16 %v6573
        %v6614 = vunpack.c.l.b16 %v6574
        %v6615 = vunpack.c.l.b16 %v6575
        %v6616 = vunpack.c.l.b16 %v6576
        %v6617 = vunpack.c.l.b16 %v6577
        %v6618 = vpack.c.b16 %v6603, %v6602
        %v6619 = vpack.c.b16 %v6605, %v6604
        %v6620 = vpack.c.b16 %v6607, %v6606
        %v6621 = vpack.c.b16 %v6609, %v6608
        %v6622 = vpack.c.b16 %v6611, %v6610
        %v6623 = vpack.c.b16 %v6613, %v6612
        %v6624 = vpack.c.b16 %v6615, %v6614
        %v6625 = vpack.c.b16 %v6617, %v6616
        %6634 = vmatprep.subr.bf16.mxu0 0
        %6635 = vmatpush1.bf16.msra.mxu0 %v6618
        %6636 = vmatprep.subr.bf16.mxu0 0
        %6637 = vmatpush1.bf16.msra.mxu0 %v6619
        %6638 = vmatprep.subr.bf16.mxu0 0
        %6639 = vmatpush1.bf16.msra.mxu0 %v6620
        %6640 = vmatprep.subr.bf16.mxu0 0
        %6641 = vmatpush1.bf16.msra.mxu0 %v6621
        %6642 = vmatprep.subr.bf16.mxu0 0
        %6643 = vmatpush1.bf16.msra.mxu0 %v6622
        %6644 = vmatprep.subr.bf16.mxu0 0
        %6645 = vmatpush1.bf16.msra.mxu0 %v6623
        %6646 = vmatprep.subr.bf16.mxu0 0
        %6647 = vmatpush1.bf16.msra.mxu0 %v6624
        %6648 = vmatprep.subr.bf16.mxu0 0
        %6649 = vmatpush1.bf16.msra.mxu0 %v6625
        %6650 = vmatprep.subr.bf16.mxu0 0
        %6651 = vmatpush1.bf16.msra.mxu0 0
        %6652 = vmatprep.subr.bf16.mxu0 0
        %6653 = vmatpush1.bf16.msra.mxu0 0
        %6654 = vmatprep.subr.bf16.mxu0 0
        %6655 = vmatpush1.bf16.msra.mxu0 0
        %6656 = vmatprep.subr.bf16.mxu0 0
        %6657 = vmatpush1.bf16.msra.mxu0 0
        %6658 = vmatprep.subr.bf16.mxu0 0
        %6659 = vmatpush1.bf16.msra.mxu0 0
        %6660 = vmatprep.subr.bf16.mxu0 0
        %6661 = vmatpush1.bf16.msra.mxu0 0
        %6662 = vmatprep.subr.bf16.mxu0 0
        %6663 = vmatpush1.bf16.msra.mxu0 0
        %6664 = vmatprep.subr.bf16.mxu0 0
        %6665 = vmatpush1.bf16.msra.mxu0 0
        %6666 = vmatprep.mubr.bf16.mxu0 0
        %6667 = vmatmul.mubr.bf16.gmra.mrb[0].mxu0 %v6557
        %v6668 = vpop.f32.mrb[0].mxu0
        %v6669 = vadd.f32 %v6584, %v6668
        %v6670 = vpop.f32.mrb[0].mxu0
        %v6671 = vpop.f32.mrb[0].mxu0
        %v6672 = vadd.f32 %v6584, %v6671
        %v6673 = vpop.f32.mrb[0].mxu0
        %6674 = vmatprep.mubr.bf16.mxu0 0
        %6675 = vmatmul.mubr.bf16.gmra.mrb[0].mxu0 %v6558
        %v6676 = vpop.f32.mrb[0].mxu0
        %v6677 = vadd.f32 %v6584, %v6676
        %v6678 = vpop.f32.mrb[0].mxu0
        %v6679 = vpop.f32.mrb[0].mxu0
        %v6680 = vadd.f32 %v6584, %v6679
        %v6681 = vpop.f32.mrb[0].mxu0
        %6682 = vmatprep.mubr.bf16.mxu0 0
        %6683 = vmatmul.mubr.bf16.gmra.mrb[0].mxu0 %v6559
        %v6684 = vpop.f32.mrb[0].mxu0
        %v6685 = vadd.f32 %v6584, %v6684
        %v6686 = vpop.f32.mrb[0].mxu0
        %v6687 = vpop.f32.mrb[0].mxu0
        %v6688 = vadd.f32 %v6584, %v6687
        %v6689 = vpop.f32.mrb[0].mxu0
        %6690 = vmatprep.mubr.bf16.mxu0 0
        %6691 = vmatmul.mubr.bf16.gmra.mrb[0].mxu0 %v6560
        %v6692 = vpop.f32.mrb[0].mxu0
        %v6693 = vadd.f32 %v6584, %v6692
        %v6694 = vpop.f32.mrb[0].mxu0
        %v6695 = vpop.f32.mrb[0].mxu0
        %v6696 = vadd.f32 %v6584, %v6695
        %v6697 = vpop.f32.mrb[0].mxu0
        %6698 = vdwg.mxu0
        %v6699 = vadd.f32 %v5974, %v6669
        %v6700 = vadd.f32 %v5975, %v6672
        %v6701 = vadd.f32 %v5976, %v6677
        %v6702 = vadd.f32 %v5977, %v6680
        %v6703 = vadd.f32 %v5978, %v6685
        %v6704 = vadd.f32 %v5979, %v6688
        %v6705 = vadd.f32 %v5980, %v6693
        %v6706 = vadd.f32 %v5981, %v6696
        %v6707 = vpack.c.bf16 %v6700, %v6699
        %v6708 = vpack.c.bf16 %v6702, %v6701
        %v6709 = vpack.c.bf16 %v6704, %v6703
        %v6710 = vpack.c.bf16 %v6706, %v6705
        %s6711 = scalar_lea.vmem %s10, 192
        %v6712 = vld [vmem:[%s6711] sm:$0xf]
        %v6713 = vld [vmem:[%s6711 + $0x4] sm:$0xf]
        %v6714 = vld [vmem:[%s6711 + $0x8] sm:$0xf]
        %v6715 = vld [vmem:[%s6711 + $0xc] sm:$0xf]
        %v6716 = vld [vmem:[%s6711 + $0x10] sm:$0xf]
        %v6717 = vld [vmem:[%s6711 + $0x14] sm:$0xf]
        %v6718 = vld [vmem:[%s6711 + $0x18] sm:$0xf]
        %v6719 = vld [vmem:[%s6711 + $0x1c] sm:$0xf]
        %v6720 = vld [vmem:[%s6711 + $0x20] sm:$0xf]
        %v6721 = vld [vmem:[%s6711 + $0x24] sm:$0xf]
        %v6722 = vld [vmem:[%s6711 + $0x28] sm:$0xf]
        %v6723 = vld [vmem:[%s6711 + $0x2c] sm:$0xf]
        %v6724 = vld [vmem:[%s6711 + $0x30] sm:$0xf]
        %v6725 = vld [vmem:[%s6711 + $0x34] sm:$0xf]
        %v6726 = vld [vmem:[%s6711 + $0x38] sm:$0xf]
        %v6727 = vld [vmem:[%s6711 + $0x3c] sm:$0xf]
        %s6728 = scalar_lea.vmem %s11, 3
        %v6729 = vld [vmem:[%s6728] sm:$0x1]
        %v6731 = vlaneseq
        %v6732 = vshrl.u32 %v6731, 7
        %v6733 = vsub.s32 0, %v6732
        %v6734 = vrot.slane %v6729, %v6733
        %v6752 = vunpack.c.l.b16 %v6712
        %v6753 = vunpack.c.l.b16 %v6713
        %v6754 = vunpack.c.l.b16 %v6714
        %v6755 = vunpack.c.l.b16 %v6715
        %v6756 = vunpack.c.l.b16 %v6716
        %v6757 = vunpack.c.l.b16 %v6717
        %v6758 = vunpack.c.l.b16 %v6718
        %v6759 = vunpack.c.l.b16 %v6719
        %v6760 = vunpack.c.l.b16 %v6720
        %v6761 = vunpack.c.l.b16 %v6721
        %v6762 = vunpack.c.l.b16 %v6722
        %v6763 = vunpack.c.l.b16 %v6723
        %v6764 = vunpack.c.l.b16 %v6724
        %v6765 = vunpack.c.l.b16 %v6725
        %v6766 = vunpack.c.l.b16 %v6726
        %v6767 = vunpack.c.l.b16 %v6727
        %v6768 = vpack.c.b16 %v6753, %v6752
        %v6769 = vpack.c.b16 %v6755, %v6754
        %v6770 = vpack.c.b16 %v6757, %v6756
        %v6771 = vpack.c.b16 %v6759, %v6758
        %v6772 = vpack.c.b16 %v6761, %v6760
        %v6773 = vpack.c.b16 %v6763, %v6762
        %v6774 = vpack.c.b16 %v6765, %v6764
        %v6775 = vpack.c.b16 %v6767, %v6766
        %6784 = vmatprep.subr.bf16.mxu0 0
        %6785 = vmatpush1.bf16.msra.mxu0 %v6768
        %6786 = vmatprep.subr.bf16.mxu0 0
        %6787 = vmatpush1.bf16.msra.mxu0 %v6769
        %6788 = vmatprep.subr.bf16.mxu0 0
        %6789 = vmatpush1.bf16.msra.mxu0 %v6770
        %6790 = vmatprep.subr.bf16.mxu0 0
        %6791 = vmatpush1.bf16.msra.mxu0 %v6771
        %6792 = vmatprep.subr.bf16.mxu0 0
        %6793 = vmatpush1.bf16.msra.mxu0 %v6772
        %6794 = vmatprep.subr.bf16.mxu0 0
        %6795 = vmatpush1.bf16.msra.mxu0 %v6773
        %6796 = vmatprep.subr.bf16.mxu0 0
        %6797 = vmatpush1.bf16.msra.mxu0 %v6774
        %6798 = vmatprep.subr.bf16.mxu0 0
        %6799 = vmatpush1.bf16.msra.mxu0 %v6775
        %6800 = vmatprep.subr.bf16.mxu0 0
        %6801 = vmatpush1.bf16.msra.mxu0 0
        %6802 = vmatprep.subr.bf16.mxu0 0
        %6803 = vmatpush1.bf16.msra.mxu0 0
        %6804 = vmatprep.subr.bf16.mxu0 0
        %6805 = vmatpush1.bf16.msra.mxu0 0
        %6806 = vmatprep.subr.bf16.mxu0 0
        %6807 = vmatpush1.bf16.msra.mxu0 0
        %6808 = vmatprep.subr.bf16.mxu0 0
        %6809 = vmatpush1.bf16.msra.mxu0 0
        %6810 = vmatprep.subr.bf16.mxu0 0
        %6811 = vmatpush1.bf16.msra.mxu0 0
        %6812 = vmatprep.subr.bf16.mxu0 0
        %6813 = vmatpush1.bf16.msra.mxu0 0
        %6814 = vmatprep.subr.bf16.mxu0 0
        %6815 = vmatpush1.bf16.msra.mxu0 0
        %6816 = vmatprep.mubr.bf16.mxu0 0
        %6817 = vmatmul.mubr.bf16.gmra.mrb[0].mxu0 %v6707
        %v6818 = vpop.f32.mrb[0].mxu0
        %v6819 = vadd.f32 %v6734, %v6818
        %v6820 = vpop.f32.mrb[0].mxu0
        %v6821 = vpop.f32.mrb[0].mxu0
        %v6822 = vadd.f32 %v6734, %v6821
        %v6823 = vpop.f32.mrb[0].mxu0
        %6824 = vmatprep.mubr.bf16.mxu0 0
        %6825 = vmatmul.mubr.bf16.gmra.mrb[0].mxu0 %v6708
        %v6826 = vpop.f32.mrb[0].mxu0
        %v6827 = vadd.f32 %v6734, %v6826
        %v6828 = vpop.f32.mrb[0].mxu0
        %v6829 = vpop.f32.mrb[0].mxu0
        %v6830 = vadd.f32 %v6734, %v6829
        %v6831 = vpop.f32.mrb[0].mxu0
        %6832 = vmatprep.mubr.bf16.mxu0 0
        %6833 = vmatmul.mubr.bf16.gmra.mrb[0].mxu0 %v6709
        %v6834 = vpop.f32.mrb[0].mxu0
        %v6835 = vadd.f32 %v6734, %v6834
        %v6836 = vpop.f32.mrb[0].mxu0
        %v6837 = vpop.f32.mrb[0].mxu0
        %v6838 = vadd.f32 %v6734, %v6837
        %v6839 = vpop.f32.mrb[0].mxu0
        %6840 = vmatprep.mubr.bf16.mxu0 0
        %6841 = vmatmul.mubr.bf16.gmra.mrb[0].mxu0 %v6710
        %v6842 = vpop.f32.mrb[0].mxu0
        %v6843 = vadd.f32 %v6734, %v6842
        %v6844 = vpop.f32.mrb[0].mxu0
        %v6845 = vpop.f32.mrb[0].mxu0
        %v6846 = vadd.f32 %v6734, %v6845
        %v6847 = vpop.f32.mrb[0].mxu0
        %6848 = vdwg.mxu0
        %vm6849 = vcmp.gt.f32.partialorder %v6819, 0.0
        %vm6850 = vcmp.gt.f32.partialorder %v6822, 0.0
        %vm6851 = vcmp.gt.f32.partialorder %v6827, 0.0
        %vm6852 = vcmp.gt.f32.partialorder %v6830, 0.0
        %vm6853 = vcmp.gt.f32.partialorder %v6835, 0.0
        %vm6854 = vcmp.gt.f32.partialorder %v6838, 0.0
        %vm6855 = vcmp.gt.f32.partialorder %v6843, 0.0
        %vm6856 = vcmp.gt.f32.partialorder %v6846, 0.0
        %v6857 = vmul.f32 %v6819, 0.2
        %v6858 = vmul.f32 %v6822, 0.2
        %v6859 = vmul.f32 %v6827, 0.2
        %v6860 = vmul.f32 %v6830, 0.2
        %v6861 = vmul.f32 %v6835, 0.2
        %v6862 = vmul.f32 %v6838, 0.2
        %v6863 = vmul.f32 %v6843, 0.2
        %v6864 = vmul.f32 %v6846, 0.2
        %v6865 = vsel %vm6849, %v6819, %v6857
        %v6866 = vsel %vm6850, %v6822, %v6858
        %v6867 = vsel %vm6851, %v6827, %v6859
        %v6868 = vsel %vm6852, %v6830, %v6860
        %v6869 = vsel %vm6853, %v6835, %v6861
        %v6870 = vsel %vm6854, %v6838, %v6862
        %v6871 = vsel %vm6855, %v6843, %v6863
        %v6872 = vsel %vm6856, %v6846, %v6864
        %v6873 = vpack.c.bf16 %v6866, %v6865
        %v6874 = vpack.c.bf16 %v6868, %v6867
        %v6875 = vpack.c.bf16 %v6870, %v6869
        %v6876 = vpack.c.bf16 %v6872, %v6871
        %s6877 = scalar_lea.vmem [#allocation5], 192
        %v6878 = vld [vmem:[%s6877] sm:$0xf]
        %v6879 = vld [vmem:[%s6877 + $0x4] sm:$0xf]
        %v6880 = vld [vmem:[%s6877 + $0x8] sm:$0xf]
        %v6881 = vld [vmem:[%s6877 + $0xc] sm:$0xf]
        %v6882 = vld [vmem:[%s6877 + $0x10] sm:$0xf]
        %v6883 = vld [vmem:[%s6877 + $0x14] sm:$0xf]
        %v6884 = vld [vmem:[%s6877 + $0x18] sm:$0xf]
        %v6885 = vld [vmem:[%s6877 + $0x1c] sm:$0xf]
        %v6886 = vld [vmem:[%s6877 + $0x20] sm:$0xf]
        %v6887 = vld [vmem:[%s6877 + $0x24] sm:$0xf]
        %v6888 = vld [vmem:[%s6877 + $0x28] sm:$0xf]
        %v6889 = vld [vmem:[%s6877 + $0x2c] sm:$0xf]
        %v6890 = vld [vmem:[%s6877 + $0x30] sm:$0xf]
        %v6891 = vld [vmem:[%s6877 + $0x34] sm:$0xf]
        %v6892 = vld [vmem:[%s6877 + $0x38] sm:$0xf]
        %v6893 = vld [vmem:[%s6877 + $0x3c] sm:$0xf]
        %s6894 = scalar_lea.vmem %s13, 3
        %v6895 = vld [vmem:[%s6894] sm:$0x1]
        %v6897 = vlaneseq
        %v6898 = vshrl.u32 %v6897, 7
        %v6899 = vsub.s32 0, %v6898
        %v6900 = vrot.slane %v6895, %v6899
        %v6918 = vunpack.c.l.b16 %v6878
        %v6919 = vunpack.c.l.b16 %v6879
        %v6920 = vunpack.c.l.b16 %v6880
        %v6921 = vunpack.c.l.b16 %v6881
        %v6922 = vunpack.c.l.b16 %v6882
        %v6923 = vunpack.c.l.b16 %v6883
        %v6924 = vunpack.c.l.b16 %v6884
        %v6925 = vunpack.c.l.b16 %v6885
        %v6926 = vunpack.c.l.b16 %v6886
        %v6927 = vunpack.c.l.b16 %v6887
        %v6928 = vunpack.c.l.b16 %v6888
        %v6929 = vunpack.c.l.b16 %v6889
        %v6930 = vunpack.c.l.b16 %v6890
        %v6931 = vunpack.c.l.b16 %v6891
        %v6932 = vunpack.c.l.b16 %v6892
        %v6933 = vunpack.c.l.b16 %v6893
        %v6934 = vpack.c.b16 %v6919, %v6918
        %v6935 = vpack.c.b16 %v6921, %v6920
        %v6936 = vpack.c.b16 %v6923, %v6922
        %v6937 = vpack.c.b16 %v6925, %v6924
        %v6938 = vpack.c.b16 %v6927, %v6926
        %v6939 = vpack.c.b16 %v6929, %v6928
        %v6940 = vpack.c.b16 %v6931, %v6930
        %v6941 = vpack.c.b16 %v6933, %v6932
        %6950 = vmatprep.subr.bf16.mxu0 0
        %6951 = vmatpush1.bf16.msra.mxu0 %v6934
        %6952 = vmatprep.subr.bf16.mxu0 0
        %6953 = vmatpush1.bf16.msra.mxu0 %v6935
        %6954 = vmatprep.subr.bf16.mxu0 0
        %6955 = vmatpush1.bf16.msra.mxu0 %v6936
        %6956 = vmatprep.subr.bf16.mxu0 0
        %6957 = vmatpush1.bf16.msra.mxu0 %v6937
        %6958 = vmatprep.subr.bf16.mxu0 0
        %6959 = vmatpush1.bf16.msra.mxu0 %v6938
        %6960 = vmatprep.subr.bf16.mxu0 0
        %6961 = vmatpush1.bf16.msra.mxu0 %v6939
        %6962 = vmatprep.subr.bf16.mxu0 0
        %6963 = vmatpush1.bf16.msra.mxu0 %v6940
        %6964 = vmatprep.subr.bf16.mxu0 0
        %6965 = vmatpush1.bf16.msra.mxu0 %v6941
        %6966 = vmatprep.subr.bf16.mxu0 0
        %6967 = vmatpush1.bf16.msra.mxu0 0
        %6968 = vmatprep.subr.bf16.mxu0 0
        %6969 = vmatpush1.bf16.msra.mxu0 0
        %6970 = vmatprep.subr.bf16.mxu0 0
        %6971 = vmatpush1.bf16.msra.mxu0 0
        %6972 = vmatprep.subr.bf16.mxu0 0
        %6973 = vmatpush1.bf16.msra.mxu0 0
        %6974 = vmatprep.subr.bf16.mxu0 0
        %6975 = vmatpush1.bf16.msra.mxu0 0
        %6976 = vmatprep.subr.bf16.mxu0 0
        %6977 = vmatpush1.bf16.msra.mxu0 0
        %6978 = vmatprep.subr.bf16.mxu0 0
        %6979 = vmatpush1.bf16.msra.mxu0 0
        %6980 = vmatprep.subr.bf16.mxu0 0
        %6981 = vmatpush1.bf16.msra.mxu0 0
        %6982 = vmatprep.mubr.bf16.mxu0 0
        %6983 = vmatmul.mubr.bf16.gmra.mrb[0].mxu0 %v6873
        %v6984 = vpop.f32.mrb[0].mxu0
        %v6985 = vadd.f32 %v6900, %v6984
        %v6986 = vpop.f32.mrb[0].mxu0
        %v6987 = vpop.f32.mrb[0].mxu0
        %v6988 = vadd.f32 %v6900, %v6987
        %v6989 = vpop.f32.mrb[0].mxu0
        %6990 = vmatprep.mubr.bf16.mxu0 0
        %6991 = vmatmul.mubr.bf16.gmra.mrb[0].mxu0 %v6874
        %v6992 = vpop.f32.mrb[0].mxu0
        %v6993 = vadd.f32 %v6900, %v6992
        %v6994 = vpop.f32.mrb[0].mxu0
        %v6995 = vpop.f32.mrb[0].mxu0
        %v6996 = vadd.f32 %v6900, %v6995
        %v6997 = vpop.f32.mrb[0].mxu0
        %6998 = vmatprep.mubr.bf16.mxu0 0
        %6999 = vmatmul.mubr.bf16.gmra.mrb[0].mxu0 %v6875
        %v7000 = vpop.f32.mrb[0].mxu0
        %v7001 = vadd.f32 %v6900, %v7000
        %v7002 = vpop.f32.mrb[0].mxu0
        %v7003 = vpop.f32.mrb[0].mxu0
        %v7004 = vadd.f32 %v6900, %v7003
        %v7005 = vpop.f32.mrb[0].mxu0
        %7006 = vmatprep.mubr.bf16.mxu0 0
        %7007 = vmatmul.mubr.bf16.gmra.mrb[0].mxu0 %v6876
        %v7008 = vpop.f32.mrb[0].mxu0
        %v7009 = vadd.f32 %v6900, %v7008
        %v7010 = vpop.f32.mrb[0].mxu0
        %v7011 = vpop.f32.mrb[0].mxu0
        %v7012 = vadd.f32 %v6900, %v7011
        %v7013 = vpop.f32.mrb[0].mxu0
        %7014 = vdwg.mxu0
        %v7015 = vadd.f32 %v6699, %v6985
        %v7016 = vadd.f32 %v6700, %v6988
        %v7017 = vadd.f32 %v6701, %v6993
        %v7018 = vadd.f32 %v6702, %v6996
        %v7019 = vadd.f32 %v6703, %v7001
        %v7020 = vadd.f32 %v6704, %v7004
        %v7021 = vadd.f32 %v6705, %v7009
        %v7022 = vadd.f32 %v6706, %v7012
        %v7023 = vpack.c.bf16 %v7016, %v7015
        %v7024 = vpack.c.bf16 %v7018, %v7017
        %v7025 = vpack.c.bf16 %v7020, %v7019
        %v7026 = vpack.c.bf16 %v7022, %v7021
        %s7027 = scalar_lea.vmem %s6, 768
        %v7028 = vld [vmem:[%s7027] sm:$0xff]
        %v7029 = vld [vmem:[%s7027 + $0x8] sm:$0xf]
        %v7030 = vld [vmem:[%s7027 + $0xc] sm:$0xff]
        %v7031 = vld [vmem:[%s7027 + $0x14] sm:$0xf]
        %v7032 = vld [vmem:[%s7027 + $0x18] sm:$0xff]
        %v7033 = vld [vmem:[%s7027 + $0x20] sm:$0xf]
        %v7034 = vld [vmem:[%s7027 + $0x24] sm:$0xff]
        %v7035 = vld [vmem:[%s7027 + $0x2c] sm:$0xf]
        %v7036 = vld [vmem:[%s7027 + $0x30] sm:$0xff]
        %v7037 = vld [vmem:[%s7027 + $0x38] sm:$0xf]
        %v7038 = vld [vmem:[%s7027 + $0x3c] sm:$0xff]
        %v7039 = vld [vmem:[%s7027 + $0x44] sm:$0xf]
        %v7040 = vld [vmem:[%s7027 + $0x48] sm:$0xff]
        %v7041 = vld [vmem:[%s7027 + $0x50] sm:$0xf]
        %v7042 = vld [vmem:[%s7027 + $0x54] sm:$0xff]
        %v7043 = vld [vmem:[%s7027 + $0x5c] sm:$0xf]
        %v7044 = vld [vmem:[%s7027 + $0x60] sm:$0xff]
        %v7045 = vld [vmem:[%s7027 + $0x68] sm:$0xf]
        %v7046 = vld [vmem:[%s7027 + $0x6c] sm:$0xff]
        %v7047 = vld [vmem:[%s7027 + $0x74] sm:$0xf]
        %v7048 = vld [vmem:[%s7027 + $0x78] sm:$0xff]
        %v7049 = vld [vmem:[%s7027 + $0x80] sm:$0xf]
        %v7050 = vld [vmem:[%s7027 + $0x84] sm:$0xff]
        %v7051 = vld [vmem:[%s7027 + $0x8c] sm:$0xf]
        %v7052 = vld [vmem:[%s7027 + $0x90] sm:$0xff]
        %v7053 = vld [vmem:[%s7027 + $0x98] sm:$0xf]
        %v7054 = vld [vmem:[%s7027 + $0x9c] sm:$0xff]
        %v7055 = vld [vmem:[%s7027 + $0xa4] sm:$0xf]
        %v7056 = vld [vmem:[%s7027 + $0xa8] sm:$0xff]
        %v7057 = vld [vmem:[%s7027 + $0xb0] sm:$0xf]
        %v7058 = vld [vmem:[%s7027 + $0xb4] sm:$0xff]
        %v7059 = vld [vmem:[%s7027 + $0xbc] sm:$0xf]
        %s7060 = scalar_lea.vmem %s7, 12
        %v7061 = vld [vmem:[%s7060] sm:$0x7]
        %v7063 = vlaneseq
        %v7064 = vshrl.u32 %v7063, 7
        %v7065 = vsub.s32 0, %v7064
        %v7066 = vrot.slane %v7061, %v7065
        %v7067 = vlaneseq
        %v7068 = vshrl.u32 %v7067, 7
        %v7069 = vsub.s32 1, %v7068
        %v7070 = vrot.slane %v7061, %v7069
        %v7071 = vlaneseq
        %v7072 = vshrl.u32 %v7071, 7
        %v7073 = vsub.s32 2, %v7072
        %v7074 = vrot.slane %v7061, %v7073
        %v7110 = vunpack.c.l.b16 %v7028
        %v7111 = vunpack.c.h.b16 %v7028
        %v7112 = vunpack.c.l.b16 %v7029
        %v7113 = vunpack.c.l.b16 %v7030
        %v7114 = vunpack.c.h.b16 %v7030
        %v7115 = vunpack.c.l.b16 %v7031
        %v7116 = vunpack.c.l.b16 %v7032
        %v7117 = vunpack.c.h.b16 %v7032
        %v7118 = vunpack.c.l.b16 %v7033
        %v7119 = vunpack.c.l.b16 %v7034
        %v7120 = vunpack.c.h.b16 %v7034
        %v7121 = vunpack.c.l.b16 %v7035
        %v7122 = vunpack.c.l.b16 %v7036
        %v7123 = vunpack.c.h.b16 %v7036
        %v7124 = vunpack.c.l.b16 %v7037
        %v7125 = vunpack.c.l.b16 %v7038
        %v7126 = vunpack.c.h.b16 %v7038
        %v7127 = vunpack.c.l.b16 %v7039
        %v7128 = vunpack.c.l.b16 %v7040
        %v7129 = vunpack.c.h.b16 %v7040
        %v7130 = vunpack.c.l.b16 %v7041
        %v7131 = vunpack.c.l.b16 %v7042
        %v7132 = vunpack.c.h.b16 %v7042
        %v7133 = vunpack.c.l.b16 %v7043
        %v7134 = vunpack.c.l.b16 %v7044
        %v7135 = vunpack.c.h.b16 %v7044
        %v7136 = vunpack.c.l.b16 %v7045
        %v7137 = vunpack.c.l.b16 %v7046
        %v7138 = vunpack.c.h.b16 %v7046
        %v7139 = vunpack.c.l.b16 %v7047
        %v7140 = vunpack.c.l.b16 %v7048
        %v7141 = vunpack.c.h.b16 %v7048
        %v7142 = vunpack.c.l.b16 %v7049
        %v7143 = vunpack.c.l.b16 %v7050
        %v7144 = vunpack.c.h.b16 %v7050
        %v7145 = vunpack.c.l.b16 %v7051
        %v7146 = vunpack.c.l.b16 %v7052
        %v7147 = vunpack.c.h.b16 %v7052
        %v7148 = vunpack.c.l.b16 %v7053
        %v7149 = vunpack.c.l.b16 %v7054
        %v7150 = vunpack.c.h.b16 %v7054
        %v7151 = vunpack.c.l.b16 %v7055
        %v7152 = vunpack.c.l.b16 %v7056
        %v7153 = vunpack.c.h.b16 %v7056
        %v7154 = vunpack.c.l.b16 %v7057
        %v7155 = vunpack.c.l.b16 %v7058
        %v7156 = vunpack.c.h.b16 %v7058
        %v7157 = vunpack.c.l.b16 %v7059
        %v7158 = vpack.c.b16 %v7113, %v7110
        %v7159 = vpack.c.b16 %v7114, %v7111
        %v7160 = vpack.c.b16 %v7115, %v7112
        %v7161 = vpack.c.b16 %v7119, %v7116
        %v7162 = vpack.c.b16 %v7120, %v7117
        %v7163 = vpack.c.b16 %v7121, %v7118
        %v7164 = vpack.c.b16 %v7125, %v7122
        %v7165 = vpack.c.b16 %v7126, %v7123
        %v7166 = vpack.c.b16 %v7127, %v7124
        %v7167 = vpack.c.b16 %v7131, %v7128
        %v7168 = vpack.c.b16 %v7132, %v7129
        %v7169 = vpack.c.b16 %v7133, %v7130
        %v7170 = vpack.c.b16 %v7137, %v7134
        %v7171 = vpack.c.b16 %v7138, %v7135
        %v7172 = vpack.c.b16 %v7139, %v7136
        %v7173 = vpack.c.b16 %v7143, %v7140
        %v7174 = vpack.c.b16 %v7144, %v7141
        %v7175 = vpack.c.b16 %v7145, %v7142
        %v7176 = vpack.c.b16 %v7149, %v7146
        %v7177 = vpack.c.b16 %v7150, %v7147
        %v7178 = vpack.c.b16 %v7151, %v7148
        %v7179 = vpack.c.b16 %v7155, %v7152
        %v7180 = vpack.c.b16 %v7156, %v7153
        %v7181 = vpack.c.b16 %v7157, %v7154
        %7206 = vmatprep.subr.bf16.mxu0 %v7159
        %7207 = vmatpush1.bf16.msra.mxu0 %v7158
        %7208 = vmatprep.subr.bf16.mxu0 %v7162
        %7209 = vmatpush1.bf16.msra.mxu0 %v7161
        %7210 = vmatprep.subr.bf16.mxu0 %v7165
        %7211 = vmatpush1.bf16.msra.mxu0 %v7164
        %7212 = vmatprep.subr.bf16.mxu0 %v7168
        %7213 = vmatpush1.bf16.msra.mxu0 %v7167
        %7214 = vmatprep.subr.bf16.mxu0 %v7171
        %7215 = vmatpush1.bf16.msra.mxu0 %v7170
        %7216 = vmatprep.subr.bf16.mxu0 %v7174
        %7217 = vmatpush1.bf16.msra.mxu0 %v7173
        %7218 = vmatprep.subr.bf16.mxu0 %v7177
        %7219 = vmatpush1.bf16.msra.mxu0 %v7176
        %7220 = vmatprep.subr.bf16.mxu0 %v7180
        %7221 = vmatpush1.bf16.msra.mxu0 %v7179
        %7222 = vmatprep.subr.bf16.mxu0 0
        %7223 = vmatpush1.bf16.msra.mxu0 0
        %7224 = vmatprep.subr.bf16.mxu0 0
        %7225 = vmatpush1.bf16.msra.mxu0 0
        %7226 = vmatprep.subr.bf16.mxu0 0
        %7227 = vmatpush1.bf16.msra.mxu0 0
        %7228 = vmatprep.subr.bf16.mxu0 0
        %7229 = vmatpush1.bf16.msra.mxu0 0
        %7230 = vmatprep.subr.bf16.mxu0 0
        %7231 = vmatpush1.bf16.msra.mxu0 0
        %7232 = vmatprep.subr.bf16.mxu0 0
        %7233 = vmatpush1.bf16.msra.mxu0 0
        %7234 = vmatprep.subr.bf16.mxu0 0
        %7235 = vmatpush1.bf16.msra.mxu0 0
        %7236 = vmatprep.subr.bf16.mxu0 0
        %7237 = vmatpush1.bf16.msra.mxu0 0
        %7238 = vmatprep.mubr.bf16.mxu0 0
        %7239 = vmatmul.mubr.bf16.gmra.mrb[0].mxu0 %v7023
        %v7240 = vpop.f32.mrb[0].mxu0
        %v7241 = vadd.f32 %v7066, %v7240
        %v7242 = vpop.f32.mrb[0].mxu0
        %v7243 = vadd.f32 %v7070, %v7242
        %v7244 = vpop.f32.mrb[0].mxu0
        %v7245 = vadd.f32 %v7066, %v7244
        %v7246 = vpop.f32.mrb[0].mxu0
        %v7247 = vadd.f32 %v7070, %v7246
        %7248 = vmatprep.mubr.bf16.mxu0 0
        %7249 = vmatmul.mubr.bf16.gmra.mrb[0].mxu0 %v7024
        %v7250 = vpop.f32.mrb[0].mxu0
        %v7251 = vadd.f32 %v7066, %v7250
        %v7252 = vpop.f32.mrb[0].mxu0
        %v7253 = vadd.f32 %v7070, %v7252
        %v7254 = vpop.f32.mrb[0].mxu0
        %v7255 = vadd.f32 %v7066, %v7254
        %v7256 = vpop.f32.mrb[0].mxu0
        %v7257 = vadd.f32 %v7070, %v7256
        %7258 = vmatprep.mubr.bf16.mxu0 0
        %7259 = vmatmul.mubr.bf16.gmra.mrb[0].mxu0 %v7025
        %v7260 = vpop.f32.mrb[0].mxu0
        %v7261 = vadd.f32 %v7066, %v7260
        %v7262 = vpop.f32.mrb[0].mxu0
        %v7263 = vadd.f32 %v7070, %v7262
        %v7264 = vpop.f32.mrb[0].mxu0
        %v7265 = vadd.f32 %v7066, %v7264
        %v7266 = vpop.f32.mrb[0].mxu0
        %v7267 = vadd.f32 %v7070, %v7266
        %7268 = vmatprep.mubr.bf16.mxu0 0
        %7269 = vmatmul.mubr.bf16.gmra.mrb[0].mxu0 %v7026
        %v7270 = vpop.f32.mrb[0].mxu0
        %v7271 = vadd.f32 %v7066, %v7270
        %v7272 = vpop.f32.mrb[0].mxu0
        %v7273 = vadd.f32 %v7070, %v7272
        %v7274 = vpop.f32.mrb[0].mxu0
        %v7275 = vadd.f32 %v7066, %v7274
        %v7276 = vpop.f32.mrb[0].mxu0
        %v7277 = vadd.f32 %v7070, %v7276
        %7278 = vdwg.mxu0
        %7279 = vmatprep.subr.bf16.mxu0 0
        %7280 = vmatpush1.bf16.msra.mxu0 %v7160
        %7281 = vmatprep.subr.bf16.mxu0 0
        %7282 = vmatpush1.bf16.msra.mxu0 %v7163
        %7283 = vmatprep.subr.bf16.mxu0 0
        %7284 = vmatpush1.bf16.msra.mxu0 %v7166
        %7285 = vmatprep.subr.bf16.mxu0 0
        %7286 = vmatpush1.bf16.msra.mxu0 %v7169
        %7287 = vmatprep.subr.bf16.mxu0 0
        %7288 = vmatpush1.bf16.msra.mxu0 %v7172
        %7289 = vmatprep.subr.bf16.mxu0 0
        %7290 = vmatpush1.bf16.msra.mxu0 %v7175
        %7291 = vmatprep.subr.bf16.mxu0 0
        %7292 = vmatpush1.bf16.msra.mxu0 %v7178
        %7293 = vmatprep.subr.bf16.mxu0 0
        %7294 = vmatpush1.bf16.msra.mxu0 %v7181
        %7295 = vmatprep.subr.bf16.mxu0 0
        %7296 = vmatpush1.bf16.msra.mxu0 0
        %7297 = vmatprep.subr.bf16.mxu0 0
        %7298 = vmatpush1.bf16.msra.mxu0 0
        %7299 = vmatprep.subr.bf16.mxu0 0
        %7300 = vmatpush1.bf16.msra.mxu0 0
        %7301 = vmatprep.subr.bf16.mxu0 0
        %7302 = vmatpush1.bf16.msra.mxu0 0
        %7303 = vmatprep.subr.bf16.mxu0 0
        %7304 = vmatpush1.bf16.msra.mxu0 0
        %7305 = vmatprep.subr.bf16.mxu0 0
        %7306 = vmatpush1.bf16.msra.mxu0 0
        %7307 = vmatprep.subr.bf16.mxu0 0
        %7308 = vmatpush1.bf16.msra.mxu0 0
        %7309 = vmatprep.subr.bf16.mxu0 0
        %7310 = vmatpush1.bf16.msra.mxu0 0
        %7311 = vmatprep.mubr.bf16.mxu0 0
        %7312 = vmatmul.mubr.bf16.gmra.mrb[0].mxu0 %v7023
        %v7313 = vpop.f32.mrb[0].mxu0
        %v7314 = vadd.f32 %v7074, %v7313
        %v7315 = vpop.f32.mrb[0].mxu0
        %v7316 = vpop.f32.mrb[0].mxu0
        %v7317 = vadd.f32 %v7074, %v7316
        %v7318 = vpop.f32.mrb[0].mxu0
        %7319 = vmatprep.mubr.bf16.mxu0 0
        %7320 = vmatmul.mubr.bf16.gmra.mrb[0].mxu0 %v7024
        %v7321 = vpop.f32.mrb[0].mxu0
        %v7322 = vadd.f32 %v7074, %v7321
        %v7323 = vpop.f32.mrb[0].mxu0
        %v7324 = vpop.f32.mrb[0].mxu0
        %v7325 = vadd.f32 %v7074, %v7324
        %v7326 = vpop.f32.mrb[0].mxu0
        %7327 = vmatprep.mubr.bf16.mxu0 0
        %7328 = vmatmul.mubr.bf16.gmra.mrb[0].mxu0 %v7025
        %v7329 = vpop.f32.mrb[0].mxu0
        %v7330 = vadd.f32 %v7074, %v7329
        %v7331 = vpop.f32.mrb[0].mxu0
        %v7332 = vpop.f32.mrb[0].mxu0
        %v7333 = vadd.f32 %v7074, %v7332
        %v7334 = vpop.f32.mrb[0].mxu0
        %7335 = vmatprep.mubr.bf16.mxu0 0
        %7336 = vmatmul.mubr.bf16.gmra.mrb[0].mxu0 %v7026
        %v7337 = vpop.f32.mrb[0].mxu0
        %v7338 = vadd.f32 %v7074, %v7337
        %v7339 = vpop.f32.mrb[0].mxu0
        %v7340 = vpop.f32.mrb[0].mxu0
        %v7341 = vadd.f32 %v7074, %v7340
        %v7342 = vpop.f32.mrb[0].mxu0
        %7343 = vdwg.mxu0
        %v7344 = vpack.c.bf16 %v7245, %v7241
        %v7345 = vpack.c.bf16 %v7255, %v7251
        %v7346 = vpack.c.bf16 %v7265, %v7261
        %v7347 = vpack.c.bf16 %v7275, %v7271
        %v7348 = vpack.c.bf16 %v7247, %v7243
        %v7349 = vpack.c.bf16 %v7257, %v7253
        %v7350 = vpack.c.bf16 %v7267, %v7263
        %v7351 = vpack.c.bf16 %v7277, %v7273
        %7352 = vmatprep.subr.bf16.mxu0 0
        %7353 = vmatpush1.bf16.xpose.msra.mxu0 %v7348
        %7354 = vmatprep.subr.bf16.mxu0 0
        %7355 = vmatpush1.bf16.xpose.msra.mxu0 %v7349
        %7356 = vmatprep.subr.bf16.mxu0 0
        %7357 = vmatpush1.bf16.xpose.msra.mxu0 %v7350
        %7358 = vmatprep.subr.bf16.mxu0 0
        %7359 = vmatpush1.bf16.xpose.msra.mxu0 %v7351
        %7360 = vmatprep.subr.bf16.mxu0 0
        %7361 = vmatpush1.bf16.xpose.msra.mxu0 0
        %7362 = vmatprep.subr.bf16.mxu0 0
        %7363 = vmatpush1.bf16.xpose.msra.mxu0 0
        %7364 = vmatprep.subr.bf16.mxu0 0
        %7365 = vmatpush1.bf16.xpose.msra.mxu0 0
        %7366 = vmatprep.subr.bf16.mxu0 0
        %7367 = vmatpush1.bf16.xpose.msra.mxu0 0
        %7368 = vmatprep.subr.bf16.mxu0 0
        %7369 = vmatpush1.bf16.xpose.msra.mxu0 0
        %7370 = vmatprep.subr.bf16.mxu0 0
        %7371 = vmatpush1.bf16.xpose.msra.mxu0 0
        %7372 = vmatprep.subr.bf16.mxu0 0
        %7373 = vmatpush1.bf16.xpose.msra.mxu0 0
        %7374 = vmatprep.subr.bf16.mxu0 0
        %7375 = vmatpush1.bf16.xpose.msra.mxu0 0
        %7376 = vmatprep.subr.bf16.mxu0 0
        %7377 = vmatpush1.bf16.xpose.msra.mxu0 0
        %7378 = vmatprep.subr.bf16.mxu0 0
        %7379 = vmatpush1.bf16.xpose.msra.mxu0 0
        %7380 = vmatprep.subr.bf16.mxu0 0
        %7381 = vmatpush1.bf16.xpose.msra.mxu0 0
        %7382 = vmatprep.subr.bf16.mxu0 0
        %7383 = vmatpush1.bf16.xpose.msra.mxu0 0
        %7384 = vmatprep.mubr.bf16.mxu0 0
        %7385 = vmatmul.mubr.bf16.gmra.mrb[0].mxu0 %v7344
        %v7386 = vpop.f32.mrb[0].mxu0
        %v7387 = vadd.f32 0.0, %v7386
        %v7388 = vpop.f32.mrb[0].mxu0
        %v7389 = vpop.f32.mrb[0].mxu0
        %v7390 = vadd.f32 0.0, %v7389
        %v7391 = vpop.f32.mrb[0].mxu0
        %7392 = vmatprep.mubr.bf16.mxu0 0
        %7393 = vmatmul.mubr.bf16.gmra.mrb[0].mxu0 %v7345
        %v7394 = vpop.f32.mrb[0].mxu0
        %v7395 = vadd.f32 0.0, %v7394
        %v7396 = vpop.f32.mrb[0].mxu0
        %v7397 = vpop.f32.mrb[0].mxu0
        %v7398 = vadd.f32 0.0, %v7397
        %v7399 = vpop.f32.mrb[0].mxu0
        %7400 = vmatprep.mubr.bf16.mxu0 0
        %7401 = vmatmul.mubr.bf16.gmra.mrb[0].mxu0 %v7346
        %v7402 = vpop.f32.mrb[0].mxu0
        %v7403 = vadd.f32 0.0, %v7402
        %v7404 = vpop.f32.mrb[0].mxu0
        %v7405 = vpop.f32.mrb[0].mxu0
        %v7406 = vadd.f32 0.0, %v7405
        %v7407 = vpop.f32.mrb[0].mxu0
        %7408 = vmatprep.mubr.bf16.mxu0 0
        %7409 = vmatmul.mubr.bf16.gmra.mrb[0].mxu0 %v7347
        %v7410 = vpop.f32.mrb[0].mxu0
        %v7411 = vadd.f32 0.0, %v7410
        %v7412 = vpop.f32.mrb[0].mxu0
        %v7413 = vpop.f32.mrb[0].mxu0
        %v7414 = vadd.f32 0.0, %v7413
        %v7415 = vpop.f32.mrb[0].mxu0
        %7416 = vdwg.mxu0
        %v7417 = vmul.f32 %v7387, 0.088388346
        %v7418 = vmul.f32 %v7390, 0.088388346
        %v7419 = vmul.f32 %v7395, 0.088388346
        %v7420 = vmul.f32 %v7398, 0.088388346
        %v7421 = vmul.f32 %v7403, 0.088388346
        %v7422 = vmul.f32 %v7406, 0.088388346
        %v7423 = vmul.f32 %v7411, 0.088388346
        %v7424 = vmul.f32 %v7414, 0.088388346
        %v7425 = vsel %vm3266, %v7417, -inf
        %7426 = vmax.xlane.f32.xlu0 %v7425
        %v7427 = vpop.xlane.xlu0 %7426
        %v7428 = vsel %vm3266, %v7418, -inf
        %7429 = vmax.xlane.f32.xlu0 %v7428
        %v7430 = vpop.xlane.xlu0 %7429
        %v7431 = vsel %vm3266, %v7419, -inf
        %7432 = vmax.xlane.f32.xlu0 %v7431
        %v7433 = vpop.xlane.xlu0 %7432
        %v7434 = vsel %vm3266, %v7420, -inf
        %7435 = vmax.xlane.f32.xlu0 %v7434
        %v7436 = vpop.xlane.xlu0 %7435
        %v7437 = vsel %vm3266, %v7421, -inf
        %7438 = vmax.xlane.f32.xlu0 %v7437
        %v7439 = vpop.xlane.xlu0 %7438
        %v7440 = vsel %vm3266, %v7422, -inf
        %7441 = vmax.xlane.f32.xlu0 %v7440
        %v7442 = vpop.xlane.xlu0 %7441
        %v7443 = vsel %vm3266, %v7423, -inf
        %7444 = vmax.xlane.f32.xlu0 %v7443
        %v7445 = vpop.xlane.xlu0 %7444
        %v7446 = vsel %vm3266, %v7424, -inf
        %7447 = vmax.xlane.f32.xlu0 %v7446
        %v7448 = vpop.xlane.xlu0 %7447
        %v7449 = vsub.f32 %v7417, %v7427
        %v7450 = vsub.f32 %v7418, %v7430
        %v7451 = vsub.f32 %v7419, %v7433
        %v7452 = vsub.f32 %v7420, %v7436
        %v7453 = vsub.f32 %v7421, %v7439
        %v7454 = vsub.f32 %v7422, %v7442
        %v7455 = vsub.f32 %v7423, %v7445
        %v7456 = vsub.f32 %v7424, %v7448
        %v7457 = vmul.f32 %v7449, 1.442695
        %v7458 = vpow.pop %v7457
        %v7459 = vmul.f32 %v7450, 1.442695
        %v7460 = vpow.pop %v7459
        %v7461 = vmul.f32 %v7451, 1.442695
        %v7462 = vpow.pop %v7461
        %v7463 = vmul.f32 %v7452, 1.442695
        %v7464 = vpow.pop %v7463
        %v7465 = vmul.f32 %v7453, 1.442695
        %v7466 = vpow.pop %v7465
        %v7467 = vmul.f32 %v7454, 1.442695
        %v7468 = vpow.pop %v7467
        %v7469 = vmul.f32 %v7455, 1.442695
        %v7470 = vpow.pop %v7469
        %v7471 = vmul.f32 %v7456, 1.442695
        %v7472 = vpow.pop %v7471
        %v7473 = vsel %vm3266, %v7458, 0.0
        %7474 = vadd.xlane.f32.xlu0 %v7473
        %v7475 = vpop.xlane.xlu0 %7474
        %v7476 = vsel %vm3266, %v7460, 0.0
        %7477 = vadd.xlane.f32.xlu0 %v7476
        %v7478 = vpop.xlane.xlu0 %7477
        %v7479 = vsel %vm3266, %v7462, 0.0
        %7480 = vadd.xlane.f32.xlu0 %v7479
        %v7481 = vpop.xlane.xlu0 %7480
        %v7482 = vsel %vm3266, %v7464, 0.0
        %7483 = vadd.xlane.f32.xlu0 %v7482
        %v7484 = vpop.xlane.xlu0 %7483
        %v7485 = vsel %vm3266, %v7466, 0.0
        %7486 = vadd.xlane.f32.xlu0 %v7485
        %v7487 = vpop.xlane.xlu0 %7486
        %v7488 = vsel %vm3266, %v7468, 0.0
        %7489 = vadd.xlane.f32.xlu0 %v7488
        %v7490 = vpop.xlane.xlu0 %7489
        %v7491 = vsel %vm3266, %v7470, 0.0
        %7492 = vadd.xlane.f32.xlu0 %v7491
        %v7493 = vpop.xlane.xlu0 %7492
        %v7494 = vsel %vm3266, %v7472, 0.0
        %7495 = vadd.xlane.f32.xlu0 %v7494
        %v7496 = vpop.xlane.xlu0 %7495
        %v7497 = vrcp.pop %v7475
        %v7498 = vrcp.pop %v7478
        %v7499 = vrcp.pop %v7481
        %v7500 = vrcp.pop %v7484
        %v7501 = vrcp.pop %v7487
        %v7502 = vrcp.pop %v7490
        %v7503 = vrcp.pop %v7493
        %v7504 = vrcp.pop %v7496
        %v7505 = vmul.f32 %v7458, %v7497
        %v7506 = vmul.f32 %v7460, %v7498
        %v7507 = vmul.f32 %v7462, %v7499
        %v7508 = vmul.f32 %v7464, %v7500
        %v7509 = vmul.f32 %v7466, %v7501
        %v7510 = vmul.f32 %v7468, %v7502
        %v7511 = vmul.f32 %v7470, %v7503
        %v7512 = vmul.f32 %v7472, %v7504
        %v7513 = vpack.c.bf16 %v7506, %v7505
        %v7514 = vpack.c.bf16 %v7508, %v7507
        %v7515 = vpack.c.bf16 %v7510, %v7509
        %v7516 = vpack.c.bf16 %v7512, %v7511
        %v7517 = vpack.c.bf16 %v7317, %v7314
        %v7518 = vpack.c.bf16 %v7325, %v7322
        %v7519 = vpack.c.bf16 %v7333, %v7330
        %v7520 = vpack.c.bf16 %v7341, %v7338
        %v7522 = vsel %vm3266, %v7513, 0
        %v7525 = vsel %vm3266, %v7514, 0
        %v7528 = vsel %vm3266, %v7515, 0
        %v7531 = vsel %vm3266, %v7516, 0
        %7533 = vmatprep.subr.bf16.mxu0 0
        %7534 = vmatpush1.bf16.msra.mxu0 %v7517
        %7535 = vmatprep.subr.bf16.mxu0 0
        %7536 = vmatpush1.bf16.msra.mxu0 %v7518
        %7537 = vmatprep.subr.bf16.mxu0 0
        %7538 = vmatpush1.bf16.msra.mxu0 %v7519
        %7539 = vmatprep.subr.bf16.mxu0 0
        %7540 = vmatpush1.bf16.msra.mxu0 %v7520
        %7541 = vmatprep.subr.bf16.mxu0 0
        %7542 = vmatpush1.bf16.msra.mxu0 0
        %7543 = vmatprep.subr.bf16.mxu0 0
        %7544 = vmatpush1.bf16.msra.mxu0 0
        %7545 = vmatprep.subr.bf16.mxu0 0
        %7546 = vmatpush1.bf16.msra.mxu0 0
        %7547 = vmatprep.subr.bf16.mxu0 0
        %7548 = vmatpush1.bf16.msra.mxu0 0
        %7549 = vmatprep.subr.bf16.mxu0 0
        %7550 = vmatpush1.bf16.msra.mxu0 0
        %7551 = vmatprep.subr.bf16.mxu0 0
        %7552 = vmatpush1.bf16.msra.mxu0 0
        %7553 = vmatprep.subr.bf16.mxu0 0
        %7554 = vmatpush1.bf16.msra.mxu0 0
        %7555 = vmatprep.subr.bf16.mxu0 0
        %7556 = vmatpush1.bf16.msra.mxu0 0
        %7557 = vmatprep.subr.bf16.mxu0 0
        %7558 = vmatpush1.bf16.msra.mxu0 0
        %7559 = vmatprep.subr.bf16.mxu0 0
        %7560 = vmatpush1.bf16.msra.mxu0 0
        %7561 = vmatprep.subr.bf16.mxu0 0
        %7562 = vmatpush1.bf16.msra.mxu0 0
        %7563 = vmatprep.subr.bf16.mxu0 0
        %7564 = vmatpush1.bf16.msra.mxu0 0
        %7565 = vmatprep.mubr.bf16.mxu0 0
        %7566 = vmatmul.mubr.bf16.gmra.mrb[0].mxu0 %v7522
        %v7567 = vpop.f32.mrb[0].mxu0
        %v7568 = vadd.f32 0.0, %v7567
        %v7569 = vpop.f32.mrb[0].mxu0
        %v7570 = vpop.f32.mrb[0].mxu0
        %v7571 = vadd.f32 0.0, %v7570
        %v7572 = vpop.f32.mrb[0].mxu0
        %7573 = vmatprep.mubr.bf16.mxu0 0
        %7574 = vmatmul.mubr.bf16.gmra.mrb[0].mxu0 %v7525
        %v7575 = vpop.f32.mrb[0].mxu0
        %v7576 = vadd.f32 0.0, %v7575
        %v7577 = vpop.f32.mrb[0].mxu0
        %v7578 = vpop.f32.mrb[0].mxu0
        %v7579 = vadd.f32 0.0, %v7578
        %v7580 = vpop.f32.mrb[0].mxu0
        %7581 = vmatprep.mubr.bf16.mxu0 0
        %7582 = vmatmul.mubr.bf16.gmra.mrb[0].mxu0 %v7528
        %v7583 = vpop.f32.mrb[0].mxu0
        %v7584 = vadd.f32 0.0, %v7583
        %v7585 = vpop.f32.mrb[0].mxu0
        %v7586 = vpop.f32.mrb[0].mxu0
        %v7587 = vadd.f32 0.0, %v7586
        %v7588 = vpop.f32.mrb[0].mxu0
        %7589 = vmatprep.mubr.bf16.mxu0 0
        %7590 = vmatmul.mubr.bf16.gmra.mrb[0].mxu0 %v7531
        %v7591 = vpop.f32.mrb[0].mxu0
        %v7592 = vadd.f32 0.0, %v7591
        %v7593 = vpop.f32.mrb[0].mxu0
        %v7594 = vpop.f32.mrb[0].mxu0
        %v7595 = vadd.f32 0.0, %v7594
        %v7596 = vpop.f32.mrb[0].mxu0
        %7597 = vdwg.mxu0
        %v7598 = vpack.c.bf16 %v7571, %v7568
        %v7599 = vpack.c.bf16 %v7579, %v7576
        %v7600 = vpack.c.bf16 %v7587, %v7584
        %v7601 = vpack.c.bf16 %v7595, %v7592
        %s7602 = scalar_lea.vmem %s8, 256
        %v7603 = vld [vmem:[%s7602] sm:$0xf]
        %v7604 = vld [vmem:[%s7602 + $0x4] sm:$0xf]
        %v7605 = vld [vmem:[%s7602 + $0x8] sm:$0xf]
        %v7606 = vld [vmem:[%s7602 + $0xc] sm:$0xf]
        %v7607 = vld [vmem:[%s7602 + $0x10] sm:$0xf]
        %v7608 = vld [vmem:[%s7602 + $0x14] sm:$0xf]
        %v7609 = vld [vmem:[%s7602 + $0x18] sm:$0xf]
        %v7610 = vld [vmem:[%s7602 + $0x1c] sm:$0xf]
        %v7611 = vld [vmem:[%s7602 + $0x20] sm:$0xf]
        %v7612 = vld [vmem:[%s7602 + $0x24] sm:$0xf]
        %v7613 = vld [vmem:[%s7602 + $0x28] sm:$0xf]
        %v7614 = vld [vmem:[%s7602 + $0x2c] sm:$0xf]
        %v7615 = vld [vmem:[%s7602 + $0x30] sm:$0xf]
        %v7616 = vld [vmem:[%s7602 + $0x34] sm:$0xf]
        %v7617 = vld [vmem:[%s7602 + $0x38] sm:$0xf]
        %v7618 = vld [vmem:[%s7602 + $0x3c] sm:$0xf]
        %s7619 = scalar_lea.vmem %s9, 4
        %v7620 = vld [vmem:[%s7619] sm:$0x1]
        %v7622 = vlaneseq
        %v7623 = vshrl.u32 %v7622, 7
        %v7624 = vsub.s32 0, %v7623
        %v7625 = vrot.slane %v7620, %v7624
        %v7643 = vunpack.c.l.b16 %v7603
        %v7644 = vunpack.c.l.b16 %v7604
        %v7645 = vunpack.c.l.b16 %v7605
        %v7646 = vunpack.c.l.b16 %v7606
        %v7647 = vunpack.c.l.b16 %v7607
        %v7648 = vunpack.c.l.b16 %v7608
        %v7649 = vunpack.c.l.b16 %v7609
        %v7650 = vunpack.c.l.b16 %v7610
        %v7651 = vunpack.c.l.b16 %v7611
        %v7652 = vunpack.c.l.b16 %v7612
        %v7653 = vunpack.c.l.b16 %v7613
        %v7654 = vunpack.c.l.b16 %v7614
        %v7655 = vunpack.c.l.b16 %v7615
        %v7656 = vunpack.c.l.b16 %v7616
        %v7657 = vunpack.c.l.b16 %v7617
        %v7658 = vunpack.c.l.b16 %v7618
        %v7659 = vpack.c.b16 %v7644, %v7643
        %v7660 = vpack.c.b16 %v7646, %v7645
        %v7661 = vpack.c.b16 %v7648, %v7647
        %v7662 = vpack.c.b16 %v7650, %v7649
        %v7663 = vpack.c.b16 %v7652, %v7651
        %v7664 = vpack.c.b16 %v7654, %v7653
        %v7665 = vpack.c.b16 %v7656, %v7655
        %v7666 = vpack.c.b16 %v7658, %v7657
        %7675 = vmatprep.subr.bf16.mxu0 0
        %7676 = vmatpush1.bf16.msra.mxu0 %v7659
        %7677 = vmatprep.subr.bf16.mxu0 0
        %7678 = vmatpush1.bf16.msra.mxu0 %v7660
        %7679 = vmatprep.subr.bf16.mxu0 0
        %7680 = vmatpush1.bf16.msra.mxu0 %v7661
        %7681 = vmatprep.subr.bf16.mxu0 0
        %7682 = vmatpush1.bf16.msra.mxu0 %v7662
        %7683 = vmatprep.subr.bf16.mxu0 0
        %7684 = vmatpush1.bf16.msra.mxu0 %v7663
        %7685 = vmatprep.subr.bf16.mxu0 0
        %7686 = vmatpush1.bf16.msra.mxu0 %v7664
        %7687 = vmatprep.subr.bf16.mxu0 0
        %7688 = vmatpush1.bf16.msra.mxu0 %v7665
        %7689 = vmatprep.subr.bf16.mxu0 0
        %7690 = vmatpush1.bf16.msra.mxu0 %v7666
        %7691 = vmatprep.subr.bf16.mxu0 0
        %7692 = vmatpush1.bf16.msra.mxu0 0
        %7693 = vmatprep.subr.bf16.mxu0 0
        %7694 = vmatpush1.bf16.msra.mxu0 0
        %7695 = vmatprep.subr.bf16.mxu0 0
        %7696 = vmatpush1.bf16.msra.mxu0 0
        %7697 = vmatprep.subr.bf16.mxu0 0
        %7698 = vmatpush1.bf16.msra.mxu0 0
        %7699 = vmatprep.subr.bf16.mxu0 0
        %7700 = vmatpush1.bf16.msra.mxu0 0
        %7701 = vmatprep.subr.bf16.mxu0 0
        %7702 = vmatpush1.bf16.msra.mxu0 0
        %7703 = vmatprep.subr.bf16.mxu0 0
        %7704 = vmatpush1.bf16.msra.mxu0 0
        %7705 = vmatprep.subr.bf16.mxu0 0
        %7706 = vmatpush1.bf16.msra.mxu0 0
        %7707 = vmatprep.mubr.bf16.mxu0 0
        %7708 = vmatmul.mubr.bf16.gmra.mrb[0].mxu0 %v7598
        %v7709 = vpop.f32.mrb[0].mxu0
        %v7710 = vadd.f32 %v7625, %v7709
        %v7711 = vpop.f32.mrb[0].mxu0
        %v7712 = vpop.f32.mrb[0].mxu0
        %v7713 = vadd.f32 %v7625, %v7712
        %v7714 = vpop.f32.mrb[0].mxu0
        %7715 = vmatprep.mubr.bf16.mxu0 0
        %7716 = vmatmul.mubr.bf16.gmra.mrb[0].mxu0 %v7599
        %v7717 = vpop.f32.mrb[0].mxu0
        %v7718 = vadd.f32 %v7625, %v7717
        %v7719 = vpop.f32.mrb[0].mxu0
        %v7720 = vpop.f32.mrb[0].mxu0
        %v7721 = vadd.f32 %v7625, %v7720
        %v7722 = vpop.f32.mrb[0].mxu0
        %7723 = vmatprep.mubr.bf16.mxu0 0
        %7724 = vmatmul.mubr.bf16.gmra.mrb[0].mxu0 %v7600
        %v7725 = vpop.f32.mrb[0].mxu0
        %v7726 = vadd.f32 %v7625, %v7725
        %v7727 = vpop.f32.mrb[0].mxu0
        %v7728 = vpop.f32.mrb[0].mxu0
        %v7729 = vadd.f32 %v7625, %v7728
        %v7730 = vpop.f32.mrb[0].mxu0
        %7731 = vmatprep.mubr.bf16.mxu0 0
        %7732 = vmatmul.mubr.bf16.gmra.mrb[0].mxu0 %v7601
        %v7733 = vpop.f32.mrb[0].mxu0
        %v7734 = vadd.f32 %v7625, %v7733
        %v7735 = vpop.f32.mrb[0].mxu0
        %v7736 = vpop.f32.mrb[0].mxu0
        %v7737 = vadd.f32 %v7625, %v7736
        %v7738 = vpop.f32.mrb[0].mxu0
        %7739 = vdwg.mxu0
        %v7740 = vadd.f32 %v7015, %v7710
        %v7741 = vadd.f32 %v7016, %v7713
        %v7742 = vadd.f32 %v7017, %v7718
        %v7743 = vadd.f32 %v7018, %v7721
        %v7744 = vadd.f32 %v7019, %v7726
        %v7745 = vadd.f32 %v7020, %v7729
        %v7746 = vadd.f32 %v7021, %v7734
        %v7747 = vadd.f32 %v7022, %v7737
        %v7748 = vpack.c.bf16 %v7741, %v7740
        %v7749 = vpack.c.bf16 %v7743, %v7742
        %v7750 = vpack.c.bf16 %v7745, %v7744
        %v7751 = vpack.c.bf16 %v7747, %v7746
        %s7752 = scalar_lea.vmem %s10, 256
        %v7753 = vld [vmem:[%s7752] sm:$0xf]
        %v7754 = vld [vmem:[%s7752 + $0x4] sm:$0xf]
        %v7755 = vld [vmem:[%s7752 + $0x8] sm:$0xf]
        %v7756 = vld [vmem:[%s7752 + $0xc] sm:$0xf]
        %v7757 = vld [vmem:[%s7752 + $0x10] sm:$0xf]
        %v7758 = vld [vmem:[%s7752 + $0x14] sm:$0xf]
        %v7759 = vld [vmem:[%s7752 + $0x18] sm:$0xf]
        %v7760 = vld [vmem:[%s7752 + $0x1c] sm:$0xf]
        %v7761 = vld [vmem:[%s7752 + $0x20] sm:$0xf]
        %v7762 = vld [vmem:[%s7752 + $0x24] sm:$0xf]
        %v7763 = vld [vmem:[%s7752 + $0x28] sm:$0xf]
        %v7764 = vld [vmem:[%s7752 + $0x2c] sm:$0xf]
        %v7765 = vld [vmem:[%s7752 + $0x30] sm:$0xf]
        %v7766 = vld [vmem:[%s7752 + $0x34] sm:$0xf]
        %v7767 = vld [vmem:[%s7752 + $0x38] sm:$0xf]
        %v7768 = vld [vmem:[%s7752 + $0x3c] sm:$0xf]
        %s7769 = scalar_lea.vmem %s11, 4
        %v7770 = vld [vmem:[%s7769] sm:$0x1]
        %v7772 = vlaneseq
        %v7773 = vshrl.u32 %v7772, 7
        %v7774 = vsub.s32 0, %v7773
        %v7775 = vrot.slane %v7770, %v7774
        %v7793 = vunpack.c.l.b16 %v7753
        %v7794 = vunpack.c.l.b16 %v7754
        %v7795 = vunpack.c.l.b16 %v7755
        %v7796 = vunpack.c.l.b16 %v7756
        %v7797 = vunpack.c.l.b16 %v7757
        %v7798 = vunpack.c.l.b16 %v7758
        %v7799 = vunpack.c.l.b16 %v7759
        %v7800 = vunpack.c.l.b16 %v7760
        %v7801 = vunpack.c.l.b16 %v7761
        %v7802 = vunpack.c.l.b16 %v7762
        %v7803 = vunpack.c.l.b16 %v7763
        %v7804 = vunpack.c.l.b16 %v7764
        %v7805 = vunpack.c.l.b16 %v7765
        %v7806 = vunpack.c.l.b16 %v7766
        %v7807 = vunpack.c.l.b16 %v7767
        %v7808 = vunpack.c.l.b16 %v7768
        %v7809 = vpack.c.b16 %v7794, %v7793
        %v7810 = vpack.c.b16 %v7796, %v7795
        %v7811 = vpack.c.b16 %v7798, %v7797
        %v7812 = vpack.c.b16 %v7800, %v7799
        %v7813 = vpack.c.b16 %v7802, %v7801
        %v7814 = vpack.c.b16 %v7804, %v7803
        %v7815 = vpack.c.b16 %v7806, %v7805
        %v7816 = vpack.c.b16 %v7808, %v7807
        %7825 = vmatprep.subr.bf16.mxu0 0
        %7826 = vmatpush1.bf16.msra.mxu0 %v7809
        %7827 = vmatprep.subr.bf16.mxu0 0
        %7828 = vmatpush1.bf16.msra.mxu0 %v7810
        %7829 = vmatprep.subr.bf16.mxu0 0
        %7830 = vmatpush1.bf16.msra.mxu0 %v7811
        %7831 = vmatprep.subr.bf16.mxu0 0
        %7832 = vmatpush1.bf16.msra.mxu0 %v7812
        %7833 = vmatprep.subr.bf16.mxu0 0
        %7834 = vmatpush1.bf16.msra.mxu0 %v7813
        %7835 = vmatprep.subr.bf16.mxu0 0
        %7836 = vmatpush1.bf16.msra.mxu0 %v7814
        %7837 = vmatprep.subr.bf16.mxu0 0
        %7838 = vmatpush1.bf16.msra.mxu0 %v7815
        %7839 = vmatprep.subr.bf16.mxu0 0
        %7840 = vmatpush1.bf16.msra.mxu0 %v7816
        %7841 = vmatprep.subr.bf16.mxu0 0
        %7842 = vmatpush1.bf16.msra.mxu0 0
        %7843 = vmatprep.subr.bf16.mxu0 0
        %7844 = vmatpush1.bf16.msra.mxu0 0
        %7845 = vmatprep.subr.bf16.mxu0 0
        %7846 = vmatpush1.bf16.msra.mxu0 0
        %7847 = vmatprep.subr.bf16.mxu0 0
        %7848 = vmatpush1.bf16.msra.mxu0 0
        %7849 = vmatprep.subr.bf16.mxu0 0
        %7850 = vmatpush1.bf16.msra.mxu0 0
        %7851 = vmatprep.subr.bf16.mxu0 0
        %7852 = vmatpush1.bf16.msra.mxu0 0
        %7853 = vmatprep.subr.bf16.mxu0 0
        %7854 = vmatpush1.bf16.msra.mxu0 0
        %7855 = vmatprep.subr.bf16.mxu0 0
        %7856 = vmatpush1.bf16.msra.mxu0 0
        %7857 = vmatprep.mubr.bf16.mxu0 0
        %7858 = vmatmul.mubr.bf16.gmra.mrb[0].mxu0 %v7748
        %v7859 = vpop.f32.mrb[0].mxu0
        %v7860 = vadd.f32 %v7775, %v7859
        %v7861 = vpop.f32.mrb[0].mxu0
        %v7862 = vpop.f32.mrb[0].mxu0
        %v7863 = vadd.f32 %v7775, %v7862
        %v7864 = vpop.f32.mrb[0].mxu0
        %7865 = vmatprep.mubr.bf16.mxu0 0
        %7866 = vmatmul.mubr.bf16.gmra.mrb[0].mxu0 %v7749
        %v7867 = vpop.f32.mrb[0].mxu0
        %v7868 = vadd.f32 %v7775, %v7867
        %v7869 = vpop.f32.mrb[0].mxu0
        %v7870 = vpop.f32.mrb[0].mxu0
        %v7871 = vadd.f32 %v7775, %v7870
        %v7872 = vpop.f32.mrb[0].mxu0
        %7873 = vmatprep.mubr.bf16.mxu0 0
        %7874 = vmatmul.mubr.bf16.gmra.mrb[0].mxu0 %v7750
        %v7875 = vpop.f32.mrb[0].mxu0
        %v7876 = vadd.f32 %v7775, %v7875
        %v7877 = vpop.f32.mrb[0].mxu0
        %v7878 = vpop.f32.mrb[0].mxu0
        %v7879 = vadd.f32 %v7775, %v7878
        %v7880 = vpop.f32.mrb[0].mxu0
        %7881 = vmatprep.mubr.bf16.mxu0 0
        %7882 = vmatmul.mubr.bf16.gmra.mrb[0].mxu0 %v7751
        %v7883 = vpop.f32.mrb[0].mxu0
        %v7884 = vadd.f32 %v7775, %v7883
        %v7885 = vpop.f32.mrb[0].mxu0
        %v7886 = vpop.f32.mrb[0].mxu0
        %v7887 = vadd.f32 %v7775, %v7886
        %v7888 = vpop.f32.mrb[0].mxu0
        %7889 = vdwg.mxu0
        %vm7890 = vcmp.gt.f32.partialorder %v7860, 0.0
        %vm7891 = vcmp.gt.f32.partialorder %v7863, 0.0
        %vm7892 = vcmp.gt.f32.partialorder %v7868, 0.0
        %vm7893 = vcmp.gt.f32.partialorder %v7871, 0.0
        %vm7894 = vcmp.gt.f32.partialorder %v7876, 0.0
        %vm7895 = vcmp.gt.f32.partialorder %v7879, 0.0
        %vm7896 = vcmp.gt.f32.partialorder %v7884, 0.0
        %vm7897 = vcmp.gt.f32.partialorder %v7887, 0.0
        %v7898 = vmul.f32 %v7860, 0.2
        %v7899 = vmul.f32 %v7863, 0.2
        %v7900 = vmul.f32 %v7868, 0.2
        %v7901 = vmul.f32 %v7871, 0.2
        %v7902 = vmul.f32 %v7876, 0.2
        %v7903 = vmul.f32 %v7879, 0.2
        %v7904 = vmul.f32 %v7884, 0.2
        %v7905 = vmul.f32 %v7887, 0.2
        %v7906 = vsel %vm7890, %v7860, %v7898
        %v7907 = vsel %vm7891, %v7863, %v7899
        %v7908 = vsel %vm7892, %v7868, %v7900
        %v7909 = vsel %vm7893, %v7871, %v7901
        %v7910 = vsel %vm7894, %v7876, %v7902
        %v7911 = vsel %vm7895, %v7879, %v7903
        %v7912 = vsel %vm7896, %v7884, %v7904
        %v7913 = vsel %vm7897, %v7887, %v7905
        %v7914 = vpack.c.bf16 %v7907, %v7906
        %v7915 = vpack.c.bf16 %v7909, %v7908
        %v7916 = vpack.c.bf16 %v7911, %v7910
        %v7917 = vpack.c.bf16 %v7913, %v7912
        %s7918 = scalar_lea.vmem [#allocation5], 256
        %v7919 = vld [vmem:[%s7918] sm:$0xf]
        %v7920 = vld [vmem:[%s7918 + $0x4] sm:$0xf]
        %v7921 = vld [vmem:[%s7918 + $0x8] sm:$0xf]
        %v7922 = vld [vmem:[%s7918 + $0xc] sm:$0xf]
        %v7923 = vld [vmem:[%s7918 + $0x10] sm:$0xf]
        %v7924 = vld [vmem:[%s7918 + $0x14] sm:$0xf]
        %v7925 = vld [vmem:[%s7918 + $0x18] sm:$0xf]
        %v7926 = vld [vmem:[%s7918 + $0x1c] sm:$0xf]
        %v7927 = vld [vmem:[%s7918 + $0x20] sm:$0xf]
        %v7928 = vld [vmem:[%s7918 + $0x24] sm:$0xf]
        %v7929 = vld [vmem:[%s7918 + $0x28] sm:$0xf]
        %v7930 = vld [vmem:[%s7918 + $0x2c] sm:$0xf]
        %v7931 = vld [vmem:[%s7918 + $0x30] sm:$0xf]
        %v7932 = vld [vmem:[%s7918 + $0x34] sm:$0xf]
        %v7933 = vld [vmem:[%s7918 + $0x38] sm:$0xf]
        %v7934 = vld [vmem:[%s7918 + $0x3c] sm:$0xf]
        %s7935 = scalar_lea.vmem %s13, 4
        %v7936 = vld [vmem:[%s7935] sm:$0x1]
        %v7938 = vlaneseq
        %v7939 = vshrl.u32 %v7938, 7
        %v7940 = vsub.s32 0, %v7939
        %v7941 = vrot.slane %v7936, %v7940
        %v7959 = vunpack.c.l.b16 %v7919
        %v7960 = vunpack.c.l.b16 %v7920
        %v7961 = vunpack.c.l.b16 %v7921
        %v7962 = vunpack.c.l.b16 %v7922
        %v7963 = vunpack.c.l.b16 %v7923
        %v7964 = vunpack.c.l.b16 %v7924
        %v7965 = vunpack.c.l.b16 %v7925
        %v7966 = vunpack.c.l.b16 %v7926
        %v7967 = vunpack.c.l.b16 %v7927
        %v7968 = vunpack.c.l.b16 %v7928
        %v7969 = vunpack.c.l.b16 %v7929
        %v7970 = vunpack.c.l.b16 %v7930
        %v7971 = vunpack.c.l.b16 %v7931
        %v7972 = vunpack.c.l.b16 %v7932
        %v7973 = vunpack.c.l.b16 %v7933
        %v7974 = vunpack.c.l.b16 %v7934
        %v7975 = vpack.c.b16 %v7960, %v7959
        %v7976 = vpack.c.b16 %v7962, %v7961
        %v7977 = vpack.c.b16 %v7964, %v7963
        %v7978 = vpack.c.b16 %v7966, %v7965
        %v7979 = vpack.c.b16 %v7968, %v7967
        %v7980 = vpack.c.b16 %v7970, %v7969
        %v7981 = vpack.c.b16 %v7972, %v7971
        %v7982 = vpack.c.b16 %v7974, %v7973
        %7991 = vmatprep.subr.bf16.mxu0 0
        %7992 = vmatpush1.bf16.msra.mxu0 %v7975
        %7993 = vmatprep.subr.bf16.mxu0 0
        %7994 = vmatpush1.bf16.msra.mxu0 %v7976
        %7995 = vmatprep.subr.bf16.mxu0 0
        %7996 = vmatpush1.bf16.msra.mxu0 %v7977
        %7997 = vmatprep.subr.bf16.mxu0 0
        %7998 = vmatpush1.bf16.msra.mxu0 %v7978
        %7999 = vmatprep.subr.bf16.mxu0 0
        %8000 = vmatpush1.bf16.msra.mxu0 %v7979
        %8001 = vmatprep.subr.bf16.mxu0 0
        %8002 = vmatpush1.bf16.msra.mxu0 %v7980
        %8003 = vmatprep.subr.bf16.mxu0 0
        %8004 = vmatpush1.bf16.msra.mxu0 %v7981
        %8005 = vmatprep.subr.bf16.mxu0 0
        %8006 = vmatpush1.bf16.msra.mxu0 %v7982
        %8007 = vmatprep.subr.bf16.mxu0 0
        %8008 = vmatpush1.bf16.msra.mxu0 0
        %8009 = vmatprep.subr.bf16.mxu0 0
        %8010 = vmatpush1.bf16.msra.mxu0 0
        %8011 = vmatprep.subr.bf16.mxu0 0
        %8012 = vmatpush1.bf16.msra.mxu0 0
        %8013 = vmatprep.subr.bf16.mxu0 0
        %8014 = vmatpush1.bf16.msra.mxu0 0
        %8015 = vmatprep.subr.bf16.mxu0 0
        %8016 = vmatpush1.bf16.msra.mxu0 0
        %8017 = vmatprep.subr.bf16.mxu0 0
        %8018 = vmatpush1.bf16.msra.mxu0 0
        %8019 = vmatprep.subr.bf16.mxu0 0
        %8020 = vmatpush1.bf16.msra.mxu0 0
        %8021 = vmatprep.subr.bf16.mxu0 0
        %8022 = vmatpush1.bf16.msra.mxu0 0
        %8023 = vmatprep.mubr.bf16.mxu0 0
        %8024 = vmatmul.mubr.bf16.gmra.mrb[0].mxu0 %v7914
        %v8025 = vpop.f32.mrb[0].mxu0
        %v8026 = vadd.f32 %v7941, %v8025
        %v8027 = vpop.f32.mrb[0].mxu0
        %v8028 = vpop.f32.mrb[0].mxu0
        %v8029 = vadd.f32 %v7941, %v8028
        %v8030 = vpop.f32.mrb[0].mxu0
        %8031 = vmatprep.mubr.bf16.mxu0 0
        %8032 = vmatmul.mubr.bf16.gmra.mrb[0].mxu0 %v7915
        %v8033 = vpop.f32.mrb[0].mxu0
        %v8034 = vadd.f32 %v7941, %v8033
        %v8035 = vpop.f32.mrb[0].mxu0
        %v8036 = vpop.f32.mrb[0].mxu0
        %v8037 = vadd.f32 %v7941, %v8036
        %v8038 = vpop.f32.mrb[0].mxu0
        %8039 = vmatprep.mubr.bf16.mxu0 0
        %8040 = vmatmul.mubr.bf16.gmra.mrb[0].mxu0 %v7916
        %v8041 = vpop.f32.mrb[0].mxu0
        %v8042 = vadd.f32 %v7941, %v8041
        %v8043 = vpop.f32.mrb[0].mxu0
        %v8044 = vpop.f32.mrb[0].mxu0
        %v8045 = vadd.f32 %v7941, %v8044
        %v8046 = vpop.f32.mrb[0].mxu0
        %8047 = vmatprep.mubr.bf16.mxu0 0
        %8048 = vmatmul.mubr.bf16.gmra.mrb[0].mxu0 %v7917
        %v8049 = vpop.f32.mrb[0].mxu0
        %v8050 = vadd.f32 %v7941, %v8049
        %v8051 = vpop.f32.mrb[0].mxu0
        %v8052 = vpop.f32.mrb[0].mxu0
        %v8053 = vadd.f32 %v7941, %v8052
        %v8054 = vpop.f32.mrb[0].mxu0
        %8055 = vdwg.mxu0
        %v8056 = vadd.f32 %v7740, %v8026
        %v8057 = vadd.f32 %v7741, %v8029
        %v8058 = vadd.f32 %v7742, %v8034
        %v8059 = vadd.f32 %v7743, %v8037
        %v8060 = vadd.f32 %v7744, %v8042
        %v8061 = vadd.f32 %v7745, %v8045
        %v8062 = vadd.f32 %v7746, %v8050
        %v8063 = vadd.f32 %v7747, %v8053
        %v8064 = vpack.c.bf16 %v8057, %v8056
        %v8065 = vpack.c.bf16 %v8059, %v8058
        %v8066 = vpack.c.bf16 %v8061, %v8060
        %v8067 = vpack.c.bf16 %v8063, %v8062
        %s8068 = scalar_lea.vmem %s6, 960
        %v8069 = vld [vmem:[%s8068] sm:$0xff]
        %v8070 = vld [vmem:[%s8068 + $0x8] sm:$0xf]
        %v8071 = vld [vmem:[%s8068 + $0xc] sm:$0xff]
        %v8072 = vld [vmem:[%s8068 + $0x14] sm:$0xf]
        %v8073 = vld [vmem:[%s8068 + $0x18] sm:$0xff]
        %v8074 = vld [vmem:[%s8068 + $0x20] sm:$0xf]
        %v8075 = vld [vmem:[%s8068 + $0x24] sm:$0xff]
        %v8076 = vld [vmem:[%s8068 + $0x2c] sm:$0xf]
        %v8077 = vld [vmem:[%s8068 + $0x30] sm:$0xff]
        %v8078 = vld [vmem:[%s8068 + $0x38] sm:$0xf]
        %v8079 = vld [vmem:[%s8068 + $0x3c] sm:$0xff]
        %v8080 = vld [vmem:[%s8068 + $0x44] sm:$0xf]
        %v8081 = vld [vmem:[%s8068 + $0x48] sm:$0xff]
        %v8082 = vld [vmem:[%s8068 + $0x50] sm:$0xf]
        %v8083 = vld [vmem:[%s8068 + $0x54] sm:$0xff]
        %v8084 = vld [vmem:[%s8068 + $0x5c] sm:$0xf]
        %v8085 = vld [vmem:[%s8068 + $0x60] sm:$0xff]
        %v8086 = vld [vmem:[%s8068 + $0x68] sm:$0xf]
        %v8087 = vld [vmem:[%s8068 + $0x6c] sm:$0xff]
        %v8088 = vld [vmem:[%s8068 + $0x74] sm:$0xf]
        %v8089 = vld [vmem:[%s8068 + $0x78] sm:$0xff]
        %v8090 = vld [vmem:[%s8068 + $0x80] sm:$0xf]
        %v8091 = vld [vmem:[%s8068 + $0x84] sm:$0xff]
        %v8092 = vld [vmem:[%s8068 + $0x8c] sm:$0xf]
        %v8093 = vld [vmem:[%s8068 + $0x90] sm:$0xff]
        %v8094 = vld [vmem:[%s8068 + $0x98] sm:$0xf]
        %v8095 = vld [vmem:[%s8068 + $0x9c] sm:$0xff]
        %v8096 = vld [vmem:[%s8068 + $0xa4] sm:$0xf]
        %v8097 = vld [vmem:[%s8068 + $0xa8] sm:$0xff]
        %v8098 = vld [vmem:[%s8068 + $0xb0] sm:$0xf]
        %v8099 = vld [vmem:[%s8068 + $0xb4] sm:$0xff]
        %v8100 = vld [vmem:[%s8068 + $0xbc] sm:$0xf]
        %s8101 = scalar_lea.vmem %s7, 15
        %v8102 = vld [vmem:[%s8101] sm:$0x7]
        %v8104 = vlaneseq
        %v8105 = vshrl.u32 %v8104, 7
        %v8106 = vsub.s32 0, %v8105
        %v8107 = vrot.slane %v8102, %v8106
        %v8108 = vlaneseq
        %v8109 = vshrl.u32 %v8108, 7
        %v8110 = vsub.s32 1, %v8109
        %v8111 = vrot.slane %v8102, %v8110
        %v8112 = vlaneseq
        %v8113 = vshrl.u32 %v8112, 7
        %v8114 = vsub.s32 2, %v8113
        %v8115 = vrot.slane %v8102, %v8114
        %v8151 = vunpack.c.l.b16 %v8069
        %v8152 = vunpack.c.h.b16 %v8069
        %v8153 = vunpack.c.l.b16 %v8070
        %v8154 = vunpack.c.l.b16 %v8071
        %v8155 = vunpack.c.h.b16 %v8071
        %v8156 = vunpack.c.l.b16 %v8072
        %v8157 = vunpack.c.l.b16 %v8073
        %v8158 = vunpack.c.h.b16 %v8073
        %v8159 = vunpack.c.l.b16 %v8074
        %v8160 = vunpack.c.l.b16 %v8075
        %v8161 = vunpack.c.h.b16 %v8075
        %v8162 = vunpack.c.l.b16 %v8076
        %v8163 = vunpack.c.l.b16 %v8077
        %v8164 = vunpack.c.h.b16 %v8077
        %v8165 = vunpack.c.l.b16 %v8078
        %v8166 = vunpack.c.l.b16 %v8079
        %v8167 = vunpack.c.h.b16 %v8079
        %v8168 = vunpack.c.l.b16 %v8080
        %v8169 = vunpack.c.l.b16 %v8081
        %v8170 = vunpack.c.h.b16 %v8081
        %v8171 = vunpack.c.l.b16 %v8082
        %v8172 = vunpack.c.l.b16 %v8083
        %v8173 = vunpack.c.h.b16 %v8083
        %v8174 = vunpack.c.l.b16 %v8084
        %v8175 = vunpack.c.l.b16 %v8085
        %v8176 = vunpack.c.h.b16 %v8085
        %v8177 = vunpack.c.l.b16 %v8086
        %v8178 = vunpack.c.l.b16 %v8087
        %v8179 = vunpack.c.h.b16 %v8087
        %v8180 = vunpack.c.l.b16 %v8088
        %v8181 = vunpack.c.l.b16 %v8089
        %v8182 = vunpack.c.h.b16 %v8089
        %v8183 = vunpack.c.l.b16 %v8090
        %v8184 = vunpack.c.l.b16 %v8091
        %v8185 = vunpack.c.h.b16 %v8091
        %v8186 = vunpack.c.l.b16 %v8092
        %v8187 = vunpack.c.l.b16 %v8093
        %v8188 = vunpack.c.h.b16 %v8093
        %v8189 = vunpack.c.l.b16 %v8094
        %v8190 = vunpack.c.l.b16 %v8095
        %v8191 = vunpack.c.h.b16 %v8095
        %v8192 = vunpack.c.l.b16 %v8096
        %v8193 = vunpack.c.l.b16 %v8097
        %v8194 = vunpack.c.h.b16 %v8097
        %v8195 = vunpack.c.l.b16 %v8098
        %v8196 = vunpack.c.l.b16 %v8099
        %v8197 = vunpack.c.h.b16 %v8099
        %v8198 = vunpack.c.l.b16 %v8100
        %v8199 = vpack.c.b16 %v8154, %v8151
        %v8200 = vpack.c.b16 %v8155, %v8152
        %v8201 = vpack.c.b16 %v8156, %v8153
        %v8202 = vpack.c.b16 %v8160, %v8157
        %v8203 = vpack.c.b16 %v8161, %v8158
        %v8204 = vpack.c.b16 %v8162, %v8159
        %v8205 = vpack.c.b16 %v8166, %v8163
        %v8206 = vpack.c.b16 %v8167, %v8164
        %v8207 = vpack.c.b16 %v8168, %v8165
        %v8208 = vpack.c.b16 %v8172, %v8169
        %v8209 = vpack.c.b16 %v8173, %v8170
        %v8210 = vpack.c.b16 %v8174, %v8171
        %v8211 = vpack.c.b16 %v8178, %v8175
        %v8212 = vpack.c.b16 %v8179, %v8176
        %v8213 = vpack.c.b16 %v8180, %v8177
        %v8214 = vpack.c.b16 %v8184, %v8181
        %v8215 = vpack.c.b16 %v8185, %v8182
        %v8216 = vpack.c.b16 %v8186, %v8183
        %v8217 = vpack.c.b16 %v8190, %v8187
        %v8218 = vpack.c.b16 %v8191, %v8188
        %v8219 = vpack.c.b16 %v8192, %v8189
        %v8220 = vpack.c.b16 %v8196, %v8193
        %v8221 = vpack.c.b16 %v8197, %v8194
        %v8222 = vpack.c.b16 %v8198, %v8195
        %8247 = vmatprep.subr.bf16.mxu0 %v8200
        %8248 = vmatpush1.bf16.msra.mxu0 %v8199
        %8249 = vmatprep.subr.bf16.mxu0 %v8203
        %8250 = vmatpush1.bf16.msra.mxu0 %v8202
        %8251 = vmatprep.subr.bf16.mxu0 %v8206
        %8252 = vmatpush1.bf16.msra.mxu0 %v8205
        %8253 = vmatprep.subr.bf16.mxu0 %v8209
        %8254 = vmatpush1.bf16.msra.mxu0 %v8208
        %8255 = vmatprep.subr.bf16.mxu0 %v8212
        %8256 = vmatpush1.bf16.msra.mxu0 %v8211
        %8257 = vmatprep.subr.bf16.mxu0 %v8215
        %8258 = vmatpush1.bf16.msra.mxu0 %v8214
        %8259 = vmatprep.subr.bf16.mxu0 %v8218
        %8260 = vmatpush1.bf16.msra.mxu0 %v8217
        %8261 = vmatprep.subr.bf16.mxu0 %v8221
        %8262 = vmatpush1.bf16.msra.mxu0 %v8220
        %8263 = vmatprep.subr.bf16.mxu0 0
        %8264 = vmatpush1.bf16.msra.mxu0 0
        %8265 = vmatprep.subr.bf16.mxu0 0
        %8266 = vmatpush1.bf16.msra.mxu0 0
        %8267 = vmatprep.subr.bf16.mxu0 0
        %8268 = vmatpush1.bf16.msra.mxu0 0
        %8269 = vmatprep.subr.bf16.mxu0 0
        %8270 = vmatpush1.bf16.msra.mxu0 0
        %8271 = vmatprep.subr.bf16.mxu0 0
        %8272 = vmatpush1.bf16.msra.mxu0 0
        %8273 = vmatprep.subr.bf16.mxu0 0
        %8274 = vmatpush1.bf16.msra.mxu0 0
        %8275 = vmatprep.subr.bf16.mxu0 0
        %8276 = vmatpush1.bf16.msra.mxu0 0
        %8277 = vmatprep.subr.bf16.mxu0 0
        %8278 = vmatpush1.bf16.msra.mxu0 0
        %8279 = vmatprep.mubr.bf16.mxu0 0
        %8280 = vmatmul.mubr.bf16.gmra.mrb[0].mxu0 %v8064
        %v8281 = vpop.f32.mrb[0].mxu0
        %v8282 = vadd.f32 %v8107, %v8281
        %v8283 = vpop.f32.mrb[0].mxu0
        %v8284 = vadd.f32 %v8111, %v8283
        %v8285 = vpop.f32.mrb[0].mxu0
        %v8286 = vadd.f32 %v8107, %v8285
        %v8287 = vpop.f32.mrb[0].mxu0
        %v8288 = vadd.f32 %v8111, %v8287
        %8289 = vmatprep.mubr.bf16.mxu0 0
        %8290 = vmatmul.mubr.bf16.gmra.mrb[0].mxu0 %v8065
        %v8291 = vpop.f32.mrb[0].mxu0
        %v8292 = vadd.f32 %v8107, %v8291
        %v8293 = vpop.f32.mrb[0].mxu0
        %v8294 = vadd.f32 %v8111, %v8293
        %v8295 = vpop.f32.mrb[0].mxu0
        %v8296 = vadd.f32 %v8107, %v8295
        %v8297 = vpop.f32.mrb[0].mxu0
        %v8298 = vadd.f32 %v8111, %v8297
        %8299 = vmatprep.mubr.bf16.mxu0 0
        %8300 = vmatmul.mubr.bf16.gmra.mrb[0].mxu0 %v8066
        %v8301 = vpop.f32.mrb[0].mxu0
        %v8302 = vadd.f32 %v8107, %v8301
        %v8303 = vpop.f32.mrb[0].mxu0
        %v8304 = vadd.f32 %v8111, %v8303
        %v8305 = vpop.f32.mrb[0].mxu0
        %v8306 = vadd.f32 %v8107, %v8305
        %v8307 = vpop.f32.mrb[0].mxu0
        %v8308 = vadd.f32 %v8111, %v8307
        %8309 = vmatprep.mubr.bf16.mxu0 0
        %8310 = vmatmul.mubr.bf16.gmra.mrb[0].mxu0 %v8067
        %v8311 = vpop.f32.mrb[0].mxu0
        %v8312 = vadd.f32 %v8107, %v8311
        %v8313 = vpop.f32.mrb[0].mxu0
        %v8314 = vadd.f32 %v8111, %v8313
        %v8315 = vpop.f32.mrb[0].mxu0
        %v8316 = vadd.f32 %v8107, %v8315
        %v8317 = vpop.f32.mrb[0].mxu0
        %v8318 = vadd.f32 %v8111, %v8317
        %8319 = vdwg.mxu0
        %8320 = vmatprep.subr.bf16.mxu0 0
        %8321 = vmatpush1.bf16.msra.mxu0 %v8201
        %8322 = vmatprep.subr.bf16.mxu0 0
        %8323 = vmatpush1.bf16.msra.mxu0 %v8204
        %8324 = vmatprep.subr.bf16.mxu0 0
        %8325 = vmatpush1.bf16.msra.mxu0 %v8207
        %8326 = vmatprep.subr.bf16.mxu0 0
        %8327 = vmatpush1.bf16.msra.mxu0 %v8210
        %8328 = vmatprep.subr.bf16.mxu0 0
        %8329 = vmatpush1.bf16.msra.mxu0 %v8213
        %8330 = vmatprep.subr.bf16.mxu0 0
        %8331 = vmatpush1.bf16.msra.mxu0 %v8216
        %8332 = vmatprep.subr.bf16.mxu0 0
        %8333 = vmatpush1.bf16.msra.mxu0 %v8219
        %8334 = vmatprep.subr.bf16.mxu0 0
        %8335 = vmatpush1.bf16.msra.mxu0 %v8222
        %8336 = vmatprep.subr.bf16.mxu0 0
        %8337 = vmatpush1.bf16.msra.mxu0 0
        %8338 = vmatprep.subr.bf16.mxu0 0
        %8339 = vmatpush1.bf16.msra.mxu0 0
        %8340 = vmatprep.subr.bf16.mxu0 0
        %8341 = vmatpush1.bf16.msra.mxu0 0
        %8342 = vmatprep.subr.bf16.mxu0 0
        %8343 = vmatpush1.bf16.msra.mxu0 0
        %8344 = vmatprep.subr.bf16.mxu0 0
        %8345 = vmatpush1.bf16.msra.mxu0 0
        %8346 = vmatprep.subr.bf16.mxu0 0
        %8347 = vmatpush1.bf16.msra.mxu0 0
        %8348 = vmatprep.subr.bf16.mxu0 0
        %8349 = vmatpush1.bf16.msra.mxu0 0
        %8350 = vmatprep.subr.bf16.mxu0 0
        %8351 = vmatpush1.bf16.msra.mxu0 0
        %8352 = vmatprep.mubr.bf16.mxu0 0
        %8353 = vmatmul.mubr.bf16.gmra.mrb[0].mxu0 %v8064
        %v8354 = vpop.f32.mrb[0].mxu0
        %v8355 = vadd.f32 %v8115, %v8354
        %v8356 = vpop.f32.mrb[0].mxu0
        %v8357 = vpop.f32.mrb[0].mxu0
        %v8358 = vadd.f32 %v8115, %v8357
        %v8359 = vpop.f32.mrb[0].mxu0
        %8360 = vmatprep.mubr.bf16.mxu0 0
        %8361 = vmatmul.mubr.bf16.gmra.mrb[0].mxu0 %v8065
        %v8362 = vpop.f32.mrb[0].mxu0
        %v8363 = vadd.f32 %v8115, %v8362
        %v8364 = vpop.f32.mrb[0].mxu0
        %v8365 = vpop.f32.mrb[0].mxu0
        %v8366 = vadd.f32 %v8115, %v8365
        %v8367 = vpop.f32.mrb[0].mxu0
        %8368 = vmatprep.mubr.bf16.mxu0 0
        %8369 = vmatmul.mubr.bf16.gmra.mrb[0].mxu0 %v8066
        %v8370 = vpop.f32.mrb[0].mxu0
        %v8371 = vadd.f32 %v8115, %v8370
        %v8372 = vpop.f32.mrb[0].mxu0
        %v8373 = vpop.f32.mrb[0].mxu0
        %v8374 = vadd.f32 %v8115, %v8373
        %v8375 = vpop.f32.mrb[0].mxu0
        %8376 = vmatprep.mubr.bf16.mxu0 0
        %8377 = vmatmul.mubr.bf16.gmra.mrb[0].mxu0 %v8067
        %v8378 = vpop.f32.mrb[0].mxu0
        %v8379 = vadd.f32 %v8115, %v8378
        %v8380 = vpop.f32.mrb[0].mxu0
        %v8381 = vpop.f32.mrb[0].mxu0
        %v8382 = vadd.f32 %v8115, %v8381
        %v8383 = vpop.f32.mrb[0].mxu0
        %8384 = vdwg.mxu0
        %v8385 = vpack.c.bf16 %v8286, %v8282
        %v8386 = vpack.c.bf16 %v8296, %v8292
        %v8387 = vpack.c.bf16 %v8306, %v8302
        %v8388 = vpack.c.bf16 %v8316, %v8312
        %v8389 = vpack.c.bf16 %v8288, %v8284
        %v8390 = vpack.c.bf16 %v8298, %v8294
        %v8391 = vpack.c.bf16 %v8308, %v8304
        %v8392 = vpack.c.bf16 %v8318, %v8314
        %8393 = vmatprep.subr.bf16.mxu0 0
        %8394 = vmatpush1.bf16.xpose.msra.mxu0 %v8389
        %8395 = vmatprep.subr.bf16.mxu0 0
        %8396 = vmatpush1.bf16.xpose.msra.mxu0 %v8390
        %8397 = vmatprep.subr.bf16.mxu0 0
        %8398 = vmatpush1.bf16.xpose.msra.mxu0 %v8391
        %8399 = vmatprep.subr.bf16.mxu0 0
        %8400 = vmatpush1.bf16.xpose.msra.mxu0 %v8392
        %8401 = vmatprep.subr.bf16.mxu0 0
        %8402 = vmatpush1.bf16.xpose.msra.mxu0 0
        %8403 = vmatprep.subr.bf16.mxu0 0
        %8404 = vmatpush1.bf16.xpose.msra.mxu0 0
        %8405 = vmatprep.subr.bf16.mxu0 0
        %8406 = vmatpush1.bf16.xpose.msra.mxu0 0
        %8407 = vmatprep.subr.bf16.mxu0 0
        %8408 = vmatpush1.bf16.xpose.msra.mxu0 0
        %8409 = vmatprep.subr.bf16.mxu0 0
        %8410 = vmatpush1.bf16.xpose.msra.mxu0 0
        %8411 = vmatprep.subr.bf16.mxu0 0
        %8412 = vmatpush1.bf16.xpose.msra.mxu0 0
        %8413 = vmatprep.subr.bf16.mxu0 0
        %8414 = vmatpush1.bf16.xpose.msra.mxu0 0
        %8415 = vmatprep.subr.bf16.mxu0 0
        %8416 = vmatpush1.bf16.xpose.msra.mxu0 0
        %8417 = vmatprep.subr.bf16.mxu0 0
        %8418 = vmatpush1.bf16.xpose.msra.mxu0 0
        %8419 = vmatprep.subr.bf16.mxu0 0
        %8420 = vmatpush1.bf16.xpose.msra.mxu0 0
        %8421 = vmatprep.subr.bf16.mxu0 0
        %8422 = vmatpush1.bf16.xpose.msra.mxu0 0
        %8423 = vmatprep.subr.bf16.mxu0 0
        %8424 = vmatpush1.bf16.xpose.msra.mxu0 0
        %8425 = vmatprep.mubr.bf16.mxu0 0
        %8426 = vmatmul.mubr.bf16.gmra.mrb[0].mxu0 %v8385
        %v8427 = vpop.f32.mrb[0].mxu0
        %v8428 = vadd.f32 0.0, %v8427
        %v8429 = vpop.f32.mrb[0].mxu0
        %v8430 = vpop.f32.mrb[0].mxu0
        %v8431 = vadd.f32 0.0, %v8430
        %v8432 = vpop.f32.mrb[0].mxu0
        %8433 = vmatprep.mubr.bf16.mxu0 0
        %8434 = vmatmul.mubr.bf16.gmra.mrb[0].mxu0 %v8386
        %v8435 = vpop.f32.mrb[0].mxu0
        %v8436 = vadd.f32 0.0, %v8435
        %v8437 = vpop.f32.mrb[0].mxu0
        %v8438 = vpop.f32.mrb[0].mxu0
        %v8439 = vadd.f32 0.0, %v8438
        %v8440 = vpop.f32.mrb[0].mxu0
        %8441 = vmatprep.mubr.bf16.mxu0 0
        %8442 = vmatmul.mubr.bf16.gmra.mrb[0].mxu0 %v8387
        %v8443 = vpop.f32.mrb[0].mxu0
        %v8444 = vadd.f32 0.0, %v8443
        %v8445 = vpop.f32.mrb[0].mxu0
        %v8446 = vpop.f32.mrb[0].mxu0
        %v8447 = vadd.f32 0.0, %v8446
        %v8448 = vpop.f32.mrb[0].mxu0
        %8449 = vmatprep.mubr.bf16.mxu0 0
        %8450 = vmatmul.mubr.bf16.gmra.mrb[0].mxu0 %v8388
        %v8451 = vpop.f32.mrb[0].mxu0
        %v8452 = vadd.f32 0.0, %v8451
        %v8453 = vpop.f32.mrb[0].mxu0
        %v8454 = vpop.f32.mrb[0].mxu0
        %v8455 = vadd.f32 0.0, %v8454
        %v8456 = vpop.f32.mrb[0].mxu0
        %8457 = vdwg.mxu0
        %v8458 = vmul.f32 %v8428, 0.088388346
        %v8459 = vmul.f32 %v8431, 0.088388346
        %v8460 = vmul.f32 %v8436, 0.088388346
        %v8461 = vmul.f32 %v8439, 0.088388346
        %v8462 = vmul.f32 %v8444, 0.088388346
        %v8463 = vmul.f32 %v8447, 0.088388346
        %v8464 = vmul.f32 %v8452, 0.088388346
        %v8465 = vmul.f32 %v8455, 0.088388346
        %v8466 = vsel %vm3266, %v8458, -inf
        %8467 = vmax.xlane.f32.xlu0 %v8466
        %v8468 = vpop.xlane.xlu0 %8467
        %v8469 = vsel %vm3266, %v8459, -inf
        %8470 = vmax.xlane.f32.xlu0 %v8469
        %v8471 = vpop.xlane.xlu0 %8470
        %v8472 = vsel %vm3266, %v8460, -inf
        %8473 = vmax.xlane.f32.xlu0 %v8472
        %v8474 = vpop.xlane.xlu0 %8473
        %v8475 = vsel %vm3266, %v8461, -inf
        %8476 = vmax.xlane.f32.xlu0 %v8475
        %v8477 = vpop.xlane.xlu0 %8476
        %v8478 = vsel %vm3266, %v8462, -inf
        %8479 = vmax.xlane.f32.xlu0 %v8478
        %v8480 = vpop.xlane.xlu0 %8479
        %v8481 = vsel %vm3266, %v8463, -inf
        %8482 = vmax.xlane.f32.xlu0 %v8481
        %v8483 = vpop.xlane.xlu0 %8482
        %v8484 = vsel %vm3266, %v8464, -inf
        %8485 = vmax.xlane.f32.xlu0 %v8484
        %v8486 = vpop.xlane.xlu0 %8485
        %v8487 = vsel %vm3266, %v8465, -inf
        %8488 = vmax.xlane.f32.xlu0 %v8487
        %v8489 = vpop.xlane.xlu0 %8488
        %v8490 = vsub.f32 %v8458, %v8468
        %v8491 = vsub.f32 %v8459, %v8471
        %v8492 = vsub.f32 %v8460, %v8474
        %v8493 = vsub.f32 %v8461, %v8477
        %v8494 = vsub.f32 %v8462, %v8480
        %v8495 = vsub.f32 %v8463, %v8483
        %v8496 = vsub.f32 %v8464, %v8486
        %v8497 = vsub.f32 %v8465, %v8489
        %v8498 = vmul.f32 %v8490, 1.442695
        %v8499 = vpow.pop %v8498
        %v8500 = vmul.f32 %v8491, 1.442695
        %v8501 = vpow.pop %v8500
        %v8502 = vmul.f32 %v8492, 1.442695
        %v8503 = vpow.pop %v8502
        %v8504 = vmul.f32 %v8493, 1.442695
        %v8505 = vpow.pop %v8504
        %v8506 = vmul.f32 %v8494, 1.442695
        %v8507 = vpow.pop %v8506
        %v8508 = vmul.f32 %v8495, 1.442695
        %v8509 = vpow.pop %v8508
        %v8510 = vmul.f32 %v8496, 1.442695
        %v8511 = vpow.pop %v8510
        %v8512 = vmul.f32 %v8497, 1.442695
        %v8513 = vpow.pop %v8512
        %v8514 = vsel %vm3266, %v8499, 0.0
        %8515 = vadd.xlane.f32.xlu0 %v8514
        %v8516 = vpop.xlane.xlu0 %8515
        %v8517 = vsel %vm3266, %v8501, 0.0
        %8518 = vadd.xlane.f32.xlu0 %v8517
        %v8519 = vpop.xlane.xlu0 %8518
        %v8520 = vsel %vm3266, %v8503, 0.0
        %8521 = vadd.xlane.f32.xlu0 %v8520
        %v8522 = vpop.xlane.xlu0 %8521
        %v8523 = vsel %vm3266, %v8505, 0.0
        %8524 = vadd.xlane.f32.xlu0 %v8523
        %v8525 = vpop.xlane.xlu0 %8524
        %v8526 = vsel %vm3266, %v8507, 0.0
        %8527 = vadd.xlane.f32.xlu0 %v8526
        %v8528 = vpop.xlane.xlu0 %8527
        %v8529 = vsel %vm3266, %v8509, 0.0
        %8530 = vadd.xlane.f32.xlu0 %v8529
        %v8531 = vpop.xlane.xlu0 %8530
        %v8532 = vsel %vm3266, %v8511, 0.0
        %8533 = vadd.xlane.f32.xlu0 %v8532
        %v8534 = vpop.xlane.xlu0 %8533
        %v8535 = vsel %vm3266, %v8513, 0.0
        %8536 = vadd.xlane.f32.xlu0 %v8535
        %v8537 = vpop.xlane.xlu0 %8536
        %v8538 = vrcp.pop %v8516
        %v8539 = vrcp.pop %v8519
        %v8540 = vrcp.pop %v8522
        %v8541 = vrcp.pop %v8525
        %v8542 = vrcp.pop %v8528
        %v8543 = vrcp.pop %v8531
        %v8544 = vrcp.pop %v8534
        %v8545 = vrcp.pop %v8537
        %v8546 = vmul.f32 %v8499, %v8538
        %v8547 = vmul.f32 %v8501, %v8539
        %v8548 = vmul.f32 %v8503, %v8540
        %v8549 = vmul.f32 %v8505, %v8541
        %v8550 = vmul.f32 %v8507, %v8542
        %v8551 = vmul.f32 %v8509, %v8543
        %v8552 = vmul.f32 %v8511, %v8544
        %v8553 = vmul.f32 %v8513, %v8545
        %v8554 = vpack.c.bf16 %v8547, %v8546
        %v8555 = vpack.c.bf16 %v8549, %v8548
        %v8556 = vpack.c.bf16 %v8551, %v8550
        %v8557 = vpack.c.bf16 %v8553, %v8552
        %v8558 = vpack.c.bf16 %v8358, %v8355
        %v8559 = vpack.c.bf16 %v8366, %v8363
        %v8560 = vpack.c.bf16 %v8374, %v8371
        %v8561 = vpack.c.bf16 %v8382, %v8379
        %v8563 = vsel %vm3266, %v8554, 0
        %v8566 = vsel %vm3266, %v8555, 0
        %v8569 = vsel %vm3266, %v8556, 0
        %v8572 = vsel %vm3266, %v8557, 0
        %8574 = vmatprep.subr.bf16.mxu0 0
        %8575 = vmatpush1.bf16.msra.mxu0 %v8558
        %8576 = vmatprep.subr.bf16.mxu0 0
        %8577 = vmatpush1.bf16.msra.mxu0 %v8559
        %8578 = vmatprep.subr.bf16.mxu0 0
        %8579 = vmatpush1.bf16.msra.mxu0 %v8560
        %8580 = vmatprep.subr.bf16.mxu0 0
        %8581 = vmatpush1.bf16.msra.mxu0 %v8561
        %8582 = vmatprep.subr.bf16.mxu0 0
        %8583 = vmatpush1.bf16.msra.mxu0 0
        %8584 = vmatprep.subr.bf16.mxu0 0
        %8585 = vmatpush1.bf16.msra.mxu0 0
        %8586 = vmatprep.subr.bf16.mxu0 0
        %8587 = vmatpush1.bf16.msra.mxu0 0
        %8588 = vmatprep.subr.bf16.mxu0 0
        %8589 = vmatpush1.bf16.msra.mxu0 0
        %8590 = vmatprep.subr.bf16.mxu0 0
        %8591 = vmatpush1.bf16.msra.mxu0 0
        %8592 = vmatprep.subr.bf16.mxu0 0
        %8593 = vmatpush1.bf16.msra.mxu0 0
        %8594 = vmatprep.subr.bf16.mxu0 0
        %8595 = vmatpush1.bf16.msra.mxu0 0
        %8596 = vmatprep.subr.bf16.mxu0 0
        %8597 = vmatpush1.bf16.msra.mxu0 0
        %8598 = vmatprep.subr.bf16.mxu0 0
        %8599 = vmatpush1.bf16.msra.mxu0 0
        %8600 = vmatprep.subr.bf16.mxu0 0
        %8601 = vmatpush1.bf16.msra.mxu0 0
        %8602 = vmatprep.subr.bf16.mxu0 0
        %8603 = vmatpush1.bf16.msra.mxu0 0
        %8604 = vmatprep.subr.bf16.mxu0 0
        %8605 = vmatpush1.bf16.msra.mxu0 0
        %8606 = vmatprep.mubr.bf16.mxu0 0
        %8607 = vmatmul.mubr.bf16.gmra.mrb[0].mxu0 %v8563
        %v8608 = vpop.f32.mrb[0].mxu0
        %v8609 = vadd.f32 0.0, %v8608
        %v8610 = vpop.f32.mrb[0].mxu0
        %v8611 = vpop.f32.mrb[0].mxu0
        %v8612 = vadd.f32 0.0, %v8611
        %v8613 = vpop.f32.mrb[0].mxu0
        %8614 = vmatprep.mubr.bf16.mxu0 0
        %8615 = vmatmul.mubr.bf16.gmra.mrb[0].mxu0 %v8566
        %v8616 = vpop.f32.mrb[0].mxu0
        %v8617 = vadd.f32 0.0, %v8616
        %v8618 = vpop.f32.mrb[0].mxu0
        %v8619 = vpop.f32.mrb[0].mxu0
        %v8620 = vadd.f32 0.0, %v8619
        %v8621 = vpop.f32.mrb[0].mxu0
        %8622 = vmatprep.mubr.bf16.mxu0 0
        %8623 = vmatmul.mubr.bf16.gmra.mrb[0].mxu0 %v8569
        %v8624 = vpop.f32.mrb[0].mxu0
        %v8625 = vadd.f32 0.0, %v8624
        %v8626 = vpop.f32.mrb[0].mxu0
        %v8627 = vpop.f32.mrb[0].mxu0
        %v8628 = vadd.f32 0.0, %v8627
        %v8629 = vpop.f32.mrb[0].mxu0
        %8630 = vmatprep.mubr.bf16.mxu0 0
        %8631 = vmatmul.mubr.bf16.gmra.mrb[0].mxu0 %v8572
        %v8632 = vpop.f32.mrb[0].mxu0
        %v8633 = vadd.f32 0.0, %v8632
        %v8634 = vpop.f32.mrb[0].mxu0
        %v8635 = vpop.f32.mrb[0].mxu0
        %v8636 = vadd.f32 0.0, %v8635
        %v8637 = vpop.f32.mrb[0].mxu0
        %8638 = vdwg.mxu0
        %v8639 = vpack.c.bf16 %v8612, %v8609
        %v8640 = vpack.c.bf16 %v8620, %v8617
        %v8641 = vpack.c.bf16 %v8628, %v8625
        %v8642 = vpack.c.bf16 %v8636, %v8633
        %s8643 = scalar_lea.vmem %s8, 320
        %v8644 = vld [vmem:[%s8643] sm:$0xf]
        %v8645 = vld [vmem:[%s8643 + $0x4] sm:$0xf]
        %v8646 = vld [vmem:[%s8643 + $0x8] sm:$0xf]
        %v8647 = vld [vmem:[%s8643 + $0xc] sm:$0xf]
        %v8648 = vld [vmem:[%s8643 + $0x10] sm:$0xf]
        %v8649 = vld [vmem:[%s8643 + $0x14] sm:$0xf]
        %v8650 = vld [vmem:[%s8643 + $0x18] sm:$0xf]
        %v8651 = vld [vmem:[%s8643 + $0x1c] sm:$0xf]
        %v8652 = vld [vmem:[%s8643 + $0x20] sm:$0xf]
        %v8653 = vld [vmem:[%s8643 + $0x24] sm:$0xf]
        %v8654 = vld [vmem:[%s8643 + $0x28] sm:$0xf]
        %v8655 = vld [vmem:[%s8643 + $0x2c] sm:$0xf]
        %v8656 = vld [vmem:[%s8643 + $0x30] sm:$0xf]
        %v8657 = vld [vmem:[%s8643 + $0x34] sm:$0xf]
        %v8658 = vld [vmem:[%s8643 + $0x38] sm:$0xf]
        %v8659 = vld [vmem:[%s8643 + $0x3c] sm:$0xf]
        %s8660 = scalar_lea.vmem %s9, 5
        %v8661 = vld [vmem:[%s8660] sm:$0x1]
        %v8663 = vlaneseq
        %v8664 = vshrl.u32 %v8663, 7
        %v8665 = vsub.s32 0, %v8664
        %v8666 = vrot.slane %v8661, %v8665
        %v8684 = vunpack.c.l.b16 %v8644
        %v8685 = vunpack.c.l.b16 %v8645
        %v8686 = vunpack.c.l.b16 %v8646
        %v8687 = vunpack.c.l.b16 %v8647
        %v8688 = vunpack.c.l.b16 %v8648
        %v8689 = vunpack.c.l.b16 %v8649
        %v8690 = vunpack.c.l.b16 %v8650
        %v8691 = vunpack.c.l.b16 %v8651
        %v8692 = vunpack.c.l.b16 %v8652
        %v8693 = vunpack.c.l.b16 %v8653
        %v8694 = vunpack.c.l.b16 %v8654
        %v8695 = vunpack.c.l.b16 %v8655
        %v8696 = vunpack.c.l.b16 %v8656
        %v8697 = vunpack.c.l.b16 %v8657
        %v8698 = vunpack.c.l.b16 %v8658
        %v8699 = vunpack.c.l.b16 %v8659
        %v8700 = vpack.c.b16 %v8685, %v8684
        %v8701 = vpack.c.b16 %v8687, %v8686
        %v8702 = vpack.c.b16 %v8689, %v8688
        %v8703 = vpack.c.b16 %v8691, %v8690
        %v8704 = vpack.c.b16 %v8693, %v8692
        %v8705 = vpack.c.b16 %v8695, %v8694
        %v8706 = vpack.c.b16 %v8697, %v8696
        %v8707 = vpack.c.b16 %v8699, %v8698
        %8716 = vmatprep.subr.bf16.mxu0 0
        %8717 = vmatpush1.bf16.msra.mxu0 %v8700
        %8718 = vmatprep.subr.bf16.mxu0 0
        %8719 = vmatpush1.bf16.msra.mxu0 %v8701
        %8720 = vmatprep.subr.bf16.mxu0 0
        %8721 = vmatpush1.bf16.msra.mxu0 %v8702
        %8722 = vmatprep.subr.bf16.mxu0 0
        %8723 = vmatpush1.bf16.msra.mxu0 %v8703
        %8724 = vmatprep.subr.bf16.mxu0 0
        %8725 = vmatpush1.bf16.msra.mxu0 %v8704
        %8726 = vmatprep.subr.bf16.mxu0 0
        %8727 = vmatpush1.bf16.msra.mxu0 %v8705
        %8728 = vmatprep.subr.bf16.mxu0 0
        %8729 = vmatpush1.bf16.msra.mxu0 %v8706
        %8730 = vmatprep.subr.bf16.mxu0 0
        %8731 = vmatpush1.bf16.msra.mxu0 %v8707
        %8732 = vmatprep.subr.bf16.mxu0 0
        %8733 = vmatpush1.bf16.msra.mxu0 0
        %8734 = vmatprep.subr.bf16.mxu0 0
        %8735 = vmatpush1.bf16.msra.mxu0 0
        %8736 = vmatprep.subr.bf16.mxu0 0
        %8737 = vmatpush1.bf16.msra.mxu0 0
        %8738 = vmatprep.subr.bf16.mxu0 0
        %8739 = vmatpush1.bf16.msra.mxu0 0
        %8740 = vmatprep.subr.bf16.mxu0 0
        %8741 = vmatpush1.bf16.msra.mxu0 0
        %8742 = vmatprep.subr.bf16.mxu0 0
        %8743 = vmatpush1.bf16.msra.mxu0 0
        %8744 = vmatprep.subr.bf16.mxu0 0
        %8745 = vmatpush1.bf16.msra.mxu0 0
        %8746 = vmatprep.subr.bf16.mxu0 0
        %8747 = vmatpush1.bf16.msra.mxu0 0
        %8748 = vmatprep.mubr.bf16.mxu0 0
        %8749 = vmatmul.mubr.bf16.gmra.mrb[0].mxu0 %v8639
        %v8750 = vpop.f32.mrb[0].mxu0
        %v8751 = vadd.f32 %v8666, %v8750
        %v8752 = vpop.f32.mrb[0].mxu0
        %v8753 = vpop.f32.mrb[0].mxu0
        %v8754 = vadd.f32 %v8666, %v8753
        %v8755 = vpop.f32.mrb[0].mxu0
        %8756 = vmatprep.mubr.bf16.mxu0 0
        %8757 = vmatmul.mubr.bf16.gmra.mrb[0].mxu0 %v8640
        %v8758 = vpop.f32.mrb[0].mxu0
        %v8759 = vadd.f32 %v8666, %v8758
        %v8760 = vpop.f32.mrb[0].mxu0
        %v8761 = vpop.f32.mrb[0].mxu0
        %v8762 = vadd.f32 %v8666, %v8761
        %v8763 = vpop.f32.mrb[0].mxu0
        %8764 = vmatprep.mubr.bf16.mxu0 0
        %8765 = vmatmul.mubr.bf16.gmra.mrb[0].mxu0 %v8641
        %v8766 = vpop.f32.mrb[0].mxu0
        %v8767 = vadd.f32 %v8666, %v8766
        %v8768 = vpop.f32.mrb[0].mxu0
        %v8769 = vpop.f32.mrb[0].mxu0
        %v8770 = vadd.f32 %v8666, %v8769
        %v8771 = vpop.f32.mrb[0].mxu0
        %8772 = vmatprep.mubr.bf16.mxu0 0
        %8773 = vmatmul.mubr.bf16.gmra.mrb[0].mxu0 %v8642
        %v8774 = vpop.f32.mrb[0].mxu0
        %v8775 = vadd.f32 %v8666, %v8774
        %v8776 = vpop.f32.mrb[0].mxu0
        %v8777 = vpop.f32.mrb[0].mxu0
        %v8778 = vadd.f32 %v8666, %v8777
        %v8779 = vpop.f32.mrb[0].mxu0
        %8780 = vdwg.mxu0
        %v8781 = vadd.f32 %v8056, %v8751
        %v8782 = vadd.f32 %v8057, %v8754
        %v8783 = vadd.f32 %v8058, %v8759
        %v8784 = vadd.f32 %v8059, %v8762
        %v8785 = vadd.f32 %v8060, %v8767
        %v8786 = vadd.f32 %v8061, %v8770
        %v8787 = vadd.f32 %v8062, %v8775
        %v8788 = vadd.f32 %v8063, %v8778
        %v8789 = vpack.c.bf16 %v8782, %v8781
        %v8790 = vpack.c.bf16 %v8784, %v8783
        %v8791 = vpack.c.bf16 %v8786, %v8785
        %v8792 = vpack.c.bf16 %v8788, %v8787
        %s8793 = scalar_lea.vmem %s10, 320
        %v8794 = vld [vmem:[%s8793] sm:$0xf]
        %v8795 = vld [vmem:[%s8793 + $0x4] sm:$0xf]
        %v8796 = vld [vmem:[%s8793 + $0x8] sm:$0xf]
        %v8797 = vld [vmem:[%s8793 + $0xc] sm:$0xf]
        %v8798 = vld [vmem:[%s8793 + $0x10] sm:$0xf]
        %v8799 = vld [vmem:[%s8793 + $0x14] sm:$0xf]
        %v8800 = vld [vmem:[%s8793 + $0x18] sm:$0xf]
        %v8801 = vld [vmem:[%s8793 + $0x1c] sm:$0xf]
        %v8802 = vld [vmem:[%s8793 + $0x20] sm:$0xf]
        %v8803 = vld [vmem:[%s8793 + $0x24] sm:$0xf]
        %v8804 = vld [vmem:[%s8793 + $0x28] sm:$0xf]
        %v8805 = vld [vmem:[%s8793 + $0x2c] sm:$0xf]
        %v8806 = vld [vmem:[%s8793 + $0x30] sm:$0xf]
        %v8807 = vld [vmem:[%s8793 + $0x34] sm:$0xf]
        %v8808 = vld [vmem:[%s8793 + $0x38] sm:$0xf]
        %v8809 = vld [vmem:[%s8793 + $0x3c] sm:$0xf]
        %s8810 = scalar_lea.vmem %s11, 5
        %v8811 = vld [vmem:[%s8810] sm:$0x1]
        %v8813 = vlaneseq
        %v8814 = vshrl.u32 %v8813, 7
        %v8815 = vsub.s32 0, %v8814
        %v8816 = vrot.slane %v8811, %v8815
        %v8834 = vunpack.c.l.b16 %v8794
        %v8835 = vunpack.c.l.b16 %v8795
        %v8836 = vunpack.c.l.b16 %v8796
        %v8837 = vunpack.c.l.b16 %v8797
        %v8838 = vunpack.c.l.b16 %v8798
        %v8839 = vunpack.c.l.b16 %v8799
        %v8840 = vunpack.c.l.b16 %v8800
        %v8841 = vunpack.c.l.b16 %v8801
        %v8842 = vunpack.c.l.b16 %v8802
        %v8843 = vunpack.c.l.b16 %v8803
        %v8844 = vunpack.c.l.b16 %v8804
        %v8845 = vunpack.c.l.b16 %v8805
        %v8846 = vunpack.c.l.b16 %v8806
        %v8847 = vunpack.c.l.b16 %v8807
        %v8848 = vunpack.c.l.b16 %v8808
        %v8849 = vunpack.c.l.b16 %v8809
        %v8850 = vpack.c.b16 %v8835, %v8834
        %v8851 = vpack.c.b16 %v8837, %v8836
        %v8852 = vpack.c.b16 %v8839, %v8838
        %v8853 = vpack.c.b16 %v8841, %v8840
        %v8854 = vpack.c.b16 %v8843, %v8842
        %v8855 = vpack.c.b16 %v8845, %v8844
        %v8856 = vpack.c.b16 %v8847, %v8846
        %v8857 = vpack.c.b16 %v8849, %v8848
        %8866 = vmatprep.subr.bf16.mxu0 0
        %8867 = vmatpush1.bf16.msra.mxu0 %v8850
        %8868 = vmatprep.subr.bf16.mxu0 0
        %8869 = vmatpush1.bf16.msra.mxu0 %v8851
        %8870 = vmatprep.subr.bf16.mxu0 0
        %8871 = vmatpush1.bf16.msra.mxu0 %v8852
        %8872 = vmatprep.subr.bf16.mxu0 0
        %8873 = vmatpush1.bf16.msra.mxu0 %v8853
        %8874 = vmatprep.subr.bf16.mxu0 0
        %8875 = vmatpush1.bf16.msra.mxu0 %v8854
        %8876 = vmatprep.subr.bf16.mxu0 0
        %8877 = vmatpush1.bf16.msra.mxu0 %v8855
        %8878 = vmatprep.subr.bf16.mxu0 0
        %8879 = vmatpush1.bf16.msra.mxu0 %v8856
        %8880 = vmatprep.subr.bf16.mxu0 0
        %8881 = vmatpush1.bf16.msra.mxu0 %v8857
        %8882 = vmatprep.subr.bf16.mxu0 0
        %8883 = vmatpush1.bf16.msra.mxu0 0
        %8884 = vmatprep.subr.bf16.mxu0 0
        %8885 = vmatpush1.bf16.msra.mxu0 0
        %8886 = vmatprep.subr.bf16.mxu0 0
        %8887 = vmatpush1.bf16.msra.mxu0 0
        %8888 = vmatprep.subr.bf16.mxu0 0
        %8889 = vmatpush1.bf16.msra.mxu0 0
        %8890 = vmatprep.subr.bf16.mxu0 0
        %8891 = vmatpush1.bf16.msra.mxu0 0
        %8892 = vmatprep.subr.bf16.mxu0 0
        %8893 = vmatpush1.bf16.msra.mxu0 0
        %8894 = vmatprep.subr.bf16.mxu0 0
        %8895 = vmatpush1.bf16.msra.mxu0 0
        %8896 = vmatprep.subr.bf16.mxu0 0
        %8897 = vmatpush1.bf16.msra.mxu0 0
        %8898 = vmatprep.mubr.bf16.mxu0 0
        %8899 = vmatmul.mubr.bf16.gmra.mrb[0].mxu0 %v8789
        %v8900 = vpop.f32.mrb[0].mxu0
        %v8901 = vadd.f32 %v8816, %v8900
        %v8902 = vpop.f32.mrb[0].mxu0
        %v8903 = vpop.f32.mrb[0].mxu0
        %v8904 = vadd.f32 %v8816, %v8903
        %v8905 = vpop.f32.mrb[0].mxu0
        %8906 = vmatprep.mubr.bf16.mxu0 0
        %8907 = vmatmul.mubr.bf16.gmra.mrb[0].mxu0 %v8790
        %v8908 = vpop.f32.mrb[0].mxu0
        %v8909 = vadd.f32 %v8816, %v8908
        %v8910 = vpop.f32.mrb[0].mxu0
        %v8911 = vpop.f32.mrb[0].mxu0
        %v8912 = vadd.f32 %v8816, %v8911
        %v8913 = vpop.f32.mrb[0].mxu0
        %8914 = vmatprep.mubr.bf16.mxu0 0
        %8915 = vmatmul.mubr.bf16.gmra.mrb[0].mxu0 %v8791
        %v8916 = vpop.f32.mrb[0].mxu0
        %v8917 = vadd.f32 %v8816, %v8916
        %v8918 = vpop.f32.mrb[0].mxu0
        %v8919 = vpop.f32.mrb[0].mxu0
        %v8920 = vadd.f32 %v8816, %v8919
        %v8921 = vpop.f32.mrb[0].mxu0
        %8922 = vmatprep.mubr.bf16.mxu0 0
        %8923 = vmatmul.mubr.bf16.gmra.mrb[0].mxu0 %v8792
        %v8924 = vpop.f32.mrb[0].mxu0
        %v8925 = vadd.f32 %v8816, %v8924
        %v8926 = vpop.f32.mrb[0].mxu0
        %v8927 = vpop.f32.mrb[0].mxu0
        %v8928 = vadd.f32 %v8816, %v8927
        %v8929 = vpop.f32.mrb[0].mxu0
        %8930 = vdwg.mxu0
        %vm8931 = vcmp.gt.f32.partialorder %v8901, 0.0
        %vm8932 = vcmp.gt.f32.partialorder %v8904, 0.0
        %vm8933 = vcmp.gt.f32.partialorder %v8909, 0.0
        %vm8934 = vcmp.gt.f32.partialorder %v8912, 0.0
        %vm8935 = vcmp.gt.f32.partialorder %v8917, 0.0
        %vm8936 = vcmp.gt.f32.partialorder %v8920, 0.0
        %vm8937 = vcmp.gt.f32.partialorder %v8925, 0.0
        %vm8938 = vcmp.gt.f32.partialorder %v8928, 0.0
        %v8939 = vmul.f32 %v8901, 0.2
        %v8940 = vmul.f32 %v8904, 0.2
        %v8941 = vmul.f32 %v8909, 0.2
        %v8942 = vmul.f32 %v8912, 0.2
        %v8943 = vmul.f32 %v8917, 0.2
        %v8944 = vmul.f32 %v8920, 0.2
        %v8945 = vmul.f32 %v8925, 0.2
        %v8946 = vmul.f32 %v8928, 0.2
        %v8947 = vsel %vm8931, %v8901, %v8939
        %v8948 = vsel %vm8932, %v8904, %v8940
        %v8949 = vsel %vm8933, %v8909, %v8941
        %v8950 = vsel %vm8934, %v8912, %v8942
        %v8951 = vsel %vm8935, %v8917, %v8943
        %v8952 = vsel %vm8936, %v8920, %v8944
        %v8953 = vsel %vm8937, %v8925, %v8945
        %v8954 = vsel %vm8938, %v8928, %v8946
        %v8955 = vpack.c.bf16 %v8948, %v8947
        %v8956 = vpack.c.bf16 %v8950, %v8949
        %v8957 = vpack.c.bf16 %v8952, %v8951
        %v8958 = vpack.c.bf16 %v8954, %v8953
        %s8959 = scalar_lea.vmem [#allocation5], 320
        %v8960 = vld [vmem:[%s8959] sm:$0xf]
        %v8961 = vld [vmem:[%s8959 + $0x4] sm:$0xf]
        %v8962 = vld [vmem:[%s8959 + $0x8] sm:$0xf]
        %v8963 = vld [vmem:[%s8959 + $0xc] sm:$0xf]
        %v8964 = vld [vmem:[%s8959 + $0x10] sm:$0xf]
        %v8965 = vld [vmem:[%s8959 + $0x14] sm:$0xf]
        %v8966 = vld [vmem:[%s8959 + $0x18] sm:$0xf]
        %v8967 = vld [vmem:[%s8959 + $0x1c] sm:$0xf]
        %v8968 = vld [vmem:[%s8959 + $0x20] sm:$0xf]
        %v8969 = vld [vmem:[%s8959 + $0x24] sm:$0xf]
        %v8970 = vld [vmem:[%s8959 + $0x28] sm:$0xf]
        %v8971 = vld [vmem:[%s8959 + $0x2c] sm:$0xf]
        %v8972 = vld [vmem:[%s8959 + $0x30] sm:$0xf]
        %v8973 = vld [vmem:[%s8959 + $0x34] sm:$0xf]
        %v8974 = vld [vmem:[%s8959 + $0x38] sm:$0xf]
        %v8975 = vld [vmem:[%s8959 + $0x3c] sm:$0xf]
        %s8976 = scalar_lea.vmem %s13, 5
        %v8977 = vld [vmem:[%s8976] sm:$0x1]
        %v8979 = vlaneseq
        %v8980 = vshrl.u32 %v8979, 7
        %v8981 = vsub.s32 0, %v8980
        %v8982 = vrot.slane %v8977, %v8981
        %v9000 = vunpack.c.l.b16 %v8960
        %v9001 = vunpack.c.l.b16 %v8961
        %v9002 = vunpack.c.l.b16 %v8962
        %v9003 = vunpack.c.l.b16 %v8963
        %v9004 = vunpack.c.l.b16 %v8964
        %v9005 = vunpack.c.l.b16 %v8965
        %v9006 = vunpack.c.l.b16 %v8966
        %v9007 = vunpack.c.l.b16 %v8967
        %v9008 = vunpack.c.l.b16 %v8968
        %v9009 = vunpack.c.l.b16 %v8969
        %v9010 = vunpack.c.l.b16 %v8970
        %v9011 = vunpack.c.l.b16 %v8971
        %v9012 = vunpack.c.l.b16 %v8972
        %v9013 = vunpack.c.l.b16 %v8973
        %v9014 = vunpack.c.l.b16 %v8974
        %v9015 = vunpack.c.l.b16 %v8975
        %v9016 = vpack.c.b16 %v9001, %v9000
        %v9017 = vpack.c.b16 %v9003, %v9002
        %v9018 = vpack.c.b16 %v9005, %v9004
        %v9019 = vpack.c.b16 %v9007, %v9006
        %v9020 = vpack.c.b16 %v9009, %v9008
        %v9021 = vpack.c.b16 %v9011, %v9010
        %v9022 = vpack.c.b16 %v9013, %v9012
        %v9023 = vpack.c.b16 %v9015, %v9014
        %9032 = vmatprep.subr.bf16.mxu0 0
        %9033 = vmatpush1.bf16.msra.mxu0 %v9016
        %9034 = vmatprep.subr.bf16.mxu0 0
        %9035 = vmatpush1.bf16.msra.mxu0 %v9017
        %9036 = vmatprep.subr.bf16.mxu0 0
        %9037 = vmatpush1.bf16.msra.mxu0 %v9018
        %9038 = vmatprep.subr.bf16.mxu0 0
        %9039 = vmatpush1.bf16.msra.mxu0 %v9019
        %9040 = vmatprep.subr.bf16.mxu0 0
        %9041 = vmatpush1.bf16.msra.mxu0 %v9020
        %9042 = vmatprep.subr.bf16.mxu0 0
        %9043 = vmatpush1.bf16.msra.mxu0 %v9021
        %9044 = vmatprep.subr.bf16.mxu0 0
        %9045 = vmatpush1.bf16.msra.mxu0 %v9022
        %9046 = vmatprep.subr.bf16.mxu0 0
        %9047 = vmatpush1.bf16.msra.mxu0 %v9023
        %9048 = vmatprep.subr.bf16.mxu0 0
        %9049 = vmatpush1.bf16.msra.mxu0 0
        %9050 = vmatprep.subr.bf16.mxu0 0
        %9051 = vmatpush1.bf16.msra.mxu0 0
        %9052 = vmatprep.subr.bf16.mxu0 0
        %9053 = vmatpush1.bf16.msra.mxu0 0
        %9054 = vmatprep.subr.bf16.mxu0 0
        %9055 = vmatpush1.bf16.msra.mxu0 0
        %9056 = vmatprep.subr.bf16.mxu0 0
        %9057 = vmatpush1.bf16.msra.mxu0 0
        %9058 = vmatprep.subr.bf16.mxu0 0
        %9059 = vmatpush1.bf16.msra.mxu0 0
        %9060 = vmatprep.subr.bf16.mxu0 0
        %9061 = vmatpush1.bf16.msra.mxu0 0
        %9062 = vmatprep.subr.bf16.mxu0 0
        %9063 = vmatpush1.bf16.msra.mxu0 0
        %9064 = vmatprep.mubr.bf16.mxu0 0
        %9065 = vmatmul.mubr.bf16.gmra.mrb[0].mxu0 %v8955
        %v9066 = vpop.f32.mrb[0].mxu0
        %v9067 = vpop.f32.mrb[0].mxu0
        %v9068 = vpop.f32.mrb[0].mxu0
        %v9069 = vpop.f32.mrb[0].mxu0
        %9070 = vmatprep.mubr.bf16.mxu0 0
        %9071 = vmatmul.mubr.bf16.gmra.mrb[0].mxu0 %v8956
        %v9072 = vpop.f32.mrb[0].mxu0
        %v9073 = vpop.f32.mrb[0].mxu0
        %v9074 = vpop.f32.mrb[0].mxu0
        %v9075 = vpop.f32.mrb[0].mxu0
        %9076 = vmatprep.mubr.bf16.mxu0 0
        %9077 = vmatmul.mubr.bf16.gmra.mrb[0].mxu0 %v8957
        %v9078 = vpop.f32.mrb[0].mxu0
        %v9079 = vpop.f32.mrb[0].mxu0
        %v9080 = vpop.f32.mrb[0].mxu0
        %v9081 = vpop.f32.mrb[0].mxu0
        %9082 = vmatprep.mubr.bf16.mxu0 0
        %9083 = vmatmul.mubr.bf16.gmra.mrb[0].mxu0 %v8958
        %v9084 = vpop.f32.mrb[0].mxu0
        %v9085 = vpop.f32.mrb[0].mxu0
        %v9086 = vpop.f32.mrb[0].mxu0
        %v9087 = vadd.f32 %v8982, %v9086
        %v9088 = vpop.f32.mrb[0].mxu0
        %9089 = vdwg.mxu0
        %v9090 = vadd.f32 %v8788, %v9087
        %v9091 = vpack.c.bf16 %v9090, %v9090
        %v9092 = vld [vmem:[%s14] sm:$0xf]
        %v9093 = vld [vmem:[%s14 + $0x4] sm:$0xf]
        %v9094 = vld [vmem:[%s14 + $0x8] sm:$0xf]
        %v9095 = vld [vmem:[%s14 + $0xc] sm:$0xf]
        %v9096 = vld [vmem:[%s14 + $0x10] sm:$0xf]
        %v9097 = vld [vmem:[%s14 + $0x14] sm:$0xf]
        %v9098 = vld [vmem:[%s14 + $0x18] sm:$0xf]
        %v9099 = vld [vmem:[%s14 + $0x1c] sm:$0xf]
        %v9100 = vld [vmem:[%s14 + $0x20] sm:$0xf]
        %v9101 = vld [vmem:[%s14 + $0x24] sm:$0xf]
        %v9102 = vld [vmem:[%s14 + $0x28] sm:$0xf]
        %v9103 = vld [vmem:[%s14 + $0x2c] sm:$0xf]
        %v9104 = vld [vmem:[%s14 + $0x30] sm:$0xf]
        %v9105 = vld [vmem:[%s14 + $0x34] sm:$0xf]
        %v9106 = vld [vmem:[%s14 + $0x38] sm:$0xf]
        %v9107 = vld [vmem:[%s14 + $0x3c] sm:$0xf]
        %v9108 = vld [vmem:[%s15] sm:$0x1]
        %v9110 = vshrl.u32 %v9091, 16
        %v9112 = vrot.slane %v9110, 3
        %v9130 = vunpack.c.l.b16 %v9092
        %v9131 = vunpack.c.l.b16 %v9093
        %v9132 = vunpack.c.l.b16 %v9094
        %v9133 = vunpack.c.l.b16 %v9095
        %v9134 = vunpack.c.l.b16 %v9096
        %v9135 = vunpack.c.l.b16 %v9097
        %v9136 = vunpack.c.l.b16 %v9098
        %v9137 = vunpack.c.l.b16 %v9099
        %v9138 = vunpack.c.l.b16 %v9100
        %v9139 = vunpack.c.l.b16 %v9101
        %v9140 = vunpack.c.l.b16 %v9102
        %v9141 = vunpack.c.l.b16 %v9103
        %v9142 = vunpack.c.l.b16 %v9104
        %v9143 = vunpack.c.l.b16 %v9105
        %v9144 = vunpack.c.l.b16 %v9106
        %v9145 = vunpack.c.l.b16 %v9107
        %v9146 = vpack.c.b16 %v9131, %v9130
        %v9147 = vpack.c.b16 %v9133, %v9132
        %v9148 = vpack.c.b16 %v9135, %v9134
        %v9149 = vpack.c.b16 %v9137, %v9136
        %v9150 = vpack.c.b16 %v9139, %v9138
        %v9151 = vpack.c.b16 %v9141, %v9140
        %v9152 = vpack.c.b16 %v9143, %v9142
        %v9153 = vpack.c.b16 %v9145, %v9144
        %9162 = vmatprep.subr.bf16.mxu0 0
        %9163 = vmatpush1.bf16.msra.mxu0 %v9146
        %9164 = vmatprep.subr.bf16.mxu0 0
        %9165 = vmatpush1.bf16.msra.mxu0 %v9147
        %9166 = vmatprep.subr.bf16.mxu0 0
        %9167 = vmatpush1.bf16.msra.mxu0 %v9148
        %9168 = vmatprep.subr.bf16.mxu0 0
        %9169 = vmatpush1.bf16.msra.mxu0 %v9149
        %9170 = vmatprep.subr.bf16.mxu0 0
        %9171 = vmatpush1.bf16.msra.mxu0 %v9150
        %9172 = vmatprep.subr.bf16.mxu0 0
        %9173 = vmatpush1.bf16.msra.mxu0 %v9151
        %9174 = vmatprep.subr.bf16.mxu0 0
        %9175 = vmatpush1.bf16.msra.mxu0 %v9152
        %9176 = vmatprep.subr.bf16.mxu0 0
        %9177 = vmatpush1.bf16.msra.mxu0 %v9153
        %9178 = vmatprep.subr.bf16.mxu0 0
        %9179 = vmatpush1.bf16.msra.mxu0 0
        %9180 = vmatprep.subr.bf16.mxu0 0
        %9181 = vmatpush1.bf16.msra.mxu0 0
        %9182 = vmatprep.subr.bf16.mxu0 0
        %9183 = vmatpush1.bf16.msra.mxu0 0
        %9184 = vmatprep.subr.bf16.mxu0 0
        %9185 = vmatpush1.bf16.msra.mxu0 0
        %9186 = vmatprep.subr.bf16.mxu0 0
        %9187 = vmatpush1.bf16.msra.mxu0 0
        %9188 = vmatprep.subr.bf16.mxu0 0
        %9189 = vmatpush1.bf16.msra.mxu0 0
        %9190 = vmatprep.subr.bf16.mxu0 0
        %9191 = vmatpush1.bf16.msra.mxu0 0
        %9192 = vmatprep.subr.bf16.mxu0 0
        %9193 = vmatpush1.bf16.msra.mxu0 0
        %9194 = vmatprep.mubr.bf16.mxu0 0
        %9195 = vmatmul.mubr.bf16.gmra.mrb[0].mxu0 %v9112
        %v9196 = vpop.f32.mrb[0].mxu0
        %v9197 = vadd.f32 %v9108, %v9196
        %v9198 = vpop.f32.mrb[0].mxu0
        %v9199 = vpop.f32.mrb[0].mxu0
        %v9200 = vpop.f32.mrb[0].mxu0
        %9201 = vdwg.mxu0
        %9202 = vst [vmem:[%s546] sm:$0x1] %v9197
        %s9203 = sand.u32 %s381, 1
        %s9204 = scalar_lea.sflag [#allocation4], %s9203
        %s9205 = sand.u32 %s381, 1
        %s9206 = scalar_lea.vmem [#allocation7], %s9205
        // Predicated region
        $region93: #{encoder_forward.1} parent=83 // pred_check
          %p9207 = pneg %p391
        $region94: #{encoder_forward.1} parent=83 // pred_check_branch
          %9209 = sbr.rel (%p9207) target = $region96
        $region95: #{encoder_forward.1} parent=83 // pred_region
          %s9211 = ssub.s32 16, 16
          %9212 = vsyncadd %s9204, %s9211
          %s9213 = smul.addr %s32, 16
          %s9214 = scalar_lea.hbm %s16, %s9213
          %s9216 = sshll.u32 %s9206, 4
          %s9217 = int_to_ptr.vmem [resolvable:$true] %s9216
          %9219 = dma.vmem_to_hbm [thread:$0]  %s9217, 16, %s9214, %s9204
        $region96: #{encoder_forward.1} parent=83 // pred_fallthru
          _
      $region84: #{encoder_forward.1} parent=5 // pred_fallthru
        _
      %p9220 = scmp.le.s32.totalorder 2, %s27
      // Predicated region
      $region97: #{encoder_forward.1} parent=5 // pred_check
        %p9221 = pneg %p9220
      $region98: #{encoder_forward.1} parent=5 // pred_check_branch
        %9223 = sbr.rel (%p9221) target = $region100
      $region99: #{encoder_forward.1} parent=5 // pred_region
        %s9224 = ssub.s32 %s27, 2
        // Predicated region
        $region101: #{encoder_forward.1} parent=99 // pred_check
          %p9225 = pneg %p397
        $region102: #{encoder_forward.1} parent=99 // pred_check_branch
          %9227 = sbr.rel (%p9225) target = $region104
        $region103: #{encoder_forward.1} parent=99 // pred_region
          %s9228 = sand.u32 %s382, 1
          %s9229 = scalar_lea.sflag [#allocation4], %s9228
          %s9230 = sand.u32 %s382, 1
          %s9231 = scalar_lea.vmem [#allocation7], %s9230
          %9232 = dma.done %s9229, 16
        $region104: #{encoder_forward.1} parent=99 // pred_fallthru
          _
      $region100: #{encoder_forward.1} parent=5 // pred_fallthru
        _
    $region6: #{encoder_forward.1} parent=1 // loop_footer
      %s31 = sadd.s32 1, %s27
    $region7: #{encoder_forward.1} parent=1 // loop_footer_branch
      %26 = sbr.rel target = $region3
    $region8: #{encoder_forward.1} parent=1 // loop_exit
      _
    %9233 = vsyncpa [#allocation3], 1
    %s9234 = scalar_lea.sflag [#allocation3], 1
    %9235 = vsyncpa %s9234, 1
    %9236 = vsyncpa [#allocation6], 1
    %9237 = vsyncpa [#allocation4], 1
    %s9238 = scalar_lea.sflag [#allocation4], 1
    %9239 = vsyncpa %s9238, 1

</llo_original>
